<compile_context>
chip_gen: v7x
topology: tpu7x:2x2x1
jax: 0.10.0
libtpu: 0.0.40
codegen_flags: <defaults>
</compile_context>

<pallas_src>
import jax
import jax.numpy as jnp
from jax.experimental import pallas as pl
from jax.experimental.pallas import tpu as pltpu

# ----------------------------- configuration --------------------------------
# dim1 = C, segment S = C // segment_dim, dim2 = H*S, dim3 = W*S.
# The fused single-kernel layout assumes the module's square configuration
# (dim1 == dim2 == dim3, i.e. H == W == segment_dim), which these shapes satisfy.
B, H, W, C = 2, 8, 8, 32
SEGMENT_DIM = 8


def _spatial_transpose_matrix(h, w):
    """P with P[w*H + h, h*W + w] = 1, so (P @ X) reorders pixel rows (h,w)->(w,h)."""
    hw = h * w
    src = jnp.arange(hw)
    hh = src // w
    ww = src % w
    tgt = ww * h + hh
    return jnp.zeros((hw, hw), jnp.float32).at[tgt, src].set(1.0)


# ------------------------------- kernel --------------------------------------
def _make_kernel(Hn, Wn, seg, Sn):
    Cc = seg * Sn

    def kernel(x_ref, p_ref, q_ref, wcat_ref, wft_ref, bf_ref, wpt_ref, bp_ref,
               o_ref, cat1, cat2, xp2, wpix2):
        exact = jax.lax.Precision.HIGHEST   # permutation matmuls only (pure data movement)

        x = x_ref[...]                                        # (HW, C) pixel-major rows (h, w)

        # ---- spatially transposed copy of x for the w branch: rows (w, h) ----
        xp2[...] = jnp.dot(p_ref[...], x, precision=exact,
                           preferred_element_type=jnp.float32)

        # ---- assemble lane-dense LHS [h_in | w_in | x] for the branch matmuls ----
        #   h_in[(g, w), (h', s')] = x[(h', w), (g, s')]
        #   w_in[(g, h), (w', s')] = x[(h, w'), (g, s')] = xp2[(w', h), (g, s')]
        for g in range(seg):
            for a in range(Hn):
                cat1[g * Wn:(g + 1) * Wn, a * Sn:(a + 1) * Sn] = \
                    x_ref[a * Wn:(a + 1) * Wn, g * Sn:(g + 1) * Sn]
            for a in range(Wn):
                cat1[g * Hn:(g + 1) * Hn, Cc + a * Sn:Cc + (a + 1) * Sn] = \
                    xp2[a * Hn:(a + 1) * Hn, g * Sn:(g + 1) * Sn]
        cat1[:, 2 * Cc:3 * Cc] = x

        # ---- single block-diagonal MXU dot: [hp | wp | c3] = LHS @ blockdiag(WhT, WwT, Wc3T)
        big = jnp.dot(cat1[...], wcat_ref[...],
                      preferred_element_type=jnp.float32)     # (HW, 3C)
        cat1[...] = big                                       # stash for ref-sliced un-permutes

        # ---- un-permute h branch: H_pix[(h,w),(g,s)] = hp[(g,w),(h,s)] ----
        for a in range(Hn):                                   # a = h
            for g in range(seg):
                cat2[a * Wn:(a + 1) * Wn, g * Sn:(g + 1) * Sn] = \
                    cat1[g * Wn:(g + 1) * Wn, a * Sn:(a + 1) * Sn]

        # ---- un-permute w branch (still spatially transposed), then rows (w,h)->(h,w)
        for a in range(Wn):                                   # a = w
            for g in range(seg):
                wpix2[a * Hn:(a + 1) * Hn, g * Sn:(g + 1) * Sn] = \
                    cat1[g * Hn:(g + 1) * Hn, Cc + a * Sn:Cc + (a + 1) * Sn]
        cat2[:, Cc:2 * Cc] = jnp.dot(q_ref[...], wpix2[...], precision=exact,
                                     preferred_element_type=jnp.float32)

        # ---- c3 goes straight through ----
        cat2[:, 2 * Cc:3 * Cc] = cat1[:, 2 * Cc:3 * Cc]

        # ---- fuse (one 96-wide dot) + proj, both with bias ----
        fused = jnp.dot(cat2[...], wft_ref[...],
                        preferred_element_type=jnp.float32) + bf_ref[...]
        o_ref[...] = jnp.dot(fused, wpt_ref[...],
                             preferred_element_type=jnp.float32) + bp_ref[...]

    return kernel


# ------------------------------- wrapper --------------------------------------
def weighted_permute_mlp_forward(x, params):
    Bb, Hn, Wn, Cc = x.shape
    seg = SEGMENT_DIM
    Sn = Cc // seg
    HW = Hn * Wn
    assert Hn * Sn == Cc and Wn * Sn == Cc and seg * Sn == Cc, \
        "fused kernel assumes the module's square config (H == W == segment_dim)"

    # ---- host-side parameter packing (tiny, shape-static) ----
    P = _spatial_transpose_matrix(Hn, Wn)          # pixel rows (h,w) -> (w,h)
    Q = P.T                                        # pixel rows (w,h) -> (h,w)
    Z = jnp.zeros((Cc, Cc), jnp.float32)
    wcat = jnp.concatenate([                       # block-diagonal branch weights (3C, 3C)
        jnp.concatenate([params["Wh"].T, Z, Z], axis=1),
        jnp.concatenate([Z, params["Ww"].T, Z], axis=1),
        jnp.concatenate([Z, Z, params["Wc3"].T], axis=1)], axis=0)
    wft = params["Wf"].T                           # (3C, C)
    wpt = params["Wp"].T                           # (C, C)
    bf = params["bf"].reshape(1, Cc)
    bp = params["bp"].reshape(1, Cc)

    kernel = _make_kernel(Hn, Wn, seg, Sn)
    full = lambda b: (0, 0)
    out = pl.pallas_call(
        kernel,
        out_shape=jax.ShapeDtypeStruct((Bb, HW, Cc), jnp.float32),
        grid=(Bb,),
        in_specs=[
            pl.BlockSpec((None, HW, Cc), lambda b: (b, 0, 0)),   # x (pixel-major)
            pl.BlockSpec((HW, HW), full),                        # P
            pl.BlockSpec((HW, HW), full),                        # Q = P.T
            pl.BlockSpec((3 * Cc, 3 * Cc), full),                # blockdiag(WhT, WwT, Wc3T)
            pl.BlockSpec((3 * Cc, Cc), full),                    # fuse.weight.T
            pl.BlockSpec((1, Cc), full),                         # fuse.bias
            pl.BlockSpec((Cc, Cc), full),                        # proj.weight.T
            pl.BlockSpec((1, Cc), full),                         # proj.bias
        ],
        out_specs=pl.BlockSpec((None, HW, Cc), lambda b: (b, 0, 0)),
        scratch_shapes=[
            pltpu.VMEM((HW, 3 * Cc), jnp.float32),   # cat1: branch LHS, then [hp|wp|c3]
            pltpu.VMEM((HW, 3 * Cc), jnp.float32),   # cat2: fuse LHS [h|w|c3], pixel-major
            pltpu.VMEM((HW, Cc), jnp.float32),       # xp2 : spatially transposed x
            pltpu.VMEM((HW, Cc), jnp.float32),       # wpix2: w-branch out, rows (w,h)
        ],
        compiler_params=pltpu.CompilerParams(
            dimension_semantics=("parallel",)),      # v7x: split B over both TensorCores
    )(x.reshape(Bb, HW, Cc), P, Q, wcat, wft, bf, wpt, bp)
    return out.reshape(Bb, Hn, Wn, Cc)


# ------------------------------ pure-JAX reference ----------------------------
def reference_forward(x, p):
    Bb, Hn, Wn, Cc = x.shape
    seg = SEGMENT_DIM
    Sn = Cc // seg
    mm = lambda a, b: jnp.matmul(a, b, precision=jax.lax.Precision.HIGHEST)
    h = x.reshape(Bb, Hn, Wn, seg, Sn).transpose(0, 3, 2, 1, 4).reshape(Bb, seg, Wn, Hn * Sn)
    h = mm(h, p["Wh"].T).reshape(Bb, seg, Wn, Hn, Sn).transpose(0, 3, 2, 1, 4).reshape(Bb, Hn, Wn, Cc)
    w = x.reshape(Bb, Hn, Wn, seg, Sn).transpose(0, 1, 3, 2, 4).reshape(Bb, Hn, seg, Wn * Sn)
    w = mm(w, p["Ww"].T).reshape(Bb, Hn, seg, Wn, Sn).transpose(0, 1, 3, 2, 4).reshape(Bb, Hn, Wn, Cc)
    c3 = mm(x, p["Wc3"].T)
    xf = jnp.concatenate([h, w, c3], axis=3)
    out = mm(xf, p["Wf"].T) + p["bf"]
    out = mm(out, p["Wp"].T) + p["bp"]
    return out


# ------------------------------- parameters ----------------------------------
def init_params(key):
    d1 = C
    Sn = C // SEGMENT_DIM
    d2 = H * Sn
    d3 = W * Sn
    ks = jax.random.split(key, 7)

    def rnd(k, shape, scale=0.1):
        return scale * jax.random.normal(k, shape, dtype=jnp.float32)

    return {
        "Wh": rnd(ks[0], (d2, d2)),       # mlp_h.weight (bias=False)
        "Ww": rnd(ks[1], (d3, d3)),       # mlp_w.weight (bias=False)
        "Wc3": rnd(ks[2], (d1, d1)),      # mlp_c3.weight (bias=False)
        "Wf": rnd(ks[3], (d1, 3 * d1)),   # fuse.weight
        "bf": rnd(ks[4], (d1,), 0.05),    # fuse.bias
        "Wp": rnd(ks[5], (d1, d1)),       # proj.weight
        "bp": rnd(ks[6], (d1,), 0.05),    # proj.bias
    }


# --------------------------------- main ---------------------------------------
if __name__ == "__main__":
    key = jax.random.PRNGKey(0)
    kx, kp = jax.random.split(key)
    x = jax.random.normal(kx, (B, H, W, C), dtype=jnp.float32)
    params = init_params(kp)

    fwd = jax.jit(weighted_permute_mlp_forward)
    out = jax.block_until_ready(fwd(x, params))
    assert out.shape == (B, H, W, C)

    ref = jax.block_until_ready(reference_forward(x, params))
    err = float(jnp.max(jnp.abs(out - ref)))
    # Kernel compute dots run at default MXU precision (bf16 passes, f32 accum) per the
    # perf feedback; reference is full-f32, so allow ~1e-2 absolute slack.
    if not bool(jnp.allclose(out, ref, atol=1e-2, rtol=1e-2)):
        raise AssertionError(f"Pallas vs reference mismatch, max abs err = {err}")
    print("KERNEL_OK")
</pallas_src>

<mosaic_0001>
module attributes {stable_mosaic.version = 11 : i64} {
  func.func @kernel(%arg0: i32, %arg1: memref<1x64x32xf32, #tpu.memory_space<vmem>>, %arg2: memref<64x64xf32, #tpu.memory_space<vmem>>, %arg3: memref<64x64xf32, #tpu.memory_space<vmem>>, %arg4: memref<96x96xf32, #tpu.memory_space<vmem>>, %arg5: memref<96x32xf32, #tpu.memory_space<vmem>>, %arg6: memref<1x32xf32, #tpu.memory_space<vmem>>, %arg7: memref<32x32xf32, #tpu.memory_space<vmem>>, %arg8: memref<1x32xf32, #tpu.memory_space<vmem>>, %arg9: memref<1x64x32xf32, #tpu.memory_space<vmem>>, %arg10: memref<64x96xf32, #tpu.memory_space<vmem>>, %arg11: memref<64x96xf32, #tpu.memory_space<vmem>>, %arg12: memref<64x32xf32, #tpu.memory_space<vmem>>, %arg13: memref<64x32xf32, #tpu.memory_space<vmem>>) attributes {dimension_semantics = [#tpu.dimension_semantics<parallel>], iteration_bounds = array<i64: 2>, scalar_prefetch = 0 : i64, scratch_operands = 4 : i64, tpu.core_type = #tpu.core_type<tc>, window_params = [{transform_indices = @transform_0, window_bounds = array<i64: 1, 64, 32>}, {pipeline_mode = #tpu.pipeline_mode<synchronous>, transform_indices = @transform_1, window_bounds = array<i64: 64, 64>}, {pipeline_mode = #tpu.pipeline_mode<synchronous>, transform_indices = @transform_2, window_bounds = array<i64: 64, 64>}, {pipeline_mode = #tpu.pipeline_mode<synchronous>, transform_indices = @transform_3, window_bounds = array<i64: 96, 96>}, {pipeline_mode = #tpu.pipeline_mode<synchronous>, transform_indices = @transform_4, window_bounds = array<i64: 96, 32>}, {pipeline_mode = #tpu.pipeline_mode<synchronous>, transform_indices = @transform_5, window_bounds = array<i64: 1, 32>}, {pipeline_mode = #tpu.pipeline_mode<synchronous>, transform_indices = @transform_6, window_bounds = array<i64: 32, 32>}, {pipeline_mode = #tpu.pipeline_mode<synchronous>, transform_indices = @transform_7, window_bounds = array<i64: 1, 32>}, {transform_indices = @transform_8, window_bounds = array<i64: 1, 64, 32>}]} {
    %c0 = arith.constant 0 : index
    %c0_0 = arith.constant 0 : index
    %c0_1 = arith.constant 0 : index
    %0 = vector.load %arg1[%c0, %c0_0, %c0_1] : memref<1x64x32xf32, #tpu.memory_space<vmem>>, vector<1x64x32xf32>
    %1 = vector.shape_cast %0 : vector<1x64x32xf32> to vector<64x32xf32>
    %c0_2 = arith.constant 0 : index
    %c0_3 = arith.constant 0 : index
    %2 = vector.load %arg2[%c0_2, %c0_3] : memref<64x64xf32, #tpu.memory_space<vmem>>, vector<64x64xf32>
    %cst = arith.constant dense<0.000000e+00> : vector<64x32xf32>
    %3 = tpu.matmul %2, %1, %cst {dimension_numbers = #tpu.dot_dimension_numbers<[1], [0], [0], [1], [0, 0, 1, 1], [], []>, precision = #tpu.contract_precision<fp32>} : vector<64x64xf32>, vector<64x32xf32>, vector<64x32xf32> -> vector<64x32xf32>
    %c0_4 = arith.constant 0 : index
    %c0_5 = arith.constant 0 : index
    %4 = vector.load %arg12[%c0_4, %c0_5] : memref<64x32xf32, #tpu.memory_space<vmem>>, vector<64x32xf32>
    tpu.vector_store %arg12[%c0_4, %c0_5], %3 {strides = array<i32>} : memref<64x32xf32, #tpu.memory_space<vmem>>, vector<64x32xf32>,
    %c0_6 = arith.constant 0 : index
    %c0_7 = arith.constant 0 : index
    %c0_8 = arith.constant 0 : index
    %5 = vector.load %arg1[%c0_6, %c0_7, %c0_8] : memref<1x64x32xf32, #tpu.memory_space<vmem>>, vector<1x8x4xf32>
    %6 = vector.shape_cast %5 : vector<1x8x4xf32> to vector<8x4xf32>
    %c0_9 = arith.constant 0 : index
    %c0_10 = arith.constant 0 : index
    %7 = vector.load %arg10[%c0_9, %c0_10] : memref<64x96xf32, #tpu.memory_space<vmem>>, vector<8x4xf32>
    tpu.vector_store %arg10[%c0_9, %c0_10], %6 {strides = array<i32>} : memref<64x96xf32, #tpu.memory_space<vmem>>, vector<8x4xf32>,
    %c0_11 = arith.constant 0 : index
    %c8 = arith.constant 8 : index
    %c0_12 = arith.constant 0 : index
    %8 = vector.load %arg1[%c0_11, %c8, %c0_12] : memref<1x64x32xf32, #tpu.memory_space<vmem>>, vector<1x8x4xf32>
    %9 = vector.shape_cast %8 : vector<1x8x4xf32> to vector<8x4xf32>
    %c0_13 = arith.constant 0 : index
    %c4 = arith.constant 4 : index
    %10 = vector.load %arg10[%c0_13, %c4] : memref<64x96xf32, #tpu.memory_space<vmem>>, vector<8x4xf32>
    tpu.vector_store %arg10[%c0_13, %c4], %9 {strides = array<i32>} : memref<64x96xf32, #tpu.memory_space<vmem>>, vector<8x4xf32>,
    %c0_14 = arith.constant 0 : index
    %c16 = arith.constant 16 : index
    %c0_15 = arith.constant 0 : index
    %11 = vector.load %arg1[%c0_14, %c16, %c0_15] : memref<1x64x32xf32, #tpu.memory_space<vmem>>, vector<1x8x4xf32>
    %12 = vector.shape_cast %11 : vector<1x8x4xf32> to vector<8x4xf32>
    %c0_16 = arith.constant 0 : index
    %c8_17 = arith.constant 8 : index
    %13 = vector.load %arg10[%c0_16, %c8_17] : memref<64x96xf32, #tpu.memory_space<vmem>>, vector<8x4xf32>
    tpu.vector_store %arg10[%c0_16, %c8_17], %12 {strides = array<i32>} : memref<64x96xf32, #tpu.memory_space<vmem>>, vector<8x4xf32>,
    %c0_18 = arith.constant 0 : index
    %c24 = arith.constant 24 : index
    %c0_19 = arith.constant 0 : index
    %14 = vector.load %arg1[%c0_18, %c24, %c0_19] : memref<1x64x32xf32, #tpu.memory_space<vmem>>, vector<1x8x4xf32>
    %15 = vector.shape_cast %14 : vector<1x8x4xf32> to vector<8x4xf32>
    %c0_20 = arith.constant 0 : index
    %c12 = arith.constant 12 : index
    %16 = vector.load %arg10[%c0_20, %c12] : memref<64x96xf32, #tpu.memory_space<vmem>>, vector<8x4xf32>
    tpu.vector_store %arg10[%c0_20, %c12], %15 {strides = array<i32>} : memref<64x96xf32, #tpu.memory_space<vmem>>, vector<8x4xf32>,
    %c0_21 = arith.constant 0 : index
    %c32 = arith.constant 32 : index
    %c0_22 = arith.constant 0 : index
    %17 = vector.load %arg1[%c0_21, %c32, %c0_22] : memref<1x64x32xf32, #tpu.memory_space<vmem>>, vector<1x8x4xf32>
    %18 = vector.shape_cast %17 : vector<1x8x4xf32> to vector<8x4xf32>
    %c0_23 = arith.constant 0 : index
    %c16_24 = arith.constant 16 : index
    %19 = vector.load %arg10[%c0_23, %c16_24] : memref<64x96xf32, #tpu.memory_space<vmem>>, vector<8x4xf32>
    tpu.vector_store %arg10[%c0_23, %c16_24], %18 {strides = array<i32>} : memref<64x96xf32, #tpu.memory_space<vmem>>, vector<8x4xf32>,
    %c0_25 = arith.constant 0 : index
    %c40 = arith.constant 40 : index
    %c0_26 = arith.constant 0 : index
    %20 = vector.load %arg1[%c0_25, %c40, %c0_26] : memref<1x64x32xf32, #tpu.memory_space<vmem>>, vector<1x8x4xf32>
    %21 = vector.shape_cast %20 : vector<1x8x4xf32> to vector<8x4xf32>
    %c0_27 = arith.constant 0 : index
    %c20 = arith.constant 20 : index
    %22 = vector.load %arg10[%c0_27, %c20] : memref<64x96xf32, #tpu.memory_space<vmem>>, vector<8x4xf32>
    tpu.vector_store %arg10[%c0_27, %c20], %21 {strides = array<i32>} : memref<64x96xf32, #tpu.memory_space<vmem>>, vector<8x4xf32>,
    %c0_28 = arith.constant 0 : index
    %c48 = arith.constant 48 : index
    %c0_29 = arith.constant 0 : index
    %23 = vector.load %arg1[%c0_28, %c48, %c0_29] : memref<1x64x32xf32, #tpu.memory_space<vmem>>, vector<1x8x4xf32>
    %24 = vector.shape_cast %23 : vector<1x8x4xf32> to vector<8x4xf32>
    %c0_30 = arith.constant 0 : index
    %c24_31 = arith.constant 24 : index
    %25 = vector.load %arg10[%c0_30, %c24_31] : memref<64x96xf32, #tpu.memory_space<vmem>>, vector<8x4xf32>
    tpu.vector_store %arg10[%c0_30, %c24_31], %24 {strides = array<i32>} : memref<64x96xf32, #tpu.memory_space<vmem>>, vector<8x4xf32>,
    %c0_32 = arith.constant 0 : index
    %c56 = arith.constant 56 : index
    %c0_33 = arith.constant 0 : index
    %26 = vector.load %arg1[%c0_32, %c56, %c0_33] : memref<1x64x32xf32, #tpu.memory_space<vmem>>, vector<1x8x4xf32>
    %27 = vector.shape_cast %26 : vector<1x8x4xf32> to vector<8x4xf32>
    %c0_34 = arith.constant 0 : index
    %c28 = arith.constant 28 : index
    %28 = vector.load %arg10[%c0_34, %c28] : memref<64x96xf32, #tpu.memory_space<vmem>>, vector<8x4xf32>
    tpu.vector_store %arg10[%c0_34, %c28], %27 {strides = array<i32>} : memref<64x96xf32, #tpu.memory_space<vmem>>, vector<8x4xf32>,
    %c0_35 = arith.constant 0 : index
    %c0_36 = arith.constant 0 : index
    %29 = vector.load %arg12[%c0_35, %c0_36] : memref<64x32xf32, #tpu.memory_space<vmem>>, vector<8x4xf32>
    %c0_37 = arith.constant 0 : index
    %c32_38 = arith.constant 32 : index
    %30 = vector.load %arg10[%c0_37, %c32_38] : memref<64x96xf32, #tpu.memory_space<vmem>>, vector<8x4xf32>
    tpu.vector_store %arg10[%c0_37, %c32_38], %29 {strides = array<i32>} : memref<64x96xf32, #tpu.memory_space<vmem>>, vector<8x4xf32>,
    %c8_39 = arith.constant 8 : index
    %c0_40 = arith.constant 0 : index
    %31 = vector.load %arg12[%c8_39, %c0_40] : memref<64x32xf32, #tpu.memory_space<vmem>>, vector<8x4xf32>
    %c0_41 = arith.constant 0 : index
    %c36 = arith.constant 36 : index
    %32 = vector.load %arg10[%c0_41, %c36] : memref<64x96xf32, #tpu.memory_space<vmem>>, vector<8x4xf32>
    tpu.vector_store %arg10[%c0_41, %c36], %31 {strides = array<i32>} : memref<64x96xf32, #tpu.memory_space<vmem>>, vector<8x4xf32>,
    %c16_42 = arith.constant 16 : index
    %c0_43 = arith.constant 0 : index
    %33 = vector.load %arg12[%c16_42, %c0_43] : memref<64x32xf32, #tpu.memory_space<vmem>>, vector<8x4xf32>
    %c0_44 = arith.constant 0 : index
    %c40_45 = arith.constant 40 : index
    %34 = vector.load %arg10[%c0_44, %c40_45] : memref<64x96xf32, #tpu.memory_space<vmem>>, vector<8x4xf32>
    tpu.vector_store %arg10[%c0_44, %c40_45], %33 {strides = array<i32>} : memref<64x96xf32, #tpu.memory_space<vmem>>, vector<8x4xf32>,
    %c24_46 = arith.constant 24 : index
    %c0_47 = arith.constant 0 : index
    %35 = vector.load %arg12[%c24_46, %c0_47] : memref<64x32xf32, #tpu.memory_space<vmem>>, vector<8x4xf32>
    %c0_48 = arith.constant 0 : index
    %c44 = arith.constant 44 : index
    %36 = vector.load %arg10[%c0_48, %c44] : memref<64x96xf32, #tpu.memory_space<vmem>>, vector<8x4xf32>
    tpu.vector_store %arg10[%c0_48, %c44], %35 {strides = array<i32>} : memref<64x96xf32, #tpu.memory_space<vmem>>, vector<8x4xf32>,
    %c32_49 = arith.constant 32 : index
    %c0_50 = arith.constant 0 : index
    %37 = vector.load %arg12[%c32_49, %c0_50] : memref<64x32xf32, #tpu.memory_space<vmem>>, vector<8x4xf32>
    %c0_51 = arith.constant 0 : index
    %c48_52 = arith.constant 48 : index
    %38 = vector.load %arg10[%c0_51, %c48_52] : memref<64x96xf32, #tpu.memory_space<vmem>>, vector<8x4xf32>
    tpu.vector_store %arg10[%c0_51, %c48_52], %37 {strides = array<i32>} : memref<64x96xf32, #tpu.memory_space<vmem>>, vector<8x4xf32>,
    %c40_53 = arith.constant 40 : index
    %c0_54 = arith.constant 0 : index
    %39 = vector.load %arg12[%c40_53, %c0_54] : memref<64x32xf32, #tpu.memory_space<vmem>>, vector<8x4xf32>
    %c0_55 = arith.constant 0 : index
    %c52 = arith.constant 52 : index
    %40 = vector.load %arg10[%c0_55, %c52] : memref<64x96xf32, #tpu.memory_space<vmem>>, vector<8x4xf32>
    tpu.vector_store %arg10[%c0_55, %c52], %39 {strides = array<i32>} : memref<64x96xf32, #tpu.memory_space<vmem>>, vector<8x4xf32>,
    %c48_56 = arith.constant 48 : index
    %c0_57 = arith.constant 0 : index
    %41 = vector.load %arg12[%c48_56, %c0_57] : memref<64x32xf32, #tpu.memory_space<vmem>>, vector<8x4xf32>
    %c0_58 = arith.constant 0 : index
    %c56_59 = arith.constant 56 : index
    %42 = vector.load %arg10[%c0_58, %c56_59] : memref<64x96xf32, #tpu.memory_space<vmem>>, vector<8x4xf32>
    tpu.vector_store %arg10[%c0_58, %c56_59], %41 {strides = array<i32>} : memref<64x96xf32, #tpu.memory_space<vmem>>, vector<8x4xf32>,
    %c56_60 = arith.constant 56 : index
    %c0_61 = arith.constant 0 : index
    %43 = vector.load %arg12[%c56_60, %c0_61] : memref<64x32xf32, #tpu.memory_space<vmem>>, vector<8x4xf32>
    %c0_62 = arith.constant 0 : index
    %c60 = arith.constant 60 : index
    %44 = vector.load %arg10[%c0_62, %c60] : memref<64x96xf32, #tpu.memory_space<vmem>>, vector<8x4xf32>
    tpu.vector_store %arg10[%c0_62, %c60], %43 {strides = array<i32>} : memref<64x96xf32, #tpu.memory_space<vmem>>, vector<8x4xf32>,
    %c0_63 = arith.constant 0 : index
    %c0_64 = arith.constant 0 : index
    %c4_65 = arith.constant 4 : index
    %45 = vector.load %arg1[%c0_63, %c0_64, %c4_65] : memref<1x64x32xf32, #tpu.memory_space<vmem>>, vector<1x8x4xf32>
    %46 = vector.shape_cast %45 : vector<1x8x4xf32> to vector<8x4xf32>
    %c8_66 = arith.constant 8 : index
    %c0_67 = arith.constant 0 : index
    %47 = vector.load %arg10[%c8_66, %c0_67] : memref<64x96xf32, #tpu.memory_space<vmem>>, vector<8x4xf32>
    tpu.vector_store %arg10[%c8_66, %c0_67], %46 {strides = array<i32>} : memref<64x96xf32, #tpu.memory_space<vmem>>, vector<8x4xf32>,
    %c0_68 = arith.constant 0 : index
    %c8_69 = arith.constant 8 : index
    %c4_70 = arith.constant 4 : index
    %48 = vector.load %arg1[%c0_68, %c8_69, %c4_70] : memref<1x64x32xf32, #tpu.memory_space<vmem>>, vector<1x8x4xf32>
    %49 = vector.shape_cast %48 : vector<1x8x4xf32> to vector<8x4xf32>
    %c8_71 = arith.constant 8 : index
    %c4_72 = arith.constant 4 : index
    %50 = vector.load %arg10[%c8_71, %c4_72] : memref<64x96xf32, #tpu.memory_space<vmem>>, vector<8x4xf32>
    tpu.vector_store %arg10[%c8_71, %c4_72], %49 {strides = array<i32>} : memref<64x96xf32, #tpu.memory_space<vmem>>, vector<8x4xf32>,
    %c0_73 = arith.constant 0 : index
    %c16_74 = arith.constant 16 : index
    %c4_75 = arith.constant 4 : index
    %51 = vector.load %arg1[%c0_73, %c16_74, %c4_75] : memref<1x64x32xf32, #tpu.memory_space<vmem>>, vector<1x8x4xf32>
    %52 = vector.shape_cast %51 : vector<1x8x4xf32> to vector<8x4xf32>
    %c8_76 = arith.constant 8 : index
    %c8_77 = arith.constant 8 : index
    %53 = vector.load %arg10[%c8_76, %c8_77] : memref<64x96xf32, #tpu.memory_space<vmem>>, vector<8x4xf32>
    tpu.vector_store %arg10[%c8_76, %c8_77], %52 {strides = array<i32>} : memref<64x96xf32, #tpu.memory_space<vmem>>, vector<8x4xf32>,
    %c0_78 = arith.constant 0 : index
    %c24_79 = arith.constant 24 : index
    %c4_80 = arith.constant 4 : index
    %54 = vector.load %arg1[%c0_78, %c24_79, %c4_80] : memref<1x64x32xf32, #tpu.memory_space<vmem>>, vector<1x8x4xf32>
    %55 = vector.shape_cast %54 : vector<1x8x4xf32> to vector<8x4xf32>
    %c8_81 = arith.constant 8 : index
    %c12_82 = arith.constant 12 : index
    %56 = vector.load %arg10[%c8_81, %c12_82] : memref<64x96xf32, #tpu.memory_space<vmem>>, vector<8x4xf32>
    tpu.vector_store %arg10[%c8_81, %c12_82], %55 {strides = array<i32>} : memref<64x96xf32, #tpu.memory_space<vmem>>, vector<8x4xf32>,
    %c0_83 = arith.constant 0 : index
    %c32_84 = arith.constant 32 : index
    %c4_85 = arith.constant 4 : index
    %57 = vector.load %arg1[%c0_83, %c32_84, %c4_85] : memref<1x64x32xf32, #tpu.memory_space<vmem>>, vector<1x8x4xf32>
    %58 = vector.shape_cast %57 : vector<1x8x4xf32> to vector<8x4xf32>
    %c8_86 = arith.constant 8 : index
    %c16_87 = arith.constant 16 : index
    %59 = vector.load %arg10[%c8_86, %c16_87] : memref<64x96xf32, #tpu.memory_space<vmem>>, vector<8x4xf32>
    tpu.vector_store %arg10[%c8_86, %c16_87], %58 {strides = array<i32>} : memref<64x96xf32, #tpu.memory_space<vmem>>, vector<8x4xf32>,
    %c0_88 = arith.constant 0 : index
    %c40_89 = arith.constant 40 : index
    %c4_90 = arith.constant 4 : index
    %60 = vector.load %arg1[%c0_88, %c40_89, %c4_90] : memref<1x64x32xf32, #tpu.memory_space<vmem>>, vector<1x8x4xf32>
    %61 = vector.shape_cast %60 : vector<1x8x4xf32> to vector<8x4xf32>
    %c8_91 = arith.constant 8 : index
    %c20_92 = arith.constant 20 : index
    %62 = vector.load %arg10[%c8_91, %c20_92] : memref<64x96xf32, #tpu.memory_space<vmem>>, vector<8x4xf32>
    tpu.vector_store %arg10[%c8_91, %c20_92], %61 {strides = array<i32>} : memref<64x96xf32, #tpu.memory_space<vmem>>, vector<8x4xf32>,
    %c0_93 = arith.constant 0 : index
    %c48_94 = arith.constant 48 : index
    %c4_95 = arith.constant 4 : index
    %63 = vector.load %arg1[%c0_93, %c48_94, %c4_95] : memref<1x64x32xf32, #tpu.memory_space<vmem>>, vector<1x8x4xf32>
    %64 = vector.shape_cast %63 : vector<1x8x4xf32> to vector<8x4xf32>
    %c8_96 = arith.constant 8 : index
    %c24_97 = arith.constant 24 : index
    %65 = vector.load %arg10[%c8_96, %c24_97] : memref<64x96xf32, #tpu.memory_space<vmem>>, vector<8x4xf32>
    tpu.vector_store %arg10[%c8_96, %c24_97], %64 {strides = array<i32>} : memref<64x96xf32, #tpu.memory_space<vmem>>, vector<8x4xf32>,
    %c0_98 = arith.constant 0 : index
    %c56_99 = arith.constant 56 : index
    %c4_100 = arith.constant 4 : index
    %66 = vector.load %arg1[%c0_98, %c56_99, %c4_100] : memref<1x64x32xf32, #tpu.memory_space<vmem>>, vector<1x8x4xf32>
    %67 = vector.shape_cast %66 : vector<1x8x4xf32> to vector<8x4xf32>
    %c8_101 = arith.constant 8 : index
    %c28_102 = arith.constant 28 : index
    %68 = vector.load %arg10[%c8_101, %c28_102] : memref<64x96xf32, #tpu.memory_space<vmem>>, vector<8x4xf32>
    tpu.vector_store %arg10[%c8_101, %c28_102], %67 {strides = array<i32>} : memref<64x96xf32, #tpu.memory_space<vmem>>, vector<8x4xf32>,
    %c0_103 = arith.constant 0 : index
    %c4_104 = arith.constant 4 : index
    %69 = vector.load %arg12[%c0_103, %c4_104] : memref<64x32xf32, #tpu.memory_space<vmem>>, vector<8x4xf32>
    %c8_105 = arith.constant 8 : index
    %c32_106 = arith.constant 32 : index
    %70 = vector.load %arg10[%c8_105, %c32_106] : memref<64x96xf32, #tpu.memory_space<vmem>>, vector<8x4xf32>
    tpu.vector_store %arg10[%c8_105, %c32_106], %69 {strides = array<i32>} : memref<64x96xf32, #tpu.memory_space<vmem>>, vector<8x4xf32>,
    %c8_107 = arith.constant 8 : index
    %c4_108 = arith.constant 4 : index
    %71 = vector.load %arg12[%c8_107, %c4_108] : memref<64x32xf32, #tpu.memory_space<vmem>>, vector<8x4xf32>
    %c8_109 = arith.constant 8 : index
    %c36_110 = arith.constant 36 : index
    %72 = vector.load %arg10[%c8_109, %c36_110] : memref<64x96xf32, #tpu.memory_space<vmem>>, vector<8x4xf32>
    tpu.vector_store %arg10[%c8_109, %c36_110], %71 {strides = array<i32>} : memref<64x96xf32, #tpu.memory_space<vmem>>, vector<8x4xf32>,
    %c16_111 = arith.constant 16 : index
    %c4_112 = arith.constant 4 : index
    %73 = vector.load %arg12[%c16_111, %c4_112] : memref<64x32xf32, #tpu.memory_space<vmem>>, vector<8x4xf32>
    %c8_113 = arith.constant 8 : index
    %c40_114 = arith.constant 40 : index
    %74 = vector.load %arg10[%c8_113, %c40_114] : memref<64x96xf32, #tpu.memory_space<vmem>>, vector<8x4xf32>
    tpu.vector_store %arg10[%c8_113, %c40_114], %73 {strides = array<i32>} : memref<64x96xf32, #tpu.memory_space<vmem>>, vector<8x4xf32>,
    %c24_115 = arith.constant 24 : index
    %c4_116 = arith.constant 4 : index
    %75 = vector.load %arg12[%c24_115, %c4_116] : memref<64x32xf32, #tpu.memory_space<vmem>>, vector<8x4xf32>
    %c8_117 = arith.constant 8 : index
    %c44_118 = arith.constant 44 : index
    %76 = vector.load %arg10[%c8_117, %c44_118] : memref<64x96xf32, #tpu.memory_space<vmem>>, vector<8x4xf32>
    tpu.vector_store %arg10[%c8_117, %c44_118], %75 {strides = array<i32>} : memref<64x96xf32, #tpu.memory_space<vmem>>, vector<8x4xf32>,
    %c32_119 = arith.constant 32 : index
    %c4_120 = arith.constant 4 : index
    %77 = vector.load %arg12[%c32_119, %c4_120] : memref<64x32xf32, #tpu.memory_space<vmem>>, vector<8x4xf32>
    %c8_121 = arith.constant 8 : index
    %c48_122 = arith.constant 48 : index
    %78 = vector.load %arg10[%c8_121, %c48_122] : memref<64x96xf32, #tpu.memory_space<vmem>>, vector<8x4xf32>
    tpu.vector_store %arg10[%c8_121, %c48_122], %77 {strides = array<i32>} : memref<64x96xf32, #tpu.memory_space<vmem>>, vector<8x4xf32>,
    %c40_123 = arith.constant 40 : index
    %c4_124 = arith.constant 4 : index
    %79 = vector.load %arg12[%c40_123, %c4_124] : memref<64x32xf32, #tpu.memory_space<vmem>>, vector<8x4xf32>
    %c8_125 = arith.constant 8 : index
    %c52_126 = arith.constant 52 : index
    %80 = vector.load %arg10[%c8_125, %c52_126] : memref<64x96xf32, #tpu.memory_space<vmem>>, vector<8x4xf32>
    tpu.vector_store %arg10[%c8_125, %c52_126], %79 {strides = array<i32>} : memref<64x96xf32, #tpu.memory_space<vmem>>, vector<8x4xf32>,
    %c48_127 = arith.constant 48 : index
    %c4_128 = arith.constant 4 : index
    %81 = vector.load %arg12[%c48_127, %c4_128] : memref<64x32xf32, #tpu.memory_space<vmem>>, vector<8x4xf32>
    %c8_129 = arith.constant 8 : index
    %c56_130 = arith.constant 56 : index
    %82 = vector.load %arg10[%c8_129, %c56_130] : memref<64x96xf32, #tpu.memory_space<vmem>>, vector<8x4xf32>
    tpu.vector_store %arg10[%c8_129, %c56_130], %81 {strides = array<i32>} : memref<64x96xf32, #tpu.memory_space<vmem>>, vector<8x4xf32>,
    %c56_131 = arith.constant 56 : index
    %c4_132 = arith.constant 4 : index
    %83 = vector.load %arg12[%c56_131, %c4_132] : memref<64x32xf32, #tpu.memory_space<vmem>>, vector<8x4xf32>
    %c8_133 = arith.constant 8 : index
    %c60_134 = arith.constant 60 : index
    %84 = vector.load %arg10[%c8_133, %c60_134] : memref<64x96xf32, #tpu.memory_space<vmem>>, vector<8x4xf32>
    tpu.vector_store %arg10[%c8_133, %c60_134], %83 {strides = array<i32>} : memref<64x96xf32, #tpu.memory_space<vmem>>, vector<8x4xf32>,
    %c0_135 = arith.constant 0 : index
    %c0_136 = arith.constant 0 : index
    %c8_137 = arith.constant 8 : index
    %85 = vector.load %arg1[%c0_135, %c0_136, %c8_137] : memref<1x64x32xf32, #tpu.memory_space<vmem>>, vector<1x8x4xf32>
    %86 = vector.shape_cast %85 : vector<1x8x4xf32> to vector<8x4xf32>
    %c16_138 = arith.constant 16 : index
    %c0_139 = arith.constant 0 : index
    %87 = vector.load %arg10[%c16_138, %c0_139] : memref<64x96xf32, #tpu.memory_space<vmem>>, vector<8x4xf32>
    tpu.vector_store %arg10[%c16_138, %c0_139], %86 {strides = array<i32>} : memref<64x96xf32, #tpu.memory_space<vmem>>, vector<8x4xf32>,
    %c0_140 = arith.constant 0 : index
    %c8_141 = arith.constant 8 : index
    %c8_142 = arith.constant 8 : index
    %88 = vector.load %arg1[%c0_140, %c8_141, %c8_142] : memref<1x64x32xf32, #tpu.memory_space<vmem>>, vector<1x8x4xf32>
    %89 = vector.shape_cast %88 : vector<1x8x4xf32> to vector<8x4xf32>
    %c16_143 = arith.constant 16 : index
    %c4_144 = arith.constant 4 : index
    %90 = vector.load %arg10[%c16_143, %c4_144] : memref<64x96xf32, #tpu.memory_space<vmem>>, vector<8x4xf32>
    tpu.vector_store %arg10[%c16_143, %c4_144], %89 {strides = array<i32>} : memref<64x96xf32, #tpu.memory_space<vmem>>, vector<8x4xf32>,
    %c0_145 = arith.constant 0 : index
    %c16_146 = arith.constant 16 : index
    %c8_147 = arith.constant 8 : index
    %91 = vector.load %arg1[%c0_145, %c16_146, %c8_147] : memref<1x64x32xf32, #tpu.memory_space<vmem>>, vector<1x8x4xf32>
    %92 = vector.shape_cast %91 : vector<1x8x4xf32> to vector<8x4xf32>
    %c16_148 = arith.constant 16 : index
    %c8_149 = arith.constant 8 : index
    %93 = vector.load %arg10[%c16_148, %c8_149] : memref<64x96xf32, #tpu.memory_space<vmem>>, vector<8x4xf32>
    tpu.vector_store %arg10[%c16_148, %c8_149], %92 {strides = array<i32>} : memref<64x96xf32, #tpu.memory_space<vmem>>, vector<8x4xf32>,
    %c0_150 = arith.constant 0 : index
    %c24_151 = arith.constant 24 : index
    %c8_152 = arith.constant 8 : index
    %94 = vector.load %arg1[%c0_150, %c24_151, %c8_152] : memref<1x64x32xf32, #tpu.memory_space<vmem>>, vector<1x8x4xf32>
    %95 = vector.shape_cast %94 : vector<1x8x4xf32> to vector<8x4xf32>
    %c16_153 = arith.constant 16 : index
    %c12_154 = arith.constant 12 : index
    %96 = vector.load %arg10[%c16_153, %c12_154] : memref<64x96xf32, #tpu.memory_space<vmem>>, vector<8x4xf32>
    tpu.vector_store %arg10[%c16_153, %c12_154], %95 {strides = array<i32>} : memref<64x96xf32, #tpu.memory_space<vmem>>, vector<8x4xf32>,
    %c0_155 = arith.constant 0 : index
    %c32_156 = arith.constant 32 : index
    %c8_157 = arith.constant 8 : index
    %97 = vector.load %arg1[%c0_155, %c32_156, %c8_157] : memref<1x64x32xf32, #tpu.memory_space<vmem>>, vector<1x8x4xf32>
    %98 = vector.shape_cast %97 : vector<1x8x4xf32> to vector<8x4xf32>
    %c16_158 = arith.constant 16 : index
    %c16_159 = arith.constant 16 : index
    %99 = vector.load %arg10[%c16_158, %c16_159] : memref<64x96xf32, #tpu.memory_space<vmem>>, vector<8x4xf32>
    tpu.vector_store %arg10[%c16_158, %c16_159], %98 {strides = array<i32>} : memref<64x96xf32, #tpu.memory_space<vmem>>, vector<8x4xf32>,
    %c0_160 = arith.constant 0 : index
    %c40_161 = arith.constant 40 : index
    %c8_162 = arith.constant 8 : index
    %100 = vector.load %arg1[%c0_160, %c40_161, %c8_162] : memref<1x64x32xf32, #tpu.memory_space<vmem>>, vector<1x8x4xf32>
    %101 = vector.shape_cast %100 : vector<1x8x4xf32> to vector<8x4xf32>
    %c16_163 = arith.constant 16 : index
    %c20_164 = arith.constant 20 : index
    %102 = vector.load %arg10[%c16_163, %c20_164] : memref<64x96xf32, #tpu.memory_space<vmem>>, vector<8x4xf32>
    tpu.vector_store %arg10[%c16_163, %c20_164], %101 {strides = array<i32>} : memref<64x96xf32, #tpu.memory_space<vmem>>, vector<8x4xf32>,
    %c0_165 = arith.constant 0 : index
    %c48_166 = arith.constant 48 : index
    %c8_167 = arith.constant 8 : index
    %103 = vector.load %arg1[%c0_165, %c48_166, %c8_167] : memref<1x64x32xf32, #tpu.memory_space<vmem>>, vector<1x8x4xf32>
    %104 = vector.shape_cast %103 : vector<1x8x4xf32> to vector<8x4xf32>
    %c16_168 = arith.constant 16 : index
    %c24_169 = arith.constant 24 : index
    %105 = vector.load %arg10[%c16_168, %c24_169] : memref<64x96xf32, #tpu.memory_space<vmem>>, vector<8x4xf32>
    tpu.vector_store %arg10[%c16_168, %c24_169], %104 {strides = array<i32>} : memref<64x96xf32, #tpu.memory_space<vmem>>, vector<8x4xf32>,
    %c0_170 = arith.constant 0 : index
    %c56_171 = arith.constant 56 : index
    %c8_172 = arith.constant 8 : index
    %106 = vector.load %arg1[%c0_170, %c56_171, %c8_172] : memref<1x64x32xf32, #tpu.memory_space<vmem>>, vector<1x8x4xf32>
    %107 = vector.shape_cast %106 : vector<1x8x4xf32> to vector<8x4xf32>
    %c16_173 = arith.constant 16 : index
    %c28_174 = arith.constant 28 : index
    %108 = vector.load %arg10[%c16_173, %c28_174] : memref<64x96xf32, #tpu.memory_space<vmem>>, vector<8x4xf32>
    tpu.vector_store %arg10[%c16_173, %c28_174], %107 {strides = array<i32>} : memref<64x96xf32, #tpu.memory_space<vmem>>, vector<8x4xf32>,
    %c0_175 = arith.constant 0 : index
    %c8_176 = arith.constant 8 : index
    %109 = vector.load %arg12[%c0_175, %c8_176] : memref<64x32xf32, #tpu.memory_space<vmem>>, vector<8x4xf32>
    %c16_177 = arith.constant 16 : index
    %c32_178 = arith.constant 32 : index
    %110 = vector.load %arg10[%c16_177, %c32_178] : memref<64x96xf32, #tpu.memory_space<vmem>>, vector<8x4xf32>
    tpu.vector_store %arg10[%c16_177, %c32_178], %109 {strides = array<i32>} : memref<64x96xf32, #tpu.memory_space<vmem>>, vector<8x4xf32>,
    %c8_179 = arith.constant 8 : index
    %c8_180 = arith.constant 8 : index
    %111 = vector.load %arg12[%c8_179, %c8_180] : memref<64x32xf32, #tpu.memory_space<vmem>>, vector<8x4xf32>
    %c16_181 = arith.constant 16 : index
    %c36_182 = arith.constant 36 : index
    %112 = vector.load %arg10[%c16_181, %c36_182] : memref<64x96xf32, #tpu.memory_space<vmem>>, vector<8x4xf32>
    tpu.vector_store %arg10[%c16_181, %c36_182], %111 {strides = array<i32>} : memref<64x96xf32, #tpu.memory_space<vmem>>, vector<8x4xf32>,
    %c16_183 = arith.constant 16 : index
    %c8_184 = arith.constant 8 : index
    %113 = vector.load %arg12[%c16_183, %c8_184] : memref<64x32xf32, #tpu.memory_space<vmem>>, vector<8x4xf32>
    %c16_185 = arith.constant 16 : index
    %c40_186 = arith.constant 40 : index
    %114 = vector.load %arg10[%c16_185, %c40_186] : memref<64x96xf32, #tpu.memory_space<vmem>>, vector<8x4xf32>
    tpu.vector_store %arg10[%c16_185, %c40_186], %113 {strides = array<i32>} : memref<64x96xf32, #tpu.memory_space<vmem>>, vector<8x4xf32>,
    %c24_187 = arith.constant 24 : index
    %c8_188 = arith.constant 8 : index
    %115 = vector.load %arg12[%c24_187, %c8_188] : memref<64x32xf32, #tpu.memory_space<vmem>>, vector<8x4xf32>
    %c16_189 = arith.constant 16 : index
    %c44_190 = arith.constant 44 : index
    %116 = vector.load %arg10[%c16_189, %c44_190] : memref<64x96xf32, #tpu.memory_space<vmem>>, vector<8x4xf32>
    tpu.vector_store %arg10[%c16_189, %c44_190], %115 {strides = array<i32>} : memref<64x96xf32, #tpu.memory_space<vmem>>, vector<8x4xf32>,
    %c32_191 = arith.constant 32 : index
    %c8_192 = arith.constant 8 : index
    %117 = vector.load %arg12[%c32_191, %c8_192] : memref<64x32xf32, #tpu.memory_space<vmem>>, vector<8x4xf32>
    %c16_193 = arith.constant 16 : index
    %c48_194 = arith.constant 48 : index
    %118 = vector.load %arg10[%c16_193, %c48_194] : memref<64x96xf32, #tpu.memory_space<vmem>>, vector<8x4xf32>
    tpu.vector_store %arg10[%c16_193, %c48_194], %117 {strides = array<i32>} : memref<64x96xf32, #tpu.memory_space<vmem>>, vector<8x4xf32>,
    %c40_195 = arith.constant 40 : index
    %c8_196 = arith.constant 8 : index
    %119 = vector.load %arg12[%c40_195, %c8_196] : memref<64x32xf32, #tpu.memory_space<vmem>>, vector<8x4xf32>
    %c16_197 = arith.constant 16 : index
    %c52_198 = arith.constant 52 : index
    %120 = vector.load %arg10[%c16_197, %c52_198] : memref<64x96xf32, #tpu.memory_space<vmem>>, vector<8x4xf32>
    tpu.vector_store %arg10[%c16_197, %c52_198], %119 {strides = array<i32>} : memref<64x96xf32, #tpu.memory_space<vmem>>, vector<8x4xf32>,
    %c48_199 = arith.constant 48 : index
    %c8_200 = arith.constant 8 : index
    %121 = vector.load %arg12[%c48_199, %c8_200] : memref<64x32xf32, #tpu.memory_space<vmem>>, vector<8x4xf32>
    %c16_201 = arith.constant 16 : index
    %c56_202 = arith.constant 56 : index
    %122 = vector.load %arg10[%c16_201, %c56_202] : memref<64x96xf32, #tpu.memory_space<vmem>>, vector<8x4xf32>
    tpu.vector_store %arg10[%c16_201, %c56_202], %121 {strides = array<i32>} : memref<64x96xf32, #tpu.memory_space<vmem>>, vector<8x4xf32>,
    %c56_203 = arith.constant 56 : index
    %c8_204 = arith.constant 8 : index
    %123 = vector.load %arg12[%c56_203, %c8_204] : memref<64x32xf32, #tpu.memory_space<vmem>>, vector<8x4xf32>
    %c16_205 = arith.constant 16 : index
    %c60_206 = arith.constant 60 : index
    %124 = vector.load %arg10[%c16_205, %c60_206] : memref<64x96xf32, #tpu.memory_space<vmem>>, vector<8x4xf32>
    tpu.vector_store %arg10[%c16_205, %c60_206], %123 {strides = array<i32>} : memref<64x96xf32, #tpu.memory_space<vmem>>, vector<8x4xf32>,
    %c0_207 = arith.constant 0 : index
    %c0_208 = arith.constant 0 : index
    %c12_209 = arith.constant 12 : index
    %125 = vector.load %arg1[%c0_207, %c0_208, %c12_209] : memref<1x64x32xf32, #tpu.memory_space<vmem>>, vector<1x8x4xf32>
    %126 = vector.shape_cast %125 : vector<1x8x4xf32> to vector<8x4xf32>
    %c24_210 = arith.constant 24 : index
    %c0_211 = arith.constant 0 : index
    %127 = vector.load %arg10[%c24_210, %c0_211] : memref<64x96xf32, #tpu.memory_space<vmem>>, vector<8x4xf32>
    tpu.vector_store %arg10[%c24_210, %c0_211], %126 {strides = array<i32>} : memref<64x96xf32, #tpu.memory_space<vmem>>, vector<8x4xf32>,
    %c0_212 = arith.constant 0 : index
    %c8_213 = arith.constant 8 : index
    %c12_214 = arith.constant 12 : index
    %128 = vector.load %arg1[%c0_212, %c8_213, %c12_214] : memref<1x64x32xf32, #tpu.memory_space<vmem>>, vector<1x8x4xf32>
    %129 = vector.shape_cast %128 : vector<1x8x4xf32> to vector<8x4xf32>
    %c24_215 = arith.constant 24 : index
    %c4_216 = arith.constant 4 : index
    %130 = vector.load %arg10[%c24_215, %c4_216] : memref<64x96xf32, #tpu.memory_space<vmem>>, vector<8x4xf32>
    tpu.vector_store %arg10[%c24_215, %c4_216], %129 {strides = array<i32>} : memref<64x96xf32, #tpu.memory_space<vmem>>, vector<8x4xf32>,
    %c0_217 = arith.constant 0 : index
    %c16_218 = arith.constant 16 : index
    %c12_219 = arith.constant 12 : index
    %131 = vector.load %arg1[%c0_217, %c16_218, %c12_219] : memref<1x64x32xf32, #tpu.memory_space<vmem>>, vector<1x8x4xf32>
    %132 = vector.shape_cast %131 : vector<1x8x4xf32> to vector<8x4xf32>
    %c24_220 = arith.constant 24 : index
    %c8_221 = arith.constant 8 : index
    %133 = vector.load %arg10[%c24_220, %c8_221] : memref<64x96xf32, #tpu.memory_space<vmem>>, vector<8x4xf32>
    tpu.vector_store %arg10[%c24_220, %c8_221], %132 {strides = array<i32>} : memref<64x96xf32, #tpu.memory_space<vmem>>, vector<8x4xf32>,
    %c0_222 = arith.constant 0 : index
    %c24_223 = arith.constant 24 : index
    %c12_224 = arith.constant 12 : index
    %134 = vector.load %arg1[%c0_222, %c24_223, %c12_224] : memref<1x64x32xf32, #tpu.memory_space<vmem>>, vector<1x8x4xf32>
    %135 = vector.shape_cast %134 : vector<1x8x4xf32> to vector<8x4xf32>
    %c24_225 = arith.constant 24 : index
    %c12_226 = arith.constant 12 : index
    %136 = vector.load %arg10[%c24_225, %c12_226] : memref<64x96xf32, #tpu.memory_space<vmem>>, vector<8x4xf32>
    tpu.vector_store %arg10[%c24_225, %c12_226], %135 {strides = array<i32>} : memref<64x96xf32, #tpu.memory_space<vmem>>, vector<8x4xf32>,
    %c0_227 = arith.constant 0 : index
    %c32_228 = arith.constant 32 : index
    %c12_229 = arith.constant 12 : index
    %137 = vector.load %arg1[%c0_227, %c32_228, %c12_229] : memref<1x64x32xf32, #tpu.memory_space<vmem>>, vector<1x8x4xf32>
    %138 = vector.shape_cast %137 : vector<1x8x4xf32> to vector<8x4xf32>
    %c24_230 = arith.constant 24 : index
    %c16_231 = arith.constant 16 : index
    %139 = vector.load %arg10[%c24_230, %c16_231] : memref<64x96xf32, #tpu.memory_space<vmem>>, vector<8x4xf32>
    tpu.vector_store %arg10[%c24_230, %c16_231], %138 {strides = array<i32>} : memref<64x96xf32, #tpu.memory_space<vmem>>, vector<8x4xf32>,
    %c0_232 = arith.constant 0 : index
    %c40_233 = arith.constant 40 : index
    %c12_234 = arith.constant 12 : index
    %140 = vector.load %arg1[%c0_232, %c40_233, %c12_234] : memref<1x64x32xf32, #tpu.memory_space<vmem>>, vector<1x8x4xf32>
    %141 = vector.shape_cast %140 : vector<1x8x4xf32> to vector<8x4xf32>
    %c24_235 = arith.constant 24 : index
    %c20_236 = arith.constant 20 : index
    %142 = vector.load %arg10[%c24_235, %c20_236] : memref<64x96xf32, #tpu.memory_space<vmem>>, vector<8x4xf32>
    tpu.vector_store %arg10[%c24_235, %c20_236], %141 {strides = array<i32>} : memref<64x96xf32, #tpu.memory_space<vmem>>, vector<8x4xf32>,
    %c0_237 = arith.constant 0 : index
    %c48_238 = arith.constant 48 : index
    %c12_239 = arith.constant 12 : index
    %143 = vector.load %arg1[%c0_237, %c48_238, %c12_239] : memref<1x64x32xf32, #tpu.memory_space<vmem>>, vector<1x8x4xf32>
    %144 = vector.shape_cast %143 : vector<1x8x4xf32> to vector<8x4xf32>
    %c24_240 = arith.constant 24 : index
    %c24_241 = arith.constant 24 : index
    %145 = vector.load %arg10[%c24_240, %c24_241] : memref<64x96xf32, #tpu.memory_space<vmem>>, vector<8x4xf32>
    tpu.vector_store %arg10[%c24_240, %c24_241], %144 {strides = array<i32>} : memref<64x96xf32, #tpu.memory_space<vmem>>, vector<8x4xf32>,
    %c0_242 = arith.constant 0 : index
    %c56_243 = arith.constant 56 : index
    %c12_244 = arith.constant 12 : index
    %146 = vector.load %arg1[%c0_242, %c56_243, %c12_244] : memref<1x64x32xf32, #tpu.memory_space<vmem>>, vector<1x8x4xf32>
    %147 = vector.shape_cast %146 : vector<1x8x4xf32> to vector<8x4xf32>
    %c24_245 = arith.constant 24 : index
    %c28_246 = arith.constant 28 : index
    %148 = vector.load %arg10[%c24_245, %c28_246] : memref<64x96xf32, #tpu.memory_space<vmem>>, vector<8x4xf32>
    tpu.vector_store %arg10[%c24_245, %c28_246], %147 {strides = array<i32>} : memref<64x96xf32, #tpu.memory_space<vmem>>, vector<8x4xf32>,
    %c0_247 = arith.constant 0 : index
    %c12_248 = arith.constant 12 : index
    %149 = vector.load %arg12[%c0_247, %c12_248] : memref<64x32xf32, #tpu.memory_space<vmem>>, vector<8x4xf32>
    %c24_249 = arith.constant 24 : index
    %c32_250 = arith.constant 32 : index
    %150 = vector.load %arg10[%c24_249, %c32_250] : memref<64x96xf32, #tpu.memory_space<vmem>>, vector<8x4xf32>
    tpu.vector_store %arg10[%c24_249, %c32_250], %149 {strides = array<i32>} : memref<64x96xf32, #tpu.memory_space<vmem>>, vector<8x4xf32>,
    %c8_251 = arith.constant 8 : index
    %c12_252 = arith.constant 12 : index
    %151 = vector.load %arg12[%c8_251, %c12_252] : memref<64x32xf32, #tpu.memory_space<vmem>>, vector<8x4xf32>
    %c24_253 = arith.constant 24 : index
    %c36_254 = arith.constant 36 : index
    %152 = vector.load %arg10[%c24_253, %c36_254] : memref<64x96xf32, #tpu.memory_space<vmem>>, vector<8x4xf32>
    tpu.vector_store %arg10[%c24_253, %c36_254], %151 {strides = array<i32>} : memref<64x96xf32, #tpu.memory_space<vmem>>, vector<8x4xf32>,
    %c16_255 = arith.constant 16 : index
    %c12_256 = arith.constant 12 : index
    %153 = vector.load %arg12[%c16_255, %c12_256] : memref<64x32xf32, #tpu.memory_space<vmem>>, vector<8x4xf32>
    %c24_257 = arith.constant 24 : index
    %c40_258 = arith.constant 40 : index
    %154 = vector.load %arg10[%c24_257, %c40_258] : memref<64x96xf32, #tpu.memory_space<vmem>>, vector<8x4xf32>
    tpu.vector_store %arg10[%c24_257, %c40_258], %153 {strides = array<i32>} : memref<64x96xf32, #tpu.memory_space<vmem>>, vector<8x4xf32>,
    %c24_259 = arith.constant 24 : index
    %c12_260 = arith.constant 12 : index
    %155 = vector.load %arg12[%c24_259, %c12_260] : memref<64x32xf32, #tpu.memory_space<vmem>>, vector<8x4xf32>
    %c24_261 = arith.constant 24 : index
    %c44_262 = arith.constant 44 : index
    %156 = vector.load %arg10[%c24_261, %c44_262] : memref<64x96xf32, #tpu.memory_space<vmem>>, vector<8x4xf32>
    tpu.vector_store %arg10[%c24_261, %c44_262], %155 {strides = array<i32>} : memref<64x96xf32, #tpu.memory_space<vmem>>, vector<8x4xf32>,
    %c32_263 = arith.constant 32 : index
    %c12_264 = arith.constant 12 : index
    %157 = vector.load %arg12[%c32_263, %c12_264] : memref<64x32xf32, #tpu.memory_space<vmem>>, vector<8x4xf32>
    %c24_265 = arith.constant 24 : index
    %c48_266 = arith.constant 48 : index
    %158 = vector.load %arg10[%c24_265, %c48_266] : memref<64x96xf32, #tpu.memory_space<vmem>>, vector<8x4xf32>
    tpu.vector_store %arg10[%c24_265, %c48_266], %157 {strides = array<i32>} : memref<64x96xf32, #tpu.memory_space<vmem>>, vector<8x4xf32>,
    %c40_267 = arith.constant 40 : index
    %c12_268 = arith.constant 12 : index
    %159 = vector.load %arg12[%c40_267, %c12_268] : memref<64x32xf32, #tpu.memory_space<vmem>>, vector<8x4xf32>
    %c24_269 = arith.constant 24 : index
    %c52_270 = arith.constant 52 : index
    %160 = vector.load %arg10[%c24_269, %c52_270] : memref<64x96xf32, #tpu.memory_space<vmem>>, vector<8x4xf32>
    tpu.vector_store %arg10[%c24_269, %c52_270], %159 {strides = array<i32>} : memref<64x96xf32, #tpu.memory_space<vmem>>, vector<8x4xf32>,
    %c48_271 = arith.constant 48 : index
    %c12_272 = arith.constant 12 : index
    %161 = vector.load %arg12[%c48_271, %c12_272] : memref<64x32xf32, #tpu.memory_space<vmem>>, vector<8x4xf32>
    %c24_273 = arith.constant 24 : index
    %c56_274 = arith.constant 56 : index
    %162 = vector.load %arg10[%c24_273, %c56_274] : memref<64x96xf32, #tpu.memory_space<vmem>>, vector<8x4xf32>
    tpu.vector_store %arg10[%c24_273, %c56_274], %161 {strides = array<i32>} : memref<64x96xf32, #tpu.memory_space<vmem>>, vector<8x4xf32>,
    %c56_275 = arith.constant 56 : index
    %c12_276 = arith.constant 12 : index
    %163 = vector.load %arg12[%c56_275, %c12_276] : memref<64x32xf32, #tpu.memory_space<vmem>>, vector<8x4xf32>
    %c24_277 = arith.constant 24 : index
    %c60_278 = arith.constant 60 : index
    %164 = vector.load %arg10[%c24_277, %c60_278] : memref<64x96xf32, #tpu.memory_space<vmem>>, vector<8x4xf32>
    tpu.vector_store %arg10[%c24_277, %c60_278], %163 {strides = array<i32>} : memref<64x96xf32, #tpu.memory_space<vmem>>, vector<8x4xf32>,
    %c0_279 = arith.constant 0 : index
    %c0_280 = arith.constant 0 : index
    %c16_281 = arith.constant 16 : index
    %165 = vector.load %arg1[%c0_279, %c0_280, %c16_281] : memref<1x64x32xf32, #tpu.memory_space<vmem>>, vector<1x8x4xf32>
    %166 = vector.shape_cast %165 : vector<1x8x4xf32> to vector<8x4xf32>
    %c32_282 = arith.constant 32 : index
    %c0_283 = arith.constant 0 : index
    %167 = vector.load %arg10[%c32_282, %c0_283] : memref<64x96xf32, #tpu.memory_space<vmem>>, vector<8x4xf32>
    tpu.vector_store %arg10[%c32_282, %c0_283], %166 {strides = array<i32>} : memref<64x96xf32, #tpu.memory_space<vmem>>, vector<8x4xf32>,
    %c0_284 = arith.constant 0 : index
    %c8_285 = arith.constant 8 : index
    %c16_286 = arith.constant 16 : index
    %168 = vector.load %arg1[%c0_284, %c8_285, %c16_286] : memref<1x64x32xf32, #tpu.memory_space<vmem>>, vector<1x8x4xf32>
    %169 = vector.shape_cast %168 : vector<1x8x4xf32> to vector<8x4xf32>
    %c32_287 = arith.constant 32 : index
    %c4_288 = arith.constant 4 : index
    %170 = vector.load %arg10[%c32_287, %c4_288] : memref<64x96xf32, #tpu.memory_space<vmem>>, vector<8x4xf32>
    tpu.vector_store %arg10[%c32_287, %c4_288], %169 {strides = array<i32>} : memref<64x96xf32, #tpu.memory_space<vmem>>, vector<8x4xf32>,
    %c0_289 = arith.constant 0 : index
    %c16_290 = arith.constant 16 : index
    %c16_291 = arith.constant 16 : index
    %171 = vector.load %arg1[%c0_289, %c16_290, %c16_291] : memref<1x64x32xf32, #tpu.memory_space<vmem>>, vector<1x8x4xf32>
    %172 = vector.shape_cast %171 : vector<1x8x4xf32> to vector<8x4xf32>
    %c32_292 = arith.constant 32 : index
    %c8_293 = arith.constant 8 : index
    %173 = vector.load %arg10[%c32_292, %c8_293] : memref<64x96xf32, #tpu.memory_space<vmem>>, vector<8x4xf32>
    tpu.vector_store %arg10[%c32_292, %c8_293], %172 {strides = array<i32>} : memref<64x96xf32, #tpu.memory_space<vmem>>, vector<8x4xf32>,
    %c0_294 = arith.constant 0 : index
    %c24_295 = arith.constant 24 : index
    %c16_296 = arith.constant 16 : index
    %174 = vector.load %arg1[%c0_294, %c24_295, %c16_296] : memref<1x64x32xf32, #tpu.memory_space<vmem>>, vector<1x8x4xf32>
    %175 = vector.shape_cast %174 : vector<1x8x4xf32> to vector<8x4xf32>
    %c32_297 = arith.constant 32 : index
    %c12_298 = arith.constant 12 : index
    %176 = vector.load %arg10[%c32_297, %c12_298] : memref<64x96xf32, #tpu.memory_space<vmem>>, vector<8x4xf32>
    tpu.vector_store %arg10[%c32_297, %c12_298], %175 {strides = array<i32>} : memref<64x96xf32, #tpu.memory_space<vmem>>, vector<8x4xf32>,
    %c0_299 = arith.constant 0 : index
    %c32_300 = arith.constant 32 : index
    %c16_301 = arith.constant 16 : index
    %177 = vector.load %arg1[%c0_299, %c32_300, %c16_301] : memref<1x64x32xf32, #tpu.memory_space<vmem>>, vector<1x8x4xf32>
    %178 = vector.shape_cast %177 : vector<1x8x4xf32> to vector<8x4xf32>
    %c32_302 = arith.constant 32 : index
    %c16_303 = arith.constant 16 : index
    %179 = vector.load %arg10[%c32_302, %c16_303] : memref<64x96xf32, #tpu.memory_space<vmem>>, vector<8x4xf32>
    tpu.vector_store %arg10[%c32_302, %c16_303], %178 {strides = array<i32>} : memref<64x96xf32, #tpu.memory_space<vmem>>, vector<8x4xf32>,
    %c0_304 = arith.constant 0 : index
    %c40_305 = arith.constant 40 : index
    %c16_306 = arith.constant 16 : index
    %180 = vector.load %arg1[%c0_304, %c40_305, %c16_306] : memref<1x64x32xf32, #tpu.memory_space<vmem>>, vector<1x8x4xf32>
    %181 = vector.shape_cast %180 : vector<1x8x4xf32> to vector<8x4xf32>
    %c32_307 = arith.constant 32 : index
    %c20_308 = arith.constant 20 : index
    %182 = vector.load %arg10[%c32_307, %c20_308] : memref<64x96xf32, #tpu.memory_space<vmem>>, vector<8x4xf32>
    tpu.vector_store %arg10[%c32_307, %c20_308], %181 {strides = array<i32>} : memref<64x96xf32, #tpu.memory_space<vmem>>, vector<8x4xf32>,
    %c0_309 = arith.constant 0 : index
    %c48_310 = arith.constant 48 : index
    %c16_311 = arith.constant 16 : index
    %183 = vector.load %arg1[%c0_309, %c48_310, %c16_311] : memref<1x64x32xf32, #tpu.memory_space<vmem>>, vector<1x8x4xf32>
    %184 = vector.shape_cast %183 : vector<1x8x4xf32> to vector<8x4xf32>
    %c32_312 = arith.constant 32 : index
    %c24_313 = arith.constant 24 : index
    %185 = vector.load %arg10[%c32_312, %c24_313] : memref<64x96xf32, #tpu.memory_space<vmem>>, vector<8x4xf32>
    tpu.vector_store %arg10[%c32_312, %c24_313], %184 {strides = array<i32>} : memref<64x96xf32, #tpu.memory_space<vmem>>, vector<8x4xf32>,
    %c0_314 = arith.constant 0 : index
    %c56_315 = arith.constant 56 : index
    %c16_316 = arith.constant 16 : index
    %186 = vector.load %arg1[%c0_314, %c56_315, %c16_316] : memref<1x64x32xf32, #tpu.memory_space<vmem>>, vector<1x8x4xf32>
    %187 = vector.shape_cast %186 : vector<1x8x4xf32> to vector<8x4xf32>
    %c32_317 = arith.constant 32 : index
    %c28_318 = arith.constant 28 : index
    %188 = vector.load %arg10[%c32_317, %c28_318] : memref<64x96xf32, #tpu.memory_space<vmem>>, vector<8x4xf32>
    tpu.vector_store %arg10[%c32_317, %c28_318], %187 {strides = array<i32>} : memref<64x96xf32, #tpu.memory_space<vmem>>, vector<8x4xf32>,
    %c0_319 = arith.constant 0 : index
    %c16_320 = arith.constant 16 : index
    %189 = vector.load %arg12[%c0_319, %c16_320] : memref<64x32xf32, #tpu.memory_space<vmem>>, vector<8x4xf32>
    %c32_321 = arith.constant 32 : index
    %c32_322 = arith.constant 32 : index
    %190 = vector.load %arg10[%c32_321, %c32_322] : memref<64x96xf32, #tpu.memory_space<vmem>>, vector<8x4xf32>
    tpu.vector_store %arg10[%c32_321, %c32_322], %189 {strides = array<i32>} : memref<64x96xf32, #tpu.memory_space<vmem>>, vector<8x4xf32>,
    %c8_323 = arith.constant 8 : index
    %c16_324 = arith.constant 16 : index
    %191 = vector.load %arg12[%c8_323, %c16_324] : memref<64x32xf32, #tpu.memory_space<vmem>>, vector<8x4xf32>
    %c32_325 = arith.constant 32 : index
    %c36_326 = arith.constant 36 : index
    %192 = vector.load %arg10[%c32_325, %c36_326] : memref<64x96xf32, #tpu.memory_space<vmem>>, vector<8x4xf32>
    tpu.vector_store %arg10[%c32_325, %c36_326], %191 {strides = array<i32>} : memref<64x96xf32, #tpu.memory_space<vmem>>, vector<8x4xf32>,
    %c16_327 = arith.constant 16 : index
    %c16_328 = arith.constant 16 : index
    %193 = vector.load %arg12[%c16_327, %c16_328] : memref<64x32xf32, #tpu.memory_space<vmem>>, vector<8x4xf32>
    %c32_329 = arith.constant 32 : index
    %c40_330 = arith.constant 40 : index
    %194 = vector.load %arg10[%c32_329, %c40_330] : memref<64x96xf32, #tpu.memory_space<vmem>>, vector<8x4xf32>
    tpu.vector_store %arg10[%c32_329, %c40_330], %193 {strides = array<i32>} : memref<64x96xf32, #tpu.memory_space<vmem>>, vector<8x4xf32>,
    %c24_331 = arith.constant 24 : index
    %c16_332 = arith.constant 16 : index
    %195 = vector.load %arg12[%c24_331, %c16_332] : memref<64x32xf32, #tpu.memory_space<vmem>>, vector<8x4xf32>
    %c32_333 = arith.constant 32 : index
    %c44_334 = arith.constant 44 : index
    %196 = vector.load %arg10[%c32_333, %c44_334] : memref<64x96xf32, #tpu.memory_space<vmem>>, vector<8x4xf32>
    tpu.vector_store %arg10[%c32_333, %c44_334], %195 {strides = array<i32>} : memref<64x96xf32, #tpu.memory_space<vmem>>, vector<8x4xf32>,
    %c32_335 = arith.constant 32 : index
    %c16_336 = arith.constant 16 : index
    %197 = vector.load %arg12[%c32_335, %c16_336] : memref<64x32xf32, #tpu.memory_space<vmem>>, vector<8x4xf32>
    %c32_337 = arith.constant 32 : index
    %c48_338 = arith.constant 48 : index
    %198 = vector.load %arg10[%c32_337, %c48_338] : memref<64x96xf32, #tpu.memory_space<vmem>>, vector<8x4xf32>
    tpu.vector_store %arg10[%c32_337, %c48_338], %197 {strides = array<i32>} : memref<64x96xf32, #tpu.memory_space<vmem>>, vector<8x4xf32>,
    %c40_339 = arith.constant 40 : index
    %c16_340 = arith.constant 16 : index
    %199 = vector.load %arg12[%c40_339, %c16_340] : memref<64x32xf32, #tpu.memory_space<vmem>>, vector<8x4xf32>
    %c32_341 = arith.constant 32 : index
    %c52_342 = arith.constant 52 : index
    %200 = vector.load %arg10[%c32_341, %c52_342] : memref<64x96xf32, #tpu.memory_space<vmem>>, vector<8x4xf32>
    tpu.vector_store %arg10[%c32_341, %c52_342], %199 {strides = array<i32>} : memref<64x96xf32, #tpu.memory_space<vmem>>, vector<8x4xf32>,
    %c48_343 = arith.constant 48 : index
    %c16_344 = arith.constant 16 : index
    %201 = vector.load %arg12[%c48_343, %c16_344] : memref<64x32xf32, #tpu.memory_space<vmem>>, vector<8x4xf32>
    %c32_345 = arith.constant 32 : index
    %c56_346 = arith.constant 56 : index
    %202 = vector.load %arg10[%c32_345, %c56_346] : memref<64x96xf32, #tpu.memory_space<vmem>>, vector<8x4xf32>
    tpu.vector_store %arg10[%c32_345, %c56_346], %201 {strides = array<i32>} : memref<64x96xf32, #tpu.memory_space<vmem>>, vector<8x4xf32>,
    %c56_347 = arith.constant 56 : index
    %c16_348 = arith.constant 16 : index
    %203 = vector.load %arg12[%c56_347, %c16_348] : memref<64x32xf32, #tpu.memory_space<vmem>>, vector<8x4xf32>
    %c32_349 = arith.constant 32 : index
    %c60_350 = arith.constant 60 : index
    %204 = vector.load %arg10[%c32_349, %c60_350] : memref<64x96xf32, #tpu.memory_space<vmem>>, vector<8x4xf32>
    tpu.vector_store %arg10[%c32_349, %c60_350], %203 {strides = array<i32>} : memref<64x96xf32, #tpu.memory_space<vmem>>, vector<8x4xf32>,
    %c0_351 = arith.constant 0 : index
    %c0_352 = arith.constant 0 : index
    %c20_353 = arith.constant 20 : index
    %205 = vector.load %arg1[%c0_351, %c0_352, %c20_353] : memref<1x64x32xf32, #tpu.memory_space<vmem>>, vector<1x8x4xf32>
    %206 = vector.shape_cast %205 : vector<1x8x4xf32> to vector<8x4xf32>
    %c40_354 = arith.constant 40 : index
    %c0_355 = arith.constant 0 : index
    %207 = vector.load %arg10[%c40_354, %c0_355] : memref<64x96xf32, #tpu.memory_space<vmem>>, vector<8x4xf32>
    tpu.vector_store %arg10[%c40_354, %c0_355], %206 {strides = array<i32>} : memref<64x96xf32, #tpu.memory_space<vmem>>, vector<8x4xf32>,
    %c0_356 = arith.constant 0 : index
    %c8_357 = arith.constant 8 : index
    %c20_358 = arith.constant 20 : index
    %208 = vector.load %arg1[%c0_356, %c8_357, %c20_358] : memref<1x64x32xf32, #tpu.memory_space<vmem>>, vector<1x8x4xf32>
    %209 = vector.shape_cast %208 : vector<1x8x4xf32> to vector<8x4xf32>
    %c40_359 = arith.constant 40 : index
    %c4_360 = arith.constant 4 : index
    %210 = vector.load %arg10[%c40_359, %c4_360] : memref<64x96xf32, #tpu.memory_space<vmem>>, vector<8x4xf32>
    tpu.vector_store %arg10[%c40_359, %c4_360], %209 {strides = array<i32>} : memref<64x96xf32, #tpu.memory_space<vmem>>, vector<8x4xf32>,
    %c0_361 = arith.constant 0 : index
    %c16_362 = arith.constant 16 : index
    %c20_363 = arith.constant 20 : index
    %211 = vector.load %arg1[%c0_361, %c16_362, %c20_363] : memref<1x64x32xf32, #tpu.memory_space<vmem>>, vector<1x8x4xf32>
    %212 = vector.shape_cast %211 : vector<1x8x4xf32> to vector<8x4xf32>
    %c40_364 = arith.constant 40 : index
    %c8_365 = arith.constant 8 : index
    %213 = vector.load %arg10[%c40_364, %c8_365] : memref<64x96xf32, #tpu.memory_space<vmem>>, vector<8x4xf32>
    tpu.vector_store %arg10[%c40_364, %c8_365], %212 {strides = array<i32>} : memref<64x96xf32, #tpu.memory_space<vmem>>, vector<8x4xf32>,
    %c0_366 = arith.constant 0 : index
    %c24_367 = arith.constant 24 : index
    %c20_368 = arith.constant 20 : index
    %214 = vector.load %arg1[%c0_366, %c24_367, %c20_368] : memref<1x64x32xf32, #tpu.memory_space<vmem>>, vector<1x8x4xf32>
    %215 = vector.shape_cast %214 : vector<1x8x4xf32> to vector<8x4xf32>
    %c40_369 = arith.constant 40 : index
    %c12_370 = arith.constant 12 : index
    %216 = vector.load %arg10[%c40_369, %c12_370] : memref<64x96xf32, #tpu.memory_space<vmem>>, vector<8x4xf32>
    tpu.vector_store %arg10[%c40_369, %c12_370], %215 {strides = array<i32>} : memref<64x96xf32, #tpu.memory_space<vmem>>, vector<8x4xf32>,
    %c0_371 = arith.constant 0 : index
    %c32_372 = arith.constant 32 : index
    %c20_373 = arith.constant 20 : index
    %217 = vector.load %arg1[%c0_371, %c32_372, %c20_373] : memref<1x64x32xf32, #tpu.memory_space<vmem>>, vector<1x8x4xf32>
    %218 = vector.shape_cast %217 : vector<1x8x4xf32> to vector<8x4xf32>
    %c40_374 = arith.constant 40 : index
    %c16_375 = arith.constant 16 : index
    %219 = vector.load %arg10[%c40_374, %c16_375] : memref<64x96xf32, #tpu.memory_space<vmem>>, vector<8x4xf32>
    tpu.vector_store %arg10[%c40_374, %c16_375], %218 {strides = array<i32>} : memref<64x96xf32, #tpu.memory_space<vmem>>, vector<8x4xf32>,
    %c0_376 = arith.constant 0 : index
    %c40_377 = arith.constant 40 : index
    %c20_378 = arith.constant 20 : index
    %220 = vector.load %arg1[%c0_376, %c40_377, %c20_378] : memref<1x64x32xf32, #tpu.memory_space<vmem>>, vector<1x8x4xf32>
    %221 = vector.shape_cast %220 : vector<1x8x4xf32> to vector<8x4xf32>
    %c40_379 = arith.constant 40 : index
    %c20_380 = arith.constant 20 : index
    %222 = vector.load %arg10[%c40_379, %c20_380] : memref<64x96xf32, #tpu.memory_space<vmem>>, vector<8x4xf32>
    tpu.vector_store %arg10[%c40_379, %c20_380], %221 {strides = array<i32>} : memref<64x96xf32, #tpu.memory_space<vmem>>, vector<8x4xf32>,
    %c0_381 = arith.constant 0 : index
    %c48_382 = arith.constant 48 : index
    %c20_383 = arith.constant 20 : index
    %223 = vector.load %arg1[%c0_381, %c48_382, %c20_383] : memref<1x64x32xf32, #tpu.memory_space<vmem>>, vector<1x8x4xf32>
    %224 = vector.shape_cast %223 : vector<1x8x4xf32> to vector<8x4xf32>
    %c40_384 = arith.constant 40 : index
    %c24_385 = arith.constant 24 : index
    %225 = vector.load %arg10[%c40_384, %c24_385] : memref<64x96xf32, #tpu.memory_space<vmem>>, vector<8x4xf32>
    tpu.vector_store %arg10[%c40_384, %c24_385], %224 {strides = array<i32>} : memref<64x96xf32, #tpu.memory_space<vmem>>, vector<8x4xf32>,
    %c0_386 = arith.constant 0 : index
    %c56_387 = arith.constant 56 : index
    %c20_388 = arith.constant 20 : index
    %226 = vector.load %arg1[%c0_386, %c56_387, %c20_388] : memref<1x64x32xf32, #tpu.memory_space<vmem>>, vector<1x8x4xf32>
    %227 = vector.shape_cast %226 : vector<1x8x4xf32> to vector<8x4xf32>
    %c40_389 = arith.constant 40 : index
    %c28_390 = arith.constant 28 : index
    %228 = vector.load %arg10[%c40_389, %c28_390] : memref<64x96xf32, #tpu.memory_space<vmem>>, vector<8x4xf32>
    tpu.vector_store %arg10[%c40_389, %c28_390], %227 {strides = array<i32>} : memref<64x96xf32, #tpu.memory_space<vmem>>, vector<8x4xf32>,
    %c0_391 = arith.constant 0 : index
    %c20_392 = arith.constant 20 : index
    %229 = vector.load %arg12[%c0_391, %c20_392] : memref<64x32xf32, #tpu.memory_space<vmem>>, vector<8x4xf32>
    %c40_393 = arith.constant 40 : index
    %c32_394 = arith.constant 32 : index
    %230 = vector.load %arg10[%c40_393, %c32_394] : memref<64x96xf32, #tpu.memory_space<vmem>>, vector<8x4xf32>
    tpu.vector_store %arg10[%c40_393, %c32_394], %229 {strides = array<i32>} : memref<64x96xf32, #tpu.memory_space<vmem>>, vector<8x4xf32>,
    %c8_395 = arith.constant 8 : index
    %c20_396 = arith.constant 20 : index
    %231 = vector.load %arg12[%c8_395, %c20_396] : memref<64x32xf32, #tpu.memory_space<vmem>>, vector<8x4xf32>
    %c40_397 = arith.constant 40 : index
    %c36_398 = arith.constant 36 : index
    %232 = vector.load %arg10[%c40_397, %c36_398] : memref<64x96xf32, #tpu.memory_space<vmem>>, vector<8x4xf32>
    tpu.vector_store %arg10[%c40_397, %c36_398], %231 {strides = array<i32>} : memref<64x96xf32, #tpu.memory_space<vmem>>, vector<8x4xf32>,
    %c16_399 = arith.constant 16 : index
    %c20_400 = arith.constant 20 : index
    %233 = vector.load %arg12[%c16_399, %c20_400] : memref<64x32xf32, #tpu.memory_space<vmem>>, vector<8x4xf32>
    %c40_401 = arith.constant 40 : index
    %c40_402 = arith.constant 40 : index
    %234 = vector.load %arg10[%c40_401, %c40_402] : memref<64x96xf32, #tpu.memory_space<vmem>>, vector<8x4xf32>
    tpu.vector_store %arg10[%c40_401, %c40_402], %233 {strides = array<i32>} : memref<64x96xf32, #tpu.memory_space<vmem>>, vector<8x4xf32>,
    %c24_403 = arith.constant 24 : index
    %c20_404 = arith.constant 20 : index
    %235 = vector.load %arg12[%c24_403, %c20_404] : memref<64x32xf32, #tpu.memory_space<vmem>>, vector<8x4xf32>
    %c40_405 = arith.constant 40 : index
    %c44_406 = arith.constant 44 : index
    %236 = vector.load %arg10[%c40_405, %c44_406] : memref<64x96xf32, #tpu.memory_space<vmem>>, vector<8x4xf32>
    tpu.vector_store %arg10[%c40_405, %c44_406], %235 {strides = array<i32>} : memref<64x96xf32, #tpu.memory_space<vmem>>, vector<8x4xf32>,
    %c32_407 = arith.constant 32 : index
    %c20_408 = arith.constant 20 : index
    %237 = vector.load %arg12[%c32_407, %c20_408] : memref<64x32xf32, #tpu.memory_space<vmem>>, vector<8x4xf32>
    %c40_409 = arith.constant 40 : index
    %c48_410 = arith.constant 48 : index
    %238 = vector.load %arg10[%c40_409, %c48_410] : memref<64x96xf32, #tpu.memory_space<vmem>>, vector<8x4xf32>
    tpu.vector_store %arg10[%c40_409, %c48_410], %237 {strides = array<i32>} : memref<64x96xf32, #tpu.memory_space<vmem>>, vector<8x4xf32>,
    %c40_411 = arith.constant 40 : index
    %c20_412 = arith.constant 20 : index
    %239 = vector.load %arg12[%c40_411, %c20_412] : memref<64x32xf32, #tpu.memory_space<vmem>>, vector<8x4xf32>
    %c40_413 = arith.constant 40 : index
    %c52_414 = arith.constant 52 : index
    %240 = vector.load %arg10[%c40_413, %c52_414] : memref<64x96xf32, #tpu.memory_space<vmem>>, vector<8x4xf32>
    tpu.vector_store %arg10[%c40_413, %c52_414], %239 {strides = array<i32>} : memref<64x96xf32, #tpu.memory_space<vmem>>, vector<8x4xf32>,
    %c48_415 = arith.constant 48 : index
    %c20_416 = arith.constant 20 : index
    %241 = vector.load %arg12[%c48_415, %c20_416] : memref<64x32xf32, #tpu.memory_space<vmem>>, vector<8x4xf32>
    %c40_417 = arith.constant 40 : index
    %c56_418 = arith.constant 56 : index
    %242 = vector.load %arg10[%c40_417, %c56_418] : memref<64x96xf32, #tpu.memory_space<vmem>>, vector<8x4xf32>
    tpu.vector_store %arg10[%c40_417, %c56_418], %241 {strides = array<i32>} : memref<64x96xf32, #tpu.memory_space<vmem>>, vector<8x4xf32>,
    %c56_419 = arith.constant 56 : index
    %c20_420 = arith.constant 20 : index
    %243 = vector.load %arg12[%c56_419, %c20_420] : memref<64x32xf32, #tpu.memory_space<vmem>>, vector<8x4xf32>
    %c40_421 = arith.constant 40 : index
    %c60_422 = arith.constant 60 : index
    %244 = vector.load %arg10[%c40_421, %c60_422] : memref<64x96xf32, #tpu.memory_space<vmem>>, vector<8x4xf32>
    tpu.vector_store %arg10[%c40_421, %c60_422], %243 {strides = array<i32>} : memref<64x96xf32, #tpu.memory_space<vmem>>, vector<8x4xf32>,
    %c0_423 = arith.constant 0 : index
    %c0_424 = arith.constant 0 : index
    %c24_425 = arith.constant 24 : index
    %245 = vector.load %arg1[%c0_423, %c0_424, %c24_425] : memref<1x64x32xf32, #tpu.memory_space<vmem>>, vector<1x8x4xf32>
    %246 = vector.shape_cast %245 : vector<1x8x4xf32> to vector<8x4xf32>
    %c48_426 = arith.constant 48 : index
    %c0_427 = arith.constant 0 : index
    %247 = vector.load %arg10[%c48_426, %c0_427] : memref<64x96xf32, #tpu.memory_space<vmem>>, vector<8x4xf32>
    tpu.vector_store %arg10[%c48_426, %c0_427], %246 {strides = array<i32>} : memref<64x96xf32, #tpu.memory_space<vmem>>, vector<8x4xf32>,
    %c0_428 = arith.constant 0 : index
    %c8_429 = arith.constant 8 : index
    %c24_430 = arith.constant 24 : index
    %248 = vector.load %arg1[%c0_428, %c8_429, %c24_430] : memref<1x64x32xf32, #tpu.memory_space<vmem>>, vector<1x8x4xf32>
    %249 = vector.shape_cast %248 : vector<1x8x4xf32> to vector<8x4xf32>
    %c48_431 = arith.constant 48 : index
    %c4_432 = arith.constant 4 : index
    %250 = vector.load %arg10[%c48_431, %c4_432] : memref<64x96xf32, #tpu.memory_space<vmem>>, vector<8x4xf32>
    tpu.vector_store %arg10[%c48_431, %c4_432], %249 {strides = array<i32>} : memref<64x96xf32, #tpu.memory_space<vmem>>, vector<8x4xf32>,
    %c0_433 = arith.constant 0 : index
    %c16_434 = arith.constant 16 : index
    %c24_435 = arith.constant 24 : index
    %251 = vector.load %arg1[%c0_433, %c16_434, %c24_435] : memref<1x64x32xf32, #tpu.memory_space<vmem>>, vector<1x8x4xf32>
    %252 = vector.shape_cast %251 : vector<1x8x4xf32> to vector<8x4xf32>
    %c48_436 = arith.constant 48 : index
    %c8_437 = arith.constant 8 : index
    %253 = vector.load %arg10[%c48_436, %c8_437] : memref<64x96xf32, #tpu.memory_space<vmem>>, vector<8x4xf32>
    tpu.vector_store %arg10[%c48_436, %c8_437], %252 {strides = array<i32>} : memref<64x96xf32, #tpu.memory_space<vmem>>, vector<8x4xf32>,
    %c0_438 = arith.constant 0 : index
    %c24_439 = arith.constant 24 : index
    %c24_440 = arith.constant 24 : index
    %254 = vector.load %arg1[%c0_438, %c24_439, %c24_440] : memref<1x64x32xf32, #tpu.memory_space<vmem>>, vector<1x8x4xf32>
    %255 = vector.shape_cast %254 : vector<1x8x4xf32> to vector<8x4xf32>
    %c48_441 = arith.constant 48 : index
    %c12_442 = arith.constant 12 : index
    %256 = vector.load %arg10[%c48_441, %c12_442] : memref<64x96xf32, #tpu.memory_space<vmem>>, vector<8x4xf32>
    tpu.vector_store %arg10[%c48_441, %c12_442], %255 {strides = array<i32>} : memref<64x96xf32, #tpu.memory_space<vmem>>, vector<8x4xf32>,
    %c0_443 = arith.constant 0 : index
    %c32_444 = arith.constant 32 : index
    %c24_445 = arith.constant 24 : index
    %257 = vector.load %arg1[%c0_443, %c32_444, %c24_445] : memref<1x64x32xf32, #tpu.memory_space<vmem>>, vector<1x8x4xf32>
    %258 = vector.shape_cast %257 : vector<1x8x4xf32> to vector<8x4xf32>
    %c48_446 = arith.constant 48 : index
    %c16_447 = arith.constant 16 : index
    %259 = vector.load %arg10[%c48_446, %c16_447] : memref<64x96xf32, #tpu.memory_space<vmem>>, vector<8x4xf32>
    tpu.vector_store %arg10[%c48_446, %c16_447], %258 {strides = array<i32>} : memref<64x96xf32, #tpu.memory_space<vmem>>, vector<8x4xf32>,
    %c0_448 = arith.constant 0 : index
    %c40_449 = arith.constant 40 : index
    %c24_450 = arith.constant 24 : index
    %260 = vector.load %arg1[%c0_448, %c40_449, %c24_450] : memref<1x64x32xf32, #tpu.memory_space<vmem>>, vector<1x8x4xf32>
    %261 = vector.shape_cast %260 : vector<1x8x4xf32> to vector<8x4xf32>
    %c48_451 = arith.constant 48 : index
    %c20_452 = arith.constant 20 : index
    %262 = vector.load %arg10[%c48_451, %c20_452] : memref<64x96xf32, #tpu.memory_space<vmem>>, vector<8x4xf32>
    tpu.vector_store %arg10[%c48_451, %c20_452], %261 {strides = array<i32>} : memref<64x96xf32, #tpu.memory_space<vmem>>, vector<8x4xf32>,
    %c0_453 = arith.constant 0 : index
    %c48_454 = arith.constant 48 : index
    %c24_455 = arith.constant 24 : index
    %263 = vector.load %arg1[%c0_453, %c48_454, %c24_455] : memref<1x64x32xf32, #tpu.memory_space<vmem>>, vector<1x8x4xf32>
    %264 = vector.shape_cast %263 : vector<1x8x4xf32> to vector<8x4xf32>
    %c48_456 = arith.constant 48 : index
    %c24_457 = arith.constant 24 : index
    %265 = vector.load %arg10[%c48_456, %c24_457] : memref<64x96xf32, #tpu.memory_space<vmem>>, vector<8x4xf32>
    tpu.vector_store %arg10[%c48_456, %c24_457], %264 {strides = array<i32>} : memref<64x96xf32, #tpu.memory_space<vmem>>, vector<8x4xf32>,
    %c0_458 = arith.constant 0 : index
    %c56_459 = arith.constant 56 : index
    %c24_460 = arith.constant 24 : index
    %266 = vector.load %arg1[%c0_458, %c56_459, %c24_460] : memref<1x64x32xf32, #tpu.memory_space<vmem>>, vector<1x8x4xf32>
    %267 = vector.shape_cast %266 : vector<1x8x4xf32> to vector<8x4xf32>
    %c48_461 = arith.constant 48 : index
    %c28_462 = arith.constant 28 : index
    %268 = vector.load %arg10[%c48_461, %c28_462] : memref<64x96xf32, #tpu.memory_space<vmem>>, vector<8x4xf32>
    tpu.vector_store %arg10[%c48_461, %c28_462], %267 {strides = array<i32>} : memref<64x96xf32, #tpu.memory_space<vmem>>, vector<8x4xf32>,
    %c0_463 = arith.constant 0 : index
    %c24_464 = arith.constant 24 : index
    %269 = vector.load %arg12[%c0_463, %c24_464] : memref<64x32xf32, #tpu.memory_space<vmem>>, vector<8x4xf32>
    %c48_465 = arith.constant 48 : index
    %c32_466 = arith.constant 32 : index
    %270 = vector.load %arg10[%c48_465, %c32_466] : memref<64x96xf32, #tpu.memory_space<vmem>>, vector<8x4xf32>
    tpu.vector_store %arg10[%c48_465, %c32_466], %269 {strides = array<i32>} : memref<64x96xf32, #tpu.memory_space<vmem>>, vector<8x4xf32>,
    %c8_467 = arith.constant 8 : index
    %c24_468 = arith.constant 24 : index
    %271 = vector.load %arg12[%c8_467, %c24_468] : memref<64x32xf32, #tpu.memory_space<vmem>>, vector<8x4xf32>
    %c48_469 = arith.constant 48 : index
    %c36_470 = arith.constant 36 : index
    %272 = vector.load %arg10[%c48_469, %c36_470] : memref<64x96xf32, #tpu.memory_space<vmem>>, vector<8x4xf32>
    tpu.vector_store %arg10[%c48_469, %c36_470], %271 {strides = array<i32>} : memref<64x96xf32, #tpu.memory_space<vmem>>, vector<8x4xf32>,
    %c16_471 = arith.constant 16 : index
    %c24_472 = arith.constant 24 : index
    %273 = vector.load %arg12[%c16_471, %c24_472] : memref<64x32xf32, #tpu.memory_space<vmem>>, vector<8x4xf32>
    %c48_473 = arith.constant 48 : index
    %c40_474 = arith.constant 40 : index
    %274 = vector.load %arg10[%c48_473, %c40_474] : memref<64x96xf32, #tpu.memory_space<vmem>>, vector<8x4xf32>
    tpu.vector_store %arg10[%c48_473, %c40_474], %273 {strides = array<i32>} : memref<64x96xf32, #tpu.memory_space<vmem>>, vector<8x4xf32>,
    %c24_475 = arith.constant 24 : index
    %c24_476 = arith.constant 24 : index
    %275 = vector.load %arg12[%c24_475, %c24_476] : memref<64x32xf32, #tpu.memory_space<vmem>>, vector<8x4xf32>
    %c48_477 = arith.constant 48 : index
    %c44_478 = arith.constant 44 : index
    %276 = vector.load %arg10[%c48_477, %c44_478] : memref<64x96xf32, #tpu.memory_space<vmem>>, vector<8x4xf32>
    tpu.vector_store %arg10[%c48_477, %c44_478], %275 {strides = array<i32>} : memref<64x96xf32, #tpu.memory_space<vmem>>, vector<8x4xf32>,
    %c32_479 = arith.constant 32 : index
    %c24_480 = arith.constant 24 : index
    %277 = vector.load %arg12[%c32_479, %c24_480] : memref<64x32xf32, #tpu.memory_space<vmem>>, vector<8x4xf32>
    %c48_481 = arith.constant 48 : index
    %c48_482 = arith.constant 48 : index
    %278 = vector.load %arg10[%c48_481, %c48_482] : memref<64x96xf32, #tpu.memory_space<vmem>>, vector<8x4xf32>
    tpu.vector_store %arg10[%c48_481, %c48_482], %277 {strides = array<i32>} : memref<64x96xf32, #tpu.memory_space<vmem>>, vector<8x4xf32>,
    %c40_483 = arith.constant 40 : index
    %c24_484 = arith.constant 24 : index
    %279 = vector.load %arg12[%c40_483, %c24_484] : memref<64x32xf32, #tpu.memory_space<vmem>>, vector<8x4xf32>
    %c48_485 = arith.constant 48 : index
    %c52_486 = arith.constant 52 : index
    %280 = vector.load %arg10[%c48_485, %c52_486] : memref<64x96xf32, #tpu.memory_space<vmem>>, vector<8x4xf32>
    tpu.vector_store %arg10[%c48_485, %c52_486], %279 {strides = array<i32>} : memref<64x96xf32, #tpu.memory_space<vmem>>, vector<8x4xf32>,
    %c48_487 = arith.constant 48 : index
    %c24_488 = arith.constant 24 : index
    %281 = vector.load %arg12[%c48_487, %c24_488] : memref<64x32xf32, #tpu.memory_space<vmem>>, vector<8x4xf32>
    %c48_489 = arith.constant 48 : index
    %c56_490 = arith.constant 56 : index
    %282 = vector.load %arg10[%c48_489, %c56_490] : memref<64x96xf32, #tpu.memory_space<vmem>>, vector<8x4xf32>
    tpu.vector_store %arg10[%c48_489, %c56_490], %281 {strides = array<i32>} : memref<64x96xf32, #tpu.memory_space<vmem>>, vector<8x4xf32>,
    %c56_491 = arith.constant 56 : index
    %c24_492 = arith.constant 24 : index
    %283 = vector.load %arg12[%c56_491, %c24_492] : memref<64x32xf32, #tpu.memory_space<vmem>>, vector<8x4xf32>
    %c48_493 = arith.constant 48 : index
    %c60_494 = arith.constant 60 : index
    %284 = vector.load %arg10[%c48_493, %c60_494] : memref<64x96xf32, #tpu.memory_space<vmem>>, vector<8x4xf32>
    tpu.vector_store %arg10[%c48_493, %c60_494], %283 {strides = array<i32>} : memref<64x96xf32, #tpu.memory_space<vmem>>, vector<8x4xf32>,
    %c0_495 = arith.constant 0 : index
    %c0_496 = arith.constant 0 : index
    %c28_497 = arith.constant 28 : index
    %285 = vector.load %arg1[%c0_495, %c0_496, %c28_497] : memref<1x64x32xf32, #tpu.memory_space<vmem>>, vector<1x8x4xf32>
    %286 = vector.shape_cast %285 : vector<1x8x4xf32> to vector<8x4xf32>
    %c56_498 = arith.constant 56 : index
    %c0_499 = arith.constant 0 : index
    %287 = vector.load %arg10[%c56_498, %c0_499] : memref<64x96xf32, #tpu.memory_space<vmem>>, vector<8x4xf32>
    tpu.vector_store %arg10[%c56_498, %c0_499], %286 {strides = array<i32>} : memref<64x96xf32, #tpu.memory_space<vmem>>, vector<8x4xf32>,
    %c0_500 = arith.constant 0 : index
    %c8_501 = arith.constant 8 : index
    %c28_502 = arith.constant 28 : index
    %288 = vector.load %arg1[%c0_500, %c8_501, %c28_502] : memref<1x64x32xf32, #tpu.memory_space<vmem>>, vector<1x8x4xf32>
    %289 = vector.shape_cast %288 : vector<1x8x4xf32> to vector<8x4xf32>
    %c56_503 = arith.constant 56 : index
    %c4_504 = arith.constant 4 : index
    %290 = vector.load %arg10[%c56_503, %c4_504] : memref<64x96xf32, #tpu.memory_space<vmem>>, vector<8x4xf32>
    tpu.vector_store %arg10[%c56_503, %c4_504], %289 {strides = array<i32>} : memref<64x96xf32, #tpu.memory_space<vmem>>, vector<8x4xf32>,
    %c0_505 = arith.constant 0 : index
    %c16_506 = arith.constant 16 : index
    %c28_507 = arith.constant 28 : index
    %291 = vector.load %arg1[%c0_505, %c16_506, %c28_507] : memref<1x64x32xf32, #tpu.memory_space<vmem>>, vector<1x8x4xf32>
    %292 = vector.shape_cast %291 : vector<1x8x4xf32> to vector<8x4xf32>
    %c56_508 = arith.constant 56 : index
    %c8_509 = arith.constant 8 : index
    %293 = vector.load %arg10[%c56_508, %c8_509] : memref<64x96xf32, #tpu.memory_space<vmem>>, vector<8x4xf32>
    tpu.vector_store %arg10[%c56_508, %c8_509], %292 {strides = array<i32>} : memref<64x96xf32, #tpu.memory_space<vmem>>, vector<8x4xf32>,
    %c0_510 = arith.constant 0 : index
    %c24_511 = arith.constant 24 : index
    %c28_512 = arith.constant 28 : index
    %294 = vector.load %arg1[%c0_510, %c24_511, %c28_512] : memref<1x64x32xf32, #tpu.memory_space<vmem>>, vector<1x8x4xf32>
    %295 = vector.shape_cast %294 : vector<1x8x4xf32> to vector<8x4xf32>
    %c56_513 = arith.constant 56 : index
    %c12_514 = arith.constant 12 : index
    %296 = vector.load %arg10[%c56_513, %c12_514] : memref<64x96xf32, #tpu.memory_space<vmem>>, vector<8x4xf32>
    tpu.vector_store %arg10[%c56_513, %c12_514], %295 {strides = array<i32>} : memref<64x96xf32, #tpu.memory_space<vmem>>, vector<8x4xf32>,
    %c0_515 = arith.constant 0 : index
    %c32_516 = arith.constant 32 : index
    %c28_517 = arith.constant 28 : index
    %297 = vector.load %arg1[%c0_515, %c32_516, %c28_517] : memref<1x64x32xf32, #tpu.memory_space<vmem>>, vector<1x8x4xf32>
    %298 = vector.shape_cast %297 : vector<1x8x4xf32> to vector<8x4xf32>
    %c56_518 = arith.constant 56 : index
    %c16_519 = arith.constant 16 : index
    %299 = vector.load %arg10[%c56_518, %c16_519] : memref<64x96xf32, #tpu.memory_space<vmem>>, vector<8x4xf32>
    tpu.vector_store %arg10[%c56_518, %c16_519], %298 {strides = array<i32>} : memref<64x96xf32, #tpu.memory_space<vmem>>, vector<8x4xf32>,
    %c0_520 = arith.constant 0 : index
    %c40_521 = arith.constant 40 : index
    %c28_522 = arith.constant 28 : index
    %300 = vector.load %arg1[%c0_520, %c40_521, %c28_522] : memref<1x64x32xf32, #tpu.memory_space<vmem>>, vector<1x8x4xf32>
    %301 = vector.shape_cast %300 : vector<1x8x4xf32> to vector<8x4xf32>
    %c56_523 = arith.constant 56 : index
    %c20_524 = arith.constant 20 : index
    %302 = vector.load %arg10[%c56_523, %c20_524] : memref<64x96xf32, #tpu.memory_space<vmem>>, vector<8x4xf32>
    tpu.vector_store %arg10[%c56_523, %c20_524], %301 {strides = array<i32>} : memref<64x96xf32, #tpu.memory_space<vmem>>, vector<8x4xf32>,
    %c0_525 = arith.constant 0 : index
    %c48_526 = arith.constant 48 : index
    %c28_527 = arith.constant 28 : index
    %303 = vector.load %arg1[%c0_525, %c48_526, %c28_527] : memref<1x64x32xf32, #tpu.memory_space<vmem>>, vector<1x8x4xf32>
    %304 = vector.shape_cast %303 : vector<1x8x4xf32> to vector<8x4xf32>
    %c56_528 = arith.constant 56 : index
    %c24_529 = arith.constant 24 : index
    %305 = vector.load %arg10[%c56_528, %c24_529] : memref<64x96xf32, #tpu.memory_space<vmem>>, vector<8x4xf32>
    tpu.vector_store %arg10[%c56_528, %c24_529], %304 {strides = array<i32>} : memref<64x96xf32, #tpu.memory_space<vmem>>, vector<8x4xf32>,
    %c0_530 = arith.constant 0 : index
    %c56_531 = arith.constant 56 : index
    %c28_532 = arith.constant 28 : index
    %306 = vector.load %arg1[%c0_530, %c56_531, %c28_532] : memref<1x64x32xf32, #tpu.memory_space<vmem>>, vector<1x8x4xf32>
    %307 = vector.shape_cast %306 : vector<1x8x4xf32> to vector<8x4xf32>
    %c56_533 = arith.constant 56 : index
    %c28_534 = arith.constant 28 : index
    %308 = vector.load %arg10[%c56_533, %c28_534] : memref<64x96xf32, #tpu.memory_space<vmem>>, vector<8x4xf32>
    tpu.vector_store %arg10[%c56_533, %c28_534], %307 {strides = array<i32>} : memref<64x96xf32, #tpu.memory_space<vmem>>, vector<8x4xf32>,
    %c0_535 = arith.constant 0 : index
    %c28_536 = arith.constant 28 : index
    %309 = vector.load %arg12[%c0_535, %c28_536] : memref<64x32xf32, #tpu.memory_space<vmem>>, vector<8x4xf32>
    %c56_537 = arith.constant 56 : index
    %c32_538 = arith.constant 32 : index
    %310 = vector.load %arg10[%c56_537, %c32_538] : memref<64x96xf32, #tpu.memory_space<vmem>>, vector<8x4xf32>
    tpu.vector_store %arg10[%c56_537, %c32_538], %309 {strides = array<i32>} : memref<64x96xf32, #tpu.memory_space<vmem>>, vector<8x4xf32>,
    %c8_539 = arith.constant 8 : index
    %c28_540 = arith.constant 28 : index
    %311 = vector.load %arg12[%c8_539, %c28_540] : memref<64x32xf32, #tpu.memory_space<vmem>>, vector<8x4xf32>
    %c56_541 = arith.constant 56 : index
    %c36_542 = arith.constant 36 : index
    %312 = vector.load %arg10[%c56_541, %c36_542] : memref<64x96xf32, #tpu.memory_space<vmem>>, vector<8x4xf32>
    tpu.vector_store %arg10[%c56_541, %c36_542], %311 {strides = array<i32>} : memref<64x96xf32, #tpu.memory_space<vmem>>, vector<8x4xf32>,
    %c16_543 = arith.constant 16 : index
    %c28_544 = arith.constant 28 : index
    %313 = vector.load %arg12[%c16_543, %c28_544] : memref<64x32xf32, #tpu.memory_space<vmem>>, vector<8x4xf32>
    %c56_545 = arith.constant 56 : index
    %c40_546 = arith.constant 40 : index
    %314 = vector.load %arg10[%c56_545, %c40_546] : memref<64x96xf32, #tpu.memory_space<vmem>>, vector<8x4xf32>
    tpu.vector_store %arg10[%c56_545, %c40_546], %313 {strides = array<i32>} : memref<64x96xf32, #tpu.memory_space<vmem>>, vector<8x4xf32>,
    %c24_547 = arith.constant 24 : index
    %c28_548 = arith.constant 28 : index
    %315 = vector.load %arg12[%c24_547, %c28_548] : memref<64x32xf32, #tpu.memory_space<vmem>>, vector<8x4xf32>
    %c56_549 = arith.constant 56 : index
    %c44_550 = arith.constant 44 : index
    %316 = vector.load %arg10[%c56_549, %c44_550] : memref<64x96xf32, #tpu.memory_space<vmem>>, vector<8x4xf32>
    tpu.vector_store %arg10[%c56_549, %c44_550], %315 {strides = array<i32>} : memref<64x96xf32, #tpu.memory_space<vmem>>, vector<8x4xf32>,
    %c32_551 = arith.constant 32 : index
    %c28_552 = arith.constant 28 : index
    %317 = vector.load %arg12[%c32_551, %c28_552] : memref<64x32xf32, #tpu.memory_space<vmem>>, vector<8x4xf32>
    %c56_553 = arith.constant 56 : index
    %c48_554 = arith.constant 48 : index
    %318 = vector.load %arg10[%c56_553, %c48_554] : memref<64x96xf32, #tpu.memory_space<vmem>>, vector<8x4xf32>
    tpu.vector_store %arg10[%c56_553, %c48_554], %317 {strides = array<i32>} : memref<64x96xf32, #tpu.memory_space<vmem>>, vector<8x4xf32>,
    %c40_555 = arith.constant 40 : index
    %c28_556 = arith.constant 28 : index
    %319 = vector.load %arg12[%c40_555, %c28_556] : memref<64x32xf32, #tpu.memory_space<vmem>>, vector<8x4xf32>
    %c56_557 = arith.constant 56 : index
    %c52_558 = arith.constant 52 : index
    %320 = vector.load %arg10[%c56_557, %c52_558] : memref<64x96xf32, #tpu.memory_space<vmem>>, vector<8x4xf32>
    tpu.vector_store %arg10[%c56_557, %c52_558], %319 {strides = array<i32>} : memref<64x96xf32, #tpu.memory_space<vmem>>, vector<8x4xf32>,
    %c48_559 = arith.constant 48 : index
    %c28_560 = arith.constant 28 : index
    %321 = vector.load %arg12[%c48_559, %c28_560] : memref<64x32xf32, #tpu.memory_space<vmem>>, vector<8x4xf32>
    %c56_561 = arith.constant 56 : index
    %c56_562 = arith.constant 56 : index
    %322 = vector.load %arg10[%c56_561, %c56_562] : memref<64x96xf32, #tpu.memory_space<vmem>>, vector<8x4xf32>
    tpu.vector_store %arg10[%c56_561, %c56_562], %321 {strides = array<i32>} : memref<64x96xf32, #tpu.memory_space<vmem>>, vector<8x4xf32>,
    %c56_563 = arith.constant 56 : index
    %c28_564 = arith.constant 28 : index
    %323 = vector.load %arg12[%c56_563, %c28_564] : memref<64x32xf32, #tpu.memory_space<vmem>>, vector<8x4xf32>
    %c56_565 = arith.constant 56 : index
    %c60_566 = arith.constant 60 : index
    %324 = vector.load %arg10[%c56_565, %c60_566] : memref<64x96xf32, #tpu.memory_space<vmem>>, vector<8x4xf32>
    tpu.vector_store %arg10[%c56_565, %c60_566], %323 {strides = array<i32>} : memref<64x96xf32, #tpu.memory_space<vmem>>, vector<8x4xf32>,
    %c0_567 = arith.constant 0 : index
    %c64 = arith.constant 64 : index
    %325 = vector.load %arg10[%c0_567, %c64] : memref<64x96xf32, #tpu.memory_space<vmem>>, vector<64x32xf32>
    tpu.vector_store %arg10[%c0_567, %c64], %1 {strides = array<i32>} : memref<64x96xf32, #tpu.memory_space<vmem>>, vector<64x32xf32>,
    %c0_568 = arith.constant 0 : index
    %c0_569 = arith.constant 0 : index
    %326 = vector.load %arg10[%c0_568, %c0_569] : memref<64x96xf32, #tpu.memory_space<vmem>>, vector<64x96xf32>
    %c0_570 = arith.constant 0 : index
    %c0_571 = arith.constant 0 : index
    %327 = vector.load %arg4[%c0_570, %c0_571] : memref<96x96xf32, #tpu.memory_space<vmem>>, vector<96x96xf32>
    %cst_572 = arith.constant dense<0.000000e+00> : vector<64x96xf32>
    %328 = tpu.matmul %326, %327, %cst_572 {dimension_numbers = #tpu.dot_dimension_numbers<[1], [0], [0], [1], [0, 0, 1, 1], [], []>} : vector<64x96xf32>, vector<96x96xf32>, vector<64x96xf32> -> vector<64x96xf32>
    %c0_573 = arith.constant 0 : index
    %c0_574 = arith.constant 0 : index
    %329 = vector.load %arg10[%c0_573, %c0_574] : memref<64x96xf32, #tpu.memory_space<vmem>>, vector<64x96xf32>
    tpu.vector_store %arg10[%c0_573, %c0_574], %328 {strides = array<i32>} : memref<64x96xf32, #tpu.memory_space<vmem>>, vector<64x96xf32>,
    %c0_575 = arith.constant 0 : index
    %c0_576 = arith.constant 0 : index
    %330 = vector.load %arg10[%c0_575, %c0_576] : memref<64x96xf32, #tpu.memory_space<vmem>>, vector<8x4xf32>
    %c0_577 = arith.constant 0 : index
    %c0_578 = arith.constant 0 : index
    %331 = vector.load %arg11[%c0_577, %c0_578] : memref<64x96xf32, #tpu.memory_space<vmem>>, vector<8x4xf32>
    tpu.vector_store %arg11[%c0_577, %c0_578], %330 {strides = array<i32>} : memref<64x96xf32, #tpu.memory_space<vmem>>, vector<8x4xf32>,
    %c8_579 = arith.constant 8 : index
    %c0_580 = arith.constant 0 : index
    %332 = vector.load %arg10[%c8_579, %c0_580] : memref<64x96xf32, #tpu.memory_space<vmem>>, vector<8x4xf32>
    %c0_581 = arith.constant 0 : index
    %c4_582 = arith.constant 4 : index
    %333 = vector.load %arg11[%c0_581, %c4_582] : memref<64x96xf32, #tpu.memory_space<vmem>>, vector<8x4xf32>
    tpu.vector_store %arg11[%c0_581, %c4_582], %332 {strides = array<i32>} : memref<64x96xf32, #tpu.memory_space<vmem>>, vector<8x4xf32>,
    %c16_583 = arith.constant 16 : index
    %c0_584 = arith.constant 0 : index
    %334 = vector.load %arg10[%c16_583, %c0_584] : memref<64x96xf32, #tpu.memory_space<vmem>>, vector<8x4xf32>
    %c0_585 = arith.constant 0 : index
    %c8_586 = arith.constant 8 : index
    %335 = vector.load %arg11[%c0_585, %c8_586] : memref<64x96xf32, #tpu.memory_space<vmem>>, vector<8x4xf32>
    tpu.vector_store %arg11[%c0_585, %c8_586], %334 {strides = array<i32>} : memref<64x96xf32, #tpu.memory_space<vmem>>, vector<8x4xf32>,
    %c24_587 = arith.constant 24 : index
    %c0_588 = arith.constant 0 : index
    %336 = vector.load %arg10[%c24_587, %c0_588] : memref<64x96xf32, #tpu.memory_space<vmem>>, vector<8x4xf32>
    %c0_589 = arith.constant 0 : index
    %c12_590 = arith.constant 12 : index
    %337 = vector.load %arg11[%c0_589, %c12_590] : memref<64x96xf32, #tpu.memory_space<vmem>>, vector<8x4xf32>
    tpu.vector_store %arg11[%c0_589, %c12_590], %336 {strides = array<i32>} : memref<64x96xf32, #tpu.memory_space<vmem>>, vector<8x4xf32>,
    %c32_591 = arith.constant 32 : index
    %c0_592 = arith.constant 0 : index
    %338 = vector.load %arg10[%c32_591, %c0_592] : memref<64x96xf32, #tpu.memory_space<vmem>>, vector<8x4xf32>
    %c0_593 = arith.constant 0 : index
    %c16_594 = arith.constant 16 : index
    %339 = vector.load %arg11[%c0_593, %c16_594] : memref<64x96xf32, #tpu.memory_space<vmem>>, vector<8x4xf32>
    tpu.vector_store %arg11[%c0_593, %c16_594], %338 {strides = array<i32>} : memref<64x96xf32, #tpu.memory_space<vmem>>, vector<8x4xf32>,
    %c40_595 = arith.constant 40 : index
    %c0_596 = arith.constant 0 : index
    %340 = vector.load %arg10[%c40_595, %c0_596] : memref<64x96xf32, #tpu.memory_space<vmem>>, vector<8x4xf32>
    %c0_597 = arith.constant 0 : index
    %c20_598 = arith.constant 20 : index
    %341 = vector.load %arg11[%c0_597, %c20_598] : memref<64x96xf32, #tpu.memory_space<vmem>>, vector<8x4xf32>
    tpu.vector_store %arg11[%c0_597, %c20_598], %340 {strides = array<i32>} : memref<64x96xf32, #tpu.memory_space<vmem>>, vector<8x4xf32>,
    %c48_599 = arith.constant 48 : index
    %c0_600 = arith.constant 0 : index
    %342 = vector.load %arg10[%c48_599, %c0_600] : memref<64x96xf32, #tpu.memory_space<vmem>>, vector<8x4xf32>
    %c0_601 = arith.constant 0 : index
    %c24_602 = arith.constant 24 : index
    %343 = vector.load %arg11[%c0_601, %c24_602] : memref<64x96xf32, #tpu.memory_space<vmem>>, vector<8x4xf32>
    tpu.vector_store %arg11[%c0_601, %c24_602], %342 {strides = array<i32>} : memref<64x96xf32, #tpu.memory_space<vmem>>, vector<8x4xf32>,
    %c56_603 = arith.constant 56 : index
    %c0_604 = arith.constant 0 : index
    %344 = vector.load %arg10[%c56_603, %c0_604] : memref<64x96xf32, #tpu.memory_space<vmem>>, vector<8x4xf32>
    %c0_605 = arith.constant 0 : index
    %c28_606 = arith.constant 28 : index
    %345 = vector.load %arg11[%c0_605, %c28_606] : memref<64x96xf32, #tpu.memory_space<vmem>>, vector<8x4xf32>
    tpu.vector_store %arg11[%c0_605, %c28_606], %344 {strides = array<i32>} : memref<64x96xf32, #tpu.memory_space<vmem>>, vector<8x4xf32>,
    %c0_607 = arith.constant 0 : index
    %c4_608 = arith.constant 4 : index
    %346 = vector.load %arg10[%c0_607, %c4_608] : memref<64x96xf32, #tpu.memory_space<vmem>>, vector<8x4xf32>
    %c8_609 = arith.constant 8 : index
    %c0_610 = arith.constant 0 : index
    %347 = vector.load %arg11[%c8_609, %c0_610] : memref<64x96xf32, #tpu.memory_space<vmem>>, vector<8x4xf32>
    tpu.vector_store %arg11[%c8_609, %c0_610], %346 {strides = array<i32>} : memref<64x96xf32, #tpu.memory_space<vmem>>, vector<8x4xf32>,
    %c8_611 = arith.constant 8 : index
    %c4_612 = arith.constant 4 : index
    %348 = vector.load %arg10[%c8_611, %c4_612] : memref<64x96xf32, #tpu.memory_space<vmem>>, vector<8x4xf32>
    %c8_613 = arith.constant 8 : index
    %c4_614 = arith.constant 4 : index
    %349 = vector.load %arg11[%c8_613, %c4_614] : memref<64x96xf32, #tpu.memory_space<vmem>>, vector<8x4xf32>
    tpu.vector_store %arg11[%c8_613, %c4_614], %348 {strides = array<i32>} : memref<64x96xf32, #tpu.memory_space<vmem>>, vector<8x4xf32>,
    %c16_615 = arith.constant 16 : index
    %c4_616 = arith.constant 4 : index
    %350 = vector.load %arg10[%c16_615, %c4_616] : memref<64x96xf32, #tpu.memory_space<vmem>>, vector<8x4xf32>
    %c8_617 = arith.constant 8 : index
    %c8_618 = arith.constant 8 : index
    %351 = vector.load %arg11[%c8_617, %c8_618] : memref<64x96xf32, #tpu.memory_space<vmem>>, vector<8x4xf32>
    tpu.vector_store %arg11[%c8_617, %c8_618], %350 {strides = array<i32>} : memref<64x96xf32, #tpu.memory_space<vmem>>, vector<8x4xf32>,
    %c24_619 = arith.constant 24 : index
    %c4_620 = arith.constant 4 : index
    %352 = vector.load %arg10[%c24_619, %c4_620] : memref<64x96xf32, #tpu.memory_space<vmem>>, vector<8x4xf32>
    %c8_621 = arith.constant 8 : index
    %c12_622 = arith.constant 12 : index
    %353 = vector.load %arg11[%c8_621, %c12_622] : memref<64x96xf32, #tpu.memory_space<vmem>>, vector<8x4xf32>
    tpu.vector_store %arg11[%c8_621, %c12_622], %352 {strides = array<i32>} : memref<64x96xf32, #tpu.memory_space<vmem>>, vector<8x4xf32>,
    %c32_623 = arith.constant 32 : index
    %c4_624 = arith.constant 4 : index
    %354 = vector.load %arg10[%c32_623, %c4_624] : memref<64x96xf32, #tpu.memory_space<vmem>>, vector<8x4xf32>
    %c8_625 = arith.constant 8 : index
    %c16_626 = arith.constant 16 : index
    %355 = vector.load %arg11[%c8_625, %c16_626] : memref<64x96xf32, #tpu.memory_space<vmem>>, vector<8x4xf32>
    tpu.vector_store %arg11[%c8_625, %c16_626], %354 {strides = array<i32>} : memref<64x96xf32, #tpu.memory_space<vmem>>, vector<8x4xf32>,
    %c40_627 = arith.constant 40 : index
    %c4_628 = arith.constant 4 : index
    %356 = vector.load %arg10[%c40_627, %c4_628] : memref<64x96xf32, #tpu.memory_space<vmem>>, vector<8x4xf32>
    %c8_629 = arith.constant 8 : index
    %c20_630 = arith.constant 20 : index
    %357 = vector.load %arg11[%c8_629, %c20_630] : memref<64x96xf32, #tpu.memory_space<vmem>>, vector<8x4xf32>
    tpu.vector_store %arg11[%c8_629, %c20_630], %356 {strides = array<i32>} : memref<64x96xf32, #tpu.memory_space<vmem>>, vector<8x4xf32>,
    %c48_631 = arith.constant 48 : index
    %c4_632 = arith.constant 4 : index
    %358 = vector.load %arg10[%c48_631, %c4_632] : memref<64x96xf32, #tpu.memory_space<vmem>>, vector<8x4xf32>
    %c8_633 = arith.constant 8 : index
    %c24_634 = arith.constant 24 : index
    %359 = vector.load %arg11[%c8_633, %c24_634] : memref<64x96xf32, #tpu.memory_space<vmem>>, vector<8x4xf32>
    tpu.vector_store %arg11[%c8_633, %c24_634], %358 {strides = array<i32>} : memref<64x96xf32, #tpu.memory_space<vmem>>, vector<8x4xf32>,
    %c56_635 = arith.constant 56 : index
    %c4_636 = arith.constant 4 : index
    %360 = vector.load %arg10[%c56_635, %c4_636] : memref<64x96xf32, #tpu.memory_space<vmem>>, vector<8x4xf32>
    %c8_637 = arith.constant 8 : index
    %c28_638 = arith.constant 28 : index
    %361 = vector.load %arg11[%c8_637, %c28_638] : memref<64x96xf32, #tpu.memory_space<vmem>>, vector<8x4xf32>
    tpu.vector_store %arg11[%c8_637, %c28_638], %360 {strides = array<i32>} : memref<64x96xf32, #tpu.memory_space<vmem>>, vector<8x4xf32>,
    %c0_639 = arith.constant 0 : index
    %c8_640 = arith.constant 8 : index
    %362 = vector.load %arg10[%c0_639, %c8_640] : memref<64x96xf32, #tpu.memory_space<vmem>>, vector<8x4xf32>
    %c16_641 = arith.constant 16 : index
    %c0_642 = arith.constant 0 : index
    %363 = vector.load %arg11[%c16_641, %c0_642] : memref<64x96xf32, #tpu.memory_space<vmem>>, vector<8x4xf32>
    tpu.vector_store %arg11[%c16_641, %c0_642], %362 {strides = array<i32>} : memref<64x96xf32, #tpu.memory_space<vmem>>, vector<8x4xf32>,
    %c8_643 = arith.constant 8 : index
    %c8_644 = arith.constant 8 : index
    %364 = vector.load %arg10[%c8_643, %c8_644] : memref<64x96xf32, #tpu.memory_space<vmem>>, vector<8x4xf32>
    %c16_645 = arith.constant 16 : index
    %c4_646 = arith.constant 4 : index
    %365 = vector.load %arg11[%c16_645, %c4_646] : memref<64x96xf32, #tpu.memory_space<vmem>>, vector<8x4xf32>
    tpu.vector_store %arg11[%c16_645, %c4_646], %364 {strides = array<i32>} : memref<64x96xf32, #tpu.memory_space<vmem>>, vector<8x4xf32>,
    %c16_647 = arith.constant 16 : index
    %c8_648 = arith.constant 8 : index
    %366 = vector.load %arg10[%c16_647, %c8_648] : memref<64x96xf32, #tpu.memory_space<vmem>>, vector<8x4xf32>
    %c16_649 = arith.constant 16 : index
    %c8_650 = arith.constant 8 : index
    %367 = vector.load %arg11[%c16_649, %c8_650] : memref<64x96xf32, #tpu.memory_space<vmem>>, vector<8x4xf32>
    tpu.vector_store %arg11[%c16_649, %c8_650], %366 {strides = array<i32>} : memref<64x96xf32, #tpu.memory_space<vmem>>, vector<8x4xf32>,
    %c24_651 = arith.constant 24 : index
    %c8_652 = arith.constant 8 : index
    %368 = vector.load %arg10[%c24_651, %c8_652] : memref<64x96xf32, #tpu.memory_space<vmem>>, vector<8x4xf32>
    %c16_653 = arith.constant 16 : index
    %c12_654 = arith.constant 12 : index
    %369 = vector.load %arg11[%c16_653, %c12_654] : memref<64x96xf32, #tpu.memory_space<vmem>>, vector<8x4xf32>
    tpu.vector_store %arg11[%c16_653, %c12_654], %368 {strides = array<i32>} : memref<64x96xf32, #tpu.memory_space<vmem>>, vector<8x4xf32>,
    %c32_655 = arith.constant 32 : index
    %c8_656 = arith.constant 8 : index
    %370 = vector.load %arg10[%c32_655, %c8_656] : memref<64x96xf32, #tpu.memory_space<vmem>>, vector<8x4xf32>
    %c16_657 = arith.constant 16 : index
    %c16_658 = arith.constant 16 : index
    %371 = vector.load %arg11[%c16_657, %c16_658] : memref<64x96xf32, #tpu.memory_space<vmem>>, vector<8x4xf32>
    tpu.vector_store %arg11[%c16_657, %c16_658], %370 {strides = array<i32>} : memref<64x96xf32, #tpu.memory_space<vmem>>, vector<8x4xf32>,
    %c40_659 = arith.constant 40 : index
    %c8_660 = arith.constant 8 : index
    %372 = vector.load %arg10[%c40_659, %c8_660] : memref<64x96xf32, #tpu.memory_space<vmem>>, vector<8x4xf32>
    %c16_661 = arith.constant 16 : index
    %c20_662 = arith.constant 20 : index
    %373 = vector.load %arg11[%c16_661, %c20_662] : memref<64x96xf32, #tpu.memory_space<vmem>>, vector<8x4xf32>
    tpu.vector_store %arg11[%c16_661, %c20_662], %372 {strides = array<i32>} : memref<64x96xf32, #tpu.memory_space<vmem>>, vector<8x4xf32>,
    %c48_663 = arith.constant 48 : index
    %c8_664 = arith.constant 8 : index
    %374 = vector.load %arg10[%c48_663, %c8_664] : memref<64x96xf32, #tpu.memory_space<vmem>>, vector<8x4xf32>
    %c16_665 = arith.constant 16 : index
    %c24_666 = arith.constant 24 : index
    %375 = vector.load %arg11[%c16_665, %c24_666] : memref<64x96xf32, #tpu.memory_space<vmem>>, vector<8x4xf32>
    tpu.vector_store %arg11[%c16_665, %c24_666], %374 {strides = array<i32>} : memref<64x96xf32, #tpu.memory_space<vmem>>, vector<8x4xf32>,
    %c56_667 = arith.constant 56 : index
    %c8_668 = arith.constant 8 : index
    %376 = vector.load %arg10[%c56_667, %c8_668] : memref<64x96xf32, #tpu.memory_space<vmem>>, vector<8x4xf32>
    %c16_669 = arith.constant 16 : index
    %c28_670 = arith.constant 28 : index
    %377 = vector.load %arg11[%c16_669, %c28_670] : memref<64x96xf32, #tpu.memory_space<vmem>>, vector<8x4xf32>
    tpu.vector_store %arg11[%c16_669, %c28_670], %376 {strides = array<i32>} : memref<64x96xf32, #tpu.memory_space<vmem>>, vector<8x4xf32>,
    %c0_671 = arith.constant 0 : index
    %c12_672 = arith.constant 12 : index
    %378 = vector.load %arg10[%c0_671, %c12_672] : memref<64x96xf32, #tpu.memory_space<vmem>>, vector<8x4xf32>
    %c24_673 = arith.constant 24 : index
    %c0_674 = arith.constant 0 : index
    %379 = vector.load %arg11[%c24_673, %c0_674] : memref<64x96xf32, #tpu.memory_space<vmem>>, vector<8x4xf32>
    tpu.vector_store %arg11[%c24_673, %c0_674], %378 {strides = array<i32>} : memref<64x96xf32, #tpu.memory_space<vmem>>, vector<8x4xf32>,
    %c8_675 = arith.constant 8 : index
    %c12_676 = arith.constant 12 : index
    %380 = vector.load %arg10[%c8_675, %c12_676] : memref<64x96xf32, #tpu.memory_space<vmem>>, vector<8x4xf32>
    %c24_677 = arith.constant 24 : index
    %c4_678 = arith.constant 4 : index
    %381 = vector.load %arg11[%c24_677, %c4_678] : memref<64x96xf32, #tpu.memory_space<vmem>>, vector<8x4xf32>
    tpu.vector_store %arg11[%c24_677, %c4_678], %380 {strides = array<i32>} : memref<64x96xf32, #tpu.memory_space<vmem>>, vector<8x4xf32>,
    %c16_679 = arith.constant 16 : index
    %c12_680 = arith.constant 12 : index
    %382 = vector.load %arg10[%c16_679, %c12_680] : memref<64x96xf32, #tpu.memory_space<vmem>>, vector<8x4xf32>
    %c24_681 = arith.constant 24 : index
    %c8_682 = arith.constant 8 : index
    %383 = vector.load %arg11[%c24_681, %c8_682] : memref<64x96xf32, #tpu.memory_space<vmem>>, vector<8x4xf32>
    tpu.vector_store %arg11[%c24_681, %c8_682], %382 {strides = array<i32>} : memref<64x96xf32, #tpu.memory_space<vmem>>, vector<8x4xf32>,
    %c24_683 = arith.constant 24 : index
    %c12_684 = arith.constant 12 : index
    %384 = vector.load %arg10[%c24_683, %c12_684] : memref<64x96xf32, #tpu.memory_space<vmem>>, vector<8x4xf32>
    %c24_685 = arith.constant 24 : index
    %c12_686 = arith.constant 12 : index
    %385 = vector.load %arg11[%c24_685, %c12_686] : memref<64x96xf32, #tpu.memory_space<vmem>>, vector<8x4xf32>
    tpu.vector_store %arg11[%c24_685, %c12_686], %384 {strides = array<i32>} : memref<64x96xf32, #tpu.memory_space<vmem>>, vector<8x4xf32>,
    %c32_687 = arith.constant 32 : index
    %c12_688 = arith.constant 12 : index
    %386 = vector.load %arg10[%c32_687, %c12_688] : memref<64x96xf32, #tpu.memory_space<vmem>>, vector<8x4xf32>
    %c24_689 = arith.constant 24 : index
    %c16_690 = arith.constant 16 : index
    %387 = vector.load %arg11[%c24_689, %c16_690] : memref<64x96xf32, #tpu.memory_space<vmem>>, vector<8x4xf32>
    tpu.vector_store %arg11[%c24_689, %c16_690], %386 {strides = array<i32>} : memref<64x96xf32, #tpu.memory_space<vmem>>, vector<8x4xf32>,
    %c40_691 = arith.constant 40 : index
    %c12_692 = arith.constant 12 : index
    %388 = vector.load %arg10[%c40_691, %c12_692] : memref<64x96xf32, #tpu.memory_space<vmem>>, vector<8x4xf32>
    %c24_693 = arith.constant 24 : index
    %c20_694 = arith.constant 20 : index
    %389 = vector.load %arg11[%c24_693, %c20_694] : memref<64x96xf32, #tpu.memory_space<vmem>>, vector<8x4xf32>
    tpu.vector_store %arg11[%c24_693, %c20_694], %388 {strides = array<i32>} : memref<64x96xf32, #tpu.memory_space<vmem>>, vector<8x4xf32>,
    %c48_695 = arith.constant 48 : index
    %c12_696 = arith.constant 12 : index
    %390 = vector.load %arg10[%c48_695, %c12_696] : memref<64x96xf32, #tpu.memory_space<vmem>>, vector<8x4xf32>
    %c24_697 = arith.constant 24 : index
    %c24_698 = arith.constant 24 : index
    %391 = vector.load %arg11[%c24_697, %c24_698] : memref<64x96xf32, #tpu.memory_space<vmem>>, vector<8x4xf32>
    tpu.vector_store %arg11[%c24_697, %c24_698], %390 {strides = array<i32>} : memref<64x96xf32, #tpu.memory_space<vmem>>, vector<8x4xf32>,
    %c56_699 = arith.constant 56 : index
    %c12_700 = arith.constant 12 : index
    %392 = vector.load %arg10[%c56_699, %c12_700] : memref<64x96xf32, #tpu.memory_space<vmem>>, vector<8x4xf32>
    %c24_701 = arith.constant 24 : index
    %c28_702 = arith.constant 28 : index
    %393 = vector.load %arg11[%c24_701, %c28_702] : memref<64x96xf32, #tpu.memory_space<vmem>>, vector<8x4xf32>
    tpu.vector_store %arg11[%c24_701, %c28_702], %392 {strides = array<i32>} : memref<64x96xf32, #tpu.memory_space<vmem>>, vector<8x4xf32>,
    %c0_703 = arith.constant 0 : index
    %c16_704 = arith.constant 16 : index
    %394 = vector.load %arg10[%c0_703, %c16_704] : memref<64x96xf32, #tpu.memory_space<vmem>>, vector<8x4xf32>
    %c32_705 = arith.constant 32 : index
    %c0_706 = arith.constant 0 : index
    %395 = vector.load %arg11[%c32_705, %c0_706] : memref<64x96xf32, #tpu.memory_space<vmem>>, vector<8x4xf32>
    tpu.vector_store %arg11[%c32_705, %c0_706], %394 {strides = array<i32>} : memref<64x96xf32, #tpu.memory_space<vmem>>, vector<8x4xf32>,
    %c8_707 = arith.constant 8 : index
    %c16_708 = arith.constant 16 : index
    %396 = vector.load %arg10[%c8_707, %c16_708] : memref<64x96xf32, #tpu.memory_space<vmem>>, vector<8x4xf32>
    %c32_709 = arith.constant 32 : index
    %c4_710 = arith.constant 4 : index
    %397 = vector.load %arg11[%c32_709, %c4_710] : memref<64x96xf32, #tpu.memory_space<vmem>>, vector<8x4xf32>
    tpu.vector_store %arg11[%c32_709, %c4_710], %396 {strides = array<i32>} : memref<64x96xf32, #tpu.memory_space<vmem>>, vector<8x4xf32>,
    %c16_711 = arith.constant 16 : index
    %c16_712 = arith.constant 16 : index
    %398 = vector.load %arg10[%c16_711, %c16_712] : memref<64x96xf32, #tpu.memory_space<vmem>>, vector<8x4xf32>
    %c32_713 = arith.constant 32 : index
    %c8_714 = arith.constant 8 : index
    %399 = vector.load %arg11[%c32_713, %c8_714] : memref<64x96xf32, #tpu.memory_space<vmem>>, vector<8x4xf32>
    tpu.vector_store %arg11[%c32_713, %c8_714], %398 {strides = array<i32>} : memref<64x96xf32, #tpu.memory_space<vmem>>, vector<8x4xf32>,
    %c24_715 = arith.constant 24 : index
    %c16_716 = arith.constant 16 : index
    %400 = vector.load %arg10[%c24_715, %c16_716] : memref<64x96xf32, #tpu.memory_space<vmem>>, vector<8x4xf32>
    %c32_717 = arith.constant 32 : index
    %c12_718 = arith.constant 12 : index
    %401 = vector.load %arg11[%c32_717, %c12_718] : memref<64x96xf32, #tpu.memory_space<vmem>>, vector<8x4xf32>
    tpu.vector_store %arg11[%c32_717, %c12_718], %400 {strides = array<i32>} : memref<64x96xf32, #tpu.memory_space<vmem>>, vector<8x4xf32>,
    %c32_719 = arith.constant 32 : index
    %c16_720 = arith.constant 16 : index
    %402 = vector.load %arg10[%c32_719, %c16_720] : memref<64x96xf32, #tpu.memory_space<vmem>>, vector<8x4xf32>
    %c32_721 = arith.constant 32 : index
    %c16_722 = arith.constant 16 : index
    %403 = vector.load %arg11[%c32_721, %c16_722] : memref<64x96xf32, #tpu.memory_space<vmem>>, vector<8x4xf32>
    tpu.vector_store %arg11[%c32_721, %c16_722], %402 {strides = array<i32>} : memref<64x96xf32, #tpu.memory_space<vmem>>, vector<8x4xf32>,
    %c40_723 = arith.constant 40 : index
    %c16_724 = arith.constant 16 : index
    %404 = vector.load %arg10[%c40_723, %c16_724] : memref<64x96xf32, #tpu.memory_space<vmem>>, vector<8x4xf32>
    %c32_725 = arith.constant 32 : index
    %c20_726 = arith.constant 20 : index
    %405 = vector.load %arg11[%c32_725, %c20_726] : memref<64x96xf32, #tpu.memory_space<vmem>>, vector<8x4xf32>
    tpu.vector_store %arg11[%c32_725, %c20_726], %404 {strides = array<i32>} : memref<64x96xf32, #tpu.memory_space<vmem>>, vector<8x4xf32>,
    %c48_727 = arith.constant 48 : index
    %c16_728 = arith.constant 16 : index
    %406 = vector.load %arg10[%c48_727, %c16_728] : memref<64x96xf32, #tpu.memory_space<vmem>>, vector<8x4xf32>
    %c32_729 = arith.constant 32 : index
    %c24_730 = arith.constant 24 : index
    %407 = vector.load %arg11[%c32_729, %c24_730] : memref<64x96xf32, #tpu.memory_space<vmem>>, vector<8x4xf32>
    tpu.vector_store %arg11[%c32_729, %c24_730], %406 {strides = array<i32>} : memref<64x96xf32, #tpu.memory_space<vmem>>, vector<8x4xf32>,
    %c56_731 = arith.constant 56 : index
    %c16_732 = arith.constant 16 : index
    %408 = vector.load %arg10[%c56_731, %c16_732] : memref<64x96xf32, #tpu.memory_space<vmem>>, vector<8x4xf32>
    %c32_733 = arith.constant 32 : index
    %c28_734 = arith.constant 28 : index
    %409 = vector.load %arg11[%c32_733, %c28_734] : memref<64x96xf32, #tpu.memory_space<vmem>>, vector<8x4xf32>
    tpu.vector_store %arg11[%c32_733, %c28_734], %408 {strides = array<i32>} : memref<64x96xf32, #tpu.memory_space<vmem>>, vector<8x4xf32>,
    %c0_735 = arith.constant 0 : index
    %c20_736 = arith.constant 20 : index
    %410 = vector.load %arg10[%c0_735, %c20_736] : memref<64x96xf32, #tpu.memory_space<vmem>>, vector<8x4xf32>
    %c40_737 = arith.constant 40 : index
    %c0_738 = arith.constant 0 : index
    %411 = vector.load %arg11[%c40_737, %c0_738] : memref<64x96xf32, #tpu.memory_space<vmem>>, vector<8x4xf32>
    tpu.vector_store %arg11[%c40_737, %c0_738], %410 {strides = array<i32>} : memref<64x96xf32, #tpu.memory_space<vmem>>, vector<8x4xf32>,
    %c8_739 = arith.constant 8 : index
    %c20_740 = arith.constant 20 : index
    %412 = vector.load %arg10[%c8_739, %c20_740] : memref<64x96xf32, #tpu.memory_space<vmem>>, vector<8x4xf32>
    %c40_741 = arith.constant 40 : index
    %c4_742 = arith.constant 4 : index
    %413 = vector.load %arg11[%c40_741, %c4_742] : memref<64x96xf32, #tpu.memory_space<vmem>>, vector<8x4xf32>
    tpu.vector_store %arg11[%c40_741, %c4_742], %412 {strides = array<i32>} : memref<64x96xf32, #tpu.memory_space<vmem>>, vector<8x4xf32>,
    %c16_743 = arith.constant 16 : index
    %c20_744 = arith.constant 20 : index
    %414 = vector.load %arg10[%c16_743, %c20_744] : memref<64x96xf32, #tpu.memory_space<vmem>>, vector<8x4xf32>
    %c40_745 = arith.constant 40 : index
    %c8_746 = arith.constant 8 : index
    %415 = vector.load %arg11[%c40_745, %c8_746] : memref<64x96xf32, #tpu.memory_space<vmem>>, vector<8x4xf32>
    tpu.vector_store %arg11[%c40_745, %c8_746], %414 {strides = array<i32>} : memref<64x96xf32, #tpu.memory_space<vmem>>, vector<8x4xf32>,
    %c24_747 = arith.constant 24 : index
    %c20_748 = arith.constant 20 : index
    %416 = vector.load %arg10[%c24_747, %c20_748] : memref<64x96xf32, #tpu.memory_space<vmem>>, vector<8x4xf32>
    %c40_749 = arith.constant 40 : index
    %c12_750 = arith.constant 12 : index
    %417 = vector.load %arg11[%c40_749, %c12_750] : memref<64x96xf32, #tpu.memory_space<vmem>>, vector<8x4xf32>
    tpu.vector_store %arg11[%c40_749, %c12_750], %416 {strides = array<i32>} : memref<64x96xf32, #tpu.memory_space<vmem>>, vector<8x4xf32>,
    %c32_751 = arith.constant 32 : index
    %c20_752 = arith.constant 20 : index
    %418 = vector.load %arg10[%c32_751, %c20_752] : memref<64x96xf32, #tpu.memory_space<vmem>>, vector<8x4xf32>
    %c40_753 = arith.constant 40 : index
    %c16_754 = arith.constant 16 : index
    %419 = vector.load %arg11[%c40_753, %c16_754] : memref<64x96xf32, #tpu.memory_space<vmem>>, vector<8x4xf32>
    tpu.vector_store %arg11[%c40_753, %c16_754], %418 {strides = array<i32>} : memref<64x96xf32, #tpu.memory_space<vmem>>, vector<8x4xf32>,
    %c40_755 = arith.constant 40 : index
    %c20_756 = arith.constant 20 : index
    %420 = vector.load %arg10[%c40_755, %c20_756] : memref<64x96xf32, #tpu.memory_space<vmem>>, vector<8x4xf32>
    %c40_757 = arith.constant 40 : index
    %c20_758 = arith.constant 20 : index
    %421 = vector.load %arg11[%c40_757, %c20_758] : memref<64x96xf32, #tpu.memory_space<vmem>>, vector<8x4xf32>
    tpu.vector_store %arg11[%c40_757, %c20_758], %420 {strides = array<i32>} : memref<64x96xf32, #tpu.memory_space<vmem>>, vector<8x4xf32>,
    %c48_759 = arith.constant 48 : index
    %c20_760 = arith.constant 20 : index
    %422 = vector.load %arg10[%c48_759, %c20_760] : memref<64x96xf32, #tpu.memory_space<vmem>>, vector<8x4xf32>
    %c40_761 = arith.constant 40 : index
    %c24_762 = arith.constant 24 : index
    %423 = vector.load %arg11[%c40_761, %c24_762] : memref<64x96xf32, #tpu.memory_space<vmem>>, vector<8x4xf32>
    tpu.vector_store %arg11[%c40_761, %c24_762], %422 {strides = array<i32>} : memref<64x96xf32, #tpu.memory_space<vmem>>, vector<8x4xf32>,
    %c56_763 = arith.constant 56 : index
    %c20_764 = arith.constant 20 : index
    %424 = vector.load %arg10[%c56_763, %c20_764] : memref<64x96xf32, #tpu.memory_space<vmem>>, vector<8x4xf32>
    %c40_765 = arith.constant 40 : index
    %c28_766 = arith.constant 28 : index
    %425 = vector.load %arg11[%c40_765, %c28_766] : memref<64x96xf32, #tpu.memory_space<vmem>>, vector<8x4xf32>
    tpu.vector_store %arg11[%c40_765, %c28_766], %424 {strides = array<i32>} : memref<64x96xf32, #tpu.memory_space<vmem>>, vector<8x4xf32>,
    %c0_767 = arith.constant 0 : index
    %c24_768 = arith.constant 24 : index
    %426 = vector.load %arg10[%c0_767, %c24_768] : memref<64x96xf32, #tpu.memory_space<vmem>>, vector<8x4xf32>
    %c48_769 = arith.constant 48 : index
    %c0_770 = arith.constant 0 : index
    %427 = vector.load %arg11[%c48_769, %c0_770] : memref<64x96xf32, #tpu.memory_space<vmem>>, vector<8x4xf32>
    tpu.vector_store %arg11[%c48_769, %c0_770], %426 {strides = array<i32>} : memref<64x96xf32, #tpu.memory_space<vmem>>, vector<8x4xf32>,
    %c8_771 = arith.constant 8 : index
    %c24_772 = arith.constant 24 : index
    %428 = vector.load %arg10[%c8_771, %c24_772] : memref<64x96xf32, #tpu.memory_space<vmem>>, vector<8x4xf32>
    %c48_773 = arith.constant 48 : index
    %c4_774 = arith.constant 4 : index
    %429 = vector.load %arg11[%c48_773, %c4_774] : memref<64x96xf32, #tpu.memory_space<vmem>>, vector<8x4xf32>
    tpu.vector_store %arg11[%c48_773, %c4_774], %428 {strides = array<i32>} : memref<64x96xf32, #tpu.memory_space<vmem>>, vector<8x4xf32>,
    %c16_775 = arith.constant 16 : index
    %c24_776 = arith.constant 24 : index
    %430 = vector.load %arg10[%c16_775, %c24_776] : memref<64x96xf32, #tpu.memory_space<vmem>>, vector<8x4xf32>
    %c48_777 = arith.constant 48 : index
    %c8_778 = arith.constant 8 : index
    %431 = vector.load %arg11[%c48_777, %c8_778] : memref<64x96xf32, #tpu.memory_space<vmem>>, vector<8x4xf32>
    tpu.vector_store %arg11[%c48_777, %c8_778], %430 {strides = array<i32>} : memref<64x96xf32, #tpu.memory_space<vmem>>, vector<8x4xf32>,
    %c24_779 = arith.constant 24 : index
    %c24_780 = arith.constant 24 : index
    %432 = vector.load %arg10[%c24_779, %c24_780] : memref<64x96xf32, #tpu.memory_space<vmem>>, vector<8x4xf32>
    %c48_781 = arith.constant 48 : index
    %c12_782 = arith.constant 12 : index
    %433 = vector.load %arg11[%c48_781, %c12_782] : memref<64x96xf32, #tpu.memory_space<vmem>>, vector<8x4xf32>
    tpu.vector_store %arg11[%c48_781, %c12_782], %432 {strides = array<i32>} : memref<64x96xf32, #tpu.memory_space<vmem>>, vector<8x4xf32>,
    %c32_783 = arith.constant 32 : index
    %c24_784 = arith.constant 24 : index
    %434 = vector.load %arg10[%c32_783, %c24_784] : memref<64x96xf32, #tpu.memory_space<vmem>>, vector<8x4xf32>
    %c48_785 = arith.constant 48 : index
    %c16_786 = arith.constant 16 : index
    %435 = vector.load %arg11[%c48_785, %c16_786] : memref<64x96xf32, #tpu.memory_space<vmem>>, vector<8x4xf32>
    tpu.vector_store %arg11[%c48_785, %c16_786], %434 {strides = array<i32>} : memref<64x96xf32, #tpu.memory_space<vmem>>, vector<8x4xf32>,
    %c40_787 = arith.constant 40 : index
    %c24_788 = arith.constant 24 : index
    %436 = vector.load %arg10[%c40_787, %c24_788] : memref<64x96xf32, #tpu.memory_space<vmem>>, vector<8x4xf32>
    %c48_789 = arith.constant 48 : index
    %c20_790 = arith.constant 20 : index
    %437 = vector.load %arg11[%c48_789, %c20_790] : memref<64x96xf32, #tpu.memory_space<vmem>>, vector<8x4xf32>
    tpu.vector_store %arg11[%c48_789, %c20_790], %436 {strides = array<i32>} : memref<64x96xf32, #tpu.memory_space<vmem>>, vector<8x4xf32>,
    %c48_791 = arith.constant 48 : index
    %c24_792 = arith.constant 24 : index
    %438 = vector.load %arg10[%c48_791, %c24_792] : memref<64x96xf32, #tpu.memory_space<vmem>>, vector<8x4xf32>
    %c48_793 = arith.constant 48 : index
    %c24_794 = arith.constant 24 : index
    %439 = vector.load %arg11[%c48_793, %c24_794] : memref<64x96xf32, #tpu.memory_space<vmem>>, vector<8x4xf32>
    tpu.vector_store %arg11[%c48_793, %c24_794], %438 {strides = array<i32>} : memref<64x96xf32, #tpu.memory_space<vmem>>, vector<8x4xf32>,
    %c56_795 = arith.constant 56 : index
    %c24_796 = arith.constant 24 : index
    %440 = vector.load %arg10[%c56_795, %c24_796] : memref<64x96xf32, #tpu.memory_space<vmem>>, vector<8x4xf32>
    %c48_797 = arith.constant 48 : index
    %c28_798 = arith.constant 28 : index
    %441 = vector.load %arg11[%c48_797, %c28_798] : memref<64x96xf32, #tpu.memory_space<vmem>>, vector<8x4xf32>
    tpu.vector_store %arg11[%c48_797, %c28_798], %440 {strides = array<i32>} : memref<64x96xf32, #tpu.memory_space<vmem>>, vector<8x4xf32>,
    %c0_799 = arith.constant 0 : index
    %c28_800 = arith.constant 28 : index
    %442 = vector.load %arg10[%c0_799, %c28_800] : memref<64x96xf32, #tpu.memory_space<vmem>>, vector<8x4xf32>
    %c56_801 = arith.constant 56 : index
    %c0_802 = arith.constant 0 : index
    %443 = vector.load %arg11[%c56_801, %c0_802] : memref<64x96xf32, #tpu.memory_space<vmem>>, vector<8x4xf32>
    tpu.vector_store %arg11[%c56_801, %c0_802], %442 {strides = array<i32>} : memref<64x96xf32, #tpu.memory_space<vmem>>, vector<8x4xf32>,
    %c8_803 = arith.constant 8 : index
    %c28_804 = arith.constant 28 : index
    %444 = vector.load %arg10[%c8_803, %c28_804] : memref<64x96xf32, #tpu.memory_space<vmem>>, vector<8x4xf32>
    %c56_805 = arith.constant 56 : index
    %c4_806 = arith.constant 4 : index
    %445 = vector.load %arg11[%c56_805, %c4_806] : memref<64x96xf32, #tpu.memory_space<vmem>>, vector<8x4xf32>
    tpu.vector_store %arg11[%c56_805, %c4_806], %444 {strides = array<i32>} : memref<64x96xf32, #tpu.memory_space<vmem>>, vector<8x4xf32>,
    %c16_807 = arith.constant 16 : index
    %c28_808 = arith.constant 28 : index
    %446 = vector.load %arg10[%c16_807, %c28_808] : memref<64x96xf32, #tpu.memory_space<vmem>>, vector<8x4xf32>
    %c56_809 = arith.constant 56 : index
    %c8_810 = arith.constant 8 : index
    %447 = vector.load %arg11[%c56_809, %c8_810] : memref<64x96xf32, #tpu.memory_space<vmem>>, vector<8x4xf32>
    tpu.vector_store %arg11[%c56_809, %c8_810], %446 {strides = array<i32>} : memref<64x96xf32, #tpu.memory_space<vmem>>, vector<8x4xf32>,
    %c24_811 = arith.constant 24 : index
    %c28_812 = arith.constant 28 : index
    %448 = vector.load %arg10[%c24_811, %c28_812] : memref<64x96xf32, #tpu.memory_space<vmem>>, vector<8x4xf32>
    %c56_813 = arith.constant 56 : index
    %c12_814 = arith.constant 12 : index
    %449 = vector.load %arg11[%c56_813, %c12_814] : memref<64x96xf32, #tpu.memory_space<vmem>>, vector<8x4xf32>
    tpu.vector_store %arg11[%c56_813, %c12_814], %448 {strides = array<i32>} : memref<64x96xf32, #tpu.memory_space<vmem>>, vector<8x4xf32>,
    %c32_815 = arith.constant 32 : index
    %c28_816 = arith.constant 28 : index
    %450 = vector.load %arg10[%c32_815, %c28_816] : memref<64x96xf32, #tpu.memory_space<vmem>>, vector<8x4xf32>
    %c56_817 = arith.constant 56 : index
    %c16_818 = arith.constant 16 : index
    %451 = vector.load %arg11[%c56_817, %c16_818] : memref<64x96xf32, #tpu.memory_space<vmem>>, vector<8x4xf32>
    tpu.vector_store %arg11[%c56_817, %c16_818], %450 {strides = array<i32>} : memref<64x96xf32, #tpu.memory_space<vmem>>, vector<8x4xf32>,
    %c40_819 = arith.constant 40 : index
    %c28_820 = arith.constant 28 : index
    %452 = vector.load %arg10[%c40_819, %c28_820] : memref<64x96xf32, #tpu.memory_space<vmem>>, vector<8x4xf32>
    %c56_821 = arith.constant 56 : index
    %c20_822 = arith.constant 20 : index
    %453 = vector.load %arg11[%c56_821, %c20_822] : memref<64x96xf32, #tpu.memory_space<vmem>>, vector<8x4xf32>
    tpu.vector_store %arg11[%c56_821, %c20_822], %452 {strides = array<i32>} : memref<64x96xf32, #tpu.memory_space<vmem>>, vector<8x4xf32>,
    %c48_823 = arith.constant 48 : index
    %c28_824 = arith.constant 28 : index
    %454 = vector.load %arg10[%c48_823, %c28_824] : memref<64x96xf32, #tpu.memory_space<vmem>>, vector<8x4xf32>
    %c56_825 = arith.constant 56 : index
    %c24_826 = arith.constant 24 : index
    %455 = vector.load %arg11[%c56_825, %c24_826] : memref<64x96xf32, #tpu.memory_space<vmem>>, vector<8x4xf32>
    tpu.vector_store %arg11[%c56_825, %c24_826], %454 {strides = array<i32>} : memref<64x96xf32, #tpu.memory_space<vmem>>, vector<8x4xf32>,
    %c56_827 = arith.constant 56 : index
    %c28_828 = arith.constant 28 : index
    %456 = vector.load %arg10[%c56_827, %c28_828] : memref<64x96xf32, #tpu.memory_space<vmem>>, vector<8x4xf32>
    %c56_829 = arith.constant 56 : index
    %c28_830 = arith.constant 28 : index
    %457 = vector.load %arg11[%c56_829, %c28_830] : memref<64x96xf32, #tpu.memory_space<vmem>>, vector<8x4xf32>
    tpu.vector_store %arg11[%c56_829, %c28_830], %456 {strides = array<i32>} : memref<64x96xf32, #tpu.memory_space<vmem>>, vector<8x4xf32>,
    %c0_831 = arith.constant 0 : index
    %c32_832 = arith.constant 32 : index
    %458 = vector.load %arg10[%c0_831, %c32_832] : memref<64x96xf32, #tpu.memory_space<vmem>>, vector<8x4xf32>
    %c0_833 = arith.constant 0 : index
    %c0_834 = arith.constant 0 : index
    %459 = vector.load %arg13[%c0_833, %c0_834] : memref<64x32xf32, #tpu.memory_space<vmem>>, vector<8x4xf32>
    tpu.vector_store %arg13[%c0_833, %c0_834], %458 {strides = array<i32>} : memref<64x32xf32, #tpu.memory_space<vmem>>, vector<8x4xf32>,
    %c8_835 = arith.constant 8 : index
    %c32_836 = arith.constant 32 : index
    %460 = vector.load %arg10[%c8_835, %c32_836] : memref<64x96xf32, #tpu.memory_space<vmem>>, vector<8x4xf32>
    %c0_837 = arith.constant 0 : index
    %c4_838 = arith.constant 4 : index
    %461 = vector.load %arg13[%c0_837, %c4_838] : memref<64x32xf32, #tpu.memory_space<vmem>>, vector<8x4xf32>
    tpu.vector_store %arg13[%c0_837, %c4_838], %460 {strides = array<i32>} : memref<64x32xf32, #tpu.memory_space<vmem>>, vector<8x4xf32>,
    %c16_839 = arith.constant 16 : index
    %c32_840 = arith.constant 32 : index
    %462 = vector.load %arg10[%c16_839, %c32_840] : memref<64x96xf32, #tpu.memory_space<vmem>>, vector<8x4xf32>
    %c0_841 = arith.constant 0 : index
    %c8_842 = arith.constant 8 : index
    %463 = vector.load %arg13[%c0_841, %c8_842] : memref<64x32xf32, #tpu.memory_space<vmem>>, vector<8x4xf32>
    tpu.vector_store %arg13[%c0_841, %c8_842], %462 {strides = array<i32>} : memref<64x32xf32, #tpu.memory_space<vmem>>, vector<8x4xf32>,
    %c24_843 = arith.constant 24 : index
    %c32_844 = arith.constant 32 : index
    %464 = vector.load %arg10[%c24_843, %c32_844] : memref<64x96xf32, #tpu.memory_space<vmem>>, vector<8x4xf32>
    %c0_845 = arith.constant 0 : index
    %c12_846 = arith.constant 12 : index
    %465 = vector.load %arg13[%c0_845, %c12_846] : memref<64x32xf32, #tpu.memory_space<vmem>>, vector<8x4xf32>
    tpu.vector_store %arg13[%c0_845, %c12_846], %464 {strides = array<i32>} : memref<64x32xf32, #tpu.memory_space<vmem>>, vector<8x4xf32>,
    %c32_847 = arith.constant 32 : index
    %c32_848 = arith.constant 32 : index
    %466 = vector.load %arg10[%c32_847, %c32_848] : memref<64x96xf32, #tpu.memory_space<vmem>>, vector<8x4xf32>
    %c0_849 = arith.constant 0 : index
    %c16_850 = arith.constant 16 : index
    %467 = vector.load %arg13[%c0_849, %c16_850] : memref<64x32xf32, #tpu.memory_space<vmem>>, vector<8x4xf32>
    tpu.vector_store %arg13[%c0_849, %c16_850], %466 {strides = array<i32>} : memref<64x32xf32, #tpu.memory_space<vmem>>, vector<8x4xf32>,
    %c40_851 = arith.constant 40 : index
    %c32_852 = arith.constant 32 : index
    %468 = vector.load %arg10[%c40_851, %c32_852] : memref<64x96xf32, #tpu.memory_space<vmem>>, vector<8x4xf32>
    %c0_853 = arith.constant 0 : index
    %c20_854 = arith.constant 20 : index
    %469 = vector.load %arg13[%c0_853, %c20_854] : memref<64x32xf32, #tpu.memory_space<vmem>>, vector<8x4xf32>
    tpu.vector_store %arg13[%c0_853, %c20_854], %468 {strides = array<i32>} : memref<64x32xf32, #tpu.memory_space<vmem>>, vector<8x4xf32>,
    %c48_855 = arith.constant 48 : index
    %c32_856 = arith.constant 32 : index
    %470 = vector.load %arg10[%c48_855, %c32_856] : memref<64x96xf32, #tpu.memory_space<vmem>>, vector<8x4xf32>
    %c0_857 = arith.constant 0 : index
    %c24_858 = arith.constant 24 : index
    %471 = vector.load %arg13[%c0_857, %c24_858] : memref<64x32xf32, #tpu.memory_space<vmem>>, vector<8x4xf32>
    tpu.vector_store %arg13[%c0_857, %c24_858], %470 {strides = array<i32>} : memref<64x32xf32, #tpu.memory_space<vmem>>, vector<8x4xf32>,
    %c56_859 = arith.constant 56 : index
    %c32_860 = arith.constant 32 : index
    %472 = vector.load %arg10[%c56_859, %c32_860] : memref<64x96xf32, #tpu.memory_space<vmem>>, vector<8x4xf32>
    %c0_861 = arith.constant 0 : index
    %c28_862 = arith.constant 28 : index
    %473 = vector.load %arg13[%c0_861, %c28_862] : memref<64x32xf32, #tpu.memory_space<vmem>>, vector<8x4xf32>
    tpu.vector_store %arg13[%c0_861, %c28_862], %472 {strides = array<i32>} : memref<64x32xf32, #tpu.memory_space<vmem>>, vector<8x4xf32>,
    %c0_863 = arith.constant 0 : index
    %c36_864 = arith.constant 36 : index
    %474 = vector.load %arg10[%c0_863, %c36_864] : memref<64x96xf32, #tpu.memory_space<vmem>>, vector<8x4xf32>
    %c8_865 = arith.constant 8 : index
    %c0_866 = arith.constant 0 : index
    %475 = vector.load %arg13[%c8_865, %c0_866] : memref<64x32xf32, #tpu.memory_space<vmem>>, vector<8x4xf32>
    tpu.vector_store %arg13[%c8_865, %c0_866], %474 {strides = array<i32>} : memref<64x32xf32, #tpu.memory_space<vmem>>, vector<8x4xf32>,
    %c8_867 = arith.constant 8 : index
    %c36_868 = arith.constant 36 : index
    %476 = vector.load %arg10[%c8_867, %c36_868] : memref<64x96xf32, #tpu.memory_space<vmem>>, vector<8x4xf32>
    %c8_869 = arith.constant 8 : index
    %c4_870 = arith.constant 4 : index
    %477 = vector.load %arg13[%c8_869, %c4_870] : memref<64x32xf32, #tpu.memory_space<vmem>>, vector<8x4xf32>
    tpu.vector_store %arg13[%c8_869, %c4_870], %476 {strides = array<i32>} : memref<64x32xf32, #tpu.memory_space<vmem>>, vector<8x4xf32>,
    %c16_871 = arith.constant 16 : index
    %c36_872 = arith.constant 36 : index
    %478 = vector.load %arg10[%c16_871, %c36_872] : memref<64x96xf32, #tpu.memory_space<vmem>>, vector<8x4xf32>
    %c8_873 = arith.constant 8 : index
    %c8_874 = arith.constant 8 : index
    %479 = vector.load %arg13[%c8_873, %c8_874] : memref<64x32xf32, #tpu.memory_space<vmem>>, vector<8x4xf32>
    tpu.vector_store %arg13[%c8_873, %c8_874], %478 {strides = array<i32>} : memref<64x32xf32, #tpu.memory_space<vmem>>, vector<8x4xf32>,
    %c24_875 = arith.constant 24 : index
    %c36_876 = arith.constant 36 : index
    %480 = vector.load %arg10[%c24_875, %c36_876] : memref<64x96xf32, #tpu.memory_space<vmem>>, vector<8x4xf32>
    %c8_877 = arith.constant 8 : index
    %c12_878 = arith.constant 12 : index
    %481 = vector.load %arg13[%c8_877, %c12_878] : memref<64x32xf32, #tpu.memory_space<vmem>>, vector<8x4xf32>
    tpu.vector_store %arg13[%c8_877, %c12_878], %480 {strides = array<i32>} : memref<64x32xf32, #tpu.memory_space<vmem>>, vector<8x4xf32>,
    %c32_879 = arith.constant 32 : index
    %c36_880 = arith.constant 36 : index
    %482 = vector.load %arg10[%c32_879, %c36_880] : memref<64x96xf32, #tpu.memory_space<vmem>>, vector<8x4xf32>
    %c8_881 = arith.constant 8 : index
    %c16_882 = arith.constant 16 : index
    %483 = vector.load %arg13[%c8_881, %c16_882] : memref<64x32xf32, #tpu.memory_space<vmem>>, vector<8x4xf32>
    tpu.vector_store %arg13[%c8_881, %c16_882], %482 {strides = array<i32>} : memref<64x32xf32, #tpu.memory_space<vmem>>, vector<8x4xf32>,
    %c40_883 = arith.constant 40 : index
    %c36_884 = arith.constant 36 : index
    %484 = vector.load %arg10[%c40_883, %c36_884] : memref<64x96xf32, #tpu.memory_space<vmem>>, vector<8x4xf32>
    %c8_885 = arith.constant 8 : index
    %c20_886 = arith.constant 20 : index
    %485 = vector.load %arg13[%c8_885, %c20_886] : memref<64x32xf32, #tpu.memory_space<vmem>>, vector<8x4xf32>
    tpu.vector_store %arg13[%c8_885, %c20_886], %484 {strides = array<i32>} : memref<64x32xf32, #tpu.memory_space<vmem>>, vector<8x4xf32>,
    %c48_887 = arith.constant 48 : index
    %c36_888 = arith.constant 36 : index
    %486 = vector.load %arg10[%c48_887, %c36_888] : memref<64x96xf32, #tpu.memory_space<vmem>>, vector<8x4xf32>
    %c8_889 = arith.constant 8 : index
    %c24_890 = arith.constant 24 : index
    %487 = vector.load %arg13[%c8_889, %c24_890] : memref<64x32xf32, #tpu.memory_space<vmem>>, vector<8x4xf32>
    tpu.vector_store %arg13[%c8_889, %c24_890], %486 {strides = array<i32>} : memref<64x32xf32, #tpu.memory_space<vmem>>, vector<8x4xf32>,
    %c56_891 = arith.constant 56 : index
    %c36_892 = arith.constant 36 : index
    %488 = vector.load %arg10[%c56_891, %c36_892] : memref<64x96xf32, #tpu.memory_space<vmem>>, vector<8x4xf32>
    %c8_893 = arith.constant 8 : index
    %c28_894 = arith.constant 28 : index
    %489 = vector.load %arg13[%c8_893, %c28_894] : memref<64x32xf32, #tpu.memory_space<vmem>>, vector<8x4xf32>
    tpu.vector_store %arg13[%c8_893, %c28_894], %488 {strides = array<i32>} : memref<64x32xf32, #tpu.memory_space<vmem>>, vector<8x4xf32>,
    %c0_895 = arith.constant 0 : index
    %c40_896 = arith.constant 40 : index
    %490 = vector.load %arg10[%c0_895, %c40_896] : memref<64x96xf32, #tpu.memory_space<vmem>>, vector<8x4xf32>
    %c16_897 = arith.constant 16 : index
    %c0_898 = arith.constant 0 : index
    %491 = vector.load %arg13[%c16_897, %c0_898] : memref<64x32xf32, #tpu.memory_space<vmem>>, vector<8x4xf32>
    tpu.vector_store %arg13[%c16_897, %c0_898], %490 {strides = array<i32>} : memref<64x32xf32, #tpu.memory_space<vmem>>, vector<8x4xf32>,
    %c8_899 = arith.constant 8 : index
    %c40_900 = arith.constant 40 : index
    %492 = vector.load %arg10[%c8_899, %c40_900] : memref<64x96xf32, #tpu.memory_space<vmem>>, vector<8x4xf32>
    %c16_901 = arith.constant 16 : index
    %c4_902 = arith.constant 4 : index
    %493 = vector.load %arg13[%c16_901, %c4_902] : memref<64x32xf32, #tpu.memory_space<vmem>>, vector<8x4xf32>
    tpu.vector_store %arg13[%c16_901, %c4_902], %492 {strides = array<i32>} : memref<64x32xf32, #tpu.memory_space<vmem>>, vector<8x4xf32>,
    %c16_903 = arith.constant 16 : index
    %c40_904 = arith.constant 40 : index
    %494 = vector.load %arg10[%c16_903, %c40_904] : memref<64x96xf32, #tpu.memory_space<vmem>>, vector<8x4xf32>
    %c16_905 = arith.constant 16 : index
    %c8_906 = arith.constant 8 : index
    %495 = vector.load %arg13[%c16_905, %c8_906] : memref<64x32xf32, #tpu.memory_space<vmem>>, vector<8x4xf32>
    tpu.vector_store %arg13[%c16_905, %c8_906], %494 {strides = array<i32>} : memref<64x32xf32, #tpu.memory_space<vmem>>, vector<8x4xf32>,
    %c24_907 = arith.constant 24 : index
    %c40_908 = arith.constant 40 : index
    %496 = vector.load %arg10[%c24_907, %c40_908] : memref<64x96xf32, #tpu.memory_space<vmem>>, vector<8x4xf32>
    %c16_909 = arith.constant 16 : index
    %c12_910 = arith.constant 12 : index
    %497 = vector.load %arg13[%c16_909, %c12_910] : memref<64x32xf32, #tpu.memory_space<vmem>>, vector<8x4xf32>
    tpu.vector_store %arg13[%c16_909, %c12_910], %496 {strides = array<i32>} : memref<64x32xf32, #tpu.memory_space<vmem>>, vector<8x4xf32>,
    %c32_911 = arith.constant 32 : index
    %c40_912 = arith.constant 40 : index
    %498 = vector.load %arg10[%c32_911, %c40_912] : memref<64x96xf32, #tpu.memory_space<vmem>>, vector<8x4xf32>
    %c16_913 = arith.constant 16 : index
    %c16_914 = arith.constant 16 : index
    %499 = vector.load %arg13[%c16_913, %c16_914] : memref<64x32xf32, #tpu.memory_space<vmem>>, vector<8x4xf32>
    tpu.vector_store %arg13[%c16_913, %c16_914], %498 {strides = array<i32>} : memref<64x32xf32, #tpu.memory_space<vmem>>, vector<8x4xf32>,
    %c40_915 = arith.constant 40 : index
    %c40_916 = arith.constant 40 : index
    %500 = vector.load %arg10[%c40_915, %c40_916] : memref<64x96xf32, #tpu.memory_space<vmem>>, vector<8x4xf32>
    %c16_917 = arith.constant 16 : index
    %c20_918 = arith.constant 20 : index
    %501 = vector.load %arg13[%c16_917, %c20_918] : memref<64x32xf32, #tpu.memory_space<vmem>>, vector<8x4xf32>
    tpu.vector_store %arg13[%c16_917, %c20_918], %500 {strides = array<i32>} : memref<64x32xf32, #tpu.memory_space<vmem>>, vector<8x4xf32>,
    %c48_919 = arith.constant 48 : index
    %c40_920 = arith.constant 40 : index
    %502 = vector.load %arg10[%c48_919, %c40_920] : memref<64x96xf32, #tpu.memory_space<vmem>>, vector<8x4xf32>
    %c16_921 = arith.constant 16 : index
    %c24_922 = arith.constant 24 : index
    %503 = vector.load %arg13[%c16_921, %c24_922] : memref<64x32xf32, #tpu.memory_space<vmem>>, vector<8x4xf32>
    tpu.vector_store %arg13[%c16_921, %c24_922], %502 {strides = array<i32>} : memref<64x32xf32, #tpu.memory_space<vmem>>, vector<8x4xf32>,
    %c56_923 = arith.constant 56 : index
    %c40_924 = arith.constant 40 : index
    %504 = vector.load %arg10[%c56_923, %c40_924] : memref<64x96xf32, #tpu.memory_space<vmem>>, vector<8x4xf32>
    %c16_925 = arith.constant 16 : index
    %c28_926 = arith.constant 28 : index
    %505 = vector.load %arg13[%c16_925, %c28_926] : memref<64x32xf32, #tpu.memory_space<vmem>>, vector<8x4xf32>
    tpu.vector_store %arg13[%c16_925, %c28_926], %504 {strides = array<i32>} : memref<64x32xf32, #tpu.memory_space<vmem>>, vector<8x4xf32>,
    %c0_927 = arith.constant 0 : index
    %c44_928 = arith.constant 44 : index
    %506 = vector.load %arg10[%c0_927, %c44_928] : memref<64x96xf32, #tpu.memory_space<vmem>>, vector<8x4xf32>
    %c24_929 = arith.constant 24 : index
    %c0_930 = arith.constant 0 : index
    %507 = vector.load %arg13[%c24_929, %c0_930] : memref<64x32xf32, #tpu.memory_space<vmem>>, vector<8x4xf32>
    tpu.vector_store %arg13[%c24_929, %c0_930], %506 {strides = array<i32>} : memref<64x32xf32, #tpu.memory_space<vmem>>, vector<8x4xf32>,
    %c8_931 = arith.constant 8 : index
    %c44_932 = arith.constant 44 : index
    %508 = vector.load %arg10[%c8_931, %c44_932] : memref<64x96xf32, #tpu.memory_space<vmem>>, vector<8x4xf32>
    %c24_933 = arith.constant 24 : index
    %c4_934 = arith.constant 4 : index
    %509 = vector.load %arg13[%c24_933, %c4_934] : memref<64x32xf32, #tpu.memory_space<vmem>>, vector<8x4xf32>
    tpu.vector_store %arg13[%c24_933, %c4_934], %508 {strides = array<i32>} : memref<64x32xf32, #tpu.memory_space<vmem>>, vector<8x4xf32>,
    %c16_935 = arith.constant 16 : index
    %c44_936 = arith.constant 44 : index
    %510 = vector.load %arg10[%c16_935, %c44_936] : memref<64x96xf32, #tpu.memory_space<vmem>>, vector<8x4xf32>
    %c24_937 = arith.constant 24 : index
    %c8_938 = arith.constant 8 : index
    %511 = vector.load %arg13[%c24_937, %c8_938] : memref<64x32xf32, #tpu.memory_space<vmem>>, vector<8x4xf32>
    tpu.vector_store %arg13[%c24_937, %c8_938], %510 {strides = array<i32>} : memref<64x32xf32, #tpu.memory_space<vmem>>, vector<8x4xf32>,
    %c24_939 = arith.constant 24 : index
    %c44_940 = arith.constant 44 : index
    %512 = vector.load %arg10[%c24_939, %c44_940] : memref<64x96xf32, #tpu.memory_space<vmem>>, vector<8x4xf32>
    %c24_941 = arith.constant 24 : index
    %c12_942 = arith.constant 12 : index
    %513 = vector.load %arg13[%c24_941, %c12_942] : memref<64x32xf32, #tpu.memory_space<vmem>>, vector<8x4xf32>
    tpu.vector_store %arg13[%c24_941, %c12_942], %512 {strides = array<i32>} : memref<64x32xf32, #tpu.memory_space<vmem>>, vector<8x4xf32>,
    %c32_943 = arith.constant 32 : index
    %c44_944 = arith.constant 44 : index
    %514 = vector.load %arg10[%c32_943, %c44_944] : memref<64x96xf32, #tpu.memory_space<vmem>>, vector<8x4xf32>
    %c24_945 = arith.constant 24 : index
    %c16_946 = arith.constant 16 : index
    %515 = vector.load %arg13[%c24_945, %c16_946] : memref<64x32xf32, #tpu.memory_space<vmem>>, vector<8x4xf32>
    tpu.vector_store %arg13[%c24_945, %c16_946], %514 {strides = array<i32>} : memref<64x32xf32, #tpu.memory_space<vmem>>, vector<8x4xf32>,
    %c40_947 = arith.constant 40 : index
    %c44_948 = arith.constant 44 : index
    %516 = vector.load %arg10[%c40_947, %c44_948] : memref<64x96xf32, #tpu.memory_space<vmem>>, vector<8x4xf32>
    %c24_949 = arith.constant 24 : index
    %c20_950 = arith.constant 20 : index
    %517 = vector.load %arg13[%c24_949, %c20_950] : memref<64x32xf32, #tpu.memory_space<vmem>>, vector<8x4xf32>
    tpu.vector_store %arg13[%c24_949, %c20_950], %516 {strides = array<i32>} : memref<64x32xf32, #tpu.memory_space<vmem>>, vector<8x4xf32>,
    %c48_951 = arith.constant 48 : index
    %c44_952 = arith.constant 44 : index
    %518 = vector.load %arg10[%c48_951, %c44_952] : memref<64x96xf32, #tpu.memory_space<vmem>>, vector<8x4xf32>
    %c24_953 = arith.constant 24 : index
    %c24_954 = arith.constant 24 : index
    %519 = vector.load %arg13[%c24_953, %c24_954] : memref<64x32xf32, #tpu.memory_space<vmem>>, vector<8x4xf32>
    tpu.vector_store %arg13[%c24_953, %c24_954], %518 {strides = array<i32>} : memref<64x32xf32, #tpu.memory_space<vmem>>, vector<8x4xf32>,
    %c56_955 = arith.constant 56 : index
    %c44_956 = arith.constant 44 : index
    %520 = vector.load %arg10[%c56_955, %c44_956] : memref<64x96xf32, #tpu.memory_space<vmem>>, vector<8x4xf32>
    %c24_957 = arith.constant 24 : index
    %c28_958 = arith.constant 28 : index
    %521 = vector.load %arg13[%c24_957, %c28_958] : memref<64x32xf32, #tpu.memory_space<vmem>>, vector<8x4xf32>
    tpu.vector_store %arg13[%c24_957, %c28_958], %520 {strides = array<i32>} : memref<64x32xf32, #tpu.memory_space<vmem>>, vector<8x4xf32>,
    %c0_959 = arith.constant 0 : index
    %c48_960 = arith.constant 48 : index
    %522 = vector.load %arg10[%c0_959, %c48_960] : memref<64x96xf32, #tpu.memory_space<vmem>>, vector<8x4xf32>
    %c32_961 = arith.constant 32 : index
    %c0_962 = arith.constant 0 : index
    %523 = vector.load %arg13[%c32_961, %c0_962] : memref<64x32xf32, #tpu.memory_space<vmem>>, vector<8x4xf32>
    tpu.vector_store %arg13[%c32_961, %c0_962], %522 {strides = array<i32>} : memref<64x32xf32, #tpu.memory_space<vmem>>, vector<8x4xf32>,
    %c8_963 = arith.constant 8 : index
    %c48_964 = arith.constant 48 : index
    %524 = vector.load %arg10[%c8_963, %c48_964] : memref<64x96xf32, #tpu.memory_space<vmem>>, vector<8x4xf32>
    %c32_965 = arith.constant 32 : index
    %c4_966 = arith.constant 4 : index
    %525 = vector.load %arg13[%c32_965, %c4_966] : memref<64x32xf32, #tpu.memory_space<vmem>>, vector<8x4xf32>
    tpu.vector_store %arg13[%c32_965, %c4_966], %524 {strides = array<i32>} : memref<64x32xf32, #tpu.memory_space<vmem>>, vector<8x4xf32>,
    %c16_967 = arith.constant 16 : index
    %c48_968 = arith.constant 48 : index
    %526 = vector.load %arg10[%c16_967, %c48_968] : memref<64x96xf32, #tpu.memory_space<vmem>>, vector<8x4xf32>
    %c32_969 = arith.constant 32 : index
    %c8_970 = arith.constant 8 : index
    %527 = vector.load %arg13[%c32_969, %c8_970] : memref<64x32xf32, #tpu.memory_space<vmem>>, vector<8x4xf32>
    tpu.vector_store %arg13[%c32_969, %c8_970], %526 {strides = array<i32>} : memref<64x32xf32, #tpu.memory_space<vmem>>, vector<8x4xf32>,
    %c24_971 = arith.constant 24 : index
    %c48_972 = arith.constant 48 : index
    %528 = vector.load %arg10[%c24_971, %c48_972] : memref<64x96xf32, #tpu.memory_space<vmem>>, vector<8x4xf32>
    %c32_973 = arith.constant 32 : index
    %c12_974 = arith.constant 12 : index
    %529 = vector.load %arg13[%c32_973, %c12_974] : memref<64x32xf32, #tpu.memory_space<vmem>>, vector<8x4xf32>
    tpu.vector_store %arg13[%c32_973, %c12_974], %528 {strides = array<i32>} : memref<64x32xf32, #tpu.memory_space<vmem>>, vector<8x4xf32>,
    %c32_975 = arith.constant 32 : index
    %c48_976 = arith.constant 48 : index
    %530 = vector.load %arg10[%c32_975, %c48_976] : memref<64x96xf32, #tpu.memory_space<vmem>>, vector<8x4xf32>
    %c32_977 = arith.constant 32 : index
    %c16_978 = arith.constant 16 : index
    %531 = vector.load %arg13[%c32_977, %c16_978] : memref<64x32xf32, #tpu.memory_space<vmem>>, vector<8x4xf32>
    tpu.vector_store %arg13[%c32_977, %c16_978], %530 {strides = array<i32>} : memref<64x32xf32, #tpu.memory_space<vmem>>, vector<8x4xf32>,
    %c40_979 = arith.constant 40 : index
    %c48_980 = arith.constant 48 : index
    %532 = vector.load %arg10[%c40_979, %c48_980] : memref<64x96xf32, #tpu.memory_space<vmem>>, vector<8x4xf32>
    %c32_981 = arith.constant 32 : index
    %c20_982 = arith.constant 20 : index
    %533 = vector.load %arg13[%c32_981, %c20_982] : memref<64x32xf32, #tpu.memory_space<vmem>>, vector<8x4xf32>
    tpu.vector_store %arg13[%c32_981, %c20_982], %532 {strides = array<i32>} : memref<64x32xf32, #tpu.memory_space<vmem>>, vector<8x4xf32>,
    %c48_983 = arith.constant 48 : index
    %c48_984 = arith.constant 48 : index
    %534 = vector.load %arg10[%c48_983, %c48_984] : memref<64x96xf32, #tpu.memory_space<vmem>>, vector<8x4xf32>
    %c32_985 = arith.constant 32 : index
    %c24_986 = arith.constant 24 : index
    %535 = vector.load %arg13[%c32_985, %c24_986] : memref<64x32xf32, #tpu.memory_space<vmem>>, vector<8x4xf32>
    tpu.vector_store %arg13[%c32_985, %c24_986], %534 {strides = array<i32>} : memref<64x32xf32, #tpu.memory_space<vmem>>, vector<8x4xf32>,
    %c56_987 = arith.constant 56 : index
    %c48_988 = arith.constant 48 : index
    %536 = vector.load %arg10[%c56_987, %c48_988] : memref<64x96xf32, #tpu.memory_space<vmem>>, vector<8x4xf32>
    %c32_989 = arith.constant 32 : index
    %c28_990 = arith.constant 28 : index
    %537 = vector.load %arg13[%c32_989, %c28_990] : memref<64x32xf32, #tpu.memory_space<vmem>>, vector<8x4xf32>
    tpu.vector_store %arg13[%c32_989, %c28_990], %536 {strides = array<i32>} : memref<64x32xf32, #tpu.memory_space<vmem>>, vector<8x4xf32>,
    %c0_991 = arith.constant 0 : index
    %c52_992 = arith.constant 52 : index
    %538 = vector.load %arg10[%c0_991, %c52_992] : memref<64x96xf32, #tpu.memory_space<vmem>>, vector<8x4xf32>
    %c40_993 = arith.constant 40 : index
    %c0_994 = arith.constant 0 : index
    %539 = vector.load %arg13[%c40_993, %c0_994] : memref<64x32xf32, #tpu.memory_space<vmem>>, vector<8x4xf32>
    tpu.vector_store %arg13[%c40_993, %c0_994], %538 {strides = array<i32>} : memref<64x32xf32, #tpu.memory_space<vmem>>, vector<8x4xf32>,
    %c8_995 = arith.constant 8 : index
    %c52_996 = arith.constant 52 : index
    %540 = vector.load %arg10[%c8_995, %c52_996] : memref<64x96xf32, #tpu.memory_space<vmem>>, vector<8x4xf32>
    %c40_997 = arith.constant 40 : index
    %c4_998 = arith.constant 4 : index
    %541 = vector.load %arg13[%c40_997, %c4_998] : memref<64x32xf32, #tpu.memory_space<vmem>>, vector<8x4xf32>
    tpu.vector_store %arg13[%c40_997, %c4_998], %540 {strides = array<i32>} : memref<64x32xf32, #tpu.memory_space<vmem>>, vector<8x4xf32>,
    %c16_999 = arith.constant 16 : index
    %c52_1000 = arith.constant 52 : index
    %542 = vector.load %arg10[%c16_999, %c52_1000] : memref<64x96xf32, #tpu.memory_space<vmem>>, vector<8x4xf32>
    %c40_1001 = arith.constant 40 : index
    %c8_1002 = arith.constant 8 : index
    %543 = vector.load %arg13[%c40_1001, %c8_1002] : memref<64x32xf32, #tpu.memory_space<vmem>>, vector<8x4xf32>
    tpu.vector_store %arg13[%c40_1001, %c8_1002], %542 {strides = array<i32>} : memref<64x32xf32, #tpu.memory_space<vmem>>, vector<8x4xf32>,
    %c24_1003 = arith.constant 24 : index
    %c52_1004 = arith.constant 52 : index
    %544 = vector.load %arg10[%c24_1003, %c52_1004] : memref<64x96xf32, #tpu.memory_space<vmem>>, vector<8x4xf32>
    %c40_1005 = arith.constant 40 : index
    %c12_1006 = arith.constant 12 : index
    %545 = vector.load %arg13[%c40_1005, %c12_1006] : memref<64x32xf32, #tpu.memory_space<vmem>>, vector<8x4xf32>
    tpu.vector_store %arg13[%c40_1005, %c12_1006], %544 {strides = array<i32>} : memref<64x32xf32, #tpu.memory_space<vmem>>, vector<8x4xf32>,
    %c32_1007 = arith.constant 32 : index
    %c52_1008 = arith.constant 52 : index
    %546 = vector.load %arg10[%c32_1007, %c52_1008] : memref<64x96xf32, #tpu.memory_space<vmem>>, vector<8x4xf32>
    %c40_1009 = arith.constant 40 : index
    %c16_1010 = arith.constant 16 : index
    %547 = vector.load %arg13[%c40_1009, %c16_1010] : memref<64x32xf32, #tpu.memory_space<vmem>>, vector<8x4xf32>
    tpu.vector_store %arg13[%c40_1009, %c16_1010], %546 {strides = array<i32>} : memref<64x32xf32, #tpu.memory_space<vmem>>, vector<8x4xf32>,
    %c40_1011 = arith.constant 40 : index
    %c52_1012 = arith.constant 52 : index
    %548 = vector.load %arg10[%c40_1011, %c52_1012] : memref<64x96xf32, #tpu.memory_space<vmem>>, vector<8x4xf32>
    %c40_1013 = arith.constant 40 : index
    %c20_1014 = arith.constant 20 : index
    %549 = vector.load %arg13[%c40_1013, %c20_1014] : memref<64x32xf32, #tpu.memory_space<vmem>>, vector<8x4xf32>
    tpu.vector_store %arg13[%c40_1013, %c20_1014], %548 {strides = array<i32>} : memref<64x32xf32, #tpu.memory_space<vmem>>, vector<8x4xf32>,
    %c48_1015 = arith.constant 48 : index
    %c52_1016 = arith.constant 52 : index
    %550 = vector.load %arg10[%c48_1015, %c52_1016] : memref<64x96xf32, #tpu.memory_space<vmem>>, vector<8x4xf32>
    %c40_1017 = arith.constant 40 : index
    %c24_1018 = arith.constant 24 : index
    %551 = vector.load %arg13[%c40_1017, %c24_1018] : memref<64x32xf32, #tpu.memory_space<vmem>>, vector<8x4xf32>
    tpu.vector_store %arg13[%c40_1017, %c24_1018], %550 {strides = array<i32>} : memref<64x32xf32, #tpu.memory_space<vmem>>, vector<8x4xf32>,
    %c56_1019 = arith.constant 56 : index
    %c52_1020 = arith.constant 52 : index
    %552 = vector.load %arg10[%c56_1019, %c52_1020] : memref<64x96xf32, #tpu.memory_space<vmem>>, vector<8x4xf32>
    %c40_1021 = arith.constant 40 : index
    %c28_1022 = arith.constant 28 : index
    %553 = vector.load %arg13[%c40_1021, %c28_1022] : memref<64x32xf32, #tpu.memory_space<vmem>>, vector<8x4xf32>
    tpu.vector_store %arg13[%c40_1021, %c28_1022], %552 {strides = array<i32>} : memref<64x32xf32, #tpu.memory_space<vmem>>, vector<8x4xf32>,
    %c0_1023 = arith.constant 0 : index
    %c56_1024 = arith.constant 56 : index
    %554 = vector.load %arg10[%c0_1023, %c56_1024] : memref<64x96xf32, #tpu.memory_space<vmem>>, vector<8x4xf32>
    %c48_1025 = arith.constant 48 : index
    %c0_1026 = arith.constant 0 : index
    %555 = vector.load %arg13[%c48_1025, %c0_1026] : memref<64x32xf32, #tpu.memory_space<vmem>>, vector<8x4xf32>
    tpu.vector_store %arg13[%c48_1025, %c0_1026], %554 {strides = array<i32>} : memref<64x32xf32, #tpu.memory_space<vmem>>, vector<8x4xf32>,
    %c8_1027 = arith.constant 8 : index
    %c56_1028 = arith.constant 56 : index
    %556 = vector.load %arg10[%c8_1027, %c56_1028] : memref<64x96xf32, #tpu.memory_space<vmem>>, vector<8x4xf32>
    %c48_1029 = arith.constant 48 : index
    %c4_1030 = arith.constant 4 : index
    %557 = vector.load %arg13[%c48_1029, %c4_1030] : memref<64x32xf32, #tpu.memory_space<vmem>>, vector<8x4xf32>
    tpu.vector_store %arg13[%c48_1029, %c4_1030], %556 {strides = array<i32>} : memref<64x32xf32, #tpu.memory_space<vmem>>, vector<8x4xf32>,
    %c16_1031 = arith.constant 16 : index
    %c56_1032 = arith.constant 56 : index
    %558 = vector.load %arg10[%c16_1031, %c56_1032] : memref<64x96xf32, #tpu.memory_space<vmem>>, vector<8x4xf32>
    %c48_1033 = arith.constant 48 : index
    %c8_1034 = arith.constant 8 : index
    %559 = vector.load %arg13[%c48_1033, %c8_1034] : memref<64x32xf32, #tpu.memory_space<vmem>>, vector<8x4xf32>
    tpu.vector_store %arg13[%c48_1033, %c8_1034], %558 {strides = array<i32>} : memref<64x32xf32, #tpu.memory_space<vmem>>, vector<8x4xf32>,
    %c24_1035 = arith.constant 24 : index
    %c56_1036 = arith.constant 56 : index
    %560 = vector.load %arg10[%c24_1035, %c56_1036] : memref<64x96xf32, #tpu.memory_space<vmem>>, vector<8x4xf32>
    %c48_1037 = arith.constant 48 : index
    %c12_1038 = arith.constant 12 : index
    %561 = vector.load %arg13[%c48_1037, %c12_1038] : memref<64x32xf32, #tpu.memory_space<vmem>>, vector<8x4xf32>
    tpu.vector_store %arg13[%c48_1037, %c12_1038], %560 {strides = array<i32>} : memref<64x32xf32, #tpu.memory_space<vmem>>, vector<8x4xf32>,
    %c32_1039 = arith.constant 32 : index
    %c56_1040 = arith.constant 56 : index
    %562 = vector.load %arg10[%c32_1039, %c56_1040] : memref<64x96xf32, #tpu.memory_space<vmem>>, vector<8x4xf32>
    %c48_1041 = arith.constant 48 : index
    %c16_1042 = arith.constant 16 : index
    %563 = vector.load %arg13[%c48_1041, %c16_1042] : memref<64x32xf32, #tpu.memory_space<vmem>>, vector<8x4xf32>
    tpu.vector_store %arg13[%c48_1041, %c16_1042], %562 {strides = array<i32>} : memref<64x32xf32, #tpu.memory_space<vmem>>, vector<8x4xf32>,
    %c40_1043 = arith.constant 40 : index
    %c56_1044 = arith.constant 56 : index
    %564 = vector.load %arg10[%c40_1043, %c56_1044] : memref<64x96xf32, #tpu.memory_space<vmem>>, vector<8x4xf32>
    %c48_1045 = arith.constant 48 : index
    %c20_1046 = arith.constant 20 : index
    %565 = vector.load %arg13[%c48_1045, %c20_1046] : memref<64x32xf32, #tpu.memory_space<vmem>>, vector<8x4xf32>
    tpu.vector_store %arg13[%c48_1045, %c20_1046], %564 {strides = array<i32>} : memref<64x32xf32, #tpu.memory_space<vmem>>, vector<8x4xf32>,
    %c48_1047 = arith.constant 48 : index
    %c56_1048 = arith.constant 56 : index
    %566 = vector.load %arg10[%c48_1047, %c56_1048] : memref<64x96xf32, #tpu.memory_space<vmem>>, vector<8x4xf32>
    %c48_1049 = arith.constant 48 : index
    %c24_1050 = arith.constant 24 : index
    %567 = vector.load %arg13[%c48_1049, %c24_1050] : memref<64x32xf32, #tpu.memory_space<vmem>>, vector<8x4xf32>
    tpu.vector_store %arg13[%c48_1049, %c24_1050], %566 {strides = array<i32>} : memref<64x32xf32, #tpu.memory_space<vmem>>, vector<8x4xf32>,
    %c56_1051 = arith.constant 56 : index
    %c56_1052 = arith.constant 56 : index
    %568 = vector.load %arg10[%c56_1051, %c56_1052] : memref<64x96xf32, #tpu.memory_space<vmem>>, vector<8x4xf32>
    %c48_1053 = arith.constant 48 : index
    %c28_1054 = arith.constant 28 : index
    %569 = vector.load %arg13[%c48_1053, %c28_1054] : memref<64x32xf32, #tpu.memory_space<vmem>>, vector<8x4xf32>
    tpu.vector_store %arg13[%c48_1053, %c28_1054], %568 {strides = array<i32>} : memref<64x32xf32, #tpu.memory_space<vmem>>, vector<8x4xf32>,
    %c0_1055 = arith.constant 0 : index
    %c60_1056 = arith.constant 60 : index
    %570 = vector.load %arg10[%c0_1055, %c60_1056] : memref<64x96xf32, #tpu.memory_space<vmem>>, vector<8x4xf32>
    %c56_1057 = arith.constant 56 : index
    %c0_1058 = arith.constant 0 : index
    %571 = vector.load %arg13[%c56_1057, %c0_1058] : memref<64x32xf32, #tpu.memory_space<vmem>>, vector<8x4xf32>
    tpu.vector_store %arg13[%c56_1057, %c0_1058], %570 {strides = array<i32>} : memref<64x32xf32, #tpu.memory_space<vmem>>, vector<8x4xf32>,
    %c8_1059 = arith.constant 8 : index
    %c60_1060 = arith.constant 60 : index
    %572 = vector.load %arg10[%c8_1059, %c60_1060] : memref<64x96xf32, #tpu.memory_space<vmem>>, vector<8x4xf32>
    %c56_1061 = arith.constant 56 : index
    %c4_1062 = arith.constant 4 : index
    %573 = vector.load %arg13[%c56_1061, %c4_1062] : memref<64x32xf32, #tpu.memory_space<vmem>>, vector<8x4xf32>
    tpu.vector_store %arg13[%c56_1061, %c4_1062], %572 {strides = array<i32>} : memref<64x32xf32, #tpu.memory_space<vmem>>, vector<8x4xf32>,
    %c16_1063 = arith.constant 16 : index
    %c60_1064 = arith.constant 60 : index
    %574 = vector.load %arg10[%c16_1063, %c60_1064] : memref<64x96xf32, #tpu.memory_space<vmem>>, vector<8x4xf32>
    %c56_1065 = arith.constant 56 : index
    %c8_1066 = arith.constant 8 : index
    %575 = vector.load %arg13[%c56_1065, %c8_1066] : memref<64x32xf32, #tpu.memory_space<vmem>>, vector<8x4xf32>
    tpu.vector_store %arg13[%c56_1065, %c8_1066], %574 {strides = array<i32>} : memref<64x32xf32, #tpu.memory_space<vmem>>, vector<8x4xf32>,
    %c24_1067 = arith.constant 24 : index
    %c60_1068 = arith.constant 60 : index
    %576 = vector.load %arg10[%c24_1067, %c60_1068] : memref<64x96xf32, #tpu.memory_space<vmem>>, vector<8x4xf32>
    %c56_1069 = arith.constant 56 : index
    %c12_1070 = arith.constant 12 : index
    %577 = vector.load %arg13[%c56_1069, %c12_1070] : memref<64x32xf32, #tpu.memory_space<vmem>>, vector<8x4xf32>
    tpu.vector_store %arg13[%c56_1069, %c12_1070], %576 {strides = array<i32>} : memref<64x32xf32, #tpu.memory_space<vmem>>, vector<8x4xf32>,
    %c32_1071 = arith.constant 32 : index
    %c60_1072 = arith.constant 60 : index
    %578 = vector.load %arg10[%c32_1071, %c60_1072] : memref<64x96xf32, #tpu.memory_space<vmem>>, vector<8x4xf32>
    %c56_1073 = arith.constant 56 : index
    %c16_1074 = arith.constant 16 : index
    %579 = vector.load %arg13[%c56_1073, %c16_1074] : memref<64x32xf32, #tpu.memory_space<vmem>>, vector<8x4xf32>
    tpu.vector_store %arg13[%c56_1073, %c16_1074], %578 {strides = array<i32>} : memref<64x32xf32, #tpu.memory_space<vmem>>, vector<8x4xf32>,
    %c40_1075 = arith.constant 40 : index
    %c60_1076 = arith.constant 60 : index
    %580 = vector.load %arg10[%c40_1075, %c60_1076] : memref<64x96xf32, #tpu.memory_space<vmem>>, vector<8x4xf32>
    %c56_1077 = arith.constant 56 : index
    %c20_1078 = arith.constant 20 : index
    %581 = vector.load %arg13[%c56_1077, %c20_1078] : memref<64x32xf32, #tpu.memory_space<vmem>>, vector<8x4xf32>
    tpu.vector_store %arg13[%c56_1077, %c20_1078], %580 {strides = array<i32>} : memref<64x32xf32, #tpu.memory_space<vmem>>, vector<8x4xf32>,
    %c48_1079 = arith.constant 48 : index
    %c60_1080 = arith.constant 60 : index
    %582 = vector.load %arg10[%c48_1079, %c60_1080] : memref<64x96xf32, #tpu.memory_space<vmem>>, vector<8x4xf32>
    %c56_1081 = arith.constant 56 : index
    %c24_1082 = arith.constant 24 : index
    %583 = vector.load %arg13[%c56_1081, %c24_1082] : memref<64x32xf32, #tpu.memory_space<vmem>>, vector<8x4xf32>
    tpu.vector_store %arg13[%c56_1081, %c24_1082], %582 {strides = array<i32>} : memref<64x32xf32, #tpu.memory_space<vmem>>, vector<8x4xf32>,
    %c56_1083 = arith.constant 56 : index
    %c60_1084 = arith.constant 60 : index
    %584 = vector.load %arg10[%c56_1083, %c60_1084] : memref<64x96xf32, #tpu.memory_space<vmem>>, vector<8x4xf32>
    %c56_1085 = arith.constant 56 : index
    %c28_1086 = arith.constant 28 : index
    %585 = vector.load %arg13[%c56_1085, %c28_1086] : memref<64x32xf32, #tpu.memory_space<vmem>>, vector<8x4xf32>
    tpu.vector_store %arg13[%c56_1085, %c28_1086], %584 {strides = array<i32>} : memref<64x32xf32, #tpu.memory_space<vmem>>, vector<8x4xf32>,
    %c0_1087 = arith.constant 0 : index
    %c0_1088 = arith.constant 0 : index
    %586 = vector.load %arg3[%c0_1087, %c0_1088] : memref<64x64xf32, #tpu.memory_space<vmem>>, vector<64x64xf32>
    %c0_1089 = arith.constant 0 : index
    %c0_1090 = arith.constant 0 : index
    %587 = vector.load %arg13[%c0_1089, %c0_1090] : memref<64x32xf32, #tpu.memory_space<vmem>>, vector<64x32xf32>
    %cst_1091 = arith.constant dense<0.000000e+00> : vector<64x32xf32>
    %588 = tpu.matmul %586, %587, %cst_1091 {dimension_numbers = #tpu.dot_dimension_numbers<[1], [0], [0], [1], [0, 0, 1, 1], [], []>, precision = #tpu.contract_precision<fp32>} : vector<64x64xf32>, vector<64x32xf32>, vector<64x32xf32> -> vector<64x32xf32>
    %c0_1092 = arith.constant 0 : index
    %c32_1093 = arith.constant 32 : index
    %589 = vector.load %arg11[%c0_1092, %c32_1093] : memref<64x96xf32, #tpu.memory_space<vmem>>, vector<64x32xf32>
    tpu.vector_store %arg11[%c0_1092, %c32_1093], %588 {strides = array<i32>} : memref<64x96xf32, #tpu.memory_space<vmem>>, vector<64x32xf32>,
    %c0_1094 = arith.constant 0 : index
    %c64_1095 = arith.constant 64 : index
    %590 = vector.load %arg10[%c0_1094, %c64_1095] : memref<64x96xf32, #tpu.memory_space<vmem>>, vector<64x32xf32>
    %c0_1096 = arith.constant 0 : index
    %c64_1097 = arith.constant 64 : index
    %591 = vector.load %arg11[%c0_1096, %c64_1097] : memref<64x96xf32, #tpu.memory_space<vmem>>, vector<64x32xf32>
    tpu.vector_store %arg11[%c0_1096, %c64_1097], %590 {strides = array<i32>} : memref<64x96xf32, #tpu.memory_space<vmem>>, vector<64x32xf32>,
    %c0_1098 = arith.constant 0 : index
    %c0_1099 = arith.constant 0 : index
    %592 = vector.load %arg11[%c0_1098, %c0_1099] : memref<64x96xf32, #tpu.memory_space<vmem>>, vector<64x96xf32>
    %c0_1100 = arith.constant 0 : index
    %c0_1101 = arith.constant 0 : index
    %593 = vector.load %arg5[%c0_1100, %c0_1101] : memref<96x32xf32, #tpu.memory_space<vmem>>, vector<96x32xf32>
    %cst_1102 = arith.constant dense<0.000000e+00> : vector<64x32xf32>
    %594 = tpu.matmul %592, %593, %cst_1102 {dimension_numbers = #tpu.dot_dimension_numbers<[1], [0], [0], [1], [0, 0, 1, 1], [], []>} : vector<64x96xf32>, vector<96x32xf32>, vector<64x32xf32> -> vector<64x32xf32>
    %c0_1103 = arith.constant 0 : index
    %c0_1104 = arith.constant 0 : index
    %595 = vector.load %arg6[%c0_1103, %c0_1104] : memref<1x32xf32, #tpu.memory_space<vmem>>, vector<1x32xf32>
    %596 = vector.broadcast %595 : vector<1x32xf32> to vector<64x32xf32>
    %597 = arith.addf %594, %596 : vector<64x32xf32>
    %c0_1105 = arith.constant 0 : index
    %c0_1106 = arith.constant 0 : index
    %598 = vector.load %arg7[%c0_1105, %c0_1106] : memref<32x32xf32, #tpu.memory_space<vmem>>, vector<32x32xf32>
    %cst_1107 = arith.constant dense<0.000000e+00> : vector<64x32xf32>
    %599 = tpu.matmul %597, %598, %cst_1107 {dimension_numbers = #tpu.dot_dimension_numbers<[1], [0], [0], [1], [0, 0, 1, 1], [], []>} : vector<64x32xf32>, vector<32x32xf32>, vector<64x32xf32> -> vector<64x32xf32>
    %c0_1108 = arith.constant 0 : index
    %c0_1109 = arith.constant 0 : index
    %600 = vector.load %arg8[%c0_1108, %c0_1109] : memref<1x32xf32, #tpu.memory_space<vmem>>, vector<1x32xf32>
    %601 = vector.broadcast %600 : vector<1x32xf32> to vector<64x32xf32>
    %602 = arith.addf %599, %601 : vector<64x32xf32>
    %c0_1110 = arith.constant 0 : index
    %c0_1111 = arith.constant 0 : index
    %c0_1112 = arith.constant 0 : index
    %603 = vector.load %arg9[%c0_1110, %c0_1111, %c0_1112] : memref<1x64x32xf32, #tpu.memory_space<vmem>>, vector<1x64x32xf32>
    %604 = vector.shape_cast %603 : vector<1x64x32xf32> to vector<64x32xf32>
    %605 = vector.shape_cast %602 : vector<64x32xf32> to vector<1x64x32xf32>
    tpu.vector_store %arg9[%c0_1110, %c0_1111, %c0_1112], %605 {strides = array<i32>} : memref<1x64x32xf32, #tpu.memory_space<vmem>>, vector<1x64x32xf32>,
    return
  }
  func.func @transform_0(%arg0: i32) -> (i32, i32, i32) {
    %c0_i32 = arith.constant 0 : i32
    %c0_i32_0 = arith.constant 0 : i32
    %c0_i32_1 = arith.constant 0 : i32
    return %arg0, %c0_i32, %c0_i32_0 : i32, i32, i32
  }
  func.func @transform_1(%arg0: i32) -> (i32, i32) {
    %c0_i32 = arith.constant 0 : i32
    %c0_i32_0 = arith.constant 0 : i32
    %c0_i32_1 = arith.constant 0 : i32
    return %c0_i32, %c0_i32_0 : i32, i32
  }
  func.func @transform_2(%arg0: i32) -> (i32, i32) {
    %c0_i32 = arith.constant 0 : i32
    %c0_i32_0 = arith.constant 0 : i32
    %c0_i32_1 = arith.constant 0 : i32
    return %c0_i32, %c0_i32_0 : i32, i32
  }
  func.func @transform_3(%arg0: i32) -> (i32, i32) {
    %c0_i32 = arith.constant 0 : i32
    %c0_i32_0 = arith.constant 0 : i32
    %c0_i32_1 = arith.constant 0 : i32
    return %c0_i32, %c0_i32_0 : i32, i32
  }
  func.func @transform_4(%arg0: i32) -> (i32, i32) {
    %c0_i32 = arith.constant 0 : i32
    %c0_i32_0 = arith.constant 0 : i32
    %c0_i32_1 = arith.constant 0 : i32
    return %c0_i32, %c0_i32_0 : i32, i32
  }
  func.func @transform_5(%arg0: i32) -> (i32, i32) {
    %c0_i32 = arith.constant 0 : i32
    %c0_i32_0 = arith.constant 0 : i32
    %c0_i32_1 = arith.constant 0 : i32
    return %c0_i32, %c0_i32_0 : i32, i32
  }
  func.func @transform_6(%arg0: i32) -> (i32, i32) {
    %c0_i32 = arith.constant 0 : i32
    %c0_i32_0 = arith.constant 0 : i32
    %c0_i32_1 = arith.constant 0 : i32
    return %c0_i32, %c0_i32_0 : i32, i32
  }
  func.func @transform_7(%arg0: i32) -> (i32, i32) {
    %c0_i32 = arith.constant 0 : i32
    %c0_i32_0 = arith.constant 0 : i32
    %c0_i32_1 = arith.constant 0 : i32
    return %c0_i32, %c0_i32_0 : i32, i32
  }
  func.func @transform_8(%arg0: i32) -> (i32, i32, i32) {
    %c0_i32 = arith.constant 0 : i32
    %c0_i32_0 = arith.constant 0 : i32
    %c0_i32_1 = arith.constant 0 : i32
    return %arg0, %c0_i32, %c0_i32_0 : i32, i32, i32
  }
}

</mosaic_0001>

<llo_original>
// kernel: weighted_permute_mlp_forward.1
$region0: #{weighted_permute_mlp_forward.1}
  #allocation0 [shape = 'u32[]', space=smem, size = 0x4, offset = 0x4, fixed_abs, tag = 'smem constant byte address 0x4 - core index']
  #allocation1 [shape = 'u32[144,128]{1,0:T(1,128)}', space=vmem, size = 0x12000, scoped, tag = 'internal scratch']
  #allocation2 [shape = 'f32[64,96]{1,0:T(8,128)}', space=vmem, size = 0x8000, scoped, tag = 'scratch operand']
  #allocation3 [shape = 'f32[64,96]{1,0:T(8,128)}', space=vmem, size = 0x8000, scoped, tag = 'scratch operand']
  #allocation4 [shape = 'f32[64,32]{1,0:T(8,128)}', space=vmem, size = 0x8000, scoped, tag = 'scratch operand']
  #allocation5 [shape = 'f32[64,32]{1,0:T(8,128)}', space=vmem, size = 0x8000, scoped, tag = 'scratch operand']
  %s0 = inlined_call_operand.vmem [shape: f32[2,64,32], index: 0, kind: input, shape index: {}]
  %s1 = inlined_call_operand.vmem [shape: f32[64,64], index: 1, kind: input, shape index: {}]
  %s2 = inlined_call_operand.vmem [shape: f32[64,64], index: 2, kind: input, shape index: {}]
  %s3 = inlined_call_operand.vmem [shape: f32[96,96], index: 3, kind: input, shape index: {}]
  %s4 = inlined_call_operand.vmem [shape: f32[96,32], index: 4, kind: input, shape index: {}]
  %s5 = inlined_call_operand.vmem [shape: f32[1,32], index: 5, kind: input, shape index: {}]
  %s6 = inlined_call_operand.vmem [shape: f32[32,32], index: 6, kind: input, shape index: {}]
  %s7 = inlined_call_operand.vmem [shape: f32[1,32], index: 7, kind: input, shape index: {}]
  %s8 = inlined_call_operand.hbm [shape: f32[2,64,32], index: 8, kind: output, shape index: {}]
  %s9 = sld [smem:[#allocation0]]
  $region65: #{weighted_permute_mlp_forward.1} parent=0
    _
  %s11 = ssub.s32 1, %s9
  %s12 = scalar_select 0, %s11, %s9
  $region1: #{weighted_permute_mlp_forward.1} parent=0
    #allocation6 [shape = 'u8[65536]{0}', space=vmem, size = 0x10000, scoped, tag = 'output window, operand 0']
    #allocation7 [shape = 's32[2]{0}', space=sflag, size = 0x8, scoped, tag = 'scoped memory for weighted_permute_mlp_forward.1']
    %13 = vsyncpa [#allocation7], 0
    %s14 = scalar_lea.sflag [#allocation7], 1
    %15 = vsyncpa %s14, 0
    loop: start=0, step=1, limit=4
    $region2: #{weighted_permute_mlp_forward.1} parent=1 // loop_pre_header
      _
    $region3: #{weighted_permute_mlp_forward.1} parent=1 // loop_header
      %s17 = sphi 0, %s21
      %p18 = scmp.ge.s32.totalorder %s17, 4
      %s27 = sphi 0, %s29
      %s30 = sphi 0, %s27
      %s31 = sphi 0, %s30
      %s47 = sphi 0, %s31
      %s51 = sphi 0, %s51
      %s53 = sphi 0, %s51
      %s54 = sphi 0, %s53
      %s68 = sphi 0, %s54
      %s72 = sphi 0, %s72
      %s74 = sphi 0, %s72
      %s75 = sphi 0, %s74
      %s89 = sphi 0, %s75
      %s93 = sphi 0, %s93
      %s95 = sphi 0, %s93
      %s96 = sphi 0, %s95
      %s110 = sphi 0, %s96
      %s114 = sphi 0, %s114
      %s116 = sphi 0, %s114
      %s117 = sphi 0, %s116
      %s131 = sphi 0, %s117
      %s135 = sphi 0, %s135
      %s137 = sphi 0, %s135
      %s138 = sphi 0, %s137
      %s152 = sphi 0, %s138
      %s156 = sphi 0, %s156
      %s158 = sphi 0, %s156
      %s159 = sphi 0, %s158
      %s173 = sphi 0, %s159
      %s177 = sphi 0, %s177
      %s179 = sphi 0, %s177
      %s180 = sphi 0, %s179
      %s194 = sphi 0, %s180
      %s200 = sphi 0, %s202
      %s203 = sphi 0, %s200
      %s204 = sphi 0, %s203
      %s220 = sphi 0, %s204
    $region4: #{weighted_permute_mlp_forward.1} parent=1 // loop_header_branch
      %20 = sbr.rel (%p18) target = $region8
    $region5: #{weighted_permute_mlp_forward.1} parent=1 // loop_body
      %s22 = ssub.s32 %s17, 1
      %s23 = ssub.s32 %s17, 2
      %s24 = sadd.s32 %s17, 1
      %s25 = ssub.s32 %s17, %s24
      %p26 = scmp.eq.s32.totalorder %s25, 0
      %s28 = sadd.s32 %s27, 1
      %s29 = scalar_select %p26, %s27, %s28
      %p32 = pneg %p26
      %p33 = scmp.eq.s32.totalorder %s17, 1
      %p34 = por %p32, %p33
      %p35 = scmp.ne.s32.totalorder %s27, %s30
      %p36 = scmp.eq.s32.totalorder %s17, 0
      %p37 = por %p35, %p36
      %p38 = scmp.ne.s32.totalorder %s27, %s30
      %p39 = scmp.eq.s32.totalorder %s22, 1
      %p40 = por %p38, %p39
      %p41 = scmp.ne.s32.totalorder %s30, %s31
      %p42 = scmp.eq.s32.totalorder %s22, 0
      %p43 = por %p41, %p42
      %p44 = scmp.ne.s32.totalorder %s30, %s31
      %p45 = scmp.eq.s32.totalorder %s23, 1
      %p46 = por %p44, %p45
      %p48 = scmp.ne.s32.totalorder %s31, %s47
      %p49 = scmp.eq.s32.totalorder %s23, 0
      %p50 = por %p48, %p49
      %s52 = sadd.s32 %s51, 1
      %p55 = scmp.eq.s32.totalorder %s17, 1
      %p56 = scmp.ne.s32.totalorder %s51, %s53
      %p57 = scmp.eq.s32.totalorder %s17, 0
      %p58 = por %p56, %p57
      %p59 = scmp.ne.s32.totalorder %s51, %s53
      %p60 = scmp.eq.s32.totalorder %s22, 1
      %p61 = por %p59, %p60
      %p62 = scmp.ne.s32.totalorder %s53, %s54
      %p63 = scmp.eq.s32.totalorder %s22, 0
      %p64 = por %p62, %p63
      %p65 = scmp.ne.s32.totalorder %s53, %s54
      %p66 = scmp.eq.s32.totalorder %s23, 1
      %p67 = por %p65, %p66
      %p69 = scmp.ne.s32.totalorder %s54, %s68
      %p70 = scmp.eq.s32.totalorder %s23, 0
      %p71 = por %p69, %p70
      %s73 = sadd.s32 %s72, 1
      %p76 = scmp.eq.s32.totalorder %s17, 1
      %p77 = scmp.ne.s32.totalorder %s72, %s74
      %p78 = scmp.eq.s32.totalorder %s17, 0
      %p79 = por %p77, %p78
      %p80 = scmp.ne.s32.totalorder %s72, %s74
      %p81 = scmp.eq.s32.totalorder %s22, 1
      %p82 = por %p80, %p81
      %p83 = scmp.ne.s32.totalorder %s74, %s75
      %p84 = scmp.eq.s32.totalorder %s22, 0
      %p85 = por %p83, %p84
      %p86 = scmp.ne.s32.totalorder %s74, %s75
      %p87 = scmp.eq.s32.totalorder %s23, 1
      %p88 = por %p86, %p87
      %p90 = scmp.ne.s32.totalorder %s75, %s89
      %p91 = scmp.eq.s32.totalorder %s23, 0
      %p92 = por %p90, %p91
      %s94 = sadd.s32 %s93, 1
      %p97 = scmp.eq.s32.totalorder %s17, 1
      %p98 = scmp.ne.s32.totalorder %s93, %s95
      %p99 = scmp.eq.s32.totalorder %s17, 0
      %p100 = por %p98, %p99
      %p101 = scmp.ne.s32.totalorder %s93, %s95
      %p102 = scmp.eq.s32.totalorder %s22, 1
      %p103 = por %p101, %p102
      %p104 = scmp.ne.s32.totalorder %s95, %s96
      %p105 = scmp.eq.s32.totalorder %s22, 0
      %p106 = por %p104, %p105
      %p107 = scmp.ne.s32.totalorder %s95, %s96
      %p108 = scmp.eq.s32.totalorder %s23, 1
      %p109 = por %p107, %p108
      %p111 = scmp.ne.s32.totalorder %s96, %s110
      %p112 = scmp.eq.s32.totalorder %s23, 0
      %p113 = por %p111, %p112
      %s115 = sadd.s32 %s114, 1
      %p118 = scmp.eq.s32.totalorder %s17, 1
      %p119 = scmp.ne.s32.totalorder %s114, %s116
      %p120 = scmp.eq.s32.totalorder %s17, 0
      %p121 = por %p119, %p120
      %p122 = scmp.ne.s32.totalorder %s114, %s116
      %p123 = scmp.eq.s32.totalorder %s22, 1
      %p124 = por %p122, %p123
      %p125 = scmp.ne.s32.totalorder %s116, %s117
      %p126 = scmp.eq.s32.totalorder %s22, 0
      %p127 = por %p125, %p126
      %p128 = scmp.ne.s32.totalorder %s116, %s117
      %p129 = scmp.eq.s32.totalorder %s23, 1
      %p130 = por %p128, %p129
      %p132 = scmp.ne.s32.totalorder %s117, %s131
      %p133 = scmp.eq.s32.totalorder %s23, 0
      %p134 = por %p132, %p133
      %s136 = sadd.s32 %s135, 1
      %p139 = scmp.eq.s32.totalorder %s17, 1
      %p140 = scmp.ne.s32.totalorder %s135, %s137
      %p141 = scmp.eq.s32.totalorder %s17, 0
      %p142 = por %p140, %p141
      %p143 = scmp.ne.s32.totalorder %s135, %s137
      %p144 = scmp.eq.s32.totalorder %s22, 1
      %p145 = por %p143, %p144
      %p146 = scmp.ne.s32.totalorder %s137, %s138
      %p147 = scmp.eq.s32.totalorder %s22, 0
      %p148 = por %p146, %p147
      %p149 = scmp.ne.s32.totalorder %s137, %s138
      %p150 = scmp.eq.s32.totalorder %s23, 1
      %p151 = por %p149, %p150
      %p153 = scmp.ne.s32.totalorder %s138, %s152
      %p154 = scmp.eq.s32.totalorder %s23, 0
      %p155 = por %p153, %p154
      %s157 = sadd.s32 %s156, 1
      %p160 = scmp.eq.s32.totalorder %s17, 1
      %p161 = scmp.ne.s32.totalorder %s156, %s158
      %p162 = scmp.eq.s32.totalorder %s17, 0
      %p163 = por %p161, %p162
      %p164 = scmp.ne.s32.totalorder %s156, %s158
      %p165 = scmp.eq.s32.totalorder %s22, 1
      %p166 = por %p164, %p165
      %p167 = scmp.ne.s32.totalorder %s158, %s159
      %p168 = scmp.eq.s32.totalorder %s22, 0
      %p169 = por %p167, %p168
      %p170 = scmp.ne.s32.totalorder %s158, %s159
      %p171 = scmp.eq.s32.totalorder %s23, 1
      %p172 = por %p170, %p171
      %p174 = scmp.ne.s32.totalorder %s159, %s173
      %p175 = scmp.eq.s32.totalorder %s23, 0
      %p176 = por %p174, %p175
      %s178 = sadd.s32 %s177, 1
      %p181 = scmp.eq.s32.totalorder %s17, 1
      %p182 = scmp.ne.s32.totalorder %s177, %s179
      %p183 = scmp.eq.s32.totalorder %s17, 0
      %p184 = por %p182, %p183
      %p185 = scmp.ne.s32.totalorder %s177, %s179
      %p186 = scmp.eq.s32.totalorder %s22, 1
      %p187 = por %p185, %p186
      %p188 = scmp.ne.s32.totalorder %s179, %s180
      %p189 = scmp.eq.s32.totalorder %s22, 0
      %p190 = por %p188, %p189
      %p191 = scmp.ne.s32.totalorder %s179, %s180
      %p192 = scmp.eq.s32.totalorder %s23, 1
      %p193 = por %p191, %p192
      %p195 = scmp.ne.s32.totalorder %s180, %s194
      %p196 = scmp.eq.s32.totalorder %s23, 0
      %p197 = por %p195, %p196
      %s198 = ssub.s32 %s17, %s24
      %p199 = scmp.eq.s32.totalorder %s198, 0
      %s201 = sadd.s32 %s200, 1
      %s202 = scalar_select %p199, %s200, %s201
      %p205 = pneg %p199
      %p206 = scmp.eq.s32.totalorder %s17, 1
      %p207 = por %p205, %p206
      %p208 = scmp.ne.s32.totalorder %s200, %s203
      %p209 = scmp.eq.s32.totalorder %s17, 0
      %p210 = por %p208, %p209
      %p211 = scmp.ne.s32.totalorder %s200, %s203
      %p212 = scmp.eq.s32.totalorder %s22, 1
      %p213 = por %p211, %p212
      %p214 = scmp.ne.s32.totalorder %s203, %s204
      %p215 = scmp.eq.s32.totalorder %s22, 0
      %p216 = por %p214, %p215
      %p217 = scmp.ne.s32.totalorder %s203, %s204
      %p218 = scmp.eq.s32.totalorder %s23, 1
      %p219 = por %p217, %p218
      %p221 = scmp.ne.s32.totalorder %s204, %s220
      %p222 = scmp.eq.s32.totalorder %s23, 0
      %p223 = por %p221, %p222
      %p224 = scmp.le.s32.totalorder 1, %s17
      %p225 = scmp.lt.s32.totalorder %s17, 3
      %p226 = pnand %p224, %p225
      %p227 = pneg %p226
      // Predicated region
      $region9: #{weighted_permute_mlp_forward.1} parent=5 // pred_check
        _
      $region10: #{weighted_permute_mlp_forward.1} parent=5 // pred_check_branch
        %229 = sbr.rel (%p226) target = $region12
      $region11: #{weighted_permute_mlp_forward.1} parent=5 // pred_region
        %s230 = ssub.s32 %s17, 1
        // Predicated region
        $region13: #{weighted_permute_mlp_forward.1} parent=11 // pred_check
          %p231 = pneg %p64
        $region14: #{weighted_permute_mlp_forward.1} parent=11 // pred_check_branch
          %233 = sbr.rel (%p231) target = $region16
        $region15: #{weighted_permute_mlp_forward.1} parent=11 // pred_region
          _
        $region16: #{weighted_permute_mlp_forward.1} parent=11 // pred_fallthru
          _
        // Predicated region
        $region17: #{weighted_permute_mlp_forward.1} parent=11 // pred_check
          %p234 = pneg %p85
        $region18: #{weighted_permute_mlp_forward.1} parent=11 // pred_check_branch
          %236 = sbr.rel (%p234) target = $region20
        $region19: #{weighted_permute_mlp_forward.1} parent=11 // pred_region
          _
        $region20: #{weighted_permute_mlp_forward.1} parent=11 // pred_fallthru
          _
        // Predicated region
        $region21: #{weighted_permute_mlp_forward.1} parent=11 // pred_check
          %p237 = pneg %p106
        $region22: #{weighted_permute_mlp_forward.1} parent=11 // pred_check_branch
          %239 = sbr.rel (%p237) target = $region24
        $region23: #{weighted_permute_mlp_forward.1} parent=11 // pred_region
          _
        $region24: #{weighted_permute_mlp_forward.1} parent=11 // pred_fallthru
          _
        // Predicated region
        $region25: #{weighted_permute_mlp_forward.1} parent=11 // pred_check
          %p240 = pneg %p127
        $region26: #{weighted_permute_mlp_forward.1} parent=11 // pred_check_branch
          %242 = sbr.rel (%p240) target = $region28
        $region27: #{weighted_permute_mlp_forward.1} parent=11 // pred_region
          _
        $region28: #{weighted_permute_mlp_forward.1} parent=11 // pred_fallthru
          _
        // Predicated region
        $region29: #{weighted_permute_mlp_forward.1} parent=11 // pred_check
          %p243 = pneg %p148
        $region30: #{weighted_permute_mlp_forward.1} parent=11 // pred_check_branch
          %245 = sbr.rel (%p243) target = $region32
        $region31: #{weighted_permute_mlp_forward.1} parent=11 // pred_region
          _
        $region32: #{weighted_permute_mlp_forward.1} parent=11 // pred_fallthru
          _
        // Predicated region
        $region33: #{weighted_permute_mlp_forward.1} parent=11 // pred_check
          %p246 = pneg %p169
        $region34: #{weighted_permute_mlp_forward.1} parent=11 // pred_check_branch
          %248 = sbr.rel (%p246) target = $region36
        $region35: #{weighted_permute_mlp_forward.1} parent=11 // pred_region
          _
        $region36: #{weighted_permute_mlp_forward.1} parent=11 // pred_fallthru
          _
        // Predicated region
        $region37: #{weighted_permute_mlp_forward.1} parent=11 // pred_check
          %p249 = pneg %p190
        $region38: #{weighted_permute_mlp_forward.1} parent=11 // pred_check_branch
          %251 = sbr.rel (%p249) target = $region40
        $region39: #{weighted_permute_mlp_forward.1} parent=11 // pred_region
          _
        $region40: #{weighted_permute_mlp_forward.1} parent=11 // pred_fallthru
          _
      $region12: #{weighted_permute_mlp_forward.1} parent=5 // pred_fallthru
        _
      %p252 = scmp.lt.s32.totalorder %s17, 2
      // Predicated region
      $region41: #{weighted_permute_mlp_forward.1} parent=5 // pred_check
        %p253 = pneg %p252
      $region42: #{weighted_permute_mlp_forward.1} parent=5 // pred_check_branch
        %255 = sbr.rel (%p253) target = $region44
      $region43: #{weighted_permute_mlp_forward.1} parent=5 // pred_region
        // Predicated region
        $region45: #{weighted_permute_mlp_forward.1} parent=43 // pred_check
          %p256 = pneg %p37
        $region46: #{weighted_permute_mlp_forward.1} parent=43 // pred_check_branch
          %258 = sbr.rel (%p256) target = $region48
        $region47: #{weighted_permute_mlp_forward.1} parent=43 // pred_region
          %p259 = scmp.lt.s32.totalorder %s17, 1
          %s260 = scalar_select %p259, %s17, 1
          %s261 = smul.addr %s260, 8
          %s262 = smul.addr %s261, 8
          %s263 = scalar_lea.vmem %s0, %s262
        $region48: #{weighted_permute_mlp_forward.1} parent=43 // pred_fallthru
          _
      $region44: #{weighted_permute_mlp_forward.1} parent=5 // pred_fallthru
        _
      %p264 = scmp.le.s32.totalorder 1, %s17
      %p265 = scmp.lt.s32.totalorder %s17, 3
      %p266 = pnand %p264, %p265
      %p267 = pneg %p266
      // Predicated region
      $region49: #{weighted_permute_mlp_forward.1} parent=5 // pred_check
        _
      $region50: #{weighted_permute_mlp_forward.1} parent=5 // pred_check_branch
        %269 = sbr.rel (%p266) target = $region52
      $region51: #{weighted_permute_mlp_forward.1} parent=5 // pred_region
        %s270 = ssub.s32 %s17, 1
        %p271 = scmp.lt.s32.totalorder %s22, 1
        %s272 = scalar_select %p271, %s22, 1
        %s273 = smul.addr %s272, 8
        %s274 = smul.addr %s273, 8
        %s275 = scalar_lea.vmem %s0, %s274
        %p276 = pneg %p43
        %p277 = pneg %p40
        %p278 = pneg %p64
        %p279 = pneg %p61
        %p280 = pneg %p85
        %p281 = pneg %p82
        %p282 = pneg %p106
        %p283 = pneg %p103
        %p284 = pneg %p127
        %p285 = pneg %p124
        %p286 = pneg %p148
        %p287 = pneg %p145
        %p288 = pneg %p169
        %p289 = pneg %p166
        %p290 = pneg %p190
        %p291 = pneg %p187
        %p292 = pneg %p216
        %p293 = pneg %p213
        %s294 = sand.u32 %s203, 1
        %s295 = scalar_lea.sflag [#allocation7], %s294
        %s296 = sand.u32 %s203, 1
        %s297 = smul.addr %s296, 64
        %s298 = scalar_lea.vmem [#allocation6], %s297
        %p299 = scmp.lt.s32.totalorder %s22, 1
        %s300 = scalar_select %p299, %s22, 1
        %s301 = smul.addr %s300, 8
        %s302 = smul.addr %s301, 8
        %s303 = scalar_lea.vmem %s0, %s302
        %v304 = vld [vmem:[%s303] sm:$0xff]
        %v305 = vld [vmem:[%s303 + $0x8] sm:$0xff]
        %v306 = vld [vmem:[%s303 + $0x10] sm:$0xff]
        %v307 = vld [vmem:[%s303 + $0x18] sm:$0xff]
        %v308 = vld [vmem:[%s303 + $0x20] sm:$0xff]
        %v309 = vld [vmem:[%s303 + $0x28] sm:$0xff]
        %v310 = vld [vmem:[%s303 + $0x30] sm:$0xff]
        %v311 = vld [vmem:[%s303 + $0x38] sm:$0xff]
        %v312 = vld [vmem:[%s1] sm:$0xff]
        %v313 = vld [vmem:[%s1 + $0x8] sm:$0xff]
        %v314 = vld [vmem:[%s1 + $0x10] sm:$0xff]
        %v315 = vld [vmem:[%s1 + $0x18] sm:$0xff]
        %v316 = vld [vmem:[%s1 + $0x20] sm:$0xff]
        %v317 = vld [vmem:[%s1 + $0x28] sm:$0xff]
        %v318 = vld [vmem:[%s1 + $0x30] sm:$0xff]
        %v319 = vld [vmem:[%s1 + $0x38] sm:$0xff]
        %vm320 = vcmask 523264
        %v322 = vsel %vm320, %v312, 0
        %v325 = vsel %vm320, %v313, 0
        %v328 = vsel %vm320, %v314, 0
        %v331 = vsel %vm320, %v315, 0
        %v334 = vsel %vm320, %v316, 0
        %v337 = vsel %vm320, %v317, 0
        %v340 = vsel %vm320, %v318, 0
        %v343 = vsel %vm320, %v319, 0
        %345 = vmatprep.subr.mxu0 0.0
        %v346 = vand.u32 %v304, 4294901760
        %347 = vmatpush1.msra.mxu0 %v346
        %348 = vmatprep.subr.mxu0 0.0
        %v349 = vand.u32 %v305, 4294901760
        %350 = vmatpush1.msra.mxu0 %v349
        %351 = vmatprep.subr.mxu0 0.0
        %v352 = vand.u32 %v306, 4294901760
        %353 = vmatpush1.msra.mxu0 %v352
        %354 = vmatprep.subr.mxu0 0.0
        %v355 = vand.u32 %v307, 4294901760
        %356 = vmatpush1.msra.mxu0 %v355
        %357 = vmatprep.subr.mxu0 0.0
        %v358 = vand.u32 %v308, 4294901760
        %359 = vmatpush1.msra.mxu0 %v358
        %360 = vmatprep.subr.mxu0 0.0
        %v361 = vand.u32 %v309, 4294901760
        %362 = vmatpush1.msra.mxu0 %v361
        %363 = vmatprep.subr.mxu0 0.0
        %v364 = vand.u32 %v310, 4294901760
        %365 = vmatpush1.msra.mxu0 %v364
        %366 = vmatprep.subr.mxu0 0.0
        %v367 = vand.u32 %v311, 4294901760
        %368 = vmatpush1.msra.mxu0 %v367
        %369 = vmatprep.subr.mxu0 0.0
        %370 = vmatpush1.msra.mxu0 0.0
        %371 = vmatprep.subr.mxu0 0.0
        %372 = vmatpush1.msra.mxu0 0.0
        %373 = vmatprep.subr.mxu0 0.0
        %374 = vmatpush1.msra.mxu0 0.0
        %375 = vmatprep.subr.mxu0 0.0
        %376 = vmatpush1.msra.mxu0 0.0
        %377 = vmatprep.subr.mxu0 0.0
        %378 = vmatpush1.msra.mxu0 0.0
        %379 = vmatprep.subr.mxu0 0.0
        %380 = vmatpush1.msra.mxu0 0.0
        %381 = vmatprep.subr.mxu0 0.0
        %382 = vmatpush1.msra.mxu0 0.0
        %383 = vmatprep.subr.mxu0 0.0
        %384 = vmatpush1.msra.mxu0 0.0
        %385 = vmatprep.subr.mxu0 0.0
        %386 = vmatpush1.msra.mxu0 0.0
        %387 = vmatprep.subr.mxu0 0.0
        %388 = vmatpush1.msra.mxu0 0.0
        %389 = vmatprep.subr.mxu0 0.0
        %390 = vmatpush1.msra.mxu0 0.0
        %391 = vmatprep.subr.mxu0 0.0
        %392 = vmatpush1.msra.mxu0 0.0
        %393 = vmatprep.subr.mxu0 0.0
        %394 = vmatpush1.msra.mxu0 0.0
        %395 = vmatprep.subr.mxu0 0.0
        %396 = vmatpush1.msra.mxu0 0.0
        %397 = vmatprep.subr.mxu0 0.0
        %398 = vmatpush1.msra.mxu0 0.0
        %399 = vmatprep.subr.mxu0 0.0
        %400 = vmatpush1.msra.mxu0 0.0
        %401 = vmatprep.subr.mxu0 0.0
        %402 = vmatpush1.msra.mxu0 0.0
        %403 = vmatprep.subr.mxu0 0.0
        %404 = vmatpush1.msra.mxu0 0.0
        %405 = vmatprep.subr.mxu0 0.0
        %406 = vmatpush1.msra.mxu0 0.0
        %407 = vmatprep.subr.mxu0 0.0
        %408 = vmatpush1.msra.mxu0 0.0
        %409 = vmatprep.subr.mxu0 0.0
        %410 = vmatpush1.msra.mxu0 0.0
        %411 = vmatprep.subr.mxu0 0.0
        %412 = vmatpush1.msra.mxu0 0.0
        %413 = vmatprep.subr.mxu0 0.0
        %414 = vmatpush1.msra.mxu0 0.0
        %415 = vmatprep.subr.mxu0 0.0
        %416 = vmatpush1.msra.mxu0 0.0
        %417 = vmatprep.mubr.f32.mxu0 0.0
        %v418 = vand.u32 %v322, 4294901760
        %v419 = vsub.f32 %v322, %v418
        %v420 = vand.u32 %v419, 4294901760
        %v421 = vsub.f32 %v419, %v420
        %v422 = vand.u32 %v421, 4294901760
        %423 = vmatmul.mubr.f32.gmra.mrb[0].mxu0 %v422
        %v424 = vpop.f32.mrb[0].mxu0
        %v425 = vadd.f32 0.0, %v424
        %v426 = vpop.f32.mrb[0].mxu0
        %427 = vmatprep.mubr.f32.mxu0 0.0
        %v428 = vand.u32 %v325, 4294901760
        %v429 = vsub.f32 %v325, %v428
        %v430 = vand.u32 %v429, 4294901760
        %v431 = vsub.f32 %v429, %v430
        %v432 = vand.u32 %v431, 4294901760
        %433 = vmatmul.mubr.f32.gmra.mrb[0].mxu0 %v432
        %v434 = vpop.f32.mrb[0].mxu0
        %v435 = vadd.f32 0.0, %v434
        %v436 = vpop.f32.mrb[0].mxu0
        %437 = vmatprep.mubr.f32.mxu0 0.0
        %v438 = vand.u32 %v328, 4294901760
        %v439 = vsub.f32 %v328, %v438
        %v440 = vand.u32 %v439, 4294901760
        %v441 = vsub.f32 %v439, %v440
        %v442 = vand.u32 %v441, 4294901760
        %443 = vmatmul.mubr.f32.gmra.mrb[0].mxu0 %v442
        %v444 = vpop.f32.mrb[0].mxu0
        %v445 = vadd.f32 0.0, %v444
        %v446 = vpop.f32.mrb[0].mxu0
        %447 = vmatprep.mubr.f32.mxu0 0.0
        %v448 = vand.u32 %v331, 4294901760
        %v449 = vsub.f32 %v331, %v448
        %v450 = vand.u32 %v449, 4294901760
        %v451 = vsub.f32 %v449, %v450
        %v452 = vand.u32 %v451, 4294901760
        %453 = vmatmul.mubr.f32.gmra.mrb[0].mxu0 %v452
        %v454 = vpop.f32.mrb[0].mxu0
        %v455 = vadd.f32 0.0, %v454
        %v456 = vpop.f32.mrb[0].mxu0
        %457 = vmatprep.mubr.f32.mxu0 0.0
        %v458 = vand.u32 %v334, 4294901760
        %v459 = vsub.f32 %v334, %v458
        %v460 = vand.u32 %v459, 4294901760
        %v461 = vsub.f32 %v459, %v460
        %v462 = vand.u32 %v461, 4294901760
        %463 = vmatmul.mubr.f32.gmra.mrb[0].mxu0 %v462
        %v464 = vpop.f32.mrb[0].mxu0
        %v465 = vadd.f32 0.0, %v464
        %v466 = vpop.f32.mrb[0].mxu0
        %467 = vmatprep.mubr.f32.mxu0 0.0
        %v468 = vand.u32 %v337, 4294901760
        %v469 = vsub.f32 %v337, %v468
        %v470 = vand.u32 %v469, 4294901760
        %v471 = vsub.f32 %v469, %v470
        %v472 = vand.u32 %v471, 4294901760
        %473 = vmatmul.mubr.f32.gmra.mrb[0].mxu0 %v472
        %v474 = vpop.f32.mrb[0].mxu0
        %v475 = vadd.f32 0.0, %v474
        %v476 = vpop.f32.mrb[0].mxu0
        %477 = vmatprep.mubr.f32.mxu0 0.0
        %v478 = vand.u32 %v340, 4294901760
        %v479 = vsub.f32 %v340, %v478
        %v480 = vand.u32 %v479, 4294901760
        %v481 = vsub.f32 %v479, %v480
        %v482 = vand.u32 %v481, 4294901760
        %483 = vmatmul.mubr.f32.gmra.mrb[0].mxu0 %v482
        %v484 = vpop.f32.mrb[0].mxu0
        %v485 = vadd.f32 0.0, %v484
        %v486 = vpop.f32.mrb[0].mxu0
        %487 = vmatprep.mubr.f32.mxu0 0.0
        %v488 = vand.u32 %v343, 4294901760
        %v489 = vsub.f32 %v343, %v488
        %v490 = vand.u32 %v489, 4294901760
        %v491 = vsub.f32 %v489, %v490
        %v492 = vand.u32 %v491, 4294901760
        %493 = vmatmul.mubr.f32.gmra.mrb[0].mxu0 %v492
        %v494 = vpop.f32.mrb[0].mxu0
        %v495 = vadd.f32 0.0, %v494
        %v496 = vpop.f32.mrb[0].mxu0
        %497 = vdwg.mxu0
        %498 = vmatprep.subr.mxu0 0.0
        %v499 = vand.u32 %v304, 4294901760
        %v500 = vsub.f32 %v304, %v499
        %v501 = vand.u32 %v500, 4294901760
        %v502 = vsub.f32 %v500, %v501
        %v503 = vand.u32 %v502, 4294901760
        %504 = vmatpush1.msra.mxu0 %v503
        %505 = vmatprep.subr.mxu0 0.0
        %v506 = vand.u32 %v305, 4294901760
        %v507 = vsub.f32 %v305, %v506
        %v508 = vand.u32 %v507, 4294901760
        %v509 = vsub.f32 %v507, %v508
        %v510 = vand.u32 %v509, 4294901760
        %511 = vmatpush1.msra.mxu0 %v510
        %512 = vmatprep.subr.mxu0 0.0
        %v513 = vand.u32 %v306, 4294901760
        %v514 = vsub.f32 %v306, %v513
        %v515 = vand.u32 %v514, 4294901760
        %v516 = vsub.f32 %v514, %v515
        %v517 = vand.u32 %v516, 4294901760
        %518 = vmatpush1.msra.mxu0 %v517
        %519 = vmatprep.subr.mxu0 0.0
        %v520 = vand.u32 %v307, 4294901760
        %v521 = vsub.f32 %v307, %v520
        %v522 = vand.u32 %v521, 4294901760
        %v523 = vsub.f32 %v521, %v522
        %v524 = vand.u32 %v523, 4294901760
        %525 = vmatpush1.msra.mxu0 %v524
        %526 = vmatprep.subr.mxu0 0.0
        %v527 = vand.u32 %v308, 4294901760
        %v528 = vsub.f32 %v308, %v527
        %v529 = vand.u32 %v528, 4294901760
        %v530 = vsub.f32 %v528, %v529
        %v531 = vand.u32 %v530, 4294901760
        %532 = vmatpush1.msra.mxu0 %v531
        %533 = vmatprep.subr.mxu0 0.0
        %v534 = vand.u32 %v309, 4294901760
        %v535 = vsub.f32 %v309, %v534
        %v536 = vand.u32 %v535, 4294901760
        %v537 = vsub.f32 %v535, %v536
        %v538 = vand.u32 %v537, 4294901760
        %539 = vmatpush1.msra.mxu0 %v538
        %540 = vmatprep.subr.mxu0 0.0
        %v541 = vand.u32 %v310, 4294901760
        %v542 = vsub.f32 %v310, %v541
        %v543 = vand.u32 %v542, 4294901760
        %v544 = vsub.f32 %v542, %v543
        %v545 = vand.u32 %v544, 4294901760
        %546 = vmatpush1.msra.mxu0 %v545
        %547 = vmatprep.subr.mxu0 0.0
        %v548 = vand.u32 %v311, 4294901760
        %v549 = vsub.f32 %v311, %v548
        %v550 = vand.u32 %v549, 4294901760
        %v551 = vsub.f32 %v549, %v550
        %v552 = vand.u32 %v551, 4294901760
        %553 = vmatpush1.msra.mxu0 %v552
        %554 = vmatprep.subr.mxu0 0.0
        %555 = vmatpush1.msra.mxu0 0.0
        %556 = vmatprep.subr.mxu0 0.0
        %557 = vmatpush1.msra.mxu0 0.0
        %558 = vmatprep.subr.mxu0 0.0
        %559 = vmatpush1.msra.mxu0 0.0
        %560 = vmatprep.subr.mxu0 0.0
        %561 = vmatpush1.msra.mxu0 0.0
        %562 = vmatprep.subr.mxu0 0.0
        %563 = vmatpush1.msra.mxu0 0.0
        %564 = vmatprep.subr.mxu0 0.0
        %565 = vmatpush1.msra.mxu0 0.0
        %566 = vmatprep.subr.mxu0 0.0
        %567 = vmatpush1.msra.mxu0 0.0
        %568 = vmatprep.subr.mxu0 0.0
        %569 = vmatpush1.msra.mxu0 0.0
        %570 = vmatprep.subr.mxu0 0.0
        %571 = vmatpush1.msra.mxu0 0.0
        %572 = vmatprep.subr.mxu0 0.0
        %573 = vmatpush1.msra.mxu0 0.0
        %574 = vmatprep.subr.mxu0 0.0
        %575 = vmatpush1.msra.mxu0 0.0
        %576 = vmatprep.subr.mxu0 0.0
        %577 = vmatpush1.msra.mxu0 0.0
        %578 = vmatprep.subr.mxu0 0.0
        %579 = vmatpush1.msra.mxu0 0.0
        %580 = vmatprep.subr.mxu0 0.0
        %581 = vmatpush1.msra.mxu0 0.0
        %582 = vmatprep.subr.mxu0 0.0
        %583 = vmatpush1.msra.mxu0 0.0
        %584 = vmatprep.subr.mxu0 0.0
        %585 = vmatpush1.msra.mxu0 0.0
        %586 = vmatprep.subr.mxu0 0.0
        %587 = vmatpush1.msra.mxu0 0.0
        %588 = vmatprep.subr.mxu0 0.0
        %589 = vmatpush1.msra.mxu0 0.0
        %590 = vmatprep.subr.mxu0 0.0
        %591 = vmatpush1.msra.mxu0 0.0
        %592 = vmatprep.subr.mxu0 0.0
        %593 = vmatpush1.msra.mxu0 0.0
        %594 = vmatprep.subr.mxu0 0.0
        %595 = vmatpush1.msra.mxu0 0.0
        %596 = vmatprep.subr.mxu0 0.0
        %597 = vmatpush1.msra.mxu0 0.0
        %598 = vmatprep.subr.mxu0 0.0
        %599 = vmatpush1.msra.mxu0 0.0
        %600 = vmatprep.subr.mxu0 0.0
        %601 = vmatpush1.msra.mxu0 0.0
        %602 = vmatprep.mubr.f32.mxu0 0.0
        %v603 = vand.u32 %v322, 4294901760
        %604 = vmatmul.mubr.f32.gmra.mrb[0].mxu0 %v603
        %v605 = vpop.f32.mrb[0].mxu0
        %v606 = vadd.f32 %v425, %v605
        %v607 = vpop.f32.mrb[0].mxu0
        %608 = vmatprep.mubr.f32.mxu0 0.0
        %v609 = vand.u32 %v325, 4294901760
        %610 = vmatmul.mubr.f32.gmra.mrb[0].mxu0 %v609
        %v611 = vpop.f32.mrb[0].mxu0
        %v612 = vadd.f32 %v435, %v611
        %v613 = vpop.f32.mrb[0].mxu0
        %614 = vmatprep.mubr.f32.mxu0 0.0
        %v615 = vand.u32 %v328, 4294901760
        %616 = vmatmul.mubr.f32.gmra.mrb[0].mxu0 %v615
        %v617 = vpop.f32.mrb[0].mxu0
        %v618 = vadd.f32 %v445, %v617
        %v619 = vpop.f32.mrb[0].mxu0
        %620 = vmatprep.mubr.f32.mxu0 0.0
        %v621 = vand.u32 %v331, 4294901760
        %622 = vmatmul.mubr.f32.gmra.mrb[0].mxu0 %v621
        %v623 = vpop.f32.mrb[0].mxu0
        %v624 = vadd.f32 %v455, %v623
        %v625 = vpop.f32.mrb[0].mxu0
        %626 = vmatprep.mubr.f32.mxu0 0.0
        %v627 = vand.u32 %v334, 4294901760
        %628 = vmatmul.mubr.f32.gmra.mrb[0].mxu0 %v627
        %v629 = vpop.f32.mrb[0].mxu0
        %v630 = vadd.f32 %v465, %v629
        %v631 = vpop.f32.mrb[0].mxu0
        %632 = vmatprep.mubr.f32.mxu0 0.0
        %v633 = vand.u32 %v337, 4294901760
        %634 = vmatmul.mubr.f32.gmra.mrb[0].mxu0 %v633
        %v635 = vpop.f32.mrb[0].mxu0
        %v636 = vadd.f32 %v475, %v635
        %v637 = vpop.f32.mrb[0].mxu0
        %638 = vmatprep.mubr.f32.mxu0 0.0
        %v639 = vand.u32 %v340, 4294901760
        %640 = vmatmul.mubr.f32.gmra.mrb[0].mxu0 %v639
        %v641 = vpop.f32.mrb[0].mxu0
        %v642 = vadd.f32 %v485, %v641
        %v643 = vpop.f32.mrb[0].mxu0
        %644 = vmatprep.mubr.f32.mxu0 0.0
        %v645 = vand.u32 %v343, 4294901760
        %646 = vmatmul.mubr.f32.gmra.mrb[0].mxu0 %v645
        %v647 = vpop.f32.mrb[0].mxu0
        %v648 = vadd.f32 %v495, %v647
        %v649 = vpop.f32.mrb[0].mxu0
        %650 = vdwg.mxu0
        %651 = vmatprep.subr.mxu0 0.0
        %v652 = vand.u32 %v304, 4294901760
        %v653 = vsub.f32 %v304, %v652
        %654 = vmatpush1.msra.mxu0 %v653
        %655 = vmatprep.subr.mxu0 0.0
        %v656 = vand.u32 %v305, 4294901760
        %v657 = vsub.f32 %v305, %v656
        %658 = vmatpush1.msra.mxu0 %v657
        %659 = vmatprep.subr.mxu0 0.0
        %v660 = vand.u32 %v306, 4294901760
        %v661 = vsub.f32 %v306, %v660
        %662 = vmatpush1.msra.mxu0 %v661
        %663 = vmatprep.subr.mxu0 0.0
        %v664 = vand.u32 %v307, 4294901760
        %v665 = vsub.f32 %v307, %v664
        %666 = vmatpush1.msra.mxu0 %v665
        %667 = vmatprep.subr.mxu0 0.0
        %v668 = vand.u32 %v308, 4294901760
        %v669 = vsub.f32 %v308, %v668
        %670 = vmatpush1.msra.mxu0 %v669
        %671 = vmatprep.subr.mxu0 0.0
        %v672 = vand.u32 %v309, 4294901760
        %v673 = vsub.f32 %v309, %v672
        %674 = vmatpush1.msra.mxu0 %v673
        %675 = vmatprep.subr.mxu0 0.0
        %v676 = vand.u32 %v310, 4294901760
        %v677 = vsub.f32 %v310, %v676
        %678 = vmatpush1.msra.mxu0 %v677
        %679 = vmatprep.subr.mxu0 0.0
        %v680 = vand.u32 %v311, 4294901760
        %v681 = vsub.f32 %v311, %v680
        %682 = vmatpush1.msra.mxu0 %v681
        %683 = vmatprep.subr.mxu0 0.0
        %684 = vmatpush1.msra.mxu0 0.0
        %685 = vmatprep.subr.mxu0 0.0
        %686 = vmatpush1.msra.mxu0 0.0
        %687 = vmatprep.subr.mxu0 0.0
        %688 = vmatpush1.msra.mxu0 0.0
        %689 = vmatprep.subr.mxu0 0.0
        %690 = vmatpush1.msra.mxu0 0.0
        %691 = vmatprep.subr.mxu0 0.0
        %692 = vmatpush1.msra.mxu0 0.0
        %693 = vmatprep.subr.mxu0 0.0
        %694 = vmatpush1.msra.mxu0 0.0
        %695 = vmatprep.subr.mxu0 0.0
        %696 = vmatpush1.msra.mxu0 0.0
        %697 = vmatprep.subr.mxu0 0.0
        %698 = vmatpush1.msra.mxu0 0.0
        %699 = vmatprep.subr.mxu0 0.0
        %700 = vmatpush1.msra.mxu0 0.0
        %701 = vmatprep.subr.mxu0 0.0
        %702 = vmatpush1.msra.mxu0 0.0
        %703 = vmatprep.subr.mxu0 0.0
        %704 = vmatpush1.msra.mxu0 0.0
        %705 = vmatprep.subr.mxu0 0.0
        %706 = vmatpush1.msra.mxu0 0.0
        %707 = vmatprep.subr.mxu0 0.0
        %708 = vmatpush1.msra.mxu0 0.0
        %709 = vmatprep.subr.mxu0 0.0
        %710 = vmatpush1.msra.mxu0 0.0
        %711 = vmatprep.subr.mxu0 0.0
        %712 = vmatpush1.msra.mxu0 0.0
        %713 = vmatprep.subr.mxu0 0.0
        %714 = vmatpush1.msra.mxu0 0.0
        %715 = vmatprep.subr.mxu0 0.0
        %716 = vmatpush1.msra.mxu0 0.0
        %717 = vmatprep.subr.mxu0 0.0
        %718 = vmatpush1.msra.mxu0 0.0
        %719 = vmatprep.subr.mxu0 0.0
        %720 = vmatpush1.msra.mxu0 0.0
        %721 = vmatprep.subr.mxu0 0.0
        %722 = vmatpush1.msra.mxu0 0.0
        %723 = vmatprep.subr.mxu0 0.0
        %724 = vmatpush1.msra.mxu0 0.0
        %725 = vmatprep.subr.mxu0 0.0
        %726 = vmatpush1.msra.mxu0 0.0
        %727 = vmatprep.subr.mxu0 0.0
        %728 = vmatpush1.msra.mxu0 0.0
        %729 = vmatprep.subr.mxu0 0.0
        %730 = vmatpush1.msra.mxu0 0.0
        %731 = vmatprep.mubr.f32.mxu0 0.0
        %v732 = vand.u32 %v322, 4294901760
        %v733 = vsub.f32 %v322, %v732
        %734 = vmatmul.mubr.f32.gmra.mrb[0].mxu0 %v733
        %v735 = vpop.f32.mrb[0].mxu0
        %v736 = vadd.f32 %v606, %v735
        %v737 = vpop.f32.mrb[0].mxu0
        %738 = vmatprep.mubr.f32.mxu0 0.0
        %v739 = vand.u32 %v325, 4294901760
        %v740 = vsub.f32 %v325, %v739
        %741 = vmatmul.mubr.f32.gmra.mrb[0].mxu0 %v740
        %v742 = vpop.f32.mrb[0].mxu0
        %v743 = vadd.f32 %v612, %v742
        %v744 = vpop.f32.mrb[0].mxu0
        %745 = vmatprep.mubr.f32.mxu0 0.0
        %v746 = vand.u32 %v328, 4294901760
        %v747 = vsub.f32 %v328, %v746
        %748 = vmatmul.mubr.f32.gmra.mrb[0].mxu0 %v747
        %v749 = vpop.f32.mrb[0].mxu0
        %v750 = vadd.f32 %v618, %v749
        %v751 = vpop.f32.mrb[0].mxu0
        %752 = vmatprep.mubr.f32.mxu0 0.0
        %v753 = vand.u32 %v331, 4294901760
        %v754 = vsub.f32 %v331, %v753
        %755 = vmatmul.mubr.f32.gmra.mrb[0].mxu0 %v754
        %v756 = vpop.f32.mrb[0].mxu0
        %v757 = vadd.f32 %v624, %v756
        %v758 = vpop.f32.mrb[0].mxu0
        %759 = vmatprep.mubr.f32.mxu0 0.0
        %v760 = vand.u32 %v334, 4294901760
        %v761 = vsub.f32 %v334, %v760
        %762 = vmatmul.mubr.f32.gmra.mrb[0].mxu0 %v761
        %v763 = vpop.f32.mrb[0].mxu0
        %v764 = vadd.f32 %v630, %v763
        %v765 = vpop.f32.mrb[0].mxu0
        %766 = vmatprep.mubr.f32.mxu0 0.0
        %v767 = vand.u32 %v337, 4294901760
        %v768 = vsub.f32 %v337, %v767
        %769 = vmatmul.mubr.f32.gmra.mrb[0].mxu0 %v768
        %v770 = vpop.f32.mrb[0].mxu0
        %v771 = vadd.f32 %v636, %v770
        %v772 = vpop.f32.mrb[0].mxu0
        %773 = vmatprep.mubr.f32.mxu0 0.0
        %v774 = vand.u32 %v340, 4294901760
        %v775 = vsub.f32 %v340, %v774
        %776 = vmatmul.mubr.f32.gmra.mrb[0].mxu0 %v775
        %v777 = vpop.f32.mrb[0].mxu0
        %v778 = vadd.f32 %v642, %v777
        %v779 = vpop.f32.mrb[0].mxu0
        %780 = vmatprep.mubr.f32.mxu0 0.0
        %v781 = vand.u32 %v343, 4294901760
        %v782 = vsub.f32 %v343, %v781
        %783 = vmatmul.mubr.f32.gmra.mrb[0].mxu0 %v782
        %v784 = vpop.f32.mrb[0].mxu0
        %v785 = vadd.f32 %v648, %v784
        %v786 = vpop.f32.mrb[0].mxu0
        %787 = vdwg.mxu0
        %788 = vmatprep.subr.mxu0 0.0
        %v789 = vand.u32 %v304, 4294901760
        %790 = vmatpush1.msra.mxu0 %v789
        %791 = vmatprep.subr.mxu0 0.0
        %v792 = vand.u32 %v305, 4294901760
        %793 = vmatpush1.msra.mxu0 %v792
        %794 = vmatprep.subr.mxu0 0.0
        %v795 = vand.u32 %v306, 4294901760
        %796 = vmatpush1.msra.mxu0 %v795
        %797 = vmatprep.subr.mxu0 0.0
        %v798 = vand.u32 %v307, 4294901760
        %799 = vmatpush1.msra.mxu0 %v798
        %800 = vmatprep.subr.mxu0 0.0
        %v801 = vand.u32 %v308, 4294901760
        %802 = vmatpush1.msra.mxu0 %v801
        %803 = vmatprep.subr.mxu0 0.0
        %v804 = vand.u32 %v309, 4294901760
        %805 = vmatpush1.msra.mxu0 %v804
        %806 = vmatprep.subr.mxu0 0.0
        %v807 = vand.u32 %v310, 4294901760
        %808 = vmatpush1.msra.mxu0 %v807
        %809 = vmatprep.subr.mxu0 0.0
        %v810 = vand.u32 %v311, 4294901760
        %811 = vmatpush1.msra.mxu0 %v810
        %812 = vmatprep.subr.mxu0 0.0
        %813 = vmatpush1.msra.mxu0 0.0
        %814 = vmatprep.subr.mxu0 0.0
        %815 = vmatpush1.msra.mxu0 0.0
        %816 = vmatprep.subr.mxu0 0.0
        %817 = vmatpush1.msra.mxu0 0.0
        %818 = vmatprep.subr.mxu0 0.0
        %819 = vmatpush1.msra.mxu0 0.0
        %820 = vmatprep.subr.mxu0 0.0
        %821 = vmatpush1.msra.mxu0 0.0
        %822 = vmatprep.subr.mxu0 0.0
        %823 = vmatpush1.msra.mxu0 0.0
        %824 = vmatprep.subr.mxu0 0.0
        %825 = vmatpush1.msra.mxu0 0.0
        %826 = vmatprep.subr.mxu0 0.0
        %827 = vmatpush1.msra.mxu0 0.0
        %828 = vmatprep.subr.mxu0 0.0
        %829 = vmatpush1.msra.mxu0 0.0
        %830 = vmatprep.subr.mxu0 0.0
        %831 = vmatpush1.msra.mxu0 0.0
        %832 = vmatprep.subr.mxu0 0.0
        %833 = vmatpush1.msra.mxu0 0.0
        %834 = vmatprep.subr.mxu0 0.0
        %835 = vmatpush1.msra.mxu0 0.0
        %836 = vmatprep.subr.mxu0 0.0
        %837 = vmatpush1.msra.mxu0 0.0
        %838 = vmatprep.subr.mxu0 0.0
        %839 = vmatpush1.msra.mxu0 0.0
        %840 = vmatprep.subr.mxu0 0.0
        %841 = vmatpush1.msra.mxu0 0.0
        %842 = vmatprep.subr.mxu0 0.0
        %843 = vmatpush1.msra.mxu0 0.0
        %844 = vmatprep.subr.mxu0 0.0
        %845 = vmatpush1.msra.mxu0 0.0
        %846 = vmatprep.subr.mxu0 0.0
        %847 = vmatpush1.msra.mxu0 0.0
        %848 = vmatprep.subr.mxu0 0.0
        %849 = vmatpush1.msra.mxu0 0.0
        %850 = vmatprep.subr.mxu0 0.0
        %851 = vmatpush1.msra.mxu0 0.0
        %852 = vmatprep.subr.mxu0 0.0
        %853 = vmatpush1.msra.mxu0 0.0
        %854 = vmatprep.subr.mxu0 0.0
        %855 = vmatpush1.msra.mxu0 0.0
        %856 = vmatprep.subr.mxu0 0.0
        %857 = vmatpush1.msra.mxu0 0.0
        %858 = vmatprep.subr.mxu0 0.0
        %859 = vmatpush1.msra.mxu0 0.0
        %860 = vmatprep.mubr.f32.mxu0 0.0
        %v861 = vand.u32 %v322, 4294901760
        %v862 = vsub.f32 %v322, %v861
        %v863 = vand.u32 %v862, 4294901760
        %864 = vmatmul.mubr.f32.gmra.mrb[0].mxu0 %v863
        %v865 = vpop.f32.mrb[0].mxu0
        %v866 = vadd.f32 %v736, %v865
        %v867 = vpop.f32.mrb[0].mxu0
        %868 = vmatprep.mubr.f32.mxu0 0.0
        %v869 = vand.u32 %v325, 4294901760
        %v870 = vsub.f32 %v325, %v869
        %v871 = vand.u32 %v870, 4294901760
        %872 = vmatmul.mubr.f32.gmra.mrb[0].mxu0 %v871
        %v873 = vpop.f32.mrb[0].mxu0
        %v874 = vadd.f32 %v743, %v873
        %v875 = vpop.f32.mrb[0].mxu0
        %876 = vmatprep.mubr.f32.mxu0 0.0
        %v877 = vand.u32 %v328, 4294901760
        %v878 = vsub.f32 %v328, %v877
        %v879 = vand.u32 %v878, 4294901760
        %880 = vmatmul.mubr.f32.gmra.mrb[0].mxu0 %v879
        %v881 = vpop.f32.mrb[0].mxu0
        %v882 = vadd.f32 %v750, %v881
        %v883 = vpop.f32.mrb[0].mxu0
        %884 = vmatprep.mubr.f32.mxu0 0.0
        %v885 = vand.u32 %v331, 4294901760
        %v886 = vsub.f32 %v331, %v885
        %v887 = vand.u32 %v886, 4294901760
        %888 = vmatmul.mubr.f32.gmra.mrb[0].mxu0 %v887
        %v889 = vpop.f32.mrb[0].mxu0
        %v890 = vadd.f32 %v757, %v889
        %v891 = vpop.f32.mrb[0].mxu0
        %892 = vmatprep.mubr.f32.mxu0 0.0
        %v893 = vand.u32 %v334, 4294901760
        %v894 = vsub.f32 %v334, %v893
        %v895 = vand.u32 %v894, 4294901760
        %896 = vmatmul.mubr.f32.gmra.mrb[0].mxu0 %v895
        %v897 = vpop.f32.mrb[0].mxu0
        %v898 = vadd.f32 %v764, %v897
        %v899 = vpop.f32.mrb[0].mxu0
        %900 = vmatprep.mubr.f32.mxu0 0.0
        %v901 = vand.u32 %v337, 4294901760
        %v902 = vsub.f32 %v337, %v901
        %v903 = vand.u32 %v902, 4294901760
        %904 = vmatmul.mubr.f32.gmra.mrb[0].mxu0 %v903
        %v905 = vpop.f32.mrb[0].mxu0
        %v906 = vadd.f32 %v771, %v905
        %v907 = vpop.f32.mrb[0].mxu0
        %908 = vmatprep.mubr.f32.mxu0 0.0
        %v909 = vand.u32 %v340, 4294901760
        %v910 = vsub.f32 %v340, %v909
        %v911 = vand.u32 %v910, 4294901760
        %912 = vmatmul.mubr.f32.gmra.mrb[0].mxu0 %v911
        %v913 = vpop.f32.mrb[0].mxu0
        %v914 = vadd.f32 %v778, %v913
        %v915 = vpop.f32.mrb[0].mxu0
        %916 = vmatprep.mubr.f32.mxu0 0.0
        %v917 = vand.u32 %v343, 4294901760
        %v918 = vsub.f32 %v343, %v917
        %v919 = vand.u32 %v918, 4294901760
        %920 = vmatmul.mubr.f32.gmra.mrb[0].mxu0 %v919
        %v921 = vpop.f32.mrb[0].mxu0
        %v922 = vadd.f32 %v785, %v921
        %v923 = vpop.f32.mrb[0].mxu0
        %924 = vdwg.mxu0
        %925 = vmatprep.subr.mxu0 0.0
        %v926 = vand.u32 %v304, 4294901760
        %v927 = vsub.f32 %v304, %v926
        %v928 = vand.u32 %v927, 4294901760
        %929 = vmatpush1.msra.mxu0 %v928
        %930 = vmatprep.subr.mxu0 0.0
        %v931 = vand.u32 %v305, 4294901760
        %v932 = vsub.f32 %v305, %v931
        %v933 = vand.u32 %v932, 4294901760
        %934 = vmatpush1.msra.mxu0 %v933
        %935 = vmatprep.subr.mxu0 0.0
        %v936 = vand.u32 %v306, 4294901760
        %v937 = vsub.f32 %v306, %v936
        %v938 = vand.u32 %v937, 4294901760
        %939 = vmatpush1.msra.mxu0 %v938
        %940 = vmatprep.subr.mxu0 0.0
        %v941 = vand.u32 %v307, 4294901760
        %v942 = vsub.f32 %v307, %v941
        %v943 = vand.u32 %v942, 4294901760
        %944 = vmatpush1.msra.mxu0 %v943
        %945 = vmatprep.subr.mxu0 0.0
        %v946 = vand.u32 %v308, 4294901760
        %v947 = vsub.f32 %v308, %v946
        %v948 = vand.u32 %v947, 4294901760
        %949 = vmatpush1.msra.mxu0 %v948
        %950 = vmatprep.subr.mxu0 0.0
        %v951 = vand.u32 %v309, 4294901760
        %v952 = vsub.f32 %v309, %v951
        %v953 = vand.u32 %v952, 4294901760
        %954 = vmatpush1.msra.mxu0 %v953
        %955 = vmatprep.subr.mxu0 0.0
        %v956 = vand.u32 %v310, 4294901760
        %v957 = vsub.f32 %v310, %v956
        %v958 = vand.u32 %v957, 4294901760
        %959 = vmatpush1.msra.mxu0 %v958
        %960 = vmatprep.subr.mxu0 0.0
        %v961 = vand.u32 %v311, 4294901760
        %v962 = vsub.f32 %v311, %v961
        %v963 = vand.u32 %v962, 4294901760
        %964 = vmatpush1.msra.mxu0 %v963
        %965 = vmatprep.subr.mxu0 0.0
        %966 = vmatpush1.msra.mxu0 0.0
        %967 = vmatprep.subr.mxu0 0.0
        %968 = vmatpush1.msra.mxu0 0.0
        %969 = vmatprep.subr.mxu0 0.0
        %970 = vmatpush1.msra.mxu0 0.0
        %971 = vmatprep.subr.mxu0 0.0
        %972 = vmatpush1.msra.mxu0 0.0
        %973 = vmatprep.subr.mxu0 0.0
        %974 = vmatpush1.msra.mxu0 0.0
        %975 = vmatprep.subr.mxu0 0.0
        %976 = vmatpush1.msra.mxu0 0.0
        %977 = vmatprep.subr.mxu0 0.0
        %978 = vmatpush1.msra.mxu0 0.0
        %979 = vmatprep.subr.mxu0 0.0
        %980 = vmatpush1.msra.mxu0 0.0
        %981 = vmatprep.subr.mxu0 0.0
        %982 = vmatpush1.msra.mxu0 0.0
        %983 = vmatprep.subr.mxu0 0.0
        %984 = vmatpush1.msra.mxu0 0.0
        %985 = vmatprep.subr.mxu0 0.0
        %986 = vmatpush1.msra.mxu0 0.0
        %987 = vmatprep.subr.mxu0 0.0
        %988 = vmatpush1.msra.mxu0 0.0
        %989 = vmatprep.subr.mxu0 0.0
        %990 = vmatpush1.msra.mxu0 0.0
        %991 = vmatprep.subr.mxu0 0.0
        %992 = vmatpush1.msra.mxu0 0.0
        %993 = vmatprep.subr.mxu0 0.0
        %994 = vmatpush1.msra.mxu0 0.0
        %995 = vmatprep.subr.mxu0 0.0
        %996 = vmatpush1.msra.mxu0 0.0
        %997 = vmatprep.subr.mxu0 0.0
        %998 = vmatpush1.msra.mxu0 0.0
        %999 = vmatprep.subr.mxu0 0.0
        %1000 = vmatpush1.msra.mxu0 0.0
        %1001 = vmatprep.subr.mxu0 0.0
        %1002 = vmatpush1.msra.mxu0 0.0
        %1003 = vmatprep.subr.mxu0 0.0
        %1004 = vmatpush1.msra.mxu0 0.0
        %1005 = vmatprep.subr.mxu0 0.0
        %1006 = vmatpush1.msra.mxu0 0.0
        %1007 = vmatprep.subr.mxu0 0.0
        %1008 = vmatpush1.msra.mxu0 0.0
        %1009 = vmatprep.subr.mxu0 0.0
        %1010 = vmatpush1.msra.mxu0 0.0
        %1011 = vmatprep.subr.mxu0 0.0
        %1012 = vmatpush1.msra.mxu0 0.0
        %1013 = vmatprep.mubr.f32.mxu0 0.0
        %v1014 = vand.u32 %v322, 4294901760
        %1015 = vmatmul.mubr.f32.gmra.mrb[0].mxu0 %v1014
        %v1016 = vpop.f32.mrb[0].mxu0
        %v1017 = vadd.f32 %v866, %v1016
        %v1018 = vpop.f32.mrb[0].mxu0
        %1019 = vmatprep.mubr.f32.mxu0 0.0
        %v1020 = vand.u32 %v325, 4294901760
        %1021 = vmatmul.mubr.f32.gmra.mrb[0].mxu0 %v1020
        %v1022 = vpop.f32.mrb[0].mxu0
        %v1023 = vadd.f32 %v874, %v1022
        %v1024 = vpop.f32.mrb[0].mxu0
        %1025 = vmatprep.mubr.f32.mxu0 0.0
        %v1026 = vand.u32 %v328, 4294901760
        %1027 = vmatmul.mubr.f32.gmra.mrb[0].mxu0 %v1026
        %v1028 = vpop.f32.mrb[0].mxu0
        %v1029 = vadd.f32 %v882, %v1028
        %v1030 = vpop.f32.mrb[0].mxu0
        %1031 = vmatprep.mubr.f32.mxu0 0.0
        %v1032 = vand.u32 %v331, 4294901760
        %1033 = vmatmul.mubr.f32.gmra.mrb[0].mxu0 %v1032
        %v1034 = vpop.f32.mrb[0].mxu0
        %v1035 = vadd.f32 %v890, %v1034
        %v1036 = vpop.f32.mrb[0].mxu0
        %1037 = vmatprep.mubr.f32.mxu0 0.0
        %v1038 = vand.u32 %v334, 4294901760
        %1039 = vmatmul.mubr.f32.gmra.mrb[0].mxu0 %v1038
        %v1040 = vpop.f32.mrb[0].mxu0
        %v1041 = vadd.f32 %v898, %v1040
        %v1042 = vpop.f32.mrb[0].mxu0
        %1043 = vmatprep.mubr.f32.mxu0 0.0
        %v1044 = vand.u32 %v337, 4294901760
        %1045 = vmatmul.mubr.f32.gmra.mrb[0].mxu0 %v1044
        %v1046 = vpop.f32.mrb[0].mxu0
        %v1047 = vadd.f32 %v906, %v1046
        %v1048 = vpop.f32.mrb[0].mxu0
        %1049 = vmatprep.mubr.f32.mxu0 0.0
        %v1050 = vand.u32 %v340, 4294901760
        %1051 = vmatmul.mubr.f32.gmra.mrb[0].mxu0 %v1050
        %v1052 = vpop.f32.mrb[0].mxu0
        %v1053 = vadd.f32 %v914, %v1052
        %v1054 = vpop.f32.mrb[0].mxu0
        %1055 = vmatprep.mubr.f32.mxu0 0.0
        %v1056 = vand.u32 %v343, 4294901760
        %1057 = vmatmul.mubr.f32.gmra.mrb[0].mxu0 %v1056
        %v1058 = vpop.f32.mrb[0].mxu0
        %v1059 = vadd.f32 %v922, %v1058
        %v1060 = vpop.f32.mrb[0].mxu0
        %1061 = vdwg.mxu0
        %1062 = vmatprep.subr.mxu0 0.0
        %v1063 = vand.u32 %v304, 4294901760
        %1064 = vmatpush1.msra.mxu0 %v1063
        %1065 = vmatprep.subr.mxu0 0.0
        %v1066 = vand.u32 %v305, 4294901760
        %1067 = vmatpush1.msra.mxu0 %v1066
        %1068 = vmatprep.subr.mxu0 0.0
        %v1069 = vand.u32 %v306, 4294901760
        %1070 = vmatpush1.msra.mxu0 %v1069
        %1071 = vmatprep.subr.mxu0 0.0
        %v1072 = vand.u32 %v307, 4294901760
        %1073 = vmatpush1.msra.mxu0 %v1072
        %1074 = vmatprep.subr.mxu0 0.0
        %v1075 = vand.u32 %v308, 4294901760
        %1076 = vmatpush1.msra.mxu0 %v1075
        %1077 = vmatprep.subr.mxu0 0.0
        %v1078 = vand.u32 %v309, 4294901760
        %1079 = vmatpush1.msra.mxu0 %v1078
        %1080 = vmatprep.subr.mxu0 0.0
        %v1081 = vand.u32 %v310, 4294901760
        %1082 = vmatpush1.msra.mxu0 %v1081
        %1083 = vmatprep.subr.mxu0 0.0
        %v1084 = vand.u32 %v311, 4294901760
        %1085 = vmatpush1.msra.mxu0 %v1084
        %1086 = vmatprep.subr.mxu0 0.0
        %1087 = vmatpush1.msra.mxu0 0.0
        %1088 = vmatprep.subr.mxu0 0.0
        %1089 = vmatpush1.msra.mxu0 0.0
        %1090 = vmatprep.subr.mxu0 0.0
        %1091 = vmatpush1.msra.mxu0 0.0
        %1092 = vmatprep.subr.mxu0 0.0
        %1093 = vmatpush1.msra.mxu0 0.0
        %1094 = vmatprep.subr.mxu0 0.0
        %1095 = vmatpush1.msra.mxu0 0.0
        %1096 = vmatprep.subr.mxu0 0.0
        %1097 = vmatpush1.msra.mxu0 0.0
        %1098 = vmatprep.subr.mxu0 0.0
        %1099 = vmatpush1.msra.mxu0 0.0
        %1100 = vmatprep.subr.mxu0 0.0
        %1101 = vmatpush1.msra.mxu0 0.0
        %1102 = vmatprep.subr.mxu0 0.0
        %1103 = vmatpush1.msra.mxu0 0.0
        %1104 = vmatprep.subr.mxu0 0.0
        %1105 = vmatpush1.msra.mxu0 0.0
        %1106 = vmatprep.subr.mxu0 0.0
        %1107 = vmatpush1.msra.mxu0 0.0
        %1108 = vmatprep.subr.mxu0 0.0
        %1109 = vmatpush1.msra.mxu0 0.0
        %1110 = vmatprep.subr.mxu0 0.0
        %1111 = vmatpush1.msra.mxu0 0.0
        %1112 = vmatprep.subr.mxu0 0.0
        %1113 = vmatpush1.msra.mxu0 0.0
        %1114 = vmatprep.subr.mxu0 0.0
        %1115 = vmatpush1.msra.mxu0 0.0
        %1116 = vmatprep.subr.mxu0 0.0
        %1117 = vmatpush1.msra.mxu0 0.0
        %1118 = vmatprep.subr.mxu0 0.0
        %1119 = vmatpush1.msra.mxu0 0.0
        %1120 = vmatprep.subr.mxu0 0.0
        %1121 = vmatpush1.msra.mxu0 0.0
        %1122 = vmatprep.subr.mxu0 0.0
        %1123 = vmatpush1.msra.mxu0 0.0
        %1124 = vmatprep.subr.mxu0 0.0
        %1125 = vmatpush1.msra.mxu0 0.0
        %1126 = vmatprep.subr.mxu0 0.0
        %1127 = vmatpush1.msra.mxu0 0.0
        %1128 = vmatprep.subr.mxu0 0.0
        %1129 = vmatpush1.msra.mxu0 0.0
        %1130 = vmatprep.subr.mxu0 0.0
        %1131 = vmatpush1.msra.mxu0 0.0
        %1132 = vmatprep.subr.mxu0 0.0
        %1133 = vmatpush1.msra.mxu0 0.0
        %1134 = vmatprep.mubr.f32.mxu0 0.0
        %v1135 = vand.u32 %v322, 4294901760
        %1136 = vmatmul.mubr.f32.gmra.mrb[0].mxu0 %v1135
        %v1137 = vpop.f32.mrb[0].mxu0
        %v1138 = vadd.f32 %v1017, %v1137
        %v1139 = vpop.f32.mrb[0].mxu0
        %1140 = vmatprep.mubr.f32.mxu0 0.0
        %v1141 = vand.u32 %v325, 4294901760
        %1142 = vmatmul.mubr.f32.gmra.mrb[0].mxu0 %v1141
        %v1143 = vpop.f32.mrb[0].mxu0
        %v1144 = vadd.f32 %v1023, %v1143
        %v1145 = vpop.f32.mrb[0].mxu0
        %1146 = vmatprep.mubr.f32.mxu0 0.0
        %v1147 = vand.u32 %v328, 4294901760
        %1148 = vmatmul.mubr.f32.gmra.mrb[0].mxu0 %v1147
        %v1149 = vpop.f32.mrb[0].mxu0
        %v1150 = vadd.f32 %v1029, %v1149
        %v1151 = vpop.f32.mrb[0].mxu0
        %1152 = vmatprep.mubr.f32.mxu0 0.0
        %v1153 = vand.u32 %v331, 4294901760
        %1154 = vmatmul.mubr.f32.gmra.mrb[0].mxu0 %v1153
        %v1155 = vpop.f32.mrb[0].mxu0
        %v1156 = vadd.f32 %v1035, %v1155
        %v1157 = vpop.f32.mrb[0].mxu0
        %1158 = vmatprep.mubr.f32.mxu0 0.0
        %v1159 = vand.u32 %v334, 4294901760
        %1160 = vmatmul.mubr.f32.gmra.mrb[0].mxu0 %v1159
        %v1161 = vpop.f32.mrb[0].mxu0
        %v1162 = vadd.f32 %v1041, %v1161
        %v1163 = vpop.f32.mrb[0].mxu0
        %1164 = vmatprep.mubr.f32.mxu0 0.0
        %v1165 = vand.u32 %v337, 4294901760
        %1166 = vmatmul.mubr.f32.gmra.mrb[0].mxu0 %v1165
        %v1167 = vpop.f32.mrb[0].mxu0
        %v1168 = vadd.f32 %v1047, %v1167
        %v1169 = vpop.f32.mrb[0].mxu0
        %1170 = vmatprep.mubr.f32.mxu0 0.0
        %v1171 = vand.u32 %v340, 4294901760
        %1172 = vmatmul.mubr.f32.gmra.mrb[0].mxu0 %v1171
        %v1173 = vpop.f32.mrb[0].mxu0
        %v1174 = vadd.f32 %v1053, %v1173
        %v1175 = vpop.f32.mrb[0].mxu0
        %1176 = vmatprep.mubr.f32.mxu0 0.0
        %v1177 = vand.u32 %v343, 4294901760
        %1178 = vmatmul.mubr.f32.gmra.mrb[0].mxu0 %v1177
        %v1179 = vpop.f32.mrb[0].mxu0
        %v1180 = vadd.f32 %v1059, %v1179
        %v1181 = vpop.f32.mrb[0].mxu0
        %1182 = vdwg.mxu0
        %vm1183 = vcmask 261120
        %1184 = vst.msk [vmem:[#allocation4] sm:$0xff] %vm1183, %v1138
        %1185 = vst.msk [vmem:[#allocation4 + $0x8] sm:$0xff] %vm1183, %v1144
        %1186 = vst.msk [vmem:[#allocation4 + $0x10] sm:$0xff] %vm1183, %v1150
        %1187 = vst.msk [vmem:[#allocation4 + $0x18] sm:$0xff] %vm1183, %v1156
        %1188 = vst.msk [vmem:[#allocation4 + $0x20] sm:$0xff] %vm1183, %v1162
        %1189 = vst.msk [vmem:[#allocation4 + $0x28] sm:$0xff] %vm1183, %v1168
        %1190 = vst.msk [vmem:[#allocation4 + $0x30] sm:$0xff] %vm1183, %v1174
        %1191 = vst.msk [vmem:[#allocation4 + $0x38] sm:$0xff] %vm1183, %v1180
        %v1192 = vld [vmem:[%s303] sm:$0xff]
        %vm1193 = vcmask 31744
        %1194 = vst.msk [vmem:[#allocation2] sm:$0xff] %vm1193, %v1192
        %v1195 = vld [vmem:[%s303 + $0x8] sm:$0xff]
        %1197 = vrot.lane.b32.xlu0 %v1195, 4
        %v1198 = vpop.permute.xlu0 %1197
        %vm1200 = vcmask 64544
        %1201 = vst.msk [vmem:[#allocation2] sm:$0xff] %vm1200, %v1198
        %v1202 = vld [vmem:[%s303 + $0x10] sm:$0xff]
        %1204 = vrot.lane.b32.xlu0 %v1202, 8
        %v1205 = vpop.permute.xlu0 %1204
        %vm1207 = vcmask 97344
        %1208 = vst.msk [vmem:[#allocation2] sm:$0xff] %vm1207, %v1205
        %v1209 = vld [vmem:[%s303 + $0x18] sm:$0xff]
        %1211 = vrot.lane.b32.xlu0 %v1209, 12
        %v1212 = vpop.permute.xlu0 %1211
        %vm1214 = vcmask 130144
        %1215 = vst.msk [vmem:[#allocation2] sm:$0xff] %vm1214, %v1212
        %v1216 = vld [vmem:[%s303 + $0x20] sm:$0xff]
        %1218 = vrot.lane.b32.xlu0 %v1216, 16
        %v1219 = vpop.permute.xlu0 %1218
        %vm1221 = vcmask 162944
        %1222 = vst.msk [vmem:[#allocation2] sm:$0xff] %vm1221, %v1219
        %v1223 = vld [vmem:[%s303 + $0x28] sm:$0xff]
        %1225 = vrot.lane.b32.xlu0 %v1223, 20
        %v1226 = vpop.permute.xlu0 %1225
        %vm1228 = vcmask 195744
        %1229 = vst.msk [vmem:[#allocation2] sm:$0xff] %vm1228, %v1226
        %v1230 = vld [vmem:[%s303 + $0x30] sm:$0xff]
        %1232 = vrot.lane.b32.xlu0 %v1230, 24
        %v1233 = vpop.permute.xlu0 %1232
        %vm1235 = vcmask 228544
        %1236 = vst.msk [vmem:[#allocation2] sm:$0xff] %vm1235, %v1233
        %v1237 = vld [vmem:[%s303 + $0x38] sm:$0xff]
        %1239 = vrot.lane.b32.xlu0 %v1237, 28
        %v1240 = vpop.permute.xlu0 %1239
        %vm1242 = vcmask 261344
        %1243 = vst.msk [vmem:[#allocation2] sm:$0xff] %vm1242, %v1240
        %v1244 = vld [vmem:[#allocation4] sm:$0xff]
        %1246 = vrot.lane.b32.xlu0 %v1244, 32
        %v1247 = vpop.permute.xlu0 %1246
        %vm1249 = vcmask 294144
        %1250 = vst.msk [vmem:[#allocation2] sm:$0xff] %vm1249, %v1247
        %v1251 = vld [vmem:[#allocation4 + $0x8] sm:$0xff]
        %1253 = vrot.lane.b32.xlu0 %v1251, 36
        %v1254 = vpop.permute.xlu0 %1253
        %vm1256 = vcmask 326944
        %1257 = vst.msk [vmem:[#allocation2] sm:$0xff] %vm1256, %v1254
        %v1258 = vld [vmem:[#allocation4 + $0x10] sm:$0xff]
        %1260 = vrot.lane.b32.xlu0 %v1258, 40
        %v1261 = vpop.permute.xlu0 %1260
        %vm1263 = vcmask 359744
        %1264 = vst.msk [vmem:[#allocation2] sm:$0xff] %vm1263, %v1261
        %v1265 = vld [vmem:[#allocation4 + $0x18] sm:$0xff]
        %1267 = vrot.lane.b32.xlu0 %v1265, 44
        %v1268 = vpop.permute.xlu0 %1267
        %vm1270 = vcmask 392544
        %1271 = vst.msk [vmem:[#allocation2] sm:$0xff] %vm1270, %v1268
        %v1272 = vld [vmem:[#allocation4 + $0x20] sm:$0xff]
        %1274 = vrot.lane.b32.xlu0 %v1272, 48
        %v1275 = vpop.permute.xlu0 %1274
        %vm1277 = vcmask 425344
        %1278 = vst.msk [vmem:[#allocation2] sm:$0xff] %vm1277, %v1275
        %v1279 = vld [vmem:[#allocation4 + $0x28] sm:$0xff]
        %1281 = vrot.lane.b32.xlu0 %v1279, 52
        %v1282 = vpop.permute.xlu0 %1281
        %vm1284 = vcmask 458144
        %1285 = vst.msk [vmem:[#allocation2] sm:$0xff] %vm1284, %v1282
        %v1286 = vld [vmem:[#allocation4 + $0x30] sm:$0xff]
        %1288 = vrot.lane.b32.xlu0 %v1286, 56
        %v1289 = vpop.permute.xlu0 %1288
        %vm1291 = vcmask 490944
        %1292 = vst.msk [vmem:[#allocation2] sm:$0xff] %vm1291, %v1289
        %v1293 = vld [vmem:[#allocation4 + $0x38] sm:$0xff]
        %1295 = vrot.lane.b32.xlu0 %v1293, 60
        %v1296 = vpop.permute.xlu0 %1295
        %vm1298 = vcmask 523744
        %1299 = vst.msk [vmem:[#allocation2] sm:$0xff] %vm1298, %v1296
        %v1300 = vld [vmem:[%s303] sm:$0xff]
        %1302 = vrot.lane.b32.xlu0 %v1300, 124
        %v1303 = vpop.permute.xlu0 %1302
        %1305 = vst.msk [vmem:[#allocation2 + $0x8] sm:$0xff] %vm1193, %v1303
        %v1306 = vld [vmem:[%s303 + $0x8] sm:$0xff]
        %1307 = vst.msk [vmem:[#allocation2 + $0x8] sm:$0xff] %vm1200, %v1306
        %v1308 = vld [vmem:[%s303 + $0x10] sm:$0xff]
        %1310 = vrot.lane.b32.xlu0 %v1308, 4
        %v1311 = vpop.permute.xlu0 %1310
        %1313 = vst.msk [vmem:[#allocation2 + $0x8] sm:$0xff] %vm1207, %v1311
        %v1314 = vld [vmem:[%s303 + $0x18] sm:$0xff]
        %1316 = vrot.lane.b32.xlu0 %v1314, 8
        %v1317 = vpop.permute.xlu0 %1316
        %1319 = vst.msk [vmem:[#allocation2 + $0x8] sm:$0xff] %vm1214, %v1317
        %v1320 = vld [vmem:[%s303 + $0x20] sm:$0xff]
        %1322 = vrot.lane.b32.xlu0 %v1320, 12
        %v1323 = vpop.permute.xlu0 %1322
        %1325 = vst.msk [vmem:[#allocation2 + $0x8] sm:$0xff] %vm1221, %v1323
        %v1326 = vld [vmem:[%s303 + $0x28] sm:$0xff]
        %1328 = vrot.lane.b32.xlu0 %v1326, 16
        %v1329 = vpop.permute.xlu0 %1328
        %1331 = vst.msk [vmem:[#allocation2 + $0x8] sm:$0xff] %vm1228, %v1329
        %v1332 = vld [vmem:[%s303 + $0x30] sm:$0xff]
        %1334 = vrot.lane.b32.xlu0 %v1332, 20
        %v1335 = vpop.permute.xlu0 %1334
        %1337 = vst.msk [vmem:[#allocation2 + $0x8] sm:$0xff] %vm1235, %v1335
        %v1338 = vld [vmem:[%s303 + $0x38] sm:$0xff]
        %1340 = vrot.lane.b32.xlu0 %v1338, 24
        %v1341 = vpop.permute.xlu0 %1340
        %1343 = vst.msk [vmem:[#allocation2 + $0x8] sm:$0xff] %vm1242, %v1341
        %v1344 = vld [vmem:[#allocation4] sm:$0xff]
        %1346 = vrot.lane.b32.xlu0 %v1344, 28
        %v1347 = vpop.permute.xlu0 %1346
        %1349 = vst.msk [vmem:[#allocation2 + $0x8] sm:$0xff] %vm1249, %v1347
        %v1350 = vld [vmem:[#allocation4 + $0x8] sm:$0xff]
        %1352 = vrot.lane.b32.xlu0 %v1350, 32
        %v1353 = vpop.permute.xlu0 %1352
        %1355 = vst.msk [vmem:[#allocation2 + $0x8] sm:$0xff] %vm1256, %v1353
        %v1356 = vld [vmem:[#allocation4 + $0x10] sm:$0xff]
        %1358 = vrot.lane.b32.xlu0 %v1356, 36
        %v1359 = vpop.permute.xlu0 %1358
        %1361 = vst.msk [vmem:[#allocation2 + $0x8] sm:$0xff] %vm1263, %v1359
        %v1362 = vld [vmem:[#allocation4 + $0x18] sm:$0xff]
        %1364 = vrot.lane.b32.xlu0 %v1362, 40
        %v1365 = vpop.permute.xlu0 %1364
        %1367 = vst.msk [vmem:[#allocation2 + $0x8] sm:$0xff] %vm1270, %v1365
        %v1368 = vld [vmem:[#allocation4 + $0x20] sm:$0xff]
        %1370 = vrot.lane.b32.xlu0 %v1368, 44
        %v1371 = vpop.permute.xlu0 %1370
        %1373 = vst.msk [vmem:[#allocation2 + $0x8] sm:$0xff] %vm1277, %v1371
        %v1374 = vld [vmem:[#allocation4 + $0x28] sm:$0xff]
        %1376 = vrot.lane.b32.xlu0 %v1374, 48
        %v1377 = vpop.permute.xlu0 %1376
        %1379 = vst.msk [vmem:[#allocation2 + $0x8] sm:$0xff] %vm1284, %v1377
        %v1380 = vld [vmem:[#allocation4 + $0x30] sm:$0xff]
        %1382 = vrot.lane.b32.xlu0 %v1380, 52
        %v1383 = vpop.permute.xlu0 %1382
        %1385 = vst.msk [vmem:[#allocation2 + $0x8] sm:$0xff] %vm1291, %v1383
        %v1386 = vld [vmem:[#allocation4 + $0x38] sm:$0xff]
        %1388 = vrot.lane.b32.xlu0 %v1386, 56
        %v1389 = vpop.permute.xlu0 %1388
        %1391 = vst.msk [vmem:[#allocation2 + $0x8] sm:$0xff] %vm1298, %v1389
        %v1392 = vld [vmem:[%s303] sm:$0xff]
        %1394 = vrot.lane.b32.xlu0 %v1392, 120
        %v1395 = vpop.permute.xlu0 %1394
        %1397 = vst.msk [vmem:[#allocation2 + $0x10] sm:$0xff] %vm1193, %v1395
        %v1398 = vld [vmem:[%s303 + $0x8] sm:$0xff]
        %1400 = vrot.lane.b32.xlu0 %v1398, 124
        %v1401 = vpop.permute.xlu0 %1400
        %1403 = vst.msk [vmem:[#allocation2 + $0x10] sm:$0xff] %vm1200, %v1401
        %v1404 = vld [vmem:[%s303 + $0x10] sm:$0xff]
        %1405 = vst.msk [vmem:[#allocation2 + $0x10] sm:$0xff] %vm1207, %v1404
        %v1406 = vld [vmem:[%s303 + $0x18] sm:$0xff]
        %1408 = vrot.lane.b32.xlu0 %v1406, 4
        %v1409 = vpop.permute.xlu0 %1408
        %1411 = vst.msk [vmem:[#allocation2 + $0x10] sm:$0xff] %vm1214, %v1409
        %v1412 = vld [vmem:[%s303 + $0x20] sm:$0xff]
        %1414 = vrot.lane.b32.xlu0 %v1412, 8
        %v1415 = vpop.permute.xlu0 %1414
        %1417 = vst.msk [vmem:[#allocation2 + $0x10] sm:$0xff] %vm1221, %v1415
        %v1418 = vld [vmem:[%s303 + $0x28] sm:$0xff]
        %1420 = vrot.lane.b32.xlu0 %v1418, 12
        %v1421 = vpop.permute.xlu0 %1420
        %1423 = vst.msk [vmem:[#allocation2 + $0x10] sm:$0xff] %vm1228, %v1421
        %v1424 = vld [vmem:[%s303 + $0x30] sm:$0xff]
        %1426 = vrot.lane.b32.xlu0 %v1424, 16
        %v1427 = vpop.permute.xlu0 %1426
        %1429 = vst.msk [vmem:[#allocation2 + $0x10] sm:$0xff] %vm1235, %v1427
        %v1430 = vld [vmem:[%s303 + $0x38] sm:$0xff]
        %1432 = vrot.lane.b32.xlu0 %v1430, 20
        %v1433 = vpop.permute.xlu0 %1432
        %1435 = vst.msk [vmem:[#allocation2 + $0x10] sm:$0xff] %vm1242, %v1433
        %v1436 = vld [vmem:[#allocation4] sm:$0xff]
        %1438 = vrot.lane.b32.xlu0 %v1436, 24
        %v1439 = vpop.permute.xlu0 %1438
        %1441 = vst.msk [vmem:[#allocation2 + $0x10] sm:$0xff] %vm1249, %v1439
        %v1442 = vld [vmem:[#allocation4 + $0x8] sm:$0xff]
        %1444 = vrot.lane.b32.xlu0 %v1442, 28
        %v1445 = vpop.permute.xlu0 %1444
        %1447 = vst.msk [vmem:[#allocation2 + $0x10] sm:$0xff] %vm1256, %v1445
        %v1448 = vld [vmem:[#allocation4 + $0x10] sm:$0xff]
        %1450 = vrot.lane.b32.xlu0 %v1448, 32
        %v1451 = vpop.permute.xlu0 %1450
        %1453 = vst.msk [vmem:[#allocation2 + $0x10] sm:$0xff] %vm1263, %v1451
        %v1454 = vld [vmem:[#allocation4 + $0x18] sm:$0xff]
        %1456 = vrot.lane.b32.xlu0 %v1454, 36
        %v1457 = vpop.permute.xlu0 %1456
        %1459 = vst.msk [vmem:[#allocation2 + $0x10] sm:$0xff] %vm1270, %v1457
        %v1460 = vld [vmem:[#allocation4 + $0x20] sm:$0xff]
        %1462 = vrot.lane.b32.xlu0 %v1460, 40
        %v1463 = vpop.permute.xlu0 %1462
        %1465 = vst.msk [vmem:[#allocation2 + $0x10] sm:$0xff] %vm1277, %v1463
        %v1466 = vld [vmem:[#allocation4 + $0x28] sm:$0xff]
        %1468 = vrot.lane.b32.xlu0 %v1466, 44
        %v1469 = vpop.permute.xlu0 %1468
        %1471 = vst.msk [vmem:[#allocation2 + $0x10] sm:$0xff] %vm1284, %v1469
        %v1472 = vld [vmem:[#allocation4 + $0x30] sm:$0xff]
        %1474 = vrot.lane.b32.xlu0 %v1472, 48
        %v1475 = vpop.permute.xlu0 %1474
        %1477 = vst.msk [vmem:[#allocation2 + $0x10] sm:$0xff] %vm1291, %v1475
        %v1478 = vld [vmem:[#allocation4 + $0x38] sm:$0xff]
        %1480 = vrot.lane.b32.xlu0 %v1478, 52
        %v1481 = vpop.permute.xlu0 %1480
        %1483 = vst.msk [vmem:[#allocation2 + $0x10] sm:$0xff] %vm1298, %v1481
        %v1484 = vld [vmem:[%s303] sm:$0xff]
        %1486 = vrot.lane.b32.xlu0 %v1484, 116
        %v1487 = vpop.permute.xlu0 %1486
        %1489 = vst.msk [vmem:[#allocation2 + $0x18] sm:$0xff] %vm1193, %v1487
        %v1490 = vld [vmem:[%s303 + $0x8] sm:$0xff]
        %1492 = vrot.lane.b32.xlu0 %v1490, 120
        %v1493 = vpop.permute.xlu0 %1492
        %1495 = vst.msk [vmem:[#allocation2 + $0x18] sm:$0xff] %vm1200, %v1493
        %v1496 = vld [vmem:[%s303 + $0x10] sm:$0xff]
        %1498 = vrot.lane.b32.xlu0 %v1496, 124
        %v1499 = vpop.permute.xlu0 %1498
        %1501 = vst.msk [vmem:[#allocation2 + $0x18] sm:$0xff] %vm1207, %v1499
        %v1502 = vld [vmem:[%s303 + $0x18] sm:$0xff]
        %1503 = vst.msk [vmem:[#allocation2 + $0x18] sm:$0xff] %vm1214, %v1502
        %v1504 = vld [vmem:[%s303 + $0x20] sm:$0xff]
        %1506 = vrot.lane.b32.xlu0 %v1504, 4
        %v1507 = vpop.permute.xlu0 %1506
        %1509 = vst.msk [vmem:[#allocation2 + $0x18] sm:$0xff] %vm1221, %v1507
        %v1510 = vld [vmem:[%s303 + $0x28] sm:$0xff]
        %1512 = vrot.lane.b32.xlu0 %v1510, 8
        %v1513 = vpop.permute.xlu0 %1512
        %1515 = vst.msk [vmem:[#allocation2 + $0x18] sm:$0xff] %vm1228, %v1513
        %v1516 = vld [vmem:[%s303 + $0x30] sm:$0xff]
        %1518 = vrot.lane.b32.xlu0 %v1516, 12
        %v1519 = vpop.permute.xlu0 %1518
        %1521 = vst.msk [vmem:[#allocation2 + $0x18] sm:$0xff] %vm1235, %v1519
        %v1522 = vld [vmem:[%s303 + $0x38] sm:$0xff]
        %1524 = vrot.lane.b32.xlu0 %v1522, 16
        %v1525 = vpop.permute.xlu0 %1524
        %1527 = vst.msk [vmem:[#allocation2 + $0x18] sm:$0xff] %vm1242, %v1525
        %v1528 = vld [vmem:[#allocation4] sm:$0xff]
        %1530 = vrot.lane.b32.xlu0 %v1528, 20
        %v1531 = vpop.permute.xlu0 %1530
        %1533 = vst.msk [vmem:[#allocation2 + $0x18] sm:$0xff] %vm1249, %v1531
        %v1534 = vld [vmem:[#allocation4 + $0x8] sm:$0xff]
        %1536 = vrot.lane.b32.xlu0 %v1534, 24
        %v1537 = vpop.permute.xlu0 %1536
        %1539 = vst.msk [vmem:[#allocation2 + $0x18] sm:$0xff] %vm1256, %v1537
        %v1540 = vld [vmem:[#allocation4 + $0x10] sm:$0xff]
        %1542 = vrot.lane.b32.xlu0 %v1540, 28
        %v1543 = vpop.permute.xlu0 %1542
        %1545 = vst.msk [vmem:[#allocation2 + $0x18] sm:$0xff] %vm1263, %v1543
        %v1546 = vld [vmem:[#allocation4 + $0x18] sm:$0xff]
        %1548 = vrot.lane.b32.xlu0 %v1546, 32
        %v1549 = vpop.permute.xlu0 %1548
        %1551 = vst.msk [vmem:[#allocation2 + $0x18] sm:$0xff] %vm1270, %v1549
        %v1552 = vld [vmem:[#allocation4 + $0x20] sm:$0xff]
        %1554 = vrot.lane.b32.xlu0 %v1552, 36
        %v1555 = vpop.permute.xlu0 %1554
        %1557 = vst.msk [vmem:[#allocation2 + $0x18] sm:$0xff] %vm1277, %v1555
        %v1558 = vld [vmem:[#allocation4 + $0x28] sm:$0xff]
        %1560 = vrot.lane.b32.xlu0 %v1558, 40
        %v1561 = vpop.permute.xlu0 %1560
        %1563 = vst.msk [vmem:[#allocation2 + $0x18] sm:$0xff] %vm1284, %v1561
        %v1564 = vld [vmem:[#allocation4 + $0x30] sm:$0xff]
        %1566 = vrot.lane.b32.xlu0 %v1564, 44
        %v1567 = vpop.permute.xlu0 %1566
        %1569 = vst.msk [vmem:[#allocation2 + $0x18] sm:$0xff] %vm1291, %v1567
        %v1570 = vld [vmem:[#allocation4 + $0x38] sm:$0xff]
        %1572 = vrot.lane.b32.xlu0 %v1570, 48
        %v1573 = vpop.permute.xlu0 %1572
        %1575 = vst.msk [vmem:[#allocation2 + $0x18] sm:$0xff] %vm1298, %v1573
        %v1576 = vld [vmem:[%s303] sm:$0xff]
        %1578 = vrot.lane.b32.xlu0 %v1576, 112
        %v1579 = vpop.permute.xlu0 %1578
        %1581 = vst.msk [vmem:[#allocation2 + $0x20] sm:$0xff] %vm1193, %v1579
        %v1582 = vld [vmem:[%s303 + $0x8] sm:$0xff]
        %1584 = vrot.lane.b32.xlu0 %v1582, 116
        %v1585 = vpop.permute.xlu0 %1584
        %1587 = vst.msk [vmem:[#allocation2 + $0x20] sm:$0xff] %vm1200, %v1585
        %v1588 = vld [vmem:[%s303 + $0x10] sm:$0xff]
        %1590 = vrot.lane.b32.xlu0 %v1588, 120
        %v1591 = vpop.permute.xlu0 %1590
        %1593 = vst.msk [vmem:[#allocation2 + $0x20] sm:$0xff] %vm1207, %v1591
        %v1594 = vld [vmem:[%s303 + $0x18] sm:$0xff]
        %1596 = vrot.lane.b32.xlu0 %v1594, 124
        %v1597 = vpop.permute.xlu0 %1596
        %1599 = vst.msk [vmem:[#allocation2 + $0x20] sm:$0xff] %vm1214, %v1597
        %v1600 = vld [vmem:[%s303 + $0x20] sm:$0xff]
        %1601 = vst.msk [vmem:[#allocation2 + $0x20] sm:$0xff] %vm1221, %v1600
        %v1602 = vld [vmem:[%s303 + $0x28] sm:$0xff]
        %1604 = vrot.lane.b32.xlu0 %v1602, 4
        %v1605 = vpop.permute.xlu0 %1604
        %1607 = vst.msk [vmem:[#allocation2 + $0x20] sm:$0xff] %vm1228, %v1605
        %v1608 = vld [vmem:[%s303 + $0x30] sm:$0xff]
        %1610 = vrot.lane.b32.xlu0 %v1608, 8
        %v1611 = vpop.permute.xlu0 %1610
        %1613 = vst.msk [vmem:[#allocation2 + $0x20] sm:$0xff] %vm1235, %v1611
        %v1614 = vld [vmem:[%s303 + $0x38] sm:$0xff]
        %1616 = vrot.lane.b32.xlu0 %v1614, 12
        %v1617 = vpop.permute.xlu0 %1616
        %1619 = vst.msk [vmem:[#allocation2 + $0x20] sm:$0xff] %vm1242, %v1617
        %v1620 = vld [vmem:[#allocation4] sm:$0xff]
        %1622 = vrot.lane.b32.xlu0 %v1620, 16
        %v1623 = vpop.permute.xlu0 %1622
        %1625 = vst.msk [vmem:[#allocation2 + $0x20] sm:$0xff] %vm1249, %v1623
        %v1626 = vld [vmem:[#allocation4 + $0x8] sm:$0xff]
        %1628 = vrot.lane.b32.xlu0 %v1626, 20
        %v1629 = vpop.permute.xlu0 %1628
        %1631 = vst.msk [vmem:[#allocation2 + $0x20] sm:$0xff] %vm1256, %v1629
        %v1632 = vld [vmem:[#allocation4 + $0x10] sm:$0xff]
        %1634 = vrot.lane.b32.xlu0 %v1632, 24
        %v1635 = vpop.permute.xlu0 %1634
        %1637 = vst.msk [vmem:[#allocation2 + $0x20] sm:$0xff] %vm1263, %v1635
        %v1638 = vld [vmem:[#allocation4 + $0x18] sm:$0xff]
        %1640 = vrot.lane.b32.xlu0 %v1638, 28
        %v1641 = vpop.permute.xlu0 %1640
        %1643 = vst.msk [vmem:[#allocation2 + $0x20] sm:$0xff] %vm1270, %v1641
        %v1644 = vld [vmem:[#allocation4 + $0x20] sm:$0xff]
        %1646 = vrot.lane.b32.xlu0 %v1644, 32
        %v1647 = vpop.permute.xlu0 %1646
        %1649 = vst.msk [vmem:[#allocation2 + $0x20] sm:$0xff] %vm1277, %v1647
        %v1650 = vld [vmem:[#allocation4 + $0x28] sm:$0xff]
        %1652 = vrot.lane.b32.xlu0 %v1650, 36
        %v1653 = vpop.permute.xlu0 %1652
        %1655 = vst.msk [vmem:[#allocation2 + $0x20] sm:$0xff] %vm1284, %v1653
        %v1656 = vld [vmem:[#allocation4 + $0x30] sm:$0xff]
        %1658 = vrot.lane.b32.xlu0 %v1656, 40
        %v1659 = vpop.permute.xlu0 %1658
        %1661 = vst.msk [vmem:[#allocation2 + $0x20] sm:$0xff] %vm1291, %v1659
        %v1662 = vld [vmem:[#allocation4 + $0x38] sm:$0xff]
        %1664 = vrot.lane.b32.xlu0 %v1662, 44
        %v1665 = vpop.permute.xlu0 %1664
        %1667 = vst.msk [vmem:[#allocation2 + $0x20] sm:$0xff] %vm1298, %v1665
        %v1668 = vld [vmem:[%s303] sm:$0xff]
        %1670 = vrot.lane.b32.xlu0 %v1668, 108
        %v1671 = vpop.permute.xlu0 %1670
        %1673 = vst.msk [vmem:[#allocation2 + $0x28] sm:$0xff] %vm1193, %v1671
        %v1674 = vld [vmem:[%s303 + $0x8] sm:$0xff]
        %1676 = vrot.lane.b32.xlu0 %v1674, 112
        %v1677 = vpop.permute.xlu0 %1676
        %1679 = vst.msk [vmem:[#allocation2 + $0x28] sm:$0xff] %vm1200, %v1677
        %v1680 = vld [vmem:[%s303 + $0x10] sm:$0xff]
        %1682 = vrot.lane.b32.xlu0 %v1680, 116
        %v1683 = vpop.permute.xlu0 %1682
        %1685 = vst.msk [vmem:[#allocation2 + $0x28] sm:$0xff] %vm1207, %v1683
        %v1686 = vld [vmem:[%s303 + $0x18] sm:$0xff]
        %1688 = vrot.lane.b32.xlu0 %v1686, 120
        %v1689 = vpop.permute.xlu0 %1688
        %1691 = vst.msk [vmem:[#allocation2 + $0x28] sm:$0xff] %vm1214, %v1689
        %v1692 = vld [vmem:[%s303 + $0x20] sm:$0xff]
        %1694 = vrot.lane.b32.xlu0 %v1692, 124
        %v1695 = vpop.permute.xlu0 %1694
        %1697 = vst.msk [vmem:[#allocation2 + $0x28] sm:$0xff] %vm1221, %v1695
        %v1698 = vld [vmem:[%s303 + $0x28] sm:$0xff]
        %1699 = vst.msk [vmem:[#allocation2 + $0x28] sm:$0xff] %vm1228, %v1698
        %v1700 = vld [vmem:[%s303 + $0x30] sm:$0xff]
        %1702 = vrot.lane.b32.xlu0 %v1700, 4
        %v1703 = vpop.permute.xlu0 %1702
        %1705 = vst.msk [vmem:[#allocation2 + $0x28] sm:$0xff] %vm1235, %v1703
        %v1706 = vld [vmem:[%s303 + $0x38] sm:$0xff]
        %1708 = vrot.lane.b32.xlu0 %v1706, 8
        %v1709 = vpop.permute.xlu0 %1708
        %1711 = vst.msk [vmem:[#allocation2 + $0x28] sm:$0xff] %vm1242, %v1709
        %v1712 = vld [vmem:[#allocation4] sm:$0xff]
        %1714 = vrot.lane.b32.xlu0 %v1712, 12
        %v1715 = vpop.permute.xlu0 %1714
        %1717 = vst.msk [vmem:[#allocation2 + $0x28] sm:$0xff] %vm1249, %v1715
        %v1718 = vld [vmem:[#allocation4 + $0x8] sm:$0xff]
        %1720 = vrot.lane.b32.xlu0 %v1718, 16
        %v1721 = vpop.permute.xlu0 %1720
        %1723 = vst.msk [vmem:[#allocation2 + $0x28] sm:$0xff] %vm1256, %v1721
        %v1724 = vld [vmem:[#allocation4 + $0x10] sm:$0xff]
        %1726 = vrot.lane.b32.xlu0 %v1724, 20
        %v1727 = vpop.permute.xlu0 %1726
        %1729 = vst.msk [vmem:[#allocation2 + $0x28] sm:$0xff] %vm1263, %v1727
        %v1730 = vld [vmem:[#allocation4 + $0x18] sm:$0xff]
        %1732 = vrot.lane.b32.xlu0 %v1730, 24
        %v1733 = vpop.permute.xlu0 %1732
        %1735 = vst.msk [vmem:[#allocation2 + $0x28] sm:$0xff] %vm1270, %v1733
        %v1736 = vld [vmem:[#allocation4 + $0x20] sm:$0xff]
        %1738 = vrot.lane.b32.xlu0 %v1736, 28
        %v1739 = vpop.permute.xlu0 %1738
        %1741 = vst.msk [vmem:[#allocation2 + $0x28] sm:$0xff] %vm1277, %v1739
        %v1742 = vld [vmem:[#allocation4 + $0x28] sm:$0xff]
        %1744 = vrot.lane.b32.xlu0 %v1742, 32
        %v1745 = vpop.permute.xlu0 %1744
        %1747 = vst.msk [vmem:[#allocation2 + $0x28] sm:$0xff] %vm1284, %v1745
        %v1748 = vld [vmem:[#allocation4 + $0x30] sm:$0xff]
        %1750 = vrot.lane.b32.xlu0 %v1748, 36
        %v1751 = vpop.permute.xlu0 %1750
        %1753 = vst.msk [vmem:[#allocation2 + $0x28] sm:$0xff] %vm1291, %v1751
        %v1754 = vld [vmem:[#allocation4 + $0x38] sm:$0xff]
        %1756 = vrot.lane.b32.xlu0 %v1754, 40
        %v1757 = vpop.permute.xlu0 %1756
        %1759 = vst.msk [vmem:[#allocation2 + $0x28] sm:$0xff] %vm1298, %v1757
        %v1760 = vld [vmem:[%s303] sm:$0xff]
        %1762 = vrot.lane.b32.xlu0 %v1760, 104
        %v1763 = vpop.permute.xlu0 %1762
        %1765 = vst.msk [vmem:[#allocation2 + $0x30] sm:$0xff] %vm1193, %v1763
        %v1766 = vld [vmem:[%s303 + $0x8] sm:$0xff]
        %1768 = vrot.lane.b32.xlu0 %v1766, 108
        %v1769 = vpop.permute.xlu0 %1768
        %1771 = vst.msk [vmem:[#allocation2 + $0x30] sm:$0xff] %vm1200, %v1769
        %v1772 = vld [vmem:[%s303 + $0x10] sm:$0xff]
        %1774 = vrot.lane.b32.xlu0 %v1772, 112
        %v1775 = vpop.permute.xlu0 %1774
        %1777 = vst.msk [vmem:[#allocation2 + $0x30] sm:$0xff] %vm1207, %v1775
        %v1778 = vld [vmem:[%s303 + $0x18] sm:$0xff]
        %1780 = vrot.lane.b32.xlu0 %v1778, 116
        %v1781 = vpop.permute.xlu0 %1780
        %1783 = vst.msk [vmem:[#allocation2 + $0x30] sm:$0xff] %vm1214, %v1781
        %v1784 = vld [vmem:[%s303 + $0x20] sm:$0xff]
        %1786 = vrot.lane.b32.xlu0 %v1784, 120
        %v1787 = vpop.permute.xlu0 %1786
        %1789 = vst.msk [vmem:[#allocation2 + $0x30] sm:$0xff] %vm1221, %v1787
        %v1790 = vld [vmem:[%s303 + $0x28] sm:$0xff]
        %1792 = vrot.lane.b32.xlu0 %v1790, 124
        %v1793 = vpop.permute.xlu0 %1792
        %1795 = vst.msk [vmem:[#allocation2 + $0x30] sm:$0xff] %vm1228, %v1793
        %v1796 = vld [vmem:[%s303 + $0x30] sm:$0xff]
        %1797 = vst.msk [vmem:[#allocation2 + $0x30] sm:$0xff] %vm1235, %v1796
        %v1798 = vld [vmem:[%s303 + $0x38] sm:$0xff]
        %1800 = vrot.lane.b32.xlu0 %v1798, 4
        %v1801 = vpop.permute.xlu0 %1800
        %1803 = vst.msk [vmem:[#allocation2 + $0x30] sm:$0xff] %vm1242, %v1801
        %v1804 = vld [vmem:[#allocation4] sm:$0xff]
        %1806 = vrot.lane.b32.xlu0 %v1804, 8
        %v1807 = vpop.permute.xlu0 %1806
        %1809 = vst.msk [vmem:[#allocation2 + $0x30] sm:$0xff] %vm1249, %v1807
        %v1810 = vld [vmem:[#allocation4 + $0x8] sm:$0xff]
        %1812 = vrot.lane.b32.xlu0 %v1810, 12
        %v1813 = vpop.permute.xlu0 %1812
        %1815 = vst.msk [vmem:[#allocation2 + $0x30] sm:$0xff] %vm1256, %v1813
        %v1816 = vld [vmem:[#allocation4 + $0x10] sm:$0xff]
        %1818 = vrot.lane.b32.xlu0 %v1816, 16
        %v1819 = vpop.permute.xlu0 %1818
        %1821 = vst.msk [vmem:[#allocation2 + $0x30] sm:$0xff] %vm1263, %v1819
        %v1822 = vld [vmem:[#allocation4 + $0x18] sm:$0xff]
        %1824 = vrot.lane.b32.xlu0 %v1822, 20
        %v1825 = vpop.permute.xlu0 %1824
        %1827 = vst.msk [vmem:[#allocation2 + $0x30] sm:$0xff] %vm1270, %v1825
        %v1828 = vld [vmem:[#allocation4 + $0x20] sm:$0xff]
        %1830 = vrot.lane.b32.xlu0 %v1828, 24
        %v1831 = vpop.permute.xlu0 %1830
        %1833 = vst.msk [vmem:[#allocation2 + $0x30] sm:$0xff] %vm1277, %v1831
        %v1834 = vld [vmem:[#allocation4 + $0x28] sm:$0xff]
        %1836 = vrot.lane.b32.xlu0 %v1834, 28
        %v1837 = vpop.permute.xlu0 %1836
        %1839 = vst.msk [vmem:[#allocation2 + $0x30] sm:$0xff] %vm1284, %v1837
        %v1840 = vld [vmem:[#allocation4 + $0x30] sm:$0xff]
        %1842 = vrot.lane.b32.xlu0 %v1840, 32
        %v1843 = vpop.permute.xlu0 %1842
        %1845 = vst.msk [vmem:[#allocation2 + $0x30] sm:$0xff] %vm1291, %v1843
        %v1846 = vld [vmem:[#allocation4 + $0x38] sm:$0xff]
        %1848 = vrot.lane.b32.xlu0 %v1846, 36
        %v1849 = vpop.permute.xlu0 %1848
        %1851 = vst.msk [vmem:[#allocation2 + $0x30] sm:$0xff] %vm1298, %v1849
        %v1852 = vld [vmem:[%s303] sm:$0xff]
        %1854 = vrot.lane.b32.xlu0 %v1852, 100
        %v1855 = vpop.permute.xlu0 %1854
        %1857 = vst.msk [vmem:[#allocation2 + $0x38] sm:$0xff] %vm1193, %v1855
        %v1858 = vld [vmem:[%s303 + $0x8] sm:$0xff]
        %1860 = vrot.lane.b32.xlu0 %v1858, 104
        %v1861 = vpop.permute.xlu0 %1860
        %1863 = vst.msk [vmem:[#allocation2 + $0x38] sm:$0xff] %vm1200, %v1861
        %v1864 = vld [vmem:[%s303 + $0x10] sm:$0xff]
        %1866 = vrot.lane.b32.xlu0 %v1864, 108
        %v1867 = vpop.permute.xlu0 %1866
        %1869 = vst.msk [vmem:[#allocation2 + $0x38] sm:$0xff] %vm1207, %v1867
        %v1870 = vld [vmem:[%s303 + $0x18] sm:$0xff]
        %1872 = vrot.lane.b32.xlu0 %v1870, 112
        %v1873 = vpop.permute.xlu0 %1872
        %1875 = vst.msk [vmem:[#allocation2 + $0x38] sm:$0xff] %vm1214, %v1873
        %v1876 = vld [vmem:[%s303 + $0x20] sm:$0xff]
        %1878 = vrot.lane.b32.xlu0 %v1876, 116
        %v1879 = vpop.permute.xlu0 %1878
        %1881 = vst.msk [vmem:[#allocation2 + $0x38] sm:$0xff] %vm1221, %v1879
        %v1882 = vld [vmem:[%s303 + $0x28] sm:$0xff]
        %1884 = vrot.lane.b32.xlu0 %v1882, 120
        %v1885 = vpop.permute.xlu0 %1884
        %1887 = vst.msk [vmem:[#allocation2 + $0x38] sm:$0xff] %vm1228, %v1885
        %v1888 = vld [vmem:[%s303 + $0x30] sm:$0xff]
        %1890 = vrot.lane.b32.xlu0 %v1888, 124
        %v1891 = vpop.permute.xlu0 %1890
        %1893 = vst.msk [vmem:[#allocation2 + $0x38] sm:$0xff] %vm1235, %v1891
        %v1894 = vld [vmem:[%s303 + $0x38] sm:$0xff]
        %1895 = vst.msk [vmem:[#allocation2 + $0x38] sm:$0xff] %vm1242, %v1894
        %v1896 = vld [vmem:[#allocation4] sm:$0xff]
        %1898 = vrot.lane.b32.xlu0 %v1896, 4
        %v1899 = vpop.permute.xlu0 %1898
        %1901 = vst.msk [vmem:[#allocation2 + $0x38] sm:$0xff] %vm1249, %v1899
        %v1902 = vld [vmem:[#allocation4 + $0x8] sm:$0xff]
        %1904 = vrot.lane.b32.xlu0 %v1902, 8
        %v1905 = vpop.permute.xlu0 %1904
        %1907 = vst.msk [vmem:[#allocation2 + $0x38] sm:$0xff] %vm1256, %v1905
        %v1908 = vld [vmem:[#allocation4 + $0x10] sm:$0xff]
        %1910 = vrot.lane.b32.xlu0 %v1908, 12
        %v1911 = vpop.permute.xlu0 %1910
        %1913 = vst.msk [vmem:[#allocation2 + $0x38] sm:$0xff] %vm1263, %v1911
        %v1914 = vld [vmem:[#allocation4 + $0x18] sm:$0xff]
        %1916 = vrot.lane.b32.xlu0 %v1914, 16
        %v1917 = vpop.permute.xlu0 %1916
        %1919 = vst.msk [vmem:[#allocation2 + $0x38] sm:$0xff] %vm1270, %v1917
        %v1920 = vld [vmem:[#allocation4 + $0x20] sm:$0xff]
        %1922 = vrot.lane.b32.xlu0 %v1920, 20
        %v1923 = vpop.permute.xlu0 %1922
        %1925 = vst.msk [vmem:[#allocation2 + $0x38] sm:$0xff] %vm1277, %v1923
        %v1926 = vld [vmem:[#allocation4 + $0x28] sm:$0xff]
        %1928 = vrot.lane.b32.xlu0 %v1926, 24
        %v1929 = vpop.permute.xlu0 %1928
        %1931 = vst.msk [vmem:[#allocation2 + $0x38] sm:$0xff] %vm1284, %v1929
        %v1932 = vld [vmem:[#allocation4 + $0x30] sm:$0xff]
        %1934 = vrot.lane.b32.xlu0 %v1932, 28
        %v1935 = vpop.permute.xlu0 %1934
        %1937 = vst.msk [vmem:[#allocation2 + $0x38] sm:$0xff] %vm1291, %v1935
        %v1938 = vld [vmem:[#allocation4 + $0x38] sm:$0xff]
        %1940 = vrot.lane.b32.xlu0 %v1938, 32
        %v1941 = vpop.permute.xlu0 %1940
        %1943 = vst.msk [vmem:[#allocation2 + $0x38] sm:$0xff] %vm1298, %v1941
        %1952 = vrot.lane.b32.xlu0 %v304, 64
        %v1953 = vpop.permute.xlu0 %1952
        %1954 = vrot.lane.b32.xlu0 %v305, 64
        %v1955 = vpop.permute.xlu0 %1954
        %1956 = vrot.lane.b32.xlu0 %v306, 64
        %v1957 = vpop.permute.xlu0 %1956
        %1958 = vrot.lane.b32.xlu0 %v307, 64
        %v1959 = vpop.permute.xlu0 %1958
        %1960 = vrot.lane.b32.xlu0 %v308, 64
        %v1961 = vpop.permute.xlu0 %1960
        %1962 = vrot.lane.b32.xlu0 %v309, 64
        %v1963 = vpop.permute.xlu0 %1962
        %1964 = vrot.lane.b32.xlu0 %v310, 64
        %v1965 = vpop.permute.xlu0 %1964
        %1966 = vrot.lane.b32.xlu0 %v311, 64
        %v1967 = vpop.permute.xlu0 %1966
        %vm1976 = vcmask 785920
        %1977 = vst.msk [vmem:[#allocation2] sm:$0xff] %vm1976, %v1953
        %1978 = vst.msk [vmem:[#allocation2 + $0x8] sm:$0xff] %vm1976, %v1955
        %1979 = vst.msk [vmem:[#allocation2 + $0x10] sm:$0xff] %vm1976, %v1957
        %1980 = vst.msk [vmem:[#allocation2 + $0x18] sm:$0xff] %vm1976, %v1959
        %1981 = vst.msk [vmem:[#allocation2 + $0x20] sm:$0xff] %vm1976, %v1961
        %1982 = vst.msk [vmem:[#allocation2 + $0x28] sm:$0xff] %vm1976, %v1963
        %1983 = vst.msk [vmem:[#allocation2 + $0x30] sm:$0xff] %vm1976, %v1965
        %1984 = vst.msk [vmem:[#allocation2 + $0x38] sm:$0xff] %vm1976, %v1967
        %v1985 = vld [vmem:[#allocation2] sm:$0xff]
        %v1986 = vld [vmem:[#allocation2 + $0x8] sm:$0xff]
        %v1987 = vld [vmem:[#allocation2 + $0x10] sm:$0xff]
        %v1988 = vld [vmem:[#allocation2 + $0x18] sm:$0xff]
        %v1989 = vld [vmem:[#allocation2 + $0x20] sm:$0xff]
        %v1990 = vld [vmem:[#allocation2 + $0x28] sm:$0xff]
        %v1991 = vld [vmem:[#allocation2 + $0x30] sm:$0xff]
        %v1992 = vld [vmem:[#allocation2 + $0x38] sm:$0xff]
        %v1993 = vld [vmem:[%s3] sm:$0xff]
        %v1994 = vld [vmem:[%s3 + $0x8] sm:$0xff]
        %v1995 = vld [vmem:[%s3 + $0x10] sm:$0xff]
        %v1996 = vld [vmem:[%s3 + $0x18] sm:$0xff]
        %v1997 = vld [vmem:[%s3 + $0x20] sm:$0xff]
        %v1998 = vld [vmem:[%s3 + $0x28] sm:$0xff]
        %v1999 = vld [vmem:[%s3 + $0x30] sm:$0xff]
        %v2000 = vld [vmem:[%s3 + $0x38] sm:$0xff]
        %v2001 = vld [vmem:[%s3 + $0x40] sm:$0xff]
        %v2002 = vld [vmem:[%s3 + $0x48] sm:$0xff]
        %v2003 = vld [vmem:[%s3 + $0x50] sm:$0xff]
        %v2004 = vld [vmem:[%s3 + $0x58] sm:$0xff]
        %vm2005 = vcmask 785408
        %v2007 = vsel %vm2005, %v1985, 0
        %v2010 = vsel %vm2005, %v1986, 0
        %v2013 = vsel %vm2005, %v1987, 0
        %v2016 = vsel %vm2005, %v1988, 0
        %v2019 = vsel %vm2005, %v1989, 0
        %v2022 = vsel %vm2005, %v1990, 0
        %v2025 = vsel %vm2005, %v1991, 0
        %v2028 = vsel %vm2005, %v1992, 0
        %2030 = vmatprep.subr.mxu0 0.0
        %2031 = vmatpush1.msra.mxu0 %v1993
        %2032 = vmatprep.subr.mxu0 0.0
        %2033 = vmatpush1.msra.mxu0 %v1994
        %2034 = vmatprep.subr.mxu0 0.0
        %2035 = vmatpush1.msra.mxu0 %v1995
        %2036 = vmatprep.subr.mxu0 0.0
        %2037 = vmatpush1.msra.mxu0 %v1996
        %2038 = vmatprep.subr.mxu0 0.0
        %2039 = vmatpush1.msra.mxu0 %v1997
        %2040 = vmatprep.subr.mxu0 0.0
        %2041 = vmatpush1.msra.mxu0 %v1998
        %2042 = vmatprep.subr.mxu0 0.0
        %2043 = vmatpush1.msra.mxu0 %v1999
        %2044 = vmatprep.subr.mxu0 0.0
        %2045 = vmatpush1.msra.mxu0 %v2000
        %2046 = vmatprep.subr.mxu0 0.0
        %2047 = vmatpush1.msra.mxu0 %v2001
        %2048 = vmatprep.subr.mxu0 0.0
        %2049 = vmatpush1.msra.mxu0 %v2002
        %2050 = vmatprep.subr.mxu0 0.0
        %2051 = vmatpush1.msra.mxu0 %v2003
        %2052 = vmatprep.subr.mxu0 0.0
        %2053 = vmatpush1.msra.mxu0 %v2004
        %2054 = vmatprep.subr.mxu0 0.0
        %2055 = vmatpush1.msra.mxu0 0.0
        %2056 = vmatprep.subr.mxu0 0.0
        %2057 = vmatpush1.msra.mxu0 0.0
        %2058 = vmatprep.subr.mxu0 0.0
        %2059 = vmatpush1.msra.mxu0 0.0
        %2060 = vmatprep.subr.mxu0 0.0
        %2061 = vmatpush1.msra.mxu0 0.0
        %2062 = vmatprep.subr.mxu0 0.0
        %2063 = vmatpush1.msra.mxu0 0.0
        %2064 = vmatprep.subr.mxu0 0.0
        %2065 = vmatpush1.msra.mxu0 0.0
        %2066 = vmatprep.subr.mxu0 0.0
        %2067 = vmatpush1.msra.mxu0 0.0
        %2068 = vmatprep.subr.mxu0 0.0
        %2069 = vmatpush1.msra.mxu0 0.0
        %2070 = vmatprep.subr.mxu0 0.0
        %2071 = vmatpush1.msra.mxu0 0.0
        %2072 = vmatprep.subr.mxu0 0.0
        %2073 = vmatpush1.msra.mxu0 0.0
        %2074 = vmatprep.subr.mxu0 0.0
        %2075 = vmatpush1.msra.mxu0 0.0
        %2076 = vmatprep.subr.mxu0 0.0
        %2077 = vmatpush1.msra.mxu0 0.0
        %2078 = vmatprep.subr.mxu0 0.0
        %2079 = vmatpush1.msra.mxu0 0.0
        %2080 = vmatprep.subr.mxu0 0.0
        %2081 = vmatpush1.msra.mxu0 0.0
        %2082 = vmatprep.subr.mxu0 0.0
        %2083 = vmatpush1.msra.mxu0 0.0
        %2084 = vmatprep.subr.mxu0 0.0
        %2085 = vmatpush1.msra.mxu0 0.0
        %2086 = vmatprep.subr.mxu0 0.0
        %2087 = vmatpush1.msra.mxu0 0.0
        %2088 = vmatprep.subr.mxu0 0.0
        %2089 = vmatpush1.msra.mxu0 0.0
        %2090 = vmatprep.subr.mxu0 0.0
        %2091 = vmatpush1.msra.mxu0 0.0
        %2092 = vmatprep.subr.mxu0 0.0
        %2093 = vmatpush1.msra.mxu0 0.0
        %2094 = vmatprep.mubr.f32.mxu0 0.0
        %2095 = vmatmul.mubr.f32.gmra.mrb[0].mxu0 %v2007
        %v2096 = vpop.f32.mrb[0].mxu0
        %v2097 = vadd.f32 0.0, %v2096
        %v2098 = vpop.f32.mrb[0].mxu0
        %2099 = vmatprep.mubr.f32.mxu0 0.0
        %2100 = vmatmul.mubr.f32.gmra.mrb[0].mxu0 %v2010
        %v2101 = vpop.f32.mrb[0].mxu0
        %v2102 = vadd.f32 0.0, %v2101
        %v2103 = vpop.f32.mrb[0].mxu0
        %2104 = vmatprep.mubr.f32.mxu0 0.0
        %2105 = vmatmul.mubr.f32.gmra.mrb[0].mxu0 %v2013
        %v2106 = vpop.f32.mrb[0].mxu0
        %v2107 = vadd.f32 0.0, %v2106
        %v2108 = vpop.f32.mrb[0].mxu0
        %2109 = vmatprep.mubr.f32.mxu0 0.0
        %2110 = vmatmul.mubr.f32.gmra.mrb[0].mxu0 %v2016
        %v2111 = vpop.f32.mrb[0].mxu0
        %v2112 = vadd.f32 0.0, %v2111
        %v2113 = vpop.f32.mrb[0].mxu0
        %2114 = vmatprep.mubr.f32.mxu0 0.0
        %2115 = vmatmul.mubr.f32.gmra.mrb[0].mxu0 %v2019
        %v2116 = vpop.f32.mrb[0].mxu0
        %v2117 = vadd.f32 0.0, %v2116
        %v2118 = vpop.f32.mrb[0].mxu0
        %2119 = vmatprep.mubr.f32.mxu0 0.0
        %2120 = vmatmul.mubr.f32.gmra.mrb[0].mxu0 %v2022
        %v2121 = vpop.f32.mrb[0].mxu0
        %v2122 = vadd.f32 0.0, %v2121
        %v2123 = vpop.f32.mrb[0].mxu0
        %2124 = vmatprep.mubr.f32.mxu0 0.0
        %2125 = vmatmul.mubr.f32.gmra.mrb[0].mxu0 %v2025
        %v2126 = vpop.f32.mrb[0].mxu0
        %v2127 = vadd.f32 0.0, %v2126
        %v2128 = vpop.f32.mrb[0].mxu0
        %2129 = vmatprep.mubr.f32.mxu0 0.0
        %2130 = vmatmul.mubr.f32.gmra.mrb[0].mxu0 %v2028
        %v2131 = vpop.f32.mrb[0].mxu0
        %v2132 = vadd.f32 0.0, %v2131
        %v2133 = vpop.f32.mrb[0].mxu0
        %2134 = vdwg.mxu0
        %2135 = vst.msk [vmem:[#allocation2] sm:$0xff] %vm2005, %v2097
        %2136 = vst.msk [vmem:[#allocation2 + $0x8] sm:$0xff] %vm2005, %v2102
        %2137 = vst.msk [vmem:[#allocation2 + $0x10] sm:$0xff] %vm2005, %v2107
        %2138 = vst.msk [vmem:[#allocation2 + $0x18] sm:$0xff] %vm2005, %v2112
        %2139 = vst.msk [vmem:[#allocation2 + $0x20] sm:$0xff] %vm2005, %v2117
        %2140 = vst.msk [vmem:[#allocation2 + $0x28] sm:$0xff] %vm2005, %v2122
        %2141 = vst.msk [vmem:[#allocation2 + $0x30] sm:$0xff] %vm2005, %v2127
        %2142 = vst.msk [vmem:[#allocation2 + $0x38] sm:$0xff] %vm2005, %v2132
        %v2143 = vld [vmem:[#allocation2] sm:$0xff]
        %2144 = vst.msk [vmem:[#allocation3] sm:$0xff] %vm1193, %v2143
        %v2145 = vld [vmem:[#allocation2 + $0x8] sm:$0xff]
        %2147 = vrot.lane.b32.xlu0 %v2145, 4
        %v2148 = vpop.permute.xlu0 %2147
        %2150 = vst.msk [vmem:[#allocation3] sm:$0xff] %vm1200, %v2148
        %v2151 = vld [vmem:[#allocation2 + $0x10] sm:$0xff]
        %2153 = vrot.lane.b32.xlu0 %v2151, 8
        %v2154 = vpop.permute.xlu0 %2153
        %2156 = vst.msk [vmem:[#allocation3] sm:$0xff] %vm1207, %v2154
        %v2157 = vld [vmem:[#allocation2 + $0x18] sm:$0xff]
        %2159 = vrot.lane.b32.xlu0 %v2157, 12
        %v2160 = vpop.permute.xlu0 %2159
        %2162 = vst.msk [vmem:[#allocation3] sm:$0xff] %vm1214, %v2160
        %v2163 = vld [vmem:[#allocation2 + $0x20] sm:$0xff]
        %2165 = vrot.lane.b32.xlu0 %v2163, 16
        %v2166 = vpop.permute.xlu0 %2165
        %2168 = vst.msk [vmem:[#allocation3] sm:$0xff] %vm1221, %v2166
        %v2169 = vld [vmem:[#allocation2 + $0x28] sm:$0xff]
        %2171 = vrot.lane.b32.xlu0 %v2169, 20
        %v2172 = vpop.permute.xlu0 %2171
        %2174 = vst.msk [vmem:[#allocation3] sm:$0xff] %vm1228, %v2172
        %v2175 = vld [vmem:[#allocation2 + $0x30] sm:$0xff]
        %2177 = vrot.lane.b32.xlu0 %v2175, 24
        %v2178 = vpop.permute.xlu0 %2177
        %2180 = vst.msk [vmem:[#allocation3] sm:$0xff] %vm1235, %v2178
        %v2181 = vld [vmem:[#allocation2 + $0x38] sm:$0xff]
        %2183 = vrot.lane.b32.xlu0 %v2181, 28
        %v2184 = vpop.permute.xlu0 %2183
        %2186 = vst.msk [vmem:[#allocation3] sm:$0xff] %vm1242, %v2184
        %v2187 = vld [vmem:[#allocation2] sm:$0xff]
        %2189 = vrot.lane.b32.xlu0 %v2187, 124
        %v2190 = vpop.permute.xlu0 %2189
        %2192 = vst.msk [vmem:[#allocation3 + $0x8] sm:$0xff] %vm1193, %v2190
        %v2193 = vld [vmem:[#allocation2 + $0x8] sm:$0xff]
        %2194 = vst.msk [vmem:[#allocation3 + $0x8] sm:$0xff] %vm1200, %v2193
        %v2195 = vld [vmem:[#allocation2 + $0x10] sm:$0xff]
        %2197 = vrot.lane.b32.xlu0 %v2195, 4
        %v2198 = vpop.permute.xlu0 %2197
        %2200 = vst.msk [vmem:[#allocation3 + $0x8] sm:$0xff] %vm1207, %v2198
        %v2201 = vld [vmem:[#allocation2 + $0x18] sm:$0xff]
        %2203 = vrot.lane.b32.xlu0 %v2201, 8
        %v2204 = vpop.permute.xlu0 %2203
        %2206 = vst.msk [vmem:[#allocation3 + $0x8] sm:$0xff] %vm1214, %v2204
        %v2207 = vld [vmem:[#allocation2 + $0x20] sm:$0xff]
        %2209 = vrot.lane.b32.xlu0 %v2207, 12
        %v2210 = vpop.permute.xlu0 %2209
        %2212 = vst.msk [vmem:[#allocation3 + $0x8] sm:$0xff] %vm1221, %v2210
        %v2213 = vld [vmem:[#allocation2 + $0x28] sm:$0xff]
        %2215 = vrot.lane.b32.xlu0 %v2213, 16
        %v2216 = vpop.permute.xlu0 %2215
        %2218 = vst.msk [vmem:[#allocation3 + $0x8] sm:$0xff] %vm1228, %v2216
        %v2219 = vld [vmem:[#allocation2 + $0x30] sm:$0xff]
        %2221 = vrot.lane.b32.xlu0 %v2219, 20
        %v2222 = vpop.permute.xlu0 %2221
        %2224 = vst.msk [vmem:[#allocation3 + $0x8] sm:$0xff] %vm1235, %v2222
        %v2225 = vld [vmem:[#allocation2 + $0x38] sm:$0xff]
        %2227 = vrot.lane.b32.xlu0 %v2225, 24
        %v2228 = vpop.permute.xlu0 %2227
        %2230 = vst.msk [vmem:[#allocation3 + $0x8] sm:$0xff] %vm1242, %v2228
        %v2231 = vld [vmem:[#allocation2] sm:$0xff]
        %2233 = vrot.lane.b32.xlu0 %v2231, 120
        %v2234 = vpop.permute.xlu0 %2233
        %2236 = vst.msk [vmem:[#allocation3 + $0x10] sm:$0xff] %vm1193, %v2234
        %v2237 = vld [vmem:[#allocation2 + $0x8] sm:$0xff]
        %2239 = vrot.lane.b32.xlu0 %v2237, 124
        %v2240 = vpop.permute.xlu0 %2239
        %2242 = vst.msk [vmem:[#allocation3 + $0x10] sm:$0xff] %vm1200, %v2240
        %v2243 = vld [vmem:[#allocation2 + $0x10] sm:$0xff]
        %2244 = vst.msk [vmem:[#allocation3 + $0x10] sm:$0xff] %vm1207, %v2243
        %v2245 = vld [vmem:[#allocation2 + $0x18] sm:$0xff]
        %2247 = vrot.lane.b32.xlu0 %v2245, 4
        %v2248 = vpop.permute.xlu0 %2247
        %2250 = vst.msk [vmem:[#allocation3 + $0x10] sm:$0xff] %vm1214, %v2248
        %v2251 = vld [vmem:[#allocation2 + $0x20] sm:$0xff]
        %2253 = vrot.lane.b32.xlu0 %v2251, 8
        %v2254 = vpop.permute.xlu0 %2253
        %2256 = vst.msk [vmem:[#allocation3 + $0x10] sm:$0xff] %vm1221, %v2254
        %v2257 = vld [vmem:[#allocation2 + $0x28] sm:$0xff]
        %2259 = vrot.lane.b32.xlu0 %v2257, 12
        %v2260 = vpop.permute.xlu0 %2259
        %2262 = vst.msk [vmem:[#allocation3 + $0x10] sm:$0xff] %vm1228, %v2260
        %v2263 = vld [vmem:[#allocation2 + $0x30] sm:$0xff]
        %2265 = vrot.lane.b32.xlu0 %v2263, 16
        %v2266 = vpop.permute.xlu0 %2265
        %2268 = vst.msk [vmem:[#allocation3 + $0x10] sm:$0xff] %vm1235, %v2266
        %v2269 = vld [vmem:[#allocation2 + $0x38] sm:$0xff]
        %2271 = vrot.lane.b32.xlu0 %v2269, 20
        %v2272 = vpop.permute.xlu0 %2271
        %2274 = vst.msk [vmem:[#allocation3 + $0x10] sm:$0xff] %vm1242, %v2272
        %v2275 = vld [vmem:[#allocation2] sm:$0xff]
        %2277 = vrot.lane.b32.xlu0 %v2275, 116
        %v2278 = vpop.permute.xlu0 %2277
        %2280 = vst.msk [vmem:[#allocation3 + $0x18] sm:$0xff] %vm1193, %v2278
        %v2281 = vld [vmem:[#allocation2 + $0x8] sm:$0xff]
        %2283 = vrot.lane.b32.xlu0 %v2281, 120
        %v2284 = vpop.permute.xlu0 %2283
        %2286 = vst.msk [vmem:[#allocation3 + $0x18] sm:$0xff] %vm1200, %v2284
        %v2287 = vld [vmem:[#allocation2 + $0x10] sm:$0xff]
        %2289 = vrot.lane.b32.xlu0 %v2287, 124
        %v2290 = vpop.permute.xlu0 %2289
        %2292 = vst.msk [vmem:[#allocation3 + $0x18] sm:$0xff] %vm1207, %v2290
        %v2293 = vld [vmem:[#allocation2 + $0x18] sm:$0xff]
        %2294 = vst.msk [vmem:[#allocation3 + $0x18] sm:$0xff] %vm1214, %v2293
        %v2295 = vld [vmem:[#allocation2 + $0x20] sm:$0xff]
        %2297 = vrot.lane.b32.xlu0 %v2295, 4
        %v2298 = vpop.permute.xlu0 %2297
        %2300 = vst.msk [vmem:[#allocation3 + $0x18] sm:$0xff] %vm1221, %v2298
        %v2301 = vld [vmem:[#allocation2 + $0x28] sm:$0xff]
        %2303 = vrot.lane.b32.xlu0 %v2301, 8
        %v2304 = vpop.permute.xlu0 %2303
        %2306 = vst.msk [vmem:[#allocation3 + $0x18] sm:$0xff] %vm1228, %v2304
        %v2307 = vld [vmem:[#allocation2 + $0x30] sm:$0xff]
        %2309 = vrot.lane.b32.xlu0 %v2307, 12
        %v2310 = vpop.permute.xlu0 %2309
        %2312 = vst.msk [vmem:[#allocation3 + $0x18] sm:$0xff] %vm1235, %v2310
        %v2313 = vld [vmem:[#allocation2 + $0x38] sm:$0xff]
        %2315 = vrot.lane.b32.xlu0 %v2313, 16
        %v2316 = vpop.permute.xlu0 %2315
        %2318 = vst.msk [vmem:[#allocation3 + $0x18] sm:$0xff] %vm1242, %v2316
        %v2319 = vld [vmem:[#allocation2] sm:$0xff]
        %2321 = vrot.lane.b32.xlu0 %v2319, 112
        %v2322 = vpop.permute.xlu0 %2321
        %2324 = vst.msk [vmem:[#allocation3 + $0x20] sm:$0xff] %vm1193, %v2322
        %v2325 = vld [vmem:[#allocation2 + $0x8] sm:$0xff]
        %2327 = vrot.lane.b32.xlu0 %v2325, 116
        %v2328 = vpop.permute.xlu0 %2327
        %2330 = vst.msk [vmem:[#allocation3 + $0x20] sm:$0xff] %vm1200, %v2328
        %v2331 = vld [vmem:[#allocation2 + $0x10] sm:$0xff]
        %2333 = vrot.lane.b32.xlu0 %v2331, 120
        %v2334 = vpop.permute.xlu0 %2333
        %2336 = vst.msk [vmem:[#allocation3 + $0x20] sm:$0xff] %vm1207, %v2334
        %v2337 = vld [vmem:[#allocation2 + $0x18] sm:$0xff]
        %2339 = vrot.lane.b32.xlu0 %v2337, 124
        %v2340 = vpop.permute.xlu0 %2339
        %2342 = vst.msk [vmem:[#allocation3 + $0x20] sm:$0xff] %vm1214, %v2340
        %v2343 = vld [vmem:[#allocation2 + $0x20] sm:$0xff]
        %2344 = vst.msk [vmem:[#allocation3 + $0x20] sm:$0xff] %vm1221, %v2343
        %v2345 = vld [vmem:[#allocation2 + $0x28] sm:$0xff]
        %2347 = vrot.lane.b32.xlu0 %v2345, 4
        %v2348 = vpop.permute.xlu0 %2347
        %2350 = vst.msk [vmem:[#allocation3 + $0x20] sm:$0xff] %vm1228, %v2348
        %v2351 = vld [vmem:[#allocation2 + $0x30] sm:$0xff]
        %2353 = vrot.lane.b32.xlu0 %v2351, 8
        %v2354 = vpop.permute.xlu0 %2353
        %2356 = vst.msk [vmem:[#allocation3 + $0x20] sm:$0xff] %vm1235, %v2354
        %v2357 = vld [vmem:[#allocation2 + $0x38] sm:$0xff]
        %2359 = vrot.lane.b32.xlu0 %v2357, 12
        %v2360 = vpop.permute.xlu0 %2359
        %2362 = vst.msk [vmem:[#allocation3 + $0x20] sm:$0xff] %vm1242, %v2360
        %v2363 = vld [vmem:[#allocation2] sm:$0xff]
        %2365 = vrot.lane.b32.xlu0 %v2363, 108
        %v2366 = vpop.permute.xlu0 %2365
        %2368 = vst.msk [vmem:[#allocation3 + $0x28] sm:$0xff] %vm1193, %v2366
        %v2369 = vld [vmem:[#allocation2 + $0x8] sm:$0xff]
        %2371 = vrot.lane.b32.xlu0 %v2369, 112
        %v2372 = vpop.permute.xlu0 %2371
        %2374 = vst.msk [vmem:[#allocation3 + $0x28] sm:$0xff] %vm1200, %v2372
        %v2375 = vld [vmem:[#allocation2 + $0x10] sm:$0xff]
        %2377 = vrot.lane.b32.xlu0 %v2375, 116
        %v2378 = vpop.permute.xlu0 %2377
        %2380 = vst.msk [vmem:[#allocation3 + $0x28] sm:$0xff] %vm1207, %v2378
        %v2381 = vld [vmem:[#allocation2 + $0x18] sm:$0xff]
        %2383 = vrot.lane.b32.xlu0 %v2381, 120
        %v2384 = vpop.permute.xlu0 %2383
        %2386 = vst.msk [vmem:[#allocation3 + $0x28] sm:$0xff] %vm1214, %v2384
        %v2387 = vld [vmem:[#allocation2 + $0x20] sm:$0xff]
        %2389 = vrot.lane.b32.xlu0 %v2387, 124
        %v2390 = vpop.permute.xlu0 %2389
        %2392 = vst.msk [vmem:[#allocation3 + $0x28] sm:$0xff] %vm1221, %v2390
        %v2393 = vld [vmem:[#allocation2 + $0x28] sm:$0xff]
        %2394 = vst.msk [vmem:[#allocation3 + $0x28] sm:$0xff] %vm1228, %v2393
        %v2395 = vld [vmem:[#allocation2 + $0x30] sm:$0xff]
        %2397 = vrot.lane.b32.xlu0 %v2395, 4
        %v2398 = vpop.permute.xlu0 %2397
        %2400 = vst.msk [vmem:[#allocation3 + $0x28] sm:$0xff] %vm1235, %v2398
        %v2401 = vld [vmem:[#allocation2 + $0x38] sm:$0xff]
        %2403 = vrot.lane.b32.xlu0 %v2401, 8
        %v2404 = vpop.permute.xlu0 %2403
        %2406 = vst.msk [vmem:[#allocation3 + $0x28] sm:$0xff] %vm1242, %v2404
        %v2407 = vld [vmem:[#allocation2] sm:$0xff]
        %2409 = vrot.lane.b32.xlu0 %v2407, 104
        %v2410 = vpop.permute.xlu0 %2409
        %2412 = vst.msk [vmem:[#allocation3 + $0x30] sm:$0xff] %vm1193, %v2410
        %v2413 = vld [vmem:[#allocation2 + $0x8] sm:$0xff]
        %2415 = vrot.lane.b32.xlu0 %v2413, 108
        %v2416 = vpop.permute.xlu0 %2415
        %2418 = vst.msk [vmem:[#allocation3 + $0x30] sm:$0xff] %vm1200, %v2416
        %v2419 = vld [vmem:[#allocation2 + $0x10] sm:$0xff]
        %2421 = vrot.lane.b32.xlu0 %v2419, 112
        %v2422 = vpop.permute.xlu0 %2421
        %2424 = vst.msk [vmem:[#allocation3 + $0x30] sm:$0xff] %vm1207, %v2422
        %v2425 = vld [vmem:[#allocation2 + $0x18] sm:$0xff]
        %2427 = vrot.lane.b32.xlu0 %v2425, 116
        %v2428 = vpop.permute.xlu0 %2427
        %2430 = vst.msk [vmem:[#allocation3 + $0x30] sm:$0xff] %vm1214, %v2428
        %v2431 = vld [vmem:[#allocation2 + $0x20] sm:$0xff]
        %2433 = vrot.lane.b32.xlu0 %v2431, 120
        %v2434 = vpop.permute.xlu0 %2433
        %2436 = vst.msk [vmem:[#allocation3 + $0x30] sm:$0xff] %vm1221, %v2434
        %v2437 = vld [vmem:[#allocation2 + $0x28] sm:$0xff]
        %2439 = vrot.lane.b32.xlu0 %v2437, 124
        %v2440 = vpop.permute.xlu0 %2439
        %2442 = vst.msk [vmem:[#allocation3 + $0x30] sm:$0xff] %vm1228, %v2440
        %v2443 = vld [vmem:[#allocation2 + $0x30] sm:$0xff]
        %2444 = vst.msk [vmem:[#allocation3 + $0x30] sm:$0xff] %vm1235, %v2443
        %v2445 = vld [vmem:[#allocation2 + $0x38] sm:$0xff]
        %2447 = vrot.lane.b32.xlu0 %v2445, 4
        %v2448 = vpop.permute.xlu0 %2447
        %2450 = vst.msk [vmem:[#allocation3 + $0x30] sm:$0xff] %vm1242, %v2448
        %v2451 = vld [vmem:[#allocation2] sm:$0xff]
        %2453 = vrot.lane.b32.xlu0 %v2451, 100
        %v2454 = vpop.permute.xlu0 %2453
        %2456 = vst.msk [vmem:[#allocation3 + $0x38] sm:$0xff] %vm1193, %v2454
        %v2457 = vld [vmem:[#allocation2 + $0x8] sm:$0xff]
        %2459 = vrot.lane.b32.xlu0 %v2457, 104
        %v2460 = vpop.permute.xlu0 %2459
        %2462 = vst.msk [vmem:[#allocation3 + $0x38] sm:$0xff] %vm1200, %v2460
        %v2463 = vld [vmem:[#allocation2 + $0x10] sm:$0xff]
        %2465 = vrot.lane.b32.xlu0 %v2463, 108
        %v2466 = vpop.permute.xlu0 %2465
        %2468 = vst.msk [vmem:[#allocation3 + $0x38] sm:$0xff] %vm1207, %v2466
        %v2469 = vld [vmem:[#allocation2 + $0x18] sm:$0xff]
        %2471 = vrot.lane.b32.xlu0 %v2469, 112
        %v2472 = vpop.permute.xlu0 %2471
        %2474 = vst.msk [vmem:[#allocation3 + $0x38] sm:$0xff] %vm1214, %v2472
        %v2475 = vld [vmem:[#allocation2 + $0x20] sm:$0xff]
        %2477 = vrot.lane.b32.xlu0 %v2475, 116
        %v2478 = vpop.permute.xlu0 %2477
        %2480 = vst.msk [vmem:[#allocation3 + $0x38] sm:$0xff] %vm1221, %v2478
        %v2481 = vld [vmem:[#allocation2 + $0x28] sm:$0xff]
        %2483 = vrot.lane.b32.xlu0 %v2481, 120
        %v2484 = vpop.permute.xlu0 %2483
        %2486 = vst.msk [vmem:[#allocation3 + $0x38] sm:$0xff] %vm1228, %v2484
        %v2487 = vld [vmem:[#allocation2 + $0x30] sm:$0xff]
        %2489 = vrot.lane.b32.xlu0 %v2487, 124
        %v2490 = vpop.permute.xlu0 %2489
        %2492 = vst.msk [vmem:[#allocation3 + $0x38] sm:$0xff] %vm1235, %v2490
        %v2493 = vld [vmem:[#allocation2 + $0x38] sm:$0xff]
        %2494 = vst.msk [vmem:[#allocation3 + $0x38] sm:$0xff] %vm1242, %v2493
        %v2495 = vld [vmem:[#allocation2] sm:$0xff]
        %2497 = vrot.lane.b32.xlu0 %v2495, 96
        %v2498 = vpop.permute.xlu0 %2497
        %2500 = vst.msk [vmem:[#allocation5] sm:$0xff] %vm1193, %v2498
        %v2501 = vld [vmem:[#allocation2 + $0x8] sm:$0xff]
        %2503 = vrot.lane.b32.xlu0 %v2501, 100
        %v2504 = vpop.permute.xlu0 %2503
        %2506 = vst.msk [vmem:[#allocation5] sm:$0xff] %vm1200, %v2504
        %v2507 = vld [vmem:[#allocation2 + $0x10] sm:$0xff]
        %2509 = vrot.lane.b32.xlu0 %v2507, 104
        %v2510 = vpop.permute.xlu0 %2509
        %2512 = vst.msk [vmem:[#allocation5] sm:$0xff] %vm1207, %v2510
        %v2513 = vld [vmem:[#allocation2 + $0x18] sm:$0xff]
        %2515 = vrot.lane.b32.xlu0 %v2513, 108
        %v2516 = vpop.permute.xlu0 %2515
        %2518 = vst.msk [vmem:[#allocation5] sm:$0xff] %vm1214, %v2516
        %v2519 = vld [vmem:[#allocation2 + $0x20] sm:$0xff]
        %2521 = vrot.lane.b32.xlu0 %v2519, 112
        %v2522 = vpop.permute.xlu0 %2521
        %2524 = vst.msk [vmem:[#allocation5] sm:$0xff] %vm1221, %v2522
        %v2525 = vld [vmem:[#allocation2 + $0x28] sm:$0xff]
        %2527 = vrot.lane.b32.xlu0 %v2525, 116
        %v2528 = vpop.permute.xlu0 %2527
        %2530 = vst.msk [vmem:[#allocation5] sm:$0xff] %vm1228, %v2528
        %v2531 = vld [vmem:[#allocation2 + $0x30] sm:$0xff]
        %2533 = vrot.lane.b32.xlu0 %v2531, 120
        %v2534 = vpop.permute.xlu0 %2533
        %2536 = vst.msk [vmem:[#allocation5] sm:$0xff] %vm1235, %v2534
        %v2537 = vld [vmem:[#allocation2 + $0x38] sm:$0xff]
        %2539 = vrot.lane.b32.xlu0 %v2537, 124
        %v2540 = vpop.permute.xlu0 %2539
        %2542 = vst.msk [vmem:[#allocation5] sm:$0xff] %vm1242, %v2540
        %v2543 = vld [vmem:[#allocation2] sm:$0xff]
        %2545 = vrot.lane.b32.xlu0 %v2543, 92
        %v2546 = vpop.permute.xlu0 %2545
        %2548 = vst.msk [vmem:[#allocation5 + $0x8] sm:$0xff] %vm1193, %v2546
        %v2549 = vld [vmem:[#allocation2 + $0x8] sm:$0xff]
        %2551 = vrot.lane.b32.xlu0 %v2549, 96
        %v2552 = vpop.permute.xlu0 %2551
        %2554 = vst.msk [vmem:[#allocation5 + $0x8] sm:$0xff] %vm1200, %v2552
        %v2555 = vld [vmem:[#allocation2 + $0x10] sm:$0xff]
        %2557 = vrot.lane.b32.xlu0 %v2555, 100
        %v2558 = vpop.permute.xlu0 %2557
        %2560 = vst.msk [vmem:[#allocation5 + $0x8] sm:$0xff] %vm1207, %v2558
        %v2561 = vld [vmem:[#allocation2 + $0x18] sm:$0xff]
        %2563 = vrot.lane.b32.xlu0 %v2561, 104
        %v2564 = vpop.permute.xlu0 %2563
        %2566 = vst.msk [vmem:[#allocation5 + $0x8] sm:$0xff] %vm1214, %v2564
        %v2567 = vld [vmem:[#allocation2 + $0x20] sm:$0xff]
        %2569 = vrot.lane.b32.xlu0 %v2567, 108
        %v2570 = vpop.permute.xlu0 %2569
        %2572 = vst.msk [vmem:[#allocation5 + $0x8] sm:$0xff] %vm1221, %v2570
        %v2573 = vld [vmem:[#allocation2 + $0x28] sm:$0xff]
        %2575 = vrot.lane.b32.xlu0 %v2573, 112
        %v2576 = vpop.permute.xlu0 %2575
        %2578 = vst.msk [vmem:[#allocation5 + $0x8] sm:$0xff] %vm1228, %v2576
        %v2579 = vld [vmem:[#allocation2 + $0x30] sm:$0xff]
        %2581 = vrot.lane.b32.xlu0 %v2579, 116
        %v2582 = vpop.permute.xlu0 %2581
        %2584 = vst.msk [vmem:[#allocation5 + $0x8] sm:$0xff] %vm1235, %v2582
        %v2585 = vld [vmem:[#allocation2 + $0x38] sm:$0xff]
        %2587 = vrot.lane.b32.xlu0 %v2585, 120
        %v2588 = vpop.permute.xlu0 %2587
        %2590 = vst.msk [vmem:[#allocation5 + $0x8] sm:$0xff] %vm1242, %v2588
        %v2591 = vld [vmem:[#allocation2] sm:$0xff]
        %2593 = vrot.lane.b32.xlu0 %v2591, 88
        %v2594 = vpop.permute.xlu0 %2593
        %2596 = vst.msk [vmem:[#allocation5 + $0x10] sm:$0xff] %vm1193, %v2594
        %v2597 = vld [vmem:[#allocation2 + $0x8] sm:$0xff]
        %2599 = vrot.lane.b32.xlu0 %v2597, 92
        %v2600 = vpop.permute.xlu0 %2599
        %2602 = vst.msk [vmem:[#allocation5 + $0x10] sm:$0xff] %vm1200, %v2600
        %v2603 = vld [vmem:[#allocation2 + $0x10] sm:$0xff]
        %2605 = vrot.lane.b32.xlu0 %v2603, 96
        %v2606 = vpop.permute.xlu0 %2605
        %2608 = vst.msk [vmem:[#allocation5 + $0x10] sm:$0xff] %vm1207, %v2606
        %v2609 = vld [vmem:[#allocation2 + $0x18] sm:$0xff]
        %2611 = vrot.lane.b32.xlu0 %v2609, 100
        %v2612 = vpop.permute.xlu0 %2611
        %2614 = vst.msk [vmem:[#allocation5 + $0x10] sm:$0xff] %vm1214, %v2612
        %v2615 = vld [vmem:[#allocation2 + $0x20] sm:$0xff]
        %2617 = vrot.lane.b32.xlu0 %v2615, 104
        %v2618 = vpop.permute.xlu0 %2617
        %2620 = vst.msk [vmem:[#allocation5 + $0x10] sm:$0xff] %vm1221, %v2618
        %v2621 = vld [vmem:[#allocation2 + $0x28] sm:$0xff]
        %2623 = vrot.lane.b32.xlu0 %v2621, 108
        %v2624 = vpop.permute.xlu0 %2623
        %2626 = vst.msk [vmem:[#allocation5 + $0x10] sm:$0xff] %vm1228, %v2624
        %v2627 = vld [vmem:[#allocation2 + $0x30] sm:$0xff]
        %2629 = vrot.lane.b32.xlu0 %v2627, 112
        %v2630 = vpop.permute.xlu0 %2629
        %2632 = vst.msk [vmem:[#allocation5 + $0x10] sm:$0xff] %vm1235, %v2630
        %v2633 = vld [vmem:[#allocation2 + $0x38] sm:$0xff]
        %2635 = vrot.lane.b32.xlu0 %v2633, 116
        %v2636 = vpop.permute.xlu0 %2635
        %2638 = vst.msk [vmem:[#allocation5 + $0x10] sm:$0xff] %vm1242, %v2636
        %v2639 = vld [vmem:[#allocation2] sm:$0xff]
        %2641 = vrot.lane.b32.xlu0 %v2639, 84
        %v2642 = vpop.permute.xlu0 %2641
        %2644 = vst.msk [vmem:[#allocation5 + $0x18] sm:$0xff] %vm1193, %v2642
        %v2645 = vld [vmem:[#allocation2 + $0x8] sm:$0xff]
        %2647 = vrot.lane.b32.xlu0 %v2645, 88
        %v2648 = vpop.permute.xlu0 %2647
        %2650 = vst.msk [vmem:[#allocation5 + $0x18] sm:$0xff] %vm1200, %v2648
        %v2651 = vld [vmem:[#allocation2 + $0x10] sm:$0xff]
        %2653 = vrot.lane.b32.xlu0 %v2651, 92
        %v2654 = vpop.permute.xlu0 %2653
        %2656 = vst.msk [vmem:[#allocation5 + $0x18] sm:$0xff] %vm1207, %v2654
        %v2657 = vld [vmem:[#allocation2 + $0x18] sm:$0xff]
        %2659 = vrot.lane.b32.xlu0 %v2657, 96
        %v2660 = vpop.permute.xlu0 %2659
        %2662 = vst.msk [vmem:[#allocation5 + $0x18] sm:$0xff] %vm1214, %v2660
        %v2663 = vld [vmem:[#allocation2 + $0x20] sm:$0xff]
        %2665 = vrot.lane.b32.xlu0 %v2663, 100
        %v2666 = vpop.permute.xlu0 %2665
        %2668 = vst.msk [vmem:[#allocation5 + $0x18] sm:$0xff] %vm1221, %v2666
        %v2669 = vld [vmem:[#allocation2 + $0x28] sm:$0xff]
        %2671 = vrot.lane.b32.xlu0 %v2669, 104
        %v2672 = vpop.permute.xlu0 %2671
        %2674 = vst.msk [vmem:[#allocation5 + $0x18] sm:$0xff] %vm1228, %v2672
        %v2675 = vld [vmem:[#allocation2 + $0x30] sm:$0xff]
        %2677 = vrot.lane.b32.xlu0 %v2675, 108
        %v2678 = vpop.permute.xlu0 %2677
        %2680 = vst.msk [vmem:[#allocation5 + $0x18] sm:$0xff] %vm1235, %v2678
        %v2681 = vld [vmem:[#allocation2 + $0x38] sm:$0xff]
        %2683 = vrot.lane.b32.xlu0 %v2681, 112
        %v2684 = vpop.permute.xlu0 %2683
        %2686 = vst.msk [vmem:[#allocation5 + $0x18] sm:$0xff] %vm1242, %v2684
        %v2687 = vld [vmem:[#allocation2] sm:$0xff]
        %2689 = vrot.lane.b32.xlu0 %v2687, 80
        %v2690 = vpop.permute.xlu0 %2689
        %2692 = vst.msk [vmem:[#allocation5 + $0x20] sm:$0xff] %vm1193, %v2690
        %v2693 = vld [vmem:[#allocation2 + $0x8] sm:$0xff]
        %2695 = vrot.lane.b32.xlu0 %v2693, 84
        %v2696 = vpop.permute.xlu0 %2695
        %2698 = vst.msk [vmem:[#allocation5 + $0x20] sm:$0xff] %vm1200, %v2696
        %v2699 = vld [vmem:[#allocation2 + $0x10] sm:$0xff]
        %2701 = vrot.lane.b32.xlu0 %v2699, 88
        %v2702 = vpop.permute.xlu0 %2701
        %2704 = vst.msk [vmem:[#allocation5 + $0x20] sm:$0xff] %vm1207, %v2702
        %v2705 = vld [vmem:[#allocation2 + $0x18] sm:$0xff]
        %2707 = vrot.lane.b32.xlu0 %v2705, 92
        %v2708 = vpop.permute.xlu0 %2707
        %2710 = vst.msk [vmem:[#allocation5 + $0x20] sm:$0xff] %vm1214, %v2708
        %v2711 = vld [vmem:[#allocation2 + $0x20] sm:$0xff]
        %2713 = vrot.lane.b32.xlu0 %v2711, 96
        %v2714 = vpop.permute.xlu0 %2713
        %2716 = vst.msk [vmem:[#allocation5 + $0x20] sm:$0xff] %vm1221, %v2714
        %v2717 = vld [vmem:[#allocation2 + $0x28] sm:$0xff]
        %2719 = vrot.lane.b32.xlu0 %v2717, 100
        %v2720 = vpop.permute.xlu0 %2719
        %2722 = vst.msk [vmem:[#allocation5 + $0x20] sm:$0xff] %vm1228, %v2720
        %v2723 = vld [vmem:[#allocation2 + $0x30] sm:$0xff]
        %2725 = vrot.lane.b32.xlu0 %v2723, 104
        %v2726 = vpop.permute.xlu0 %2725
        %2728 = vst.msk [vmem:[#allocation5 + $0x20] sm:$0xff] %vm1235, %v2726
        %v2729 = vld [vmem:[#allocation2 + $0x38] sm:$0xff]
        %2731 = vrot.lane.b32.xlu0 %v2729, 108
        %v2732 = vpop.permute.xlu0 %2731
        %2734 = vst.msk [vmem:[#allocation5 + $0x20] sm:$0xff] %vm1242, %v2732
        %v2735 = vld [vmem:[#allocation2] sm:$0xff]
        %2737 = vrot.lane.b32.xlu0 %v2735, 76
        %v2738 = vpop.permute.xlu0 %2737
        %2740 = vst.msk [vmem:[#allocation5 + $0x28] sm:$0xff] %vm1193, %v2738
        %v2741 = vld [vmem:[#allocation2 + $0x8] sm:$0xff]
        %2743 = vrot.lane.b32.xlu0 %v2741, 80
        %v2744 = vpop.permute.xlu0 %2743
        %2746 = vst.msk [vmem:[#allocation5 + $0x28] sm:$0xff] %vm1200, %v2744
        %v2747 = vld [vmem:[#allocation2 + $0x10] sm:$0xff]
        %2749 = vrot.lane.b32.xlu0 %v2747, 84
        %v2750 = vpop.permute.xlu0 %2749
        %2752 = vst.msk [vmem:[#allocation5 + $0x28] sm:$0xff] %vm1207, %v2750
        %v2753 = vld [vmem:[#allocation2 + $0x18] sm:$0xff]
        %2755 = vrot.lane.b32.xlu0 %v2753, 88
        %v2756 = vpop.permute.xlu0 %2755
        %2758 = vst.msk [vmem:[#allocation5 + $0x28] sm:$0xff] %vm1214, %v2756
        %v2759 = vld [vmem:[#allocation2 + $0x20] sm:$0xff]
        %2761 = vrot.lane.b32.xlu0 %v2759, 92
        %v2762 = vpop.permute.xlu0 %2761
        %2764 = vst.msk [vmem:[#allocation5 + $0x28] sm:$0xff] %vm1221, %v2762
        %v2765 = vld [vmem:[#allocation2 + $0x28] sm:$0xff]
        %2767 = vrot.lane.b32.xlu0 %v2765, 96
        %v2768 = vpop.permute.xlu0 %2767
        %2770 = vst.msk [vmem:[#allocation5 + $0x28] sm:$0xff] %vm1228, %v2768
        %v2771 = vld [vmem:[#allocation2 + $0x30] sm:$0xff]
        %2773 = vrot.lane.b32.xlu0 %v2771, 100
        %v2774 = vpop.permute.xlu0 %2773
        %2776 = vst.msk [vmem:[#allocation5 + $0x28] sm:$0xff] %vm1235, %v2774
        %v2777 = vld [vmem:[#allocation2 + $0x38] sm:$0xff]
        %2779 = vrot.lane.b32.xlu0 %v2777, 104
        %v2780 = vpop.permute.xlu0 %2779
        %2782 = vst.msk [vmem:[#allocation5 + $0x28] sm:$0xff] %vm1242, %v2780
        %v2783 = vld [vmem:[#allocation2] sm:$0xff]
        %2785 = vrot.lane.b32.xlu0 %v2783, 72
        %v2786 = vpop.permute.xlu0 %2785
        %2788 = vst.msk [vmem:[#allocation5 + $0x30] sm:$0xff] %vm1193, %v2786
        %v2789 = vld [vmem:[#allocation2 + $0x8] sm:$0xff]
        %2791 = vrot.lane.b32.xlu0 %v2789, 76
        %v2792 = vpop.permute.xlu0 %2791
        %2794 = vst.msk [vmem:[#allocation5 + $0x30] sm:$0xff] %vm1200, %v2792
        %v2795 = vld [vmem:[#allocation2 + $0x10] sm:$0xff]
        %2797 = vrot.lane.b32.xlu0 %v2795, 80
        %v2798 = vpop.permute.xlu0 %2797
        %2800 = vst.msk [vmem:[#allocation5 + $0x30] sm:$0xff] %vm1207, %v2798
        %v2801 = vld [vmem:[#allocation2 + $0x18] sm:$0xff]
        %2803 = vrot.lane.b32.xlu0 %v2801, 84
        %v2804 = vpop.permute.xlu0 %2803
        %2806 = vst.msk [vmem:[#allocation5 + $0x30] sm:$0xff] %vm1214, %v2804
        %v2807 = vld [vmem:[#allocation2 + $0x20] sm:$0xff]
        %2809 = vrot.lane.b32.xlu0 %v2807, 88
        %v2810 = vpop.permute.xlu0 %2809
        %2812 = vst.msk [vmem:[#allocation5 + $0x30] sm:$0xff] %vm1221, %v2810
        %v2813 = vld [vmem:[#allocation2 + $0x28] sm:$0xff]
        %2815 = vrot.lane.b32.xlu0 %v2813, 92
        %v2816 = vpop.permute.xlu0 %2815
        %2818 = vst.msk [vmem:[#allocation5 + $0x30] sm:$0xff] %vm1228, %v2816
        %v2819 = vld [vmem:[#allocation2 + $0x30] sm:$0xff]
        %2821 = vrot.lane.b32.xlu0 %v2819, 96
        %v2822 = vpop.permute.xlu0 %2821
        %2824 = vst.msk [vmem:[#allocation5 + $0x30] sm:$0xff] %vm1235, %v2822
        %v2825 = vld [vmem:[#allocation2 + $0x38] sm:$0xff]
        %2827 = vrot.lane.b32.xlu0 %v2825, 100
        %v2828 = vpop.permute.xlu0 %2827
        %2830 = vst.msk [vmem:[#allocation5 + $0x30] sm:$0xff] %vm1242, %v2828
        %v2831 = vld [vmem:[#allocation2] sm:$0xff]
        %2833 = vrot.lane.b32.xlu0 %v2831, 68
        %v2834 = vpop.permute.xlu0 %2833
        %2836 = vst.msk [vmem:[#allocation5 + $0x38] sm:$0xff] %vm1193, %v2834
        %v2837 = vld [vmem:[#allocation2 + $0x8] sm:$0xff]
        %2839 = vrot.lane.b32.xlu0 %v2837, 72
        %v2840 = vpop.permute.xlu0 %2839
        %2842 = vst.msk [vmem:[#allocation5 + $0x38] sm:$0xff] %vm1200, %v2840
        %v2843 = vld [vmem:[#allocation2 + $0x10] sm:$0xff]
        %2845 = vrot.lane.b32.xlu0 %v2843, 76
        %v2846 = vpop.permute.xlu0 %2845
        %2848 = vst.msk [vmem:[#allocation5 + $0x38] sm:$0xff] %vm1207, %v2846
        %v2849 = vld [vmem:[#allocation2 + $0x18] sm:$0xff]
        %2851 = vrot.lane.b32.xlu0 %v2849, 80
        %v2852 = vpop.permute.xlu0 %2851
        %2854 = vst.msk [vmem:[#allocation5 + $0x38] sm:$0xff] %vm1214, %v2852
        %v2855 = vld [vmem:[#allocation2 + $0x20] sm:$0xff]
        %2857 = vrot.lane.b32.xlu0 %v2855, 84
        %v2858 = vpop.permute.xlu0 %2857
        %2860 = vst.msk [vmem:[#allocation5 + $0x38] sm:$0xff] %vm1221, %v2858
        %v2861 = vld [vmem:[#allocation2 + $0x28] sm:$0xff]
        %2863 = vrot.lane.b32.xlu0 %v2861, 88
        %v2864 = vpop.permute.xlu0 %2863
        %2866 = vst.msk [vmem:[#allocation5 + $0x38] sm:$0xff] %vm1228, %v2864
        %v2867 = vld [vmem:[#allocation2 + $0x30] sm:$0xff]
        %2869 = vrot.lane.b32.xlu0 %v2867, 92
        %v2870 = vpop.permute.xlu0 %2869
        %2872 = vst.msk [vmem:[#allocation5 + $0x38] sm:$0xff] %vm1235, %v2870
        %v2873 = vld [vmem:[#allocation2 + $0x38] sm:$0xff]
        %2875 = vrot.lane.b32.xlu0 %v2873, 96
        %v2876 = vpop.permute.xlu0 %2875
        %2878 = vst.msk [vmem:[#allocation5 + $0x38] sm:$0xff] %vm1242, %v2876
        %v2879 = vld [vmem:[%s2] sm:$0xff]
        %v2880 = vld [vmem:[%s2 + $0x8] sm:$0xff]
        %v2881 = vld [vmem:[%s2 + $0x10] sm:$0xff]
        %v2882 = vld [vmem:[%s2 + $0x18] sm:$0xff]
        %v2883 = vld [vmem:[%s2 + $0x20] sm:$0xff]
        %v2884 = vld [vmem:[%s2 + $0x28] sm:$0xff]
        %v2885 = vld [vmem:[%s2 + $0x30] sm:$0xff]
        %v2886 = vld [vmem:[%s2 + $0x38] sm:$0xff]
        %v2887 = vld [vmem:[#allocation5] sm:$0xff]
        %v2888 = vld [vmem:[#allocation5 + $0x8] sm:$0xff]
        %v2889 = vld [vmem:[#allocation5 + $0x10] sm:$0xff]
        %v2890 = vld [vmem:[#allocation5 + $0x18] sm:$0xff]
        %v2891 = vld [vmem:[#allocation5 + $0x20] sm:$0xff]
        %v2892 = vld [vmem:[#allocation5 + $0x28] sm:$0xff]
        %v2893 = vld [vmem:[#allocation5 + $0x30] sm:$0xff]
        %v2894 = vld [vmem:[#allocation5 + $0x38] sm:$0xff]
        %v2896 = vsel %vm320, %v2879, 0
        %v2899 = vsel %vm320, %v2880, 0
        %v2902 = vsel %vm320, %v2881, 0
        %v2905 = vsel %vm320, %v2882, 0
        %v2908 = vsel %vm320, %v2883, 0
        %v2911 = vsel %vm320, %v2884, 0
        %v2914 = vsel %vm320, %v2885, 0
        %v2917 = vsel %vm320, %v2886, 0
        %2919 = vmatprep.subr.mxu0 0.0
        %v2920 = vand.u32 %v2887, 4294901760
        %2921 = vmatpush1.msra.mxu0 %v2920
        %2922 = vmatprep.subr.mxu0 0.0
        %v2923 = vand.u32 %v2888, 4294901760
        %2924 = vmatpush1.msra.mxu0 %v2923
        %2925 = vmatprep.subr.mxu0 0.0
        %v2926 = vand.u32 %v2889, 4294901760
        %2927 = vmatpush1.msra.mxu0 %v2926
        %2928 = vmatprep.subr.mxu0 0.0
        %v2929 = vand.u32 %v2890, 4294901760
        %2930 = vmatpush1.msra.mxu0 %v2929
        %2931 = vmatprep.subr.mxu0 0.0
        %v2932 = vand.u32 %v2891, 4294901760
        %2933 = vmatpush1.msra.mxu0 %v2932
        %2934 = vmatprep.subr.mxu0 0.0
        %v2935 = vand.u32 %v2892, 4294901760
        %2936 = vmatpush1.msra.mxu0 %v2935
        %2937 = vmatprep.subr.mxu0 0.0
        %v2938 = vand.u32 %v2893, 4294901760
        %2939 = vmatpush1.msra.mxu0 %v2938
        %2940 = vmatprep.subr.mxu0 0.0
        %v2941 = vand.u32 %v2894, 4294901760
        %2942 = vmatpush1.msra.mxu0 %v2941
        %2943 = vmatprep.subr.mxu0 0.0
        %2944 = vmatpush1.msra.mxu0 0.0
        %2945 = vmatprep.subr.mxu0 0.0
        %2946 = vmatpush1.msra.mxu0 0.0
        %2947 = vmatprep.subr.mxu0 0.0
        %2948 = vmatpush1.msra.mxu0 0.0
        %2949 = vmatprep.subr.mxu0 0.0
        %2950 = vmatpush1.msra.mxu0 0.0
        %2951 = vmatprep.subr.mxu0 0.0
        %2952 = vmatpush1.msra.mxu0 0.0
        %2953 = vmatprep.subr.mxu0 0.0
        %2954 = vmatpush1.msra.mxu0 0.0
        %2955 = vmatprep.subr.mxu0 0.0
        %2956 = vmatpush1.msra.mxu0 0.0
        %2957 = vmatprep.subr.mxu0 0.0
        %2958 = vmatpush1.msra.mxu0 0.0
        %2959 = vmatprep.subr.mxu0 0.0
        %2960 = vmatpush1.msra.mxu0 0.0
        %2961 = vmatprep.subr.mxu0 0.0
        %2962 = vmatpush1.msra.mxu0 0.0
        %2963 = vmatprep.subr.mxu0 0.0
        %2964 = vmatpush1.msra.mxu0 0.0
        %2965 = vmatprep.subr.mxu0 0.0
        %2966 = vmatpush1.msra.mxu0 0.0
        %2967 = vmatprep.subr.mxu0 0.0
        %2968 = vmatpush1.msra.mxu0 0.0
        %2969 = vmatprep.subr.mxu0 0.0
        %2970 = vmatpush1.msra.mxu0 0.0
        %2971 = vmatprep.subr.mxu0 0.0
        %2972 = vmatpush1.msra.mxu0 0.0
        %2973 = vmatprep.subr.mxu0 0.0
        %2974 = vmatpush1.msra.mxu0 0.0
        %2975 = vmatprep.subr.mxu0 0.0
        %2976 = vmatpush1.msra.mxu0 0.0
        %2977 = vmatprep.subr.mxu0 0.0
        %2978 = vmatpush1.msra.mxu0 0.0
        %2979 = vmatprep.subr.mxu0 0.0
        %2980 = vmatpush1.msra.mxu0 0.0
        %2981 = vmatprep.subr.mxu0 0.0
        %2982 = vmatpush1.msra.mxu0 0.0
        %2983 = vmatprep.subr.mxu0 0.0
        %2984 = vmatpush1.msra.mxu0 0.0
        %2985 = vmatprep.subr.mxu0 0.0
        %2986 = vmatpush1.msra.mxu0 0.0
        %2987 = vmatprep.subr.mxu0 0.0
        %2988 = vmatpush1.msra.mxu0 0.0
        %2989 = vmatprep.subr.mxu0 0.0
        %2990 = vmatpush1.msra.mxu0 0.0
        %2991 = vmatprep.mubr.f32.mxu0 0.0
        %v2992 = vand.u32 %v2896, 4294901760
        %v2993 = vsub.f32 %v2896, %v2992
        %v2994 = vand.u32 %v2993, 4294901760
        %v2995 = vsub.f32 %v2993, %v2994
        %v2996 = vand.u32 %v2995, 4294901760
        %2997 = vmatmul.mubr.f32.gmra.mrb[0].mxu0 %v2996
        %v2998 = vpop.f32.mrb[0].mxu0
        %v2999 = vadd.f32 0.0, %v2998
        %v3000 = vpop.f32.mrb[0].mxu0
        %3001 = vmatprep.mubr.f32.mxu0 0.0
        %v3002 = vand.u32 %v2899, 4294901760
        %v3003 = vsub.f32 %v2899, %v3002
        %v3004 = vand.u32 %v3003, 4294901760
        %v3005 = vsub.f32 %v3003, %v3004
        %v3006 = vand.u32 %v3005, 4294901760
        %3007 = vmatmul.mubr.f32.gmra.mrb[0].mxu0 %v3006
        %v3008 = vpop.f32.mrb[0].mxu0
        %v3009 = vadd.f32 0.0, %v3008
        %v3010 = vpop.f32.mrb[0].mxu0
        %3011 = vmatprep.mubr.f32.mxu0 0.0
        %v3012 = vand.u32 %v2902, 4294901760
        %v3013 = vsub.f32 %v2902, %v3012
        %v3014 = vand.u32 %v3013, 4294901760
        %v3015 = vsub.f32 %v3013, %v3014
        %v3016 = vand.u32 %v3015, 4294901760
        %3017 = vmatmul.mubr.f32.gmra.mrb[0].mxu0 %v3016
        %v3018 = vpop.f32.mrb[0].mxu0
        %v3019 = vadd.f32 0.0, %v3018
        %v3020 = vpop.f32.mrb[0].mxu0
        %3021 = vmatprep.mubr.f32.mxu0 0.0
        %v3022 = vand.u32 %v2905, 4294901760
        %v3023 = vsub.f32 %v2905, %v3022
        %v3024 = vand.u32 %v3023, 4294901760
        %v3025 = vsub.f32 %v3023, %v3024
        %v3026 = vand.u32 %v3025, 4294901760
        %3027 = vmatmul.mubr.f32.gmra.mrb[0].mxu0 %v3026
        %v3028 = vpop.f32.mrb[0].mxu0
        %v3029 = vadd.f32 0.0, %v3028
        %v3030 = vpop.f32.mrb[0].mxu0
        %3031 = vmatprep.mubr.f32.mxu0 0.0
        %v3032 = vand.u32 %v2908, 4294901760
        %v3033 = vsub.f32 %v2908, %v3032
        %v3034 = vand.u32 %v3033, 4294901760
        %v3035 = vsub.f32 %v3033, %v3034
        %v3036 = vand.u32 %v3035, 4294901760
        %3037 = vmatmul.mubr.f32.gmra.mrb[0].mxu0 %v3036
        %v3038 = vpop.f32.mrb[0].mxu0
        %v3039 = vadd.f32 0.0, %v3038
        %v3040 = vpop.f32.mrb[0].mxu0
        %3041 = vmatprep.mubr.f32.mxu0 0.0
        %v3042 = vand.u32 %v2911, 4294901760
        %v3043 = vsub.f32 %v2911, %v3042
        %v3044 = vand.u32 %v3043, 4294901760
        %v3045 = vsub.f32 %v3043, %v3044
        %v3046 = vand.u32 %v3045, 4294901760
        %3047 = vmatmul.mubr.f32.gmra.mrb[0].mxu0 %v3046
        %v3048 = vpop.f32.mrb[0].mxu0
        %v3049 = vadd.f32 0.0, %v3048
        %v3050 = vpop.f32.mrb[0].mxu0
        %3051 = vmatprep.mubr.f32.mxu0 0.0
        %v3052 = vand.u32 %v2914, 4294901760
        %v3053 = vsub.f32 %v2914, %v3052
        %v3054 = vand.u32 %v3053, 4294901760
        %v3055 = vsub.f32 %v3053, %v3054
        %v3056 = vand.u32 %v3055, 4294901760
        %3057 = vmatmul.mubr.f32.gmra.mrb[0].mxu0 %v3056
        %v3058 = vpop.f32.mrb[0].mxu0
        %v3059 = vadd.f32 0.0, %v3058
        %v3060 = vpop.f32.mrb[0].mxu0
        %3061 = vmatprep.mubr.f32.mxu0 0.0
        %v3062 = vand.u32 %v2917, 4294901760
        %v3063 = vsub.f32 %v2917, %v3062
        %v3064 = vand.u32 %v3063, 4294901760
        %v3065 = vsub.f32 %v3063, %v3064
        %v3066 = vand.u32 %v3065, 4294901760
        %3067 = vmatmul.mubr.f32.gmra.mrb[0].mxu0 %v3066
        %v3068 = vpop.f32.mrb[0].mxu0
        %v3069 = vadd.f32 0.0, %v3068
        %v3070 = vpop.f32.mrb[0].mxu0
        %3071 = vdwg.mxu0
        %3072 = vmatprep.subr.mxu0 0.0
        %v3073 = vand.u32 %v2887, 4294901760
        %v3074 = vsub.f32 %v2887, %v3073
        %v3075 = vand.u32 %v3074, 4294901760
        %v3076 = vsub.f32 %v3074, %v3075
        %v3077 = vand.u32 %v3076, 4294901760
        %3078 = vmatpush1.msra.mxu0 %v3077
        %3079 = vmatprep.subr.mxu0 0.0
        %v3080 = vand.u32 %v2888, 4294901760
        %v3081 = vsub.f32 %v2888, %v3080
        %v3082 = vand.u32 %v3081, 4294901760
        %v3083 = vsub.f32 %v3081, %v3082
        %v3084 = vand.u32 %v3083, 4294901760
        %3085 = vmatpush1.msra.mxu0 %v3084
        %3086 = vmatprep.subr.mxu0 0.0
        %v3087 = vand.u32 %v2889, 4294901760
        %v3088 = vsub.f32 %v2889, %v3087
        %v3089 = vand.u32 %v3088, 4294901760
        %v3090 = vsub.f32 %v3088, %v3089
        %v3091 = vand.u32 %v3090, 4294901760
        %3092 = vmatpush1.msra.mxu0 %v3091
        %3093 = vmatprep.subr.mxu0 0.0
        %v3094 = vand.u32 %v2890, 4294901760
        %v3095 = vsub.f32 %v2890, %v3094
        %v3096 = vand.u32 %v3095, 4294901760
        %v3097 = vsub.f32 %v3095, %v3096
        %v3098 = vand.u32 %v3097, 4294901760
        %3099 = vmatpush1.msra.mxu0 %v3098
        %3100 = vmatprep.subr.mxu0 0.0
        %v3101 = vand.u32 %v2891, 4294901760
        %v3102 = vsub.f32 %v2891, %v3101
        %v3103 = vand.u32 %v3102, 4294901760
        %v3104 = vsub.f32 %v3102, %v3103
        %v3105 = vand.u32 %v3104, 4294901760
        %3106 = vmatpush1.msra.mxu0 %v3105
        %3107 = vmatprep.subr.mxu0 0.0
        %v3108 = vand.u32 %v2892, 4294901760
        %v3109 = vsub.f32 %v2892, %v3108
        %v3110 = vand.u32 %v3109, 4294901760
        %v3111 = vsub.f32 %v3109, %v3110
        %v3112 = vand.u32 %v3111, 4294901760
        %3113 = vmatpush1.msra.mxu0 %v3112
        %3114 = vmatprep.subr.mxu0 0.0
        %v3115 = vand.u32 %v2893, 4294901760
        %v3116 = vsub.f32 %v2893, %v3115
        %v3117 = vand.u32 %v3116, 4294901760
        %v3118 = vsub.f32 %v3116, %v3117
        %v3119 = vand.u32 %v3118, 4294901760
        %3120 = vmatpush1.msra.mxu0 %v3119
        %3121 = vmatprep.subr.mxu0 0.0
        %v3122 = vand.u32 %v2894, 4294901760
        %v3123 = vsub.f32 %v2894, %v3122
        %v3124 = vand.u32 %v3123, 4294901760
        %v3125 = vsub.f32 %v3123, %v3124
        %v3126 = vand.u32 %v3125, 4294901760
        %3127 = vmatpush1.msra.mxu0 %v3126
        %3128 = vmatprep.subr.mxu0 0.0
        %3129 = vmatpush1.msra.mxu0 0.0
        %3130 = vmatprep.subr.mxu0 0.0
        %3131 = vmatpush1.msra.mxu0 0.0
        %3132 = vmatprep.subr.mxu0 0.0
        %3133 = vmatpush1.msra.mxu0 0.0
        %3134 = vmatprep.subr.mxu0 0.0
        %3135 = vmatpush1.msra.mxu0 0.0
        %3136 = vmatprep.subr.mxu0 0.0
        %3137 = vmatpush1.msra.mxu0 0.0
        %3138 = vmatprep.subr.mxu0 0.0
        %3139 = vmatpush1.msra.mxu0 0.0
        %3140 = vmatprep.subr.mxu0 0.0
        %3141 = vmatpush1.msra.mxu0 0.0
        %3142 = vmatprep.subr.mxu0 0.0
        %3143 = vmatpush1.msra.mxu0 0.0
        %3144 = vmatprep.subr.mxu0 0.0
        %3145 = vmatpush1.msra.mxu0 0.0
        %3146 = vmatprep.subr.mxu0 0.0
        %3147 = vmatpush1.msra.mxu0 0.0
        %3148 = vmatprep.subr.mxu0 0.0
        %3149 = vmatpush1.msra.mxu0 0.0
        %3150 = vmatprep.subr.mxu0 0.0
        %3151 = vmatpush1.msra.mxu0 0.0
        %3152 = vmatprep.subr.mxu0 0.0
        %3153 = vmatpush1.msra.mxu0 0.0
        %3154 = vmatprep.subr.mxu0 0.0
        %3155 = vmatpush1.msra.mxu0 0.0
        %3156 = vmatprep.subr.mxu0 0.0
        %3157 = vmatpush1.msra.mxu0 0.0
        %3158 = vmatprep.subr.mxu0 0.0
        %3159 = vmatpush1.msra.mxu0 0.0
        %3160 = vmatprep.subr.mxu0 0.0
        %3161 = vmatpush1.msra.mxu0 0.0
        %3162 = vmatprep.subr.mxu0 0.0
        %3163 = vmatpush1.msra.mxu0 0.0
        %3164 = vmatprep.subr.mxu0 0.0
        %3165 = vmatpush1.msra.mxu0 0.0
        %3166 = vmatprep.subr.mxu0 0.0
        %3167 = vmatpush1.msra.mxu0 0.0
        %3168 = vmatprep.subr.mxu0 0.0
        %3169 = vmatpush1.msra.mxu0 0.0
        %3170 = vmatprep.subr.mxu0 0.0
        %3171 = vmatpush1.msra.mxu0 0.0
        %3172 = vmatprep.subr.mxu0 0.0
        %3173 = vmatpush1.msra.mxu0 0.0
        %3174 = vmatprep.subr.mxu0 0.0
        %3175 = vmatpush1.msra.mxu0 0.0
        %3176 = vmatprep.mubr.f32.mxu0 0.0
        %v3177 = vand.u32 %v2896, 4294901760
        %3178 = vmatmul.mubr.f32.gmra.mrb[0].mxu0 %v3177
        %v3179 = vpop.f32.mrb[0].mxu0
        %v3180 = vadd.f32 %v2999, %v3179
        %v3181 = vpop.f32.mrb[0].mxu0
        %3182 = vmatprep.mubr.f32.mxu0 0.0
        %v3183 = vand.u32 %v2899, 4294901760
        %3184 = vmatmul.mubr.f32.gmra.mrb[0].mxu0 %v3183
        %v3185 = vpop.f32.mrb[0].mxu0
        %v3186 = vadd.f32 %v3009, %v3185
        %v3187 = vpop.f32.mrb[0].mxu0
        %3188 = vmatprep.mubr.f32.mxu0 0.0
        %v3189 = vand.u32 %v2902, 4294901760
        %3190 = vmatmul.mubr.f32.gmra.mrb[0].mxu0 %v3189
        %v3191 = vpop.f32.mrb[0].mxu0
        %v3192 = vadd.f32 %v3019, %v3191
        %v3193 = vpop.f32.mrb[0].mxu0
        %3194 = vmatprep.mubr.f32.mxu0 0.0
        %v3195 = vand.u32 %v2905, 4294901760
        %3196 = vmatmul.mubr.f32.gmra.mrb[0].mxu0 %v3195
        %v3197 = vpop.f32.mrb[0].mxu0
        %v3198 = vadd.f32 %v3029, %v3197
        %v3199 = vpop.f32.mrb[0].mxu0
        %3200 = vmatprep.mubr.f32.mxu0 0.0
        %v3201 = vand.u32 %v2908, 4294901760
        %3202 = vmatmul.mubr.f32.gmra.mrb[0].mxu0 %v3201
        %v3203 = vpop.f32.mrb[0].mxu0
        %v3204 = vadd.f32 %v3039, %v3203
        %v3205 = vpop.f32.mrb[0].mxu0
        %3206 = vmatprep.mubr.f32.mxu0 0.0
        %v3207 = vand.u32 %v2911, 4294901760
        %3208 = vmatmul.mubr.f32.gmra.mrb[0].mxu0 %v3207
        %v3209 = vpop.f32.mrb[0].mxu0
        %v3210 = vadd.f32 %v3049, %v3209
        %v3211 = vpop.f32.mrb[0].mxu0
        %3212 = vmatprep.mubr.f32.mxu0 0.0
        %v3213 = vand.u32 %v2914, 4294901760
        %3214 = vmatmul.mubr.f32.gmra.mrb[0].mxu0 %v3213
        %v3215 = vpop.f32.mrb[0].mxu0
        %v3216 = vadd.f32 %v3059, %v3215
        %v3217 = vpop.f32.mrb[0].mxu0
        %3218 = vmatprep.mubr.f32.mxu0 0.0
        %v3219 = vand.u32 %v2917, 4294901760
        %3220 = vmatmul.mubr.f32.gmra.mrb[0].mxu0 %v3219
        %v3221 = vpop.f32.mrb[0].mxu0
        %v3222 = vadd.f32 %v3069, %v3221
        %v3223 = vpop.f32.mrb[0].mxu0
        %3224 = vdwg.mxu0
        %3225 = vmatprep.subr.mxu0 0.0
        %v3226 = vand.u32 %v2887, 4294901760
        %v3227 = vsub.f32 %v2887, %v3226
        %3228 = vmatpush1.msra.mxu0 %v3227
        %3229 = vmatprep.subr.mxu0 0.0
        %v3230 = vand.u32 %v2888, 4294901760
        %v3231 = vsub.f32 %v2888, %v3230
        %3232 = vmatpush1.msra.mxu0 %v3231
        %3233 = vmatprep.subr.mxu0 0.0
        %v3234 = vand.u32 %v2889, 4294901760
        %v3235 = vsub.f32 %v2889, %v3234
        %3236 = vmatpush1.msra.mxu0 %v3235
        %3237 = vmatprep.subr.mxu0 0.0
        %v3238 = vand.u32 %v2890, 4294901760
        %v3239 = vsub.f32 %v2890, %v3238
        %3240 = vmatpush1.msra.mxu0 %v3239
        %3241 = vmatprep.subr.mxu0 0.0
        %v3242 = vand.u32 %v2891, 4294901760
        %v3243 = vsub.f32 %v2891, %v3242
        %3244 = vmatpush1.msra.mxu0 %v3243
        %3245 = vmatprep.subr.mxu0 0.0
        %v3246 = vand.u32 %v2892, 4294901760
        %v3247 = vsub.f32 %v2892, %v3246
        %3248 = vmatpush1.msra.mxu0 %v3247
        %3249 = vmatprep.subr.mxu0 0.0
        %v3250 = vand.u32 %v2893, 4294901760
        %v3251 = vsub.f32 %v2893, %v3250
        %3252 = vmatpush1.msra.mxu0 %v3251
        %3253 = vmatprep.subr.mxu0 0.0
        %v3254 = vand.u32 %v2894, 4294901760
        %v3255 = vsub.f32 %v2894, %v3254
        %3256 = vmatpush1.msra.mxu0 %v3255
        %3257 = vmatprep.subr.mxu0 0.0
        %3258 = vmatpush1.msra.mxu0 0.0
        %3259 = vmatprep.subr.mxu0 0.0
        %3260 = vmatpush1.msra.mxu0 0.0
        %3261 = vmatprep.subr.mxu0 0.0
        %3262 = vmatpush1.msra.mxu0 0.0
        %3263 = vmatprep.subr.mxu0 0.0
        %3264 = vmatpush1.msra.mxu0 0.0
        %3265 = vmatprep.subr.mxu0 0.0
        %3266 = vmatpush1.msra.mxu0 0.0
        %3267 = vmatprep.subr.mxu0 0.0
        %3268 = vmatpush1.msra.mxu0 0.0
        %3269 = vmatprep.subr.mxu0 0.0
        %3270 = vmatpush1.msra.mxu0 0.0
        %3271 = vmatprep.subr.mxu0 0.0
        %3272 = vmatpush1.msra.mxu0 0.0
        %3273 = vmatprep.subr.mxu0 0.0
        %3274 = vmatpush1.msra.mxu0 0.0
        %3275 = vmatprep.subr.mxu0 0.0
        %3276 = vmatpush1.msra.mxu0 0.0
        %3277 = vmatprep.subr.mxu0 0.0
        %3278 = vmatpush1.msra.mxu0 0.0
        %3279 = vmatprep.subr.mxu0 0.0
        %3280 = vmatpush1.msra.mxu0 0.0
        %3281 = vmatprep.subr.mxu0 0.0
        %3282 = vmatpush1.msra.mxu0 0.0
        %3283 = vmatprep.subr.mxu0 0.0
        %3284 = vmatpush1.msra.mxu0 0.0
        %3285 = vmatprep.subr.mxu0 0.0
        %3286 = vmatpush1.msra.mxu0 0.0
        %3287 = vmatprep.subr.mxu0 0.0
        %3288 = vmatpush1.msra.mxu0 0.0
        %3289 = vmatprep.subr.mxu0 0.0
        %3290 = vmatpush1.msra.mxu0 0.0
        %3291 = vmatprep.subr.mxu0 0.0
        %3292 = vmatpush1.msra.mxu0 0.0
        %3293 = vmatprep.subr.mxu0 0.0
        %3294 = vmatpush1.msra.mxu0 0.0
        %3295 = vmatprep.subr.mxu0 0.0
        %3296 = vmatpush1.msra.mxu0 0.0
        %3297 = vmatprep.subr.mxu0 0.0
        %3298 = vmatpush1.msra.mxu0 0.0
        %3299 = vmatprep.subr.mxu0 0.0
        %3300 = vmatpush1.msra.mxu0 0.0
        %3301 = vmatprep.subr.mxu0 0.0
        %3302 = vmatpush1.msra.mxu0 0.0
        %3303 = vmatprep.subr.mxu0 0.0
        %3304 = vmatpush1.msra.mxu0 0.0
        %3305 = vmatprep.mubr.f32.mxu0 0.0
        %v3306 = vand.u32 %v2896, 4294901760
        %v3307 = vsub.f32 %v2896, %v3306
        %3308 = vmatmul.mubr.f32.gmra.mrb[0].mxu0 %v3307
        %v3309 = vpop.f32.mrb[0].mxu0
        %v3310 = vadd.f32 %v3180, %v3309
        %v3311 = vpop.f32.mrb[0].mxu0
        %3312 = vmatprep.mubr.f32.mxu0 0.0
        %v3313 = vand.u32 %v2899, 4294901760
        %v3314 = vsub.f32 %v2899, %v3313
        %3315 = vmatmul.mubr.f32.gmra.mrb[0].mxu0 %v3314
        %v3316 = vpop.f32.mrb[0].mxu0
        %v3317 = vadd.f32 %v3186, %v3316
        %v3318 = vpop.f32.mrb[0].mxu0
        %3319 = vmatprep.mubr.f32.mxu0 0.0
        %v3320 = vand.u32 %v2902, 4294901760
        %v3321 = vsub.f32 %v2902, %v3320
        %3322 = vmatmul.mubr.f32.gmra.mrb[0].mxu0 %v3321
        %v3323 = vpop.f32.mrb[0].mxu0
        %v3324 = vadd.f32 %v3192, %v3323
        %v3325 = vpop.f32.mrb[0].mxu0
        %3326 = vmatprep.mubr.f32.mxu0 0.0
        %v3327 = vand.u32 %v2905, 4294901760
        %v3328 = vsub.f32 %v2905, %v3327
        %3329 = vmatmul.mubr.f32.gmra.mrb[0].mxu0 %v3328
        %v3330 = vpop.f32.mrb[0].mxu0
        %v3331 = vadd.f32 %v3198, %v3330
        %v3332 = vpop.f32.mrb[0].mxu0
        %3333 = vmatprep.mubr.f32.mxu0 0.0
        %v3334 = vand.u32 %v2908, 4294901760
        %v3335 = vsub.f32 %v2908, %v3334
        %3336 = vmatmul.mubr.f32.gmra.mrb[0].mxu0 %v3335
        %v3337 = vpop.f32.mrb[0].mxu0
        %v3338 = vadd.f32 %v3204, %v3337
        %v3339 = vpop.f32.mrb[0].mxu0
        %3340 = vmatprep.mubr.f32.mxu0 0.0
        %v3341 = vand.u32 %v2911, 4294901760
        %v3342 = vsub.f32 %v2911, %v3341
        %3343 = vmatmul.mubr.f32.gmra.mrb[0].mxu0 %v3342
        %v3344 = vpop.f32.mrb[0].mxu0
        %v3345 = vadd.f32 %v3210, %v3344
        %v3346 = vpop.f32.mrb[0].mxu0
        %3347 = vmatprep.mubr.f32.mxu0 0.0
        %v3348 = vand.u32 %v2914, 4294901760
        %v3349 = vsub.f32 %v2914, %v3348
        %3350 = vmatmul.mubr.f32.gmra.mrb[0].mxu0 %v3349
        %v3351 = vpop.f32.mrb[0].mxu0
        %v3352 = vadd.f32 %v3216, %v3351
        %v3353 = vpop.f32.mrb[0].mxu0
        %3354 = vmatprep.mubr.f32.mxu0 0.0
        %v3355 = vand.u32 %v2917, 4294901760
        %v3356 = vsub.f32 %v2917, %v3355
        %3357 = vmatmul.mubr.f32.gmra.mrb[0].mxu0 %v3356
        %v3358 = vpop.f32.mrb[0].mxu0
        %v3359 = vadd.f32 %v3222, %v3358
        %v3360 = vpop.f32.mrb[0].mxu0
        %3361 = vdwg.mxu0
        %3362 = vmatprep.subr.mxu0 0.0
        %v3363 = vand.u32 %v2887, 4294901760
        %3364 = vmatpush1.msra.mxu0 %v3363
        %3365 = vmatprep.subr.mxu0 0.0
        %v3366 = vand.u32 %v2888, 4294901760
        %3367 = vmatpush1.msra.mxu0 %v3366
        %3368 = vmatprep.subr.mxu0 0.0
        %v3369 = vand.u32 %v2889, 4294901760
        %3370 = vmatpush1.msra.mxu0 %v3369
        %3371 = vmatprep.subr.mxu0 0.0
        %v3372 = vand.u32 %v2890, 4294901760
        %3373 = vmatpush1.msra.mxu0 %v3372
        %3374 = vmatprep.subr.mxu0 0.0
        %v3375 = vand.u32 %v2891, 4294901760
        %3376 = vmatpush1.msra.mxu0 %v3375
        %3377 = vmatprep.subr.mxu0 0.0
        %v3378 = vand.u32 %v2892, 4294901760
        %3379 = vmatpush1.msra.mxu0 %v3378
        %3380 = vmatprep.subr.mxu0 0.0
        %v3381 = vand.u32 %v2893, 4294901760
        %3382 = vmatpush1.msra.mxu0 %v3381
        %3383 = vmatprep.subr.mxu0 0.0
        %v3384 = vand.u32 %v2894, 4294901760
        %3385 = vmatpush1.msra.mxu0 %v3384
        %3386 = vmatprep.subr.mxu0 0.0
        %3387 = vmatpush1.msra.mxu0 0.0
        %3388 = vmatprep.subr.mxu0 0.0
        %3389 = vmatpush1.msra.mxu0 0.0
        %3390 = vmatprep.subr.mxu0 0.0
        %3391 = vmatpush1.msra.mxu0 0.0
        %3392 = vmatprep.subr.mxu0 0.0
        %3393 = vmatpush1.msra.mxu0 0.0
        %3394 = vmatprep.subr.mxu0 0.0
        %3395 = vmatpush1.msra.mxu0 0.0
        %3396 = vmatprep.subr.mxu0 0.0
        %3397 = vmatpush1.msra.mxu0 0.0
        %3398 = vmatprep.subr.mxu0 0.0
        %3399 = vmatpush1.msra.mxu0 0.0
        %3400 = vmatprep.subr.mxu0 0.0
        %3401 = vmatpush1.msra.mxu0 0.0
        %3402 = vmatprep.subr.mxu0 0.0
        %3403 = vmatpush1.msra.mxu0 0.0
        %3404 = vmatprep.subr.mxu0 0.0
        %3405 = vmatpush1.msra.mxu0 0.0
        %3406 = vmatprep.subr.mxu0 0.0
        %3407 = vmatpush1.msra.mxu0 0.0
        %3408 = vmatprep.subr.mxu0 0.0
        %3409 = vmatpush1.msra.mxu0 0.0
        %3410 = vmatprep.subr.mxu0 0.0
        %3411 = vmatpush1.msra.mxu0 0.0
        %3412 = vmatprep.subr.mxu0 0.0
        %3413 = vmatpush1.msra.mxu0 0.0
        %3414 = vmatprep.subr.mxu0 0.0
        %3415 = vmatpush1.msra.mxu0 0.0
        %3416 = vmatprep.subr.mxu0 0.0
        %3417 = vmatpush1.msra.mxu0 0.0
        %3418 = vmatprep.subr.mxu0 0.0
        %3419 = vmatpush1.msra.mxu0 0.0
        %3420 = vmatprep.subr.mxu0 0.0
        %3421 = vmatpush1.msra.mxu0 0.0
        %3422 = vmatprep.subr.mxu0 0.0
        %3423 = vmatpush1.msra.mxu0 0.0
        %3424 = vmatprep.subr.mxu0 0.0
        %3425 = vmatpush1.msra.mxu0 0.0
        %3426 = vmatprep.subr.mxu0 0.0
        %3427 = vmatpush1.msra.mxu0 0.0
        %3428 = vmatprep.subr.mxu0 0.0
        %3429 = vmatpush1.msra.mxu0 0.0
        %3430 = vmatprep.subr.mxu0 0.0
        %3431 = vmatpush1.msra.mxu0 0.0
        %3432 = vmatprep.subr.mxu0 0.0
        %3433 = vmatpush1.msra.mxu0 0.0
        %3434 = vmatprep.mubr.f32.mxu0 0.0
        %v3435 = vand.u32 %v2896, 4294901760
        %v3436 = vsub.f32 %v2896, %v3435
        %v3437 = vand.u32 %v3436, 4294901760
        %3438 = vmatmul.mubr.f32.gmra.mrb[0].mxu0 %v3437
        %v3439 = vpop.f32.mrb[0].mxu0
        %v3440 = vadd.f32 %v3310, %v3439
        %v3441 = vpop.f32.mrb[0].mxu0
        %3442 = vmatprep.mubr.f32.mxu0 0.0
        %v3443 = vand.u32 %v2899, 4294901760
        %v3444 = vsub.f32 %v2899, %v3443
        %v3445 = vand.u32 %v3444, 4294901760
        %3446 = vmatmul.mubr.f32.gmra.mrb[0].mxu0 %v3445
        %v3447 = vpop.f32.mrb[0].mxu0
        %v3448 = vadd.f32 %v3317, %v3447
        %v3449 = vpop.f32.mrb[0].mxu0
        %3450 = vmatprep.mubr.f32.mxu0 0.0
        %v3451 = vand.u32 %v2902, 4294901760
        %v3452 = vsub.f32 %v2902, %v3451
        %v3453 = vand.u32 %v3452, 4294901760
        %3454 = vmatmul.mubr.f32.gmra.mrb[0].mxu0 %v3453
        %v3455 = vpop.f32.mrb[0].mxu0
        %v3456 = vadd.f32 %v3324, %v3455
        %v3457 = vpop.f32.mrb[0].mxu0
        %3458 = vmatprep.mubr.f32.mxu0 0.0
        %v3459 = vand.u32 %v2905, 4294901760
        %v3460 = vsub.f32 %v2905, %v3459
        %v3461 = vand.u32 %v3460, 4294901760
        %3462 = vmatmul.mubr.f32.gmra.mrb[0].mxu0 %v3461
        %v3463 = vpop.f32.mrb[0].mxu0
        %v3464 = vadd.f32 %v3331, %v3463
        %v3465 = vpop.f32.mrb[0].mxu0
        %3466 = vmatprep.mubr.f32.mxu0 0.0
        %v3467 = vand.u32 %v2908, 4294901760
        %v3468 = vsub.f32 %v2908, %v3467
        %v3469 = vand.u32 %v3468, 4294901760
        %3470 = vmatmul.mubr.f32.gmra.mrb[0].mxu0 %v3469
        %v3471 = vpop.f32.mrb[0].mxu0
        %v3472 = vadd.f32 %v3338, %v3471
        %v3473 = vpop.f32.mrb[0].mxu0
        %3474 = vmatprep.mubr.f32.mxu0 0.0
        %v3475 = vand.u32 %v2911, 4294901760
        %v3476 = vsub.f32 %v2911, %v3475
        %v3477 = vand.u32 %v3476, 4294901760
        %3478 = vmatmul.mubr.f32.gmra.mrb[0].mxu0 %v3477
        %v3479 = vpop.f32.mrb[0].mxu0
        %v3480 = vadd.f32 %v3345, %v3479
        %v3481 = vpop.f32.mrb[0].mxu0
        %3482 = vmatprep.mubr.f32.mxu0 0.0
        %v3483 = vand.u32 %v2914, 4294901760
        %v3484 = vsub.f32 %v2914, %v3483
        %v3485 = vand.u32 %v3484, 4294901760
        %3486 = vmatmul.mubr.f32.gmra.mrb[0].mxu0 %v3485
        %v3487 = vpop.f32.mrb[0].mxu0
        %v3488 = vadd.f32 %v3352, %v3487
        %v3489 = vpop.f32.mrb[0].mxu0
        %3490 = vmatprep.mubr.f32.mxu0 0.0
        %v3491 = vand.u32 %v2917, 4294901760
        %v3492 = vsub.f32 %v2917, %v3491
        %v3493 = vand.u32 %v3492, 4294901760
        %3494 = vmatmul.mubr.f32.gmra.mrb[0].mxu0 %v3493
        %v3495 = vpop.f32.mrb[0].mxu0
        %v3496 = vadd.f32 %v3359, %v3495
        %v3497 = vpop.f32.mrb[0].mxu0
        %3498 = vdwg.mxu0
        %3499 = vmatprep.subr.mxu0 0.0
        %v3500 = vand.u32 %v2887, 4294901760
        %v3501 = vsub.f32 %v2887, %v3500
        %v3502 = vand.u32 %v3501, 4294901760
        %3503 = vmatpush1.msra.mxu0 %v3502
        %3504 = vmatprep.subr.mxu0 0.0
        %v3505 = vand.u32 %v2888, 4294901760
        %v3506 = vsub.f32 %v2888, %v3505
        %v3507 = vand.u32 %v3506, 4294901760
        %3508 = vmatpush1.msra.mxu0 %v3507
        %3509 = vmatprep.subr.mxu0 0.0
        %v3510 = vand.u32 %v2889, 4294901760
        %v3511 = vsub.f32 %v2889, %v3510
        %v3512 = vand.u32 %v3511, 4294901760
        %3513 = vmatpush1.msra.mxu0 %v3512
        %3514 = vmatprep.subr.mxu0 0.0
        %v3515 = vand.u32 %v2890, 4294901760
        %v3516 = vsub.f32 %v2890, %v3515
        %v3517 = vand.u32 %v3516, 4294901760
        %3518 = vmatpush1.msra.mxu0 %v3517
        %3519 = vmatprep.subr.mxu0 0.0
        %v3520 = vand.u32 %v2891, 4294901760
        %v3521 = vsub.f32 %v2891, %v3520
        %v3522 = vand.u32 %v3521, 4294901760
        %3523 = vmatpush1.msra.mxu0 %v3522
        %3524 = vmatprep.subr.mxu0 0.0
        %v3525 = vand.u32 %v2892, 4294901760
        %v3526 = vsub.f32 %v2892, %v3525
        %v3527 = vand.u32 %v3526, 4294901760
        %3528 = vmatpush1.msra.mxu0 %v3527
        %3529 = vmatprep.subr.mxu0 0.0
        %v3530 = vand.u32 %v2893, 4294901760
        %v3531 = vsub.f32 %v2893, %v3530
        %v3532 = vand.u32 %v3531, 4294901760
        %3533 = vmatpush1.msra.mxu0 %v3532
        %3534 = vmatprep.subr.mxu0 0.0
        %v3535 = vand.u32 %v2894, 4294901760
        %v3536 = vsub.f32 %v2894, %v3535
        %v3537 = vand.u32 %v3536, 4294901760
        %3538 = vmatpush1.msra.mxu0 %v3537
        %3539 = vmatprep.subr.mxu0 0.0
        %3540 = vmatpush1.msra.mxu0 0.0
        %3541 = vmatprep.subr.mxu0 0.0
        %3542 = vmatpush1.msra.mxu0 0.0
        %3543 = vmatprep.subr.mxu0 0.0
        %3544 = vmatpush1.msra.mxu0 0.0
        %3545 = vmatprep.subr.mxu0 0.0
        %3546 = vmatpush1.msra.mxu0 0.0
        %3547 = vmatprep.subr.mxu0 0.0
        %3548 = vmatpush1.msra.mxu0 0.0
        %3549 = vmatprep.subr.mxu0 0.0
        %3550 = vmatpush1.msra.mxu0 0.0
        %3551 = vmatprep.subr.mxu0 0.0
        %3552 = vmatpush1.msra.mxu0 0.0
        %3553 = vmatprep.subr.mxu0 0.0
        %3554 = vmatpush1.msra.mxu0 0.0
        %3555 = vmatprep.subr.mxu0 0.0
        %3556 = vmatpush1.msra.mxu0 0.0
        %3557 = vmatprep.subr.mxu0 0.0
        %3558 = vmatpush1.msra.mxu0 0.0
        %3559 = vmatprep.subr.mxu0 0.0
        %3560 = vmatpush1.msra.mxu0 0.0
        %3561 = vmatprep.subr.mxu0 0.0
        %3562 = vmatpush1.msra.mxu0 0.0
        %3563 = vmatprep.subr.mxu0 0.0
        %3564 = vmatpush1.msra.mxu0 0.0
        %3565 = vmatprep.subr.mxu0 0.0
        %3566 = vmatpush1.msra.mxu0 0.0
        %3567 = vmatprep.subr.mxu0 0.0
        %3568 = vmatpush1.msra.mxu0 0.0
        %3569 = vmatprep.subr.mxu0 0.0
        %3570 = vmatpush1.msra.mxu0 0.0
        %3571 = vmatprep.subr.mxu0 0.0
        %3572 = vmatpush1.msra.mxu0 0.0
        %3573 = vmatprep.subr.mxu0 0.0
        %3574 = vmatpush1.msra.mxu0 0.0
        %3575 = vmatprep.subr.mxu0 0.0
        %3576 = vmatpush1.msra.mxu0 0.0
        %3577 = vmatprep.subr.mxu0 0.0
        %3578 = vmatpush1.msra.mxu0 0.0
        %3579 = vmatprep.subr.mxu0 0.0
        %3580 = vmatpush1.msra.mxu0 0.0
        %3581 = vmatprep.subr.mxu0 0.0
        %3582 = vmatpush1.msra.mxu0 0.0
        %3583 = vmatprep.subr.mxu0 0.0
        %3584 = vmatpush1.msra.mxu0 0.0
        %3585 = vmatprep.subr.mxu0 0.0
        %3586 = vmatpush1.msra.mxu0 0.0
        %3587 = vmatprep.mubr.f32.mxu0 0.0
        %v3588 = vand.u32 %v2896, 4294901760
        %3589 = vmatmul.mubr.f32.gmra.mrb[0].mxu0 %v3588
        %v3590 = vpop.f32.mrb[0].mxu0
        %v3591 = vadd.f32 %v3440, %v3590
        %v3592 = vpop.f32.mrb[0].mxu0
        %3593 = vmatprep.mubr.f32.mxu0 0.0
        %v3594 = vand.u32 %v2899, 4294901760
        %3595 = vmatmul.mubr.f32.gmra.mrb[0].mxu0 %v3594
        %v3596 = vpop.f32.mrb[0].mxu0
        %v3597 = vadd.f32 %v3448, %v3596
        %v3598 = vpop.f32.mrb[0].mxu0
        %3599 = vmatprep.mubr.f32.mxu0 0.0
        %v3600 = vand.u32 %v2902, 4294901760
        %3601 = vmatmul.mubr.f32.gmra.mrb[0].mxu0 %v3600
        %v3602 = vpop.f32.mrb[0].mxu0
        %v3603 = vadd.f32 %v3456, %v3602
        %v3604 = vpop.f32.mrb[0].mxu0
        %3605 = vmatprep.mubr.f32.mxu0 0.0
        %v3606 = vand.u32 %v2905, 4294901760
        %3607 = vmatmul.mubr.f32.gmra.mrb[0].mxu0 %v3606
        %v3608 = vpop.f32.mrb[0].mxu0
        %v3609 = vadd.f32 %v3464, %v3608
        %v3610 = vpop.f32.mrb[0].mxu0
        %3611 = vmatprep.mubr.f32.mxu0 0.0
        %v3612 = vand.u32 %v2908, 4294901760
        %3613 = vmatmul.mubr.f32.gmra.mrb[0].mxu0 %v3612
        %v3614 = vpop.f32.mrb[0].mxu0
        %v3615 = vadd.f32 %v3472, %v3614
        %v3616 = vpop.f32.mrb[0].mxu0
        %3617 = vmatprep.mubr.f32.mxu0 0.0
        %v3618 = vand.u32 %v2911, 4294901760
        %3619 = vmatmul.mubr.f32.gmra.mrb[0].mxu0 %v3618
        %v3620 = vpop.f32.mrb[0].mxu0
        %v3621 = vadd.f32 %v3480, %v3620
        %v3622 = vpop.f32.mrb[0].mxu0
        %3623 = vmatprep.mubr.f32.mxu0 0.0
        %v3624 = vand.u32 %v2914, 4294901760
        %3625 = vmatmul.mubr.f32.gmra.mrb[0].mxu0 %v3624
        %v3626 = vpop.f32.mrb[0].mxu0
        %v3627 = vadd.f32 %v3488, %v3626
        %v3628 = vpop.f32.mrb[0].mxu0
        %3629 = vmatprep.mubr.f32.mxu0 0.0
        %v3630 = vand.u32 %v2917, 4294901760
        %3631 = vmatmul.mubr.f32.gmra.mrb[0].mxu0 %v3630
        %v3632 = vpop.f32.mrb[0].mxu0
        %v3633 = vadd.f32 %v3496, %v3632
        %v3634 = vpop.f32.mrb[0].mxu0
        %3635 = vdwg.mxu0
        %3636 = vmatprep.subr.mxu0 0.0
        %v3637 = vand.u32 %v2887, 4294901760
        %3638 = vmatpush1.msra.mxu0 %v3637
        %3639 = vmatprep.subr.mxu0 0.0
        %v3640 = vand.u32 %v2888, 4294901760
        %3641 = vmatpush1.msra.mxu0 %v3640
        %3642 = vmatprep.subr.mxu0 0.0
        %v3643 = vand.u32 %v2889, 4294901760
        %3644 = vmatpush1.msra.mxu0 %v3643
        %3645 = vmatprep.subr.mxu0 0.0
        %v3646 = vand.u32 %v2890, 4294901760
        %3647 = vmatpush1.msra.mxu0 %v3646
        %3648 = vmatprep.subr.mxu0 0.0
        %v3649 = vand.u32 %v2891, 4294901760
        %3650 = vmatpush1.msra.mxu0 %v3649
        %3651 = vmatprep.subr.mxu0 0.0
        %v3652 = vand.u32 %v2892, 4294901760
        %3653 = vmatpush1.msra.mxu0 %v3652
        %3654 = vmatprep.subr.mxu0 0.0
        %v3655 = vand.u32 %v2893, 4294901760
        %3656 = vmatpush1.msra.mxu0 %v3655
        %3657 = vmatprep.subr.mxu0 0.0
        %v3658 = vand.u32 %v2894, 4294901760
        %3659 = vmatpush1.msra.mxu0 %v3658
        %3660 = vmatprep.subr.mxu0 0.0
        %3661 = vmatpush1.msra.mxu0 0.0
        %3662 = vmatprep.subr.mxu0 0.0
        %3663 = vmatpush1.msra.mxu0 0.0
        %3664 = vmatprep.subr.mxu0 0.0
        %3665 = vmatpush1.msra.mxu0 0.0
        %3666 = vmatprep.subr.mxu0 0.0
        %3667 = vmatpush1.msra.mxu0 0.0
        %3668 = vmatprep.subr.mxu0 0.0
        %3669 = vmatpush1.msra.mxu0 0.0
        %3670 = vmatprep.subr.mxu0 0.0
        %3671 = vmatpush1.msra.mxu0 0.0
        %3672 = vmatprep.subr.mxu0 0.0
        %3673 = vmatpush1.msra.mxu0 0.0
        %3674 = vmatprep.subr.mxu0 0.0
        %3675 = vmatpush1.msra.mxu0 0.0
        %3676 = vmatprep.subr.mxu0 0.0
        %3677 = vmatpush1.msra.mxu0 0.0
        %3678 = vmatprep.subr.mxu0 0.0
        %3679 = vmatpush1.msra.mxu0 0.0
        %3680 = vmatprep.subr.mxu0 0.0
        %3681 = vmatpush1.msra.mxu0 0.0
        %3682 = vmatprep.subr.mxu0 0.0
        %3683 = vmatpush1.msra.mxu0 0.0
        %3684 = vmatprep.subr.mxu0 0.0
        %3685 = vmatpush1.msra.mxu0 0.0
        %3686 = vmatprep.subr.mxu0 0.0
        %3687 = vmatpush1.msra.mxu0 0.0
        %3688 = vmatprep.subr.mxu0 0.0
        %3689 = vmatpush1.msra.mxu0 0.0
        %3690 = vmatprep.subr.mxu0 0.0
        %3691 = vmatpush1.msra.mxu0 0.0
        %3692 = vmatprep.subr.mxu0 0.0
        %3693 = vmatpush1.msra.mxu0 0.0
        %3694 = vmatprep.subr.mxu0 0.0
        %3695 = vmatpush1.msra.mxu0 0.0
        %3696 = vmatprep.subr.mxu0 0.0
        %3697 = vmatpush1.msra.mxu0 0.0
        %3698 = vmatprep.subr.mxu0 0.0
        %3699 = vmatpush1.msra.mxu0 0.0
        %3700 = vmatprep.subr.mxu0 0.0
        %3701 = vmatpush1.msra.mxu0 0.0
        %3702 = vmatprep.subr.mxu0 0.0
        %3703 = vmatpush1.msra.mxu0 0.0
        %3704 = vmatprep.subr.mxu0 0.0
        %3705 = vmatpush1.msra.mxu0 0.0
        %3706 = vmatprep.subr.mxu0 0.0
        %3707 = vmatpush1.msra.mxu0 0.0
        %3708 = vmatprep.mubr.f32.mxu0 0.0
        %v3709 = vand.u32 %v2896, 4294901760
        %3710 = vmatmul.mubr.f32.gmra.mrb[0].mxu0 %v3709
        %v3711 = vpop.f32.mrb[0].mxu0
        %v3712 = vadd.f32 %v3591, %v3711
        %v3713 = vpop.f32.mrb[0].mxu0
        %3714 = vmatprep.mubr.f32.mxu0 0.0
        %v3715 = vand.u32 %v2899, 4294901760
        %3716 = vmatmul.mubr.f32.gmra.mrb[0].mxu0 %v3715
        %v3717 = vpop.f32.mrb[0].mxu0
        %v3718 = vadd.f32 %v3597, %v3717
        %v3719 = vpop.f32.mrb[0].mxu0
        %3720 = vmatprep.mubr.f32.mxu0 0.0
        %v3721 = vand.u32 %v2902, 4294901760
        %3722 = vmatmul.mubr.f32.gmra.mrb[0].mxu0 %v3721
        %v3723 = vpop.f32.mrb[0].mxu0
        %v3724 = vadd.f32 %v3603, %v3723
        %v3725 = vpop.f32.mrb[0].mxu0
        %3726 = vmatprep.mubr.f32.mxu0 0.0
        %v3727 = vand.u32 %v2905, 4294901760
        %3728 = vmatmul.mubr.f32.gmra.mrb[0].mxu0 %v3727
        %v3729 = vpop.f32.mrb[0].mxu0
        %v3730 = vadd.f32 %v3609, %v3729
        %v3731 = vpop.f32.mrb[0].mxu0
        %3732 = vmatprep.mubr.f32.mxu0 0.0
        %v3733 = vand.u32 %v2908, 4294901760
        %3734 = vmatmul.mubr.f32.gmra.mrb[0].mxu0 %v3733
        %v3735 = vpop.f32.mrb[0].mxu0
        %v3736 = vadd.f32 %v3615, %v3735
        %v3737 = vpop.f32.mrb[0].mxu0
        %3738 = vmatprep.mubr.f32.mxu0 0.0
        %v3739 = vand.u32 %v2911, 4294901760
        %3740 = vmatmul.mubr.f32.gmra.mrb[0].mxu0 %v3739
        %v3741 = vpop.f32.mrb[0].mxu0
        %v3742 = vadd.f32 %v3621, %v3741
        %v3743 = vpop.f32.mrb[0].mxu0
        %3744 = vmatprep.mubr.f32.mxu0 0.0
        %v3745 = vand.u32 %v2914, 4294901760
        %3746 = vmatmul.mubr.f32.gmra.mrb[0].mxu0 %v3745
        %v3747 = vpop.f32.mrb[0].mxu0
        %v3748 = vadd.f32 %v3627, %v3747
        %v3749 = vpop.f32.mrb[0].mxu0
        %3750 = vmatprep.mubr.f32.mxu0 0.0
        %v3751 = vand.u32 %v2917, 4294901760
        %3752 = vmatmul.mubr.f32.gmra.mrb[0].mxu0 %v3751
        %v3753 = vpop.f32.mrb[0].mxu0
        %v3754 = vadd.f32 %v3633, %v3753
        %v3755 = vpop.f32.mrb[0].mxu0
        %3756 = vdwg.mxu0
        %3765 = vrot.lane.b32.xlu0 %v3712, 32
        %v3766 = vpop.permute.xlu0 %3765
        %3767 = vrot.lane.b32.xlu0 %v3718, 32
        %v3768 = vpop.permute.xlu0 %3767
        %3769 = vrot.lane.b32.xlu0 %v3724, 32
        %v3770 = vpop.permute.xlu0 %3769
        %3771 = vrot.lane.b32.xlu0 %v3730, 32
        %v3772 = vpop.permute.xlu0 %3771
        %3773 = vrot.lane.b32.xlu0 %v3736, 32
        %v3774 = vpop.permute.xlu0 %3773
        %3775 = vrot.lane.b32.xlu0 %v3742, 32
        %v3776 = vpop.permute.xlu0 %3775
        %3777 = vrot.lane.b32.xlu0 %v3748, 32
        %v3778 = vpop.permute.xlu0 %3777
        %3779 = vrot.lane.b32.xlu0 %v3754, 32
        %v3780 = vpop.permute.xlu0 %3779
        %vm3789 = vcmask 523520
        %3790 = vst.msk [vmem:[#allocation3] sm:$0xff] %vm3789, %v3766
        %3791 = vst.msk [vmem:[#allocation3 + $0x8] sm:$0xff] %vm3789, %v3768
        %3792 = vst.msk [vmem:[#allocation3 + $0x10] sm:$0xff] %vm3789, %v3770
        %3793 = vst.msk [vmem:[#allocation3 + $0x18] sm:$0xff] %vm3789, %v3772
        %3794 = vst.msk [vmem:[#allocation3 + $0x20] sm:$0xff] %vm3789, %v3774
        %3795 = vst.msk [vmem:[#allocation3 + $0x28] sm:$0xff] %vm3789, %v3776
        %3796 = vst.msk [vmem:[#allocation3 + $0x30] sm:$0xff] %vm3789, %v3778
        %3797 = vst.msk [vmem:[#allocation3 + $0x38] sm:$0xff] %vm3789, %v3780
        %v3798 = vld [vmem:[#allocation2] sm:$0xff]
        %v3799 = vld [vmem:[#allocation2 + $0x8] sm:$0xff]
        %v3800 = vld [vmem:[#allocation2 + $0x10] sm:$0xff]
        %v3801 = vld [vmem:[#allocation2 + $0x18] sm:$0xff]
        %v3802 = vld [vmem:[#allocation2 + $0x20] sm:$0xff]
        %v3803 = vld [vmem:[#allocation2 + $0x28] sm:$0xff]
        %v3804 = vld [vmem:[#allocation2 + $0x30] sm:$0xff]
        %v3805 = vld [vmem:[#allocation2 + $0x38] sm:$0xff]
        %3806 = vst.msk [vmem:[#allocation3] sm:$0xff] %vm1976, %v3798
        %3807 = vst.msk [vmem:[#allocation3 + $0x8] sm:$0xff] %vm1976, %v3799
        %3808 = vst.msk [vmem:[#allocation3 + $0x10] sm:$0xff] %vm1976, %v3800
        %3809 = vst.msk [vmem:[#allocation3 + $0x18] sm:$0xff] %vm1976, %v3801
        %3810 = vst.msk [vmem:[#allocation3 + $0x20] sm:$0xff] %vm1976, %v3802
        %3811 = vst.msk [vmem:[#allocation3 + $0x28] sm:$0xff] %vm1976, %v3803
        %3812 = vst.msk [vmem:[#allocation3 + $0x30] sm:$0xff] %vm1976, %v3804
        %3813 = vst.msk [vmem:[#allocation3 + $0x38] sm:$0xff] %vm1976, %v3805
        %v3814 = vld [vmem:[#allocation3] sm:$0xff]
        %v3815 = vld [vmem:[#allocation3 + $0x8] sm:$0xff]
        %v3816 = vld [vmem:[#allocation3 + $0x10] sm:$0xff]
        %v3817 = vld [vmem:[#allocation3 + $0x18] sm:$0xff]
        %v3818 = vld [vmem:[#allocation3 + $0x20] sm:$0xff]
        %v3819 = vld [vmem:[#allocation3 + $0x28] sm:$0xff]
        %v3820 = vld [vmem:[#allocation3 + $0x30] sm:$0xff]
        %v3821 = vld [vmem:[#allocation3 + $0x38] sm:$0xff]
        %v3822 = vld [vmem:[%s4] sm:$0xff]
        %v3823 = vld [vmem:[%s4 + $0x8] sm:$0xff]
        %v3824 = vld [vmem:[%s4 + $0x10] sm:$0xff]
        %v3825 = vld [vmem:[%s4 + $0x18] sm:$0xff]
        %v3826 = vld [vmem:[%s4 + $0x20] sm:$0xff]
        %v3827 = vld [vmem:[%s4 + $0x28] sm:$0xff]
        %v3828 = vld [vmem:[%s4 + $0x30] sm:$0xff]
        %v3829 = vld [vmem:[%s4 + $0x38] sm:$0xff]
        %v3830 = vld [vmem:[%s4 + $0x40] sm:$0xff]
        %v3831 = vld [vmem:[%s4 + $0x48] sm:$0xff]
        %v3832 = vld [vmem:[%s4 + $0x50] sm:$0xff]
        %v3833 = vld [vmem:[%s4 + $0x58] sm:$0xff]
        %v3834 = vld [vmem:[%s5] sm:$0x1]
        %v3836 = vlaneseq
        %v3837 = vshrl.u32 %v3836, 7
        %v3838 = vsub.s32 0, %v3837
        %v3839 = vrot.slane %v3834, %v3838
        %v3842 = vsel %vm2005, %v3814, 0
        %v3845 = vsel %vm2005, %v3815, 0
        %v3848 = vsel %vm2005, %v3816, 0
        %v3851 = vsel %vm2005, %v3817, 0
        %v3854 = vsel %vm2005, %v3818, 0
        %v3857 = vsel %vm2005, %v3819, 0
        %v3860 = vsel %vm2005, %v3820, 0
        %v3863 = vsel %vm2005, %v3821, 0
        %3865 = vmatprep.subr.mxu0 0.0
        %3866 = vmatpush1.msra.mxu0 %v3822
        %3867 = vmatprep.subr.mxu0 0.0
        %3868 = vmatpush1.msra.mxu0 %v3823
        %3869 = vmatprep.subr.mxu0 0.0
        %3870 = vmatpush1.msra.mxu0 %v3824
        %3871 = vmatprep.subr.mxu0 0.0
        %3872 = vmatpush1.msra.mxu0 %v3825
        %3873 = vmatprep.subr.mxu0 0.0
        %3874 = vmatpush1.msra.mxu0 %v3826
        %3875 = vmatprep.subr.mxu0 0.0
        %3876 = vmatpush1.msra.mxu0 %v3827
        %3877 = vmatprep.subr.mxu0 0.0
        %3878 = vmatpush1.msra.mxu0 %v3828
        %3879 = vmatprep.subr.mxu0 0.0
        %3880 = vmatpush1.msra.mxu0 %v3829
        %3881 = vmatprep.subr.mxu0 0.0
        %3882 = vmatpush1.msra.mxu0 %v3830
        %3883 = vmatprep.subr.mxu0 0.0
        %3884 = vmatpush1.msra.mxu0 %v3831
        %3885 = vmatprep.subr.mxu0 0.0
        %3886 = vmatpush1.msra.mxu0 %v3832
        %3887 = vmatprep.subr.mxu0 0.0
        %3888 = vmatpush1.msra.mxu0 %v3833
        %3889 = vmatprep.subr.mxu0 0.0
        %3890 = vmatpush1.msra.mxu0 0.0
        %3891 = vmatprep.subr.mxu0 0.0
        %3892 = vmatpush1.msra.mxu0 0.0
        %3893 = vmatprep.subr.mxu0 0.0
        %3894 = vmatpush1.msra.mxu0 0.0
        %3895 = vmatprep.subr.mxu0 0.0
        %3896 = vmatpush1.msra.mxu0 0.0
        %3897 = vmatprep.subr.mxu0 0.0
        %3898 = vmatpush1.msra.mxu0 0.0
        %3899 = vmatprep.subr.mxu0 0.0
        %3900 = vmatpush1.msra.mxu0 0.0
        %3901 = vmatprep.subr.mxu0 0.0
        %3902 = vmatpush1.msra.mxu0 0.0
        %3903 = vmatprep.subr.mxu0 0.0
        %3904 = vmatpush1.msra.mxu0 0.0
        %3905 = vmatprep.subr.mxu0 0.0
        %3906 = vmatpush1.msra.mxu0 0.0
        %3907 = vmatprep.subr.mxu0 0.0
        %3908 = vmatpush1.msra.mxu0 0.0
        %3909 = vmatprep.subr.mxu0 0.0
        %3910 = vmatpush1.msra.mxu0 0.0
        %3911 = vmatprep.subr.mxu0 0.0
        %3912 = vmatpush1.msra.mxu0 0.0
        %3913 = vmatprep.subr.mxu0 0.0
        %3914 = vmatpush1.msra.mxu0 0.0
        %3915 = vmatprep.subr.mxu0 0.0
        %3916 = vmatpush1.msra.mxu0 0.0
        %3917 = vmatprep.subr.mxu0 0.0
        %3918 = vmatpush1.msra.mxu0 0.0
        %3919 = vmatprep.subr.mxu0 0.0
        %3920 = vmatpush1.msra.mxu0 0.0
        %3921 = vmatprep.subr.mxu0 0.0
        %3922 = vmatpush1.msra.mxu0 0.0
        %3923 = vmatprep.subr.mxu0 0.0
        %3924 = vmatpush1.msra.mxu0 0.0
        %3925 = vmatprep.subr.mxu0 0.0
        %3926 = vmatpush1.msra.mxu0 0.0
        %3927 = vmatprep.subr.mxu0 0.0
        %3928 = vmatpush1.msra.mxu0 0.0
        %3929 = vmatprep.mubr.f32.mxu0 0.0
        %3930 = vmatmul.mubr.f32.gmra.mrb[0].mxu0 %v3842
        %v3931 = vpop.f32.mrb[0].mxu0
        %v3932 = vadd.f32 %v3839, %v3931
        %v3933 = vpop.f32.mrb[0].mxu0
        %3934 = vmatprep.mubr.f32.mxu0 0.0
        %3935 = vmatmul.mubr.f32.gmra.mrb[0].mxu0 %v3845
        %v3936 = vpop.f32.mrb[0].mxu0
        %v3937 = vadd.f32 %v3839, %v3936
        %v3938 = vpop.f32.mrb[0].mxu0
        %3939 = vmatprep.mubr.f32.mxu0 0.0
        %3940 = vmatmul.mubr.f32.gmra.mrb[0].mxu0 %v3848
        %v3941 = vpop.f32.mrb[0].mxu0
        %v3942 = vadd.f32 %v3839, %v3941
        %v3943 = vpop.f32.mrb[0].mxu0
        %3944 = vmatprep.mubr.f32.mxu0 0.0
        %3945 = vmatmul.mubr.f32.gmra.mrb[0].mxu0 %v3851
        %v3946 = vpop.f32.mrb[0].mxu0
        %v3947 = vadd.f32 %v3839, %v3946
        %v3948 = vpop.f32.mrb[0].mxu0
        %3949 = vmatprep.mubr.f32.mxu0 0.0
        %3950 = vmatmul.mubr.f32.gmra.mrb[0].mxu0 %v3854
        %v3951 = vpop.f32.mrb[0].mxu0
        %v3952 = vadd.f32 %v3839, %v3951
        %v3953 = vpop.f32.mrb[0].mxu0
        %3954 = vmatprep.mubr.f32.mxu0 0.0
        %3955 = vmatmul.mubr.f32.gmra.mrb[0].mxu0 %v3857
        %v3956 = vpop.f32.mrb[0].mxu0
        %v3957 = vadd.f32 %v3839, %v3956
        %v3958 = vpop.f32.mrb[0].mxu0
        %3959 = vmatprep.mubr.f32.mxu0 0.0
        %3960 = vmatmul.mubr.f32.gmra.mrb[0].mxu0 %v3860
        %v3961 = vpop.f32.mrb[0].mxu0
        %v3962 = vadd.f32 %v3839, %v3961
        %v3963 = vpop.f32.mrb[0].mxu0
        %3964 = vmatprep.mubr.f32.mxu0 0.0
        %3965 = vmatmul.mubr.f32.gmra.mrb[0].mxu0 %v3863
        %v3966 = vpop.f32.mrb[0].mxu0
        %v3967 = vadd.f32 %v3839, %v3966
        %v3968 = vpop.f32.mrb[0].mxu0
        %3969 = vdwg.mxu0
        %v3970 = vld [vmem:[%s6] sm:$0xff]
        %v3971 = vld [vmem:[%s6 + $0x8] sm:$0xff]
        %v3972 = vld [vmem:[%s6 + $0x10] sm:$0xff]
        %v3973 = vld [vmem:[%s6 + $0x18] sm:$0xff]
        %v3974 = vld [vmem:[%s7] sm:$0x1]
        %v3976 = vlaneseq
        %v3977 = vshrl.u32 %v3976, 7
        %v3978 = vsub.s32 0, %v3977
        %v3979 = vrot.slane %v3974, %v3978
        %v3982 = vsel %vm1183, %v3932, 0
        %v3985 = vsel %vm1183, %v3937, 0
        %v3988 = vsel %vm1183, %v3942, 0
        %v3991 = vsel %vm1183, %v3947, 0
        %v3994 = vsel %vm1183, %v3952, 0
        %v3997 = vsel %vm1183, %v3957, 0
        %v4000 = vsel %vm1183, %v3962, 0
        %v4003 = vsel %vm1183, %v3967, 0
        %4005 = vmatprep.subr.mxu0 0.0
        %4006 = vmatpush1.msra.mxu0 %v3970
        %4007 = vmatprep.subr.mxu0 0.0
        %4008 = vmatpush1.msra.mxu0 %v3971
        %4009 = vmatprep.subr.mxu0 0.0
        %4010 = vmatpush1.msra.mxu0 %v3972
        %4011 = vmatprep.subr.mxu0 0.0
        %4012 = vmatpush1.msra.mxu0 %v3973
        %4013 = vmatprep.subr.mxu0 0.0
        %4014 = vmatpush1.msra.mxu0 0.0
        %4015 = vmatprep.subr.mxu0 0.0
        %4016 = vmatpush1.msra.mxu0 0.0
        %4017 = vmatprep.subr.mxu0 0.0
        %4018 = vmatpush1.msra.mxu0 0.0
        %4019 = vmatprep.subr.mxu0 0.0
        %4020 = vmatpush1.msra.mxu0 0.0
        %4021 = vmatprep.subr.mxu0 0.0
        %4022 = vmatpush1.msra.mxu0 0.0
        %4023 = vmatprep.subr.mxu0 0.0
        %4024 = vmatpush1.msra.mxu0 0.0
        %4025 = vmatprep.subr.mxu0 0.0
        %4026 = vmatpush1.msra.mxu0 0.0
        %4027 = vmatprep.subr.mxu0 0.0
        %4028 = vmatpush1.msra.mxu0 0.0
        %4029 = vmatprep.subr.mxu0 0.0
        %4030 = vmatpush1.msra.mxu0 0.0
        %4031 = vmatprep.subr.mxu0 0.0
        %4032 = vmatpush1.msra.mxu0 0.0
        %4033 = vmatprep.subr.mxu0 0.0
        %4034 = vmatpush1.msra.mxu0 0.0
        %4035 = vmatprep.subr.mxu0 0.0
        %4036 = vmatpush1.msra.mxu0 0.0
        %4037 = vmatprep.subr.mxu0 0.0
        %4038 = vmatpush1.msra.mxu0 0.0
        %4039 = vmatprep.subr.mxu0 0.0
        %4040 = vmatpush1.msra.mxu0 0.0
        %4041 = vmatprep.subr.mxu0 0.0
        %4042 = vmatpush1.msra.mxu0 0.0
        %4043 = vmatprep.subr.mxu0 0.0
        %4044 = vmatpush1.msra.mxu0 0.0
        %4045 = vmatprep.subr.mxu0 0.0
        %4046 = vmatpush1.msra.mxu0 0.0
        %4047 = vmatprep.subr.mxu0 0.0
        %4048 = vmatpush1.msra.mxu0 0.0
        %4049 = vmatprep.subr.mxu0 0.0
        %4050 = vmatpush1.msra.mxu0 0.0
        %4051 = vmatprep.subr.mxu0 0.0
        %4052 = vmatpush1.msra.mxu0 0.0
        %4053 = vmatprep.subr.mxu0 0.0
        %4054 = vmatpush1.msra.mxu0 0.0
        %4055 = vmatprep.subr.mxu0 0.0
        %4056 = vmatpush1.msra.mxu0 0.0
        %4057 = vmatprep.subr.mxu0 0.0
        %4058 = vmatpush1.msra.mxu0 0.0
        %4059 = vmatprep.subr.mxu0 0.0
        %4060 = vmatpush1.msra.mxu0 0.0
        %4061 = vmatprep.subr.mxu0 0.0
        %4062 = vmatpush1.msra.mxu0 0.0
        %4063 = vmatprep.subr.mxu0 0.0
        %4064 = vmatpush1.msra.mxu0 0.0
        %4065 = vmatprep.subr.mxu0 0.0
        %4066 = vmatpush1.msra.mxu0 0.0
        %4067 = vmatprep.subr.mxu0 0.0
        %4068 = vmatpush1.msra.mxu0 0.0
        %4069 = vmatprep.mubr.f32.mxu0 0.0
        %4070 = vmatmul.mubr.f32.gmra.mrb[0].mxu0 %v3982
        %v4071 = vpop.f32.mrb[0].mxu0
        %v4072 = vadd.f32 %v3979, %v4071
        %v4073 = vpop.f32.mrb[0].mxu0
        %4074 = vmatprep.mubr.f32.mxu0 0.0
        %4075 = vmatmul.mubr.f32.gmra.mrb[0].mxu0 %v3985
        %v4076 = vpop.f32.mrb[0].mxu0
        %v4077 = vadd.f32 %v3979, %v4076
        %v4078 = vpop.f32.mrb[0].mxu0
        %4079 = vmatprep.mubr.f32.mxu0 0.0
        %4080 = vmatmul.mubr.f32.gmra.mrb[0].mxu0 %v3988
        %v4081 = vpop.f32.mrb[0].mxu0
        %v4082 = vadd.f32 %v3979, %v4081
        %v4083 = vpop.f32.mrb[0].mxu0
        %4084 = vmatprep.mubr.f32.mxu0 0.0
        %4085 = vmatmul.mubr.f32.gmra.mrb[0].mxu0 %v3991
        %v4086 = vpop.f32.mrb[0].mxu0
        %v4087 = vadd.f32 %v3979, %v4086
        %v4088 = vpop.f32.mrb[0].mxu0
        %4089 = vmatprep.mubr.f32.mxu0 0.0
        %4090 = vmatmul.mubr.f32.gmra.mrb[0].mxu0 %v3994
        %v4091 = vpop.f32.mrb[0].mxu0
        %v4092 = vadd.f32 %v3979, %v4091
        %v4093 = vpop.f32.mrb[0].mxu0
        %4094 = vmatprep.mubr.f32.mxu0 0.0
        %4095 = vmatmul.mubr.f32.gmra.mrb[0].mxu0 %v3997
        %v4096 = vpop.f32.mrb[0].mxu0
        %v4097 = vadd.f32 %v3979, %v4096
        %v4098 = vpop.f32.mrb[0].mxu0
        %4099 = vmatprep.mubr.f32.mxu0 0.0
        %4100 = vmatmul.mubr.f32.gmra.mrb[0].mxu0 %v4000
        %v4101 = vpop.f32.mrb[0].mxu0
        %v4102 = vadd.f32 %v3979, %v4101
        %v4103 = vpop.f32.mrb[0].mxu0
        %4104 = vmatprep.mubr.f32.mxu0 0.0
        %4105 = vmatmul.mubr.f32.gmra.mrb[0].mxu0 %v4003
        %v4106 = vpop.f32.mrb[0].mxu0
        %v4107 = vadd.f32 %v3979, %v4106
        %v4108 = vpop.f32.mrb[0].mxu0
        %4109 = vdwg.mxu0
        %4110 = vst.msk [vmem:[%s298] sm:$0xff] %vm1183, %v4072
        %4111 = vst.msk [vmem:[%s298 + $0x8] sm:$0xff] %vm1183, %v4077
        %4112 = vst.msk [vmem:[%s298 + $0x10] sm:$0xff] %vm1183, %v4082
        %4113 = vst.msk [vmem:[%s298 + $0x18] sm:$0xff] %vm1183, %v4087
        %4114 = vst.msk [vmem:[%s298 + $0x20] sm:$0xff] %vm1183, %v4092
        %4115 = vst.msk [vmem:[%s298 + $0x28] sm:$0xff] %vm1183, %v4097
        %4116 = vst.msk [vmem:[%s298 + $0x30] sm:$0xff] %vm1183, %v4102
        %4117 = vst.msk [vmem:[%s298 + $0x38] sm:$0xff] %vm1183, %v4107
        %s4118 = sand.u32 %s203, 1
        %s4119 = scalar_lea.sflag [#allocation7], %s4118
        %s4120 = sand.u32 %s203, 1
        %s4121 = smul.addr %s4120, 64
        %s4122 = scalar_lea.vmem [#allocation6], %s4121
        // Predicated region
        $region53: #{weighted_permute_mlp_forward.1} parent=51 // pred_check
          %p4123 = pneg %p213
        $region54: #{weighted_permute_mlp_forward.1} parent=51 // pred_check_branch
          %4125 = sbr.rel (%p4123) target = $region56
        $region55: #{weighted_permute_mlp_forward.1} parent=51 // pred_region
          %s4127 = ssub.s32 1024, 1024
          %4128 = vsyncadd %s4119, %s4127
          %s4129 = smul.addr %s22, 8
          %s4130 = smul.addr %s4129, 128
          %s4131 = scalar_lea.hbm %s8, %s4130
          %s4132 = sshll.u32 %s4122, 4
          %s4133 = int_to_ptr.vmem [resolvable:$true] %s4132
          %4138 = dma.vmem_to_hbm [thread:$0]  %s4133, 1024, %s4131, %s4119, 128, 128, 8
        $region56: #{weighted_permute_mlp_forward.1} parent=51 // pred_fallthru
          _
      $region52: #{weighted_permute_mlp_forward.1} parent=5 // pred_fallthru
        _
      %p4139 = scmp.le.s32.totalorder 2, %s17
      // Predicated region
      $region57: #{weighted_permute_mlp_forward.1} parent=5 // pred_check
        %p4140 = pneg %p4139
      $region58: #{weighted_permute_mlp_forward.1} parent=5 // pred_check_branch
        %4142 = sbr.rel (%p4140) target = $region60
      $region59: #{weighted_permute_mlp_forward.1} parent=5 // pred_region
        %s4143 = ssub.s32 %s17, 2
        // Predicated region
        $region61: #{weighted_permute_mlp_forward.1} parent=59 // pred_check
          %p4144 = pneg %p219
        $region62: #{weighted_permute_mlp_forward.1} parent=59 // pred_check_branch
          %4146 = sbr.rel (%p4144) target = $region64
        $region63: #{weighted_permute_mlp_forward.1} parent=59 // pred_region
          %s4147 = sand.u32 %s204, 1
          %s4148 = scalar_lea.sflag [#allocation7], %s4147
          %s4149 = sand.u32 %s204, 1
          %s4150 = smul.addr %s4149, 64
          %s4151 = scalar_lea.vmem [#allocation6], %s4150
          %4152 = dma.done %s4148, 1024
        $region64: #{weighted_permute_mlp_forward.1} parent=59 // pred_fallthru
          _
      $region60: #{weighted_permute_mlp_forward.1} parent=5 // pred_fallthru
        _
    $region6: #{weighted_permute_mlp_forward.1} parent=1 // loop_footer
      %s21 = sadd.s32 1, %s17
    $region7: #{weighted_permute_mlp_forward.1} parent=1 // loop_footer_branch
      %16 = sbr.rel target = $region3
    $region8: #{weighted_permute_mlp_forward.1} parent=1 // loop_exit
      _
    %4153 = vsyncpa [#allocation7], 1
    %s4154 = scalar_lea.sflag [#allocation7], 1
    %4155 = vsyncpa %s4154, 1

</llo_original>
